<compile_context>
chip_gen: v7x
topology: tpu7x:2x2x1
jax: 0.10.0
libtpu: 0.0.40
codegen_flags: <defaults>
</compile_context>

<pallas_src>
import functools

import jax
import jax.numpy as jnp
from jax.experimental import pallas as pl
from jax.experimental.pallas import tpu as pltpu


# ----------------------------- Pallas kernels -----------------------------

def _conv_pool_bn_relu_kernel(a_ref, w_ref, s_ref, b_ref, o_ref):
    """Stage 1: o = relu(max_g(A[g] @ W) * s + b).

    A[g] holds the conv patches of the g-th 2x2 pool candidate, so the max
    over g IS the 2x2 max-pool of the 5x5/s2 conv. s/b is layer1's folded bn1
    (pool -> bn -> relu matches the PyTorch op order)."""
    w = w_ref[...]
    m = jnp.dot(a_ref[0], w, preferred_element_type=jnp.float32)
    for g in range(1, 4):
        m = jnp.maximum(m, jnp.dot(a_ref[g], w,
                                   preferred_element_type=jnp.float32))
    o_ref[...] = jnp.maximum(m * s_ref[...] + b_ref[...], 0.0)


def _conv1_sc_kernel(a_ref, w1_ref, wsc_ref, s_ref, b_ref, t_ref, sc_ref, *,
                     c_off):
    """Residual-block conv1 with the 1x1 shortcut GEMM folded in.

      t  = relu((A @ W1) * s + b)           (bn2 folded into s/b)
      sc = A[:, c_off:c_off+128] @ Wsc_pad  (the (kh=1,kw=1) column slice of A
           is exactly the stride-s subsample of h, i.e. the shortcut's input;
           Wsc is zero-padded to 128 rows so the lane slice stays vreg-aligned
           and the extra columns contribute zero)."""
    a = a_ref[...]
    acc = jnp.dot(a, w1_ref[...], preferred_element_type=jnp.float32)
    t_ref[...] = jnp.maximum(acc * s_ref[...] + b_ref[...], 0.0)
    sc_ref[...] = jnp.dot(a[:, c_off:c_off + 128], wsc_ref[...],
                          preferred_element_type=jnp.float32)


def _conv2_res_kernel(a_ref, w_ref, r_ref, s_ref, b_ref, o_ref):
    """Residual-block conv2 + shortcut add + next bn1 / trailing ReLU:
       o = relu((A @ W2 + residual) * s + b)."""
    acc = jnp.dot(a_ref[...], w_ref[...], preferred_element_type=jnp.float32)
    o_ref[...] = jnp.maximum((acc + r_ref[...]) * s_ref[...] + b_ref[...], 0.0)


# ----------------------------- tiling helpers -----------------------------

def _choose_tm(m, max_steps=4, min_tm=128):
    """Largest row tile that divides m and yields at most `max_steps` grid
    steps. Keeps blocks big (per-step overhead dominates these small GEMMs)
    while giving the larger layers >=2 parallel steps so both v7x TensorCores
    get work and the A-tile DMA overlaps compute. Falls back to one full block
    for small m (grid == 1 is always correct). Resulting tiles are multiples
    of 16 whenever m is, which keeps bf16 sublane packing unmasked."""
    if m <= min_tm or m % 2:
        return m
    tm = m
    while tm % 2 == 0 and tm // 2 >= min_tm and m // (tm // 2) <= max_steps:
        tm //= 2
    return tm


def _vec2d(v):
    return v.reshape(1, -1).astype(jnp.float32)


def _pad_cast(a, w, kmult=128):
    """Zero-pad the contraction dim to a multiple of 128 (full MXU passes,
    unmasked lane loads) and cast both GEMM inputs to bf16 (native MXU dtype
    on v5e/v6e/v7x; halves A-tile DMA bytes). Accumulation stays f32."""
    k = a.shape[-1]
    kpad = (-k) % kmult
    if kpad:
        a = jnp.pad(a, [(0, 0)] * (a.ndim - 1) + [(0, kpad)])
        w = jnp.pad(w, ((0, kpad), (0, 0)))
    return a.astype(jnp.bfloat16), w.astype(jnp.bfloat16)


# ----------------------------- Pallas wrappers -----------------------------

def conv_pool_bn_relu(a, w, scale, bias, use_pallas=True):
    """a: (4, M, K) bf16 pool-grouped patches, w: (K, C) bf16 -> (M, C) f32."""
    _, m, k = a.shape
    c = w.shape[-1]
    if not use_pallas:
        o = jnp.dot(a[0], w, preferred_element_type=jnp.float32)
        for g in range(1, 4):
            o = jnp.maximum(o, jnp.dot(a[g], w,
                                       preferred_element_type=jnp.float32))
        return jnp.maximum(o * scale + bias, 0.0)
    tm = _choose_tm(m)
    vec = pl.BlockSpec((1, c), lambda i: (0, 0))
    return pl.pallas_call(
        _conv_pool_bn_relu_kernel,
        out_shape=jax.ShapeDtypeStruct((m, c), jnp.float32),
        grid=(m // tm,),
        in_specs=[pl.BlockSpec((4, tm, k), lambda i: (0, i, 0)),
                  pl.BlockSpec((k, c), lambda i: (0, 0)),
                  vec, vec],
        out_specs=pl.BlockSpec((tm, c), lambda i: (i, 0)),
        compiler_params=pltpu.CompilerParams(
            dimension_semantics=("parallel",)),
    )(a, w, scale, bias)


def conv1_with_shortcut(a, w1, wsc_pad, scale, bias, c_off, use_pallas=True):
    """Returns (t, sc): t = relu(bn2(A @ W1)), sc = shortcut GEMM output."""
    m, k = a.shape
    c = w1.shape[-1]
    if not use_pallas:
        acc = jnp.dot(a, w1, preferred_element_type=jnp.float32)
        t = jnp.maximum(acc * scale + bias, 0.0)
        sc = jnp.dot(a[:, c_off:c_off + 128], wsc_pad,
                     preferred_element_type=jnp.float32)
        return t, sc
    tm = _choose_tm(m)
    row = pl.BlockSpec((tm, k), lambda i: (i, 0))
    out = pl.BlockSpec((tm, c), lambda i: (i, 0))
    vec = pl.BlockSpec((1, c), lambda i: (0, 0))
    return pl.pallas_call(
        functools.partial(_conv1_sc_kernel, c_off=c_off),
        out_shape=(jax.ShapeDtypeStruct((m, c), jnp.float32),
                   jax.ShapeDtypeStruct((m, c), jnp.float32)),
        grid=(m // tm,),
        in_specs=[row,
                  pl.BlockSpec((k, c), lambda i: (0, 0)),
                  pl.BlockSpec((128, c), lambda i: (0, 0)),
                  vec, vec],
        out_specs=(out, out),
        compiler_params=pltpu.CompilerParams(
            dimension_semantics=("parallel",)),
    )(a, w1, wsc_pad, scale, bias)


def conv2_with_residual(a, w2, resid, scale, bias, use_pallas=True):
    """relu((A @ W2 + resid) * scale + bias) -> (M, C) f32."""
    m, k = a.shape
    c = w2.shape[-1]
    if not use_pallas:
        acc = jnp.dot(a, w2, preferred_element_type=jnp.float32)
        return jnp.maximum((acc + resid) * scale + bias, 0.0)
    tm = _choose_tm(m)
    out = pl.BlockSpec((tm, c), lambda i: (i, 0))
    vec = pl.BlockSpec((1, c), lambda i: (0, 0))
    return pl.pallas_call(
        _conv2_res_kernel,
        out_shape=jax.ShapeDtypeStruct((m, c), jnp.float32),
        grid=(m // tm,),
        in_specs=[pl.BlockSpec((tm, k), lambda i: (i, 0)),
                  pl.BlockSpec((k, c), lambda i: (0, 0)),
                  out, vec, vec],
        out_specs=out,
        compiler_params=pltpu.CompilerParams(
            dimension_semantics=("parallel",)),
    )(a, w2, resid, scale, bias)


# ------------------------------- NN helpers --------------------------------

def bn_fold(p, prefix, eps=1e-5):
    """Fold inference-mode BatchNorm into a per-channel scale/bias."""
    scale = p[prefix + "_gamma"] / jnp.sqrt(p[prefix + "_var"] + eps)
    return scale, p[prefix + "_beta"] - p[prefix + "_mean"] * scale


def _im2col(x, ksize, stride, pad):
    """Patch matrix for a KxK conv. x: (N,H,W,C) -> (N*OH*OW, K*K*C), OH, OW.
    Column order is (kh, kw, cin), matching an HWIO weight reshape.
    # TODO(synk): build these patches inside the kernel with strided VMEM
    # slices instead of materializing the A matrix in HBM via XLA."""
    n, h, w, c = x.shape
    oh = (h + 2 * pad - ksize) // stride + 1
    ow = (w + 2 * pad - ksize) // stride + 1
    xp = jnp.pad(x, ((0, 0), (pad, pad), (pad, pad), (0, 0)))
    cols = [xp[:, i:i + stride * oh:stride, j:j + stride * ow:stride, :]
            for i in range(ksize) for j in range(ksize)]
    a = jnp.concatenate(cols, axis=-1).reshape(n * oh * ow, ksize * ksize * c)
    return a, oh, ow


def _im2col_conv_pool(x, ksize=5, stride=2, pad=2):
    """Pool-grouped patch matrix for conv0 followed by a 2x2/s2 max-pool.
    Group g=(dh,dw) holds the patches of the conv output at (2*ph+dh, 2*pw+dw)
    — an effective stride-4 conv with origin offset (2*dh, 2*dw) — so the
    kernel can take the pool max over g without any HBM pool slices."""
    n, h, w, c = x.shape
    oh = (h + 2 * pad - ksize) // stride + 1
    ow = (w + 2 * pad - ksize) // stride + 1
    ph, pw = oh // 2, ow // 2
    xp = jnp.pad(x, ((0, 0), (pad, pad), (pad, pad), (0, 0)))
    groups = []
    for dh in range(2):
        for dw in range(2):
            cols = [
                xp[:,
                   stride * dh + i:stride * dh + i + 2 * stride * ph:2 * stride,
                   stride * dw + j:stride * dw + j + 2 * stride * pw:2 * stride,
                   :]
                for i in range(ksize) for j in range(ksize)]
            groups.append(jnp.concatenate(cols, axis=-1)
                          .reshape(1, n * ph * pw, ksize * ksize * c))
    return jnp.concatenate(groups, axis=0), ph, pw


def residual_block(h, spatial, p, stride, post_scale, post_bias,
                   use_pallas=True):
    """Pre-activation residual block (kuangliu-style PreActBlock: the 1x1
    shortcut consumes relu(bn1(x)); that preamble was fused into the producer
    of `h`). Two pallas_calls:
      conv1 kernel: t = relu(bn2(conv1(h))) plus the fused 1x1 shortcut GEMM
      conv2 kernel: relu((conv2(t) + shortcut) * post_scale + post_bias)
    where post_scale/post_bias are the NEXT block's folded bn1 (or identity +
    the model's trailing ReLU for the last block)."""
    n, hh, ww = spatial
    cin = h.shape[-1]
    cout = p["w1"].shape[-1]
    x = h.reshape(n, hh, ww, cin)

    # conv1 (3x3, stride s, pad 1) + shortcut (1x1, stride s) in one kernel.
    a1, oh, ow = _im2col(x, 3, stride, 1)
    a1, w1 = _pad_cast(a1, p["w1"].reshape(9 * cin, cout))
    wsc = jnp.pad(p["w_sc"].reshape(cin, cout), ((0, 128 - cin), (0, 0)))
    s2, b2 = bn_fold(p, "bn2")
    t, sc = conv1_with_shortcut(a1, w1, wsc.astype(jnp.bfloat16),
                                _vec2d(s2), _vec2d(b2), 4 * cin, use_pallas)

    # conv2 (3x3, stride 1, pad 1) + shortcut add + post scale/bias + relu.
    a2, _, _ = _im2col(t.reshape(n, oh, ow, cout), 3, 1, 1)
    a2, w2 = _pad_cast(a2, p["w2"].reshape(9 * cout, cout))
    out = conv2_with_residual(a2, w2, sc, _vec2d(post_scale),
                              _vec2d(post_bias), use_pallas)
    return out, (n, oh, ow)


def dronet_forward(params, x_nchw, use_pallas=True):
    """NCHW float32 in -> list of four (N, 1) heads (eval-mode semantics)."""
    x = jnp.transpose(x_nchw, (0, 2, 3, 1))              # NCHW -> NHWC
    l1, l2, l3 = params["layer1"], params["layer2"], params["layer3"]
    cin = x.shape[-1]
    c0 = params["conv_w"].shape[-1]

    # Stage 1 (one kernel): conv 5x5/s2 + 2x2 max-pool + layer1.bn1 + ReLU.
    a0, ph, pw = _im2col_conv_pool(x, 5, 2, 2)
    a0, w0 = _pad_cast(a0, params["conv_w"].reshape(25 * cin, c0))
    s1, b1 = bn_fold(l1, "bn1")
    h = conv_pool_bn_relu(a0, w0, _vec2d(s1), _vec2d(b1), use_pallas)
    spatial = (x.shape[0], ph, pw)                        # (N, 16, 32), C=32

    # layer1 — its conv2 epilogue also applies layer2's bn1+ReLU.
    s, b = bn_fold(l2, "bn1")
    h, spatial = residual_block(h, spatial, l1, 2, s, b, use_pallas)

    # layer2 — its conv2 epilogue also applies layer3's bn1+ReLU.
    s, b = bn_fold(l3, "bn1")
    h, spatial = residual_block(h, spatial, l2, 2, s, b, use_pallas)

    # layer3 — its conv2 epilogue applies the model's trailing ReLU (identity
    # scale/bias); ReLU is elementwise so it commutes with the flatten below.
    c3 = l3["w1"].shape[-1]
    h, spatial = residual_block(h, spatial, l3, 2,
                                jnp.ones((c3,), jnp.float32),
                                jnp.zeros((c3,), jnp.float32), use_pallas)

    # PyTorch out.view(N, -1) flattens NCHW -> (N, C*H*W).
    n, hh, ww = spatial
    c = h.shape[-1]
    flat = jnp.transpose(h.reshape(n, hh, ww, c),
                         (0, 3, 1, 2)).reshape(n, c * hh * ww)   # (N, 1024)

    # TODO(synk): nn.Dropout() is identity in eval mode; no training-mode mask.
    # Four Linear(1024, 1) heads fused into one (1024, 4) matmul; at (2, 1024)
    # a pallas_call is pure launch overhead, so leave it to XLA.
    fc = jnp.dot(flat, params["fc_w"],
                 precision=jax.lax.Precision.HIGHEST) + params["fc_b"]
    return [fc[:, 0:1], fc[:, 1:2], fc[:, 2:3], fc[:, 3:4]]


# --------------------------- deterministic params ---------------------------

def _bn_params(c):
    return {
        "gamma": jnp.ones((c,), jnp.float32),
        "beta": jnp.zeros((c,), jnp.float32),
        "mean": jnp.zeros((c,), jnp.float32),
        "var": jnp.ones((c,), jnp.float32),
    }


def _block_params(key, cin, cout, scale=0.05):
    k1, k2, k3 = jax.random.split(key, 3)
    bn1, bn2 = _bn_params(cin), _bn_params(cout)
    return {
        "bn1_gamma": bn1["gamma"], "bn1_beta": bn1["beta"],
        "bn1_mean": bn1["mean"], "bn1_var": bn1["var"],
        "w1": scale * jax.random.normal(k1, (3, 3, cin, cout), jnp.float32),
        "bn2_gamma": bn2["gamma"], "bn2_beta": bn2["beta"],
        "bn2_mean": bn2["mean"], "bn2_var": bn2["var"],
        "w2": scale * jax.random.normal(k2, (3, 3, cout, cout), jnp.float32),
        "w_sc": scale * jax.random.normal(k3, (1, 1, cin, cout), jnp.float32),
    }


def init_params(key, is_gray=False, scale=0.05):
    cin = 1 if is_gray else 3
    k0, k1, k2, k3, k4, k5 = jax.random.split(key, 6)
    return {
        "conv_w": scale * jax.random.normal(k0, (5, 5, cin, 32), jnp.float32),
        "layer1": _block_params(k1, 32, 32, scale),
        "layer2": _block_params(k2, 32, 64, scale),
        "layer3": _block_params(k3, 64, 128, scale),
        # fc_x / fc_y / fc_z / fc_phi fused: (1024, 4) weight, (1, 4) bias.
        "fc_w": scale * jax.random.normal(k4, (128 * 2 * 4, 4), jnp.float32),
        "fc_b": scale * jax.random.normal(k5, (1, 4), jnp.float32),
    }


# ----------------------------------- main -----------------------------------

if __name__ == "__main__":
    key = jax.random.PRNGKey(0)
    kp, kx = jax.random.split(key)
    params = init_params(kp, is_gray=False)

    # Input NCHW: batch=2, 3 channels, 64x128 spatial (the module hard-codes
    # finalSize = 128*2*4, which implies this spatial size).
    x = jax.random.normal(kx, (2, 3, 64, 128), jnp.float32)

    fwd = jax.jit(functools.partial(dronet_forward, use_pallas=True))
    outs = jax.block_until_ready(fwd(params, x))

    # Pure-JAX reference: identical fused math (same bf16 GEMM inputs, f32
    # accumulation) with jnp.dot instead of Pallas kernels.
    ref_fwd = jax.jit(functools.partial(dronet_forward, use_pallas=False))
    refs = jax.block_until_ready(ref_fwd(params, x))

    for o, r in zip(outs, refs):
        assert o.shape == (2, 1), o.shape
        assert bool(jnp.all(jnp.isfinite(o)))
        assert bool(jnp.allclose(o, r, atol=5e-2, rtol=5e-2)), (o, r)

    print("KERNEL_OK")
</pallas_src>

<mosaic_0001>
module attributes {stable_mosaic.version = 11 : i64} {
  func.func @_conv_pool_bn_relu_kernel(%arg0: i32, %arg1: memref<4x256x128xbf16, #tpu.memory_space<vmem>>, %arg2: memref<128x32xbf16, #tpu.memory_space<vmem>>, %arg3: memref<1x32xf32, #tpu.memory_space<vmem>>, %arg4: memref<1x32xf32, #tpu.memory_space<vmem>>, %arg5: memref<256x32xf32, #tpu.memory_space<vmem>>) attributes {dimension_semantics = [#tpu.dimension_semantics<parallel>], iteration_bounds = array<i64: 4>, scalar_prefetch = 0 : i64, scratch_operands = 0 : i64, tpu.core_type = #tpu.core_type<tc>, window_params = [{transform_indices = @transform_0, window_bounds = array<i64: 4, 256, 128>}, {pipeline_mode = #tpu.pipeline_mode<synchronous>, transform_indices = @transform_1, window_bounds = array<i64: 128, 32>}, {pipeline_mode = #tpu.pipeline_mode<synchronous>, transform_indices = @transform_2, window_bounds = array<i64: 1, 32>}, {pipeline_mode = #tpu.pipeline_mode<synchronous>, transform_indices = @transform_3, window_bounds = array<i64: 1, 32>}, {transform_indices = @transform_4, window_bounds = array<i64: 256, 32>}]} {
    %c0 = arith.constant 0 : index
    %c0_0 = arith.constant 0 : index
    %0 = vector.load %arg2[%c0, %c0_0] : memref<128x32xbf16, #tpu.memory_space<vmem>>, vector<128x32xbf16>
    %c0_1 = arith.constant 0 : index
    %c0_2 = arith.constant 0 : index
    %c0_3 = arith.constant 0 : index
    %1 = vector.load %arg1[%c0_1, %c0_2, %c0_3] : memref<4x256x128xbf16, #tpu.memory_space<vmem>>, vector<1x256x128xbf16>
    %2 = vector.shape_cast %1 : vector<1x256x128xbf16> to vector<256x128xbf16>
    %cst = arith.constant dense<0.000000e+00> : vector<256x32xf32>
    %3 = tpu.matmul %2, %0, %cst {dimension_numbers = #tpu.dot_dimension_numbers<[1], [0], [0], [1], [0, 0, 1, 1], [], []>} : vector<256x128xbf16>, vector<128x32xbf16>, vector<256x32xf32> -> vector<256x32xf32>
    %c1 = arith.constant 1 : index
    %c0_4 = arith.constant 0 : index
    %c0_5 = arith.constant 0 : index
    %4 = vector.load %arg1[%c1, %c0_4, %c0_5] : memref<4x256x128xbf16, #tpu.memory_space<vmem>>, vector<1x256x128xbf16>
    %5 = vector.shape_cast %4 : vector<1x256x128xbf16> to vector<256x128xbf16>
    %cst_6 = arith.constant dense<0.000000e+00> : vector<256x32xf32>
    %6 = tpu.matmul %5, %0, %cst_6 {dimension_numbers = #tpu.dot_dimension_numbers<[1], [0], [0], [1], [0, 0, 1, 1], [], []>} : vector<256x128xbf16>, vector<128x32xbf16>, vector<256x32xf32> -> vector<256x32xf32>
    %7 = arith.maximumf %3, %6 : vector<256x32xf32>
    %c2 = arith.constant 2 : index
    %c0_7 = arith.constant 0 : index
    %c0_8 = arith.constant 0 : index
    %8 = vector.load %arg1[%c2, %c0_7, %c0_8] : memref<4x256x128xbf16, #tpu.memory_space<vmem>>, vector<1x256x128xbf16>
    %9 = vector.shape_cast %8 : vector<1x256x128xbf16> to vector<256x128xbf16>
    %cst_9 = arith.constant dense<0.000000e+00> : vector<256x32xf32>
    %10 = tpu.matmul %9, %0, %cst_9 {dimension_numbers = #tpu.dot_dimension_numbers<[1], [0], [0], [1], [0, 0, 1, 1], [], []>} : vector<256x128xbf16>, vector<128x32xbf16>, vector<256x32xf32> -> vector<256x32xf32>
    %11 = arith.maximumf %7, %10 : vector<256x32xf32>
    %c3 = arith.constant 3 : index
    %c0_10 = arith.constant 0 : index
    %c0_11 = arith.constant 0 : index
    %12 = vector.load %arg1[%c3, %c0_10, %c0_11] : memref<4x256x128xbf16, #tpu.memory_space<vmem>>, vector<1x256x128xbf16>
    %13 = vector.shape_cast %12 : vector<1x256x128xbf16> to vector<256x128xbf16>
    %cst_12 = arith.constant dense<0.000000e+00> : vector<256x32xf32>
    %14 = tpu.matmul %13, %0, %cst_12 {dimension_numbers = #tpu.dot_dimension_numbers<[1], [0], [0], [1], [0, 0, 1, 1], [], []>} : vector<256x128xbf16>, vector<128x32xbf16>, vector<256x32xf32> -> vector<256x32xf32>
    %15 = arith.maximumf %11, %14 : vector<256x32xf32>
    %c0_13 = arith.constant 0 : index
    %c0_14 = arith.constant 0 : index
    %16 = vector.load %arg3[%c0_13, %c0_14] : memref<1x32xf32, #tpu.memory_space<vmem>>, vector<1x32xf32>
    %17 = vector.broadcast %16 : vector<1x32xf32> to vector<256x32xf32>
    %18 = arith.mulf %15, %17 : vector<256x32xf32>
    %c0_15 = arith.constant 0 : index
    %c0_16 = arith.constant 0 : index
    %19 = vector.load %arg4[%c0_15, %c0_16] : memref<1x32xf32, #tpu.memory_space<vmem>>, vector<1x32xf32>
    %20 = vector.broadcast %19 : vector<1x32xf32> to vector<256x32xf32>
    %21 = arith.addf %18, %20 : vector<256x32xf32>
    %cst_17 = arith.constant 0.000000e+00 : f32
    %22 = vector.broadcast %cst_17 : f32 to vector<256x32xf32>
    %23 = arith.maximumf %21, %22 : vector<256x32xf32>
    %c0_18 = arith.constant 0 : index
    %c0_19 = arith.constant 0 : index
    %24 = vector.load %arg5[%c0_18, %c0_19] : memref<256x32xf32, #tpu.memory_space<vmem>>, vector<256x32xf32>
    tpu.vector_store %arg5[%c0_18, %c0_19], %23 {strides = array<i32>} : memref<256x32xf32, #tpu.memory_space<vmem>>, vector<256x32xf32>,
    return
  }
  func.func @transform_0(%arg0: i32) -> (i32, i32, i32) {
    %c0_i32 = arith.constant 0 : i32
    %c0_i32_0 = arith.constant 0 : i32
    %c0_i32_1 = arith.constant 0 : i32
    return %c0_i32, %arg0, %c0_i32_0 : i32, i32, i32
  }
  func.func @transform_1(%arg0: i32) -> (i32, i32) {
    %c0_i32 = arith.constant 0 : i32
    %c0_i32_0 = arith.constant 0 : i32
    %c0_i32_1 = arith.constant 0 : i32
    return %c0_i32, %c0_i32_0 : i32, i32
  }
  func.func @transform_2(%arg0: i32) -> (i32, i32) {
    %c0_i32 = arith.constant 0 : i32
    %c0_i32_0 = arith.constant 0 : i32
    %c0_i32_1 = arith.constant 0 : i32
    return %c0_i32, %c0_i32_0 : i32, i32
  }
  func.func @transform_3(%arg0: i32) -> (i32, i32) {
    %c0_i32 = arith.constant 0 : i32
    %c0_i32_0 = arith.constant 0 : i32
    %c0_i32_1 = arith.constant 0 : i32
    return %c0_i32, %c0_i32_0 : i32, i32
  }
  func.func @transform_4(%arg0: i32) -> (i32, i32) {
    %c0_i32 = arith.constant 0 : i32
    %c0_i32_0 = arith.constant 0 : i32
    return %arg0, %c0_i32 : i32, i32
  }
}

module attributes {stable_mosaic.version = 11 : i64} {
  func.func @_conv1_sc_kernel(%arg0: i32, %arg1: memref<128x384xbf16, #tpu.memory_space<vmem>>, %arg2: memref<384x32xbf16, #tpu.memory_space<vmem>>, %arg3: memref<128x32xbf16, #tpu.memory_space<vmem>>, %arg4: memref<1x32xf32, #tpu.memory_space<vmem>>, %arg5: memref<1x32xf32, #tpu.memory_space<vmem>>, %arg6: memref<128x32xf32, #tpu.memory_space<vmem>>, %arg7: memref<128x32xf32, #tpu.memory_space<vmem>>) attributes {dimension_semantics = [#tpu.dimension_semantics<parallel>], iteration_bounds = array<i64: 2>, scalar_prefetch = 0 : i64, scratch_operands = 0 : i64, tpu.core_type = #tpu.core_type<tc>, window_params = [{transform_indices = @transform_0, window_bounds = array<i64: 128, 384>}, {pipeline_mode = #tpu.pipeline_mode<synchronous>, transform_indices = @transform_1, window_bounds = array<i64: 384, 32>}, {pipeline_mode = #tpu.pipeline_mode<synchronous>, transform_indices = @transform_2, window_bounds = array<i64: 128, 32>}, {pipeline_mode = #tpu.pipeline_mode<synchronous>, transform_indices = @transform_3, window_bounds = array<i64: 1, 32>}, {pipeline_mode = #tpu.pipeline_mode<synchronous>, transform_indices = @transform_4, window_bounds = array<i64: 1, 32>}, {transform_indices = @transform_5, window_bounds = array<i64: 128, 32>}, {transform_indices = @transform_6, window_bounds = array<i64: 128, 32>}]} {
    %c0 = arith.constant 0 : index
    %c0_0 = arith.constant 0 : index
    %0 = vector.load %arg1[%c0, %c0_0] : memref<128x384xbf16, #tpu.memory_space<vmem>>, vector<128x384xbf16>
    %c0_1 = arith.constant 0 : index
    %c0_2 = arith.constant 0 : index
    %1 = vector.load %arg2[%c0_1, %c0_2] : memref<384x32xbf16, #tpu.memory_space<vmem>>, vector<384x32xbf16>
    %cst = arith.constant dense<0.000000e+00> : vector<128x32xf32>
    %2 = tpu.matmul %0, %1, %cst {dimension_numbers = #tpu.dot_dimension_numbers<[1], [0], [0], [1], [0, 0, 1, 1], [], []>} : vector<128x384xbf16>, vector<384x32xbf16>, vector<128x32xf32> -> vector<128x32xf32>
    %c0_3 = arith.constant 0 : index
    %c0_4 = arith.constant 0 : index
    %3 = vector.load %arg4[%c0_3, %c0_4] : memref<1x32xf32, #tpu.memory_space<vmem>>, vector<1x32xf32>
    %4 = vector.broadcast %3 : vector<1x32xf32> to vector<128x32xf32>
    %5 = arith.mulf %2, %4 : vector<128x32xf32>
    %c0_5 = arith.constant 0 : index
    %c0_6 = arith.constant 0 : index
    %6 = vector.load %arg5[%c0_5, %c0_6] : memref<1x32xf32, #tpu.memory_space<vmem>>, vector<1x32xf32>
    %7 = vector.broadcast %6 : vector<1x32xf32> to vector<128x32xf32>
    %8 = arith.addf %5, %7 : vector<128x32xf32>
    %cst_7 = arith.constant 0.000000e+00 : f32
    %9 = vector.broadcast %cst_7 : f32 to vector<128x32xf32>
    %10 = arith.maximumf %8, %9 : vector<128x32xf32>
    %c0_8 = arith.constant 0 : index
    %c0_9 = arith.constant 0 : index
    %11 = vector.load %arg6[%c0_8, %c0_9] : memref<128x32xf32, #tpu.memory_space<vmem>>, vector<128x32xf32>
    tpu.vector_store %arg6[%c0_8, %c0_9], %10 {strides = array<i32>} : memref<128x32xf32, #tpu.memory_space<vmem>>, vector<128x32xf32>,
    %12 = vector.extract_strided_slice %0 {offsets = [0, 128], sizes = [128, 128], strides = [1, 1]} : vector<128x384xbf16> to vector<128x128xbf16>
    %c0_10 = arith.constant 0 : index
    %c0_11 = arith.constant 0 : index
    %13 = vector.load %arg3[%c0_10, %c0_11] : memref<128x32xbf16, #tpu.memory_space<vmem>>, vector<128x32xbf16>
    %cst_12 = arith.constant dense<0.000000e+00> : vector<128x32xf32>
    %14 = tpu.matmul %12, %13, %cst_12 {dimension_numbers = #tpu.dot_dimension_numbers<[1], [0], [0], [1], [0, 0, 1, 1], [], []>} : vector<128x128xbf16>, vector<128x32xbf16>, vector<128x32xf32> -> vector<128x32xf32>
    %c0_13 = arith.constant 0 : index
    %c0_14 = arith.constant 0 : index
    %15 = vector.load %arg7[%c0_13, %c0_14] : memref<128x32xf32, #tpu.memory_space<vmem>>, vector<128x32xf32>
    tpu.vector_store %arg7[%c0_13, %c0_14], %14 {strides = array<i32>} : memref<128x32xf32, #tpu.memory_space<vmem>>, vector<128x32xf32>,
    return
  }
  func.func @transform_0(%arg0: i32) -> (i32, i32) {
    %c0_i32 = arith.constant 0 : i32
    %c0_i32_0 = arith.constant 0 : i32
    return %arg0, %c0_i32 : i32, i32
  }
  func.func @transform_1(%arg0: i32) -> (i32, i32) {
    %c0_i32 = arith.constant 0 : i32
    %c0_i32_0 = arith.constant 0 : i32
    %c0_i32_1 = arith.constant 0 : i32
    return %c0_i32, %c0_i32_0 : i32, i32
  }
  func.func @transform_2(%arg0: i32) -> (i32, i32) {
    %c0_i32 = arith.constant 0 : i32
    %c0_i32_0 = arith.constant 0 : i32
    %c0_i32_1 = arith.constant 0 : i32
    return %c0_i32, %c0_i32_0 : i32, i32
  }
  func.func @transform_3(%arg0: i32) -> (i32, i32) {
    %c0_i32 = arith.constant 0 : i32
    %c0_i32_0 = arith.constant 0 : i32
    %c0_i32_1 = arith.constant 0 : i32
    return %c0_i32, %c0_i32_0 : i32, i32
  }
  func.func @transform_4(%arg0: i32) -> (i32, i32) {
    %c0_i32 = arith.constant 0 : i32
    %c0_i32_0 = arith.constant 0 : i32
    %c0_i32_1 = arith.constant 0 : i32
    return %c0_i32, %c0_i32_0 : i32, i32
  }
  func.func @transform_5(%arg0: i32) -> (i32, i32) {
    %c0_i32 = arith.constant 0 : i32
    %c0_i32_0 = arith.constant 0 : i32
    return %arg0, %c0_i32 : i32, i32
  }
  func.func @transform_6(%arg0: i32) -> (i32, i32) {
    %c0_i32 = arith.constant 0 : i32
    %c0_i32_0 = arith.constant 0 : i32
    return %arg0, %c0_i32 : i32, i32
  }
}

module attributes {stable_mosaic.version = 11 : i64} {
  func.func @_conv2_res_kernel(%arg0: i32, %arg1: memref<128x384xbf16, #tpu.memory_space<vmem>>, %arg2: memref<384x32xbf16, #tpu.memory_space<vmem>>, %arg3: memref<128x32xf32, #tpu.memory_space<vmem>>, %arg4: memref<1x32xf32, #tpu.memory_space<vmem>>, %arg5: memref<1x32xf32, #tpu.memory_space<vmem>>, %arg6: memref<128x32xf32, #tpu.memory_space<vmem>>) attributes {dimension_semantics = [#tpu.dimension_semantics<parallel>], iteration_bounds = array<i64: 2>, scalar_prefetch = 0 : i64, scratch_operands = 0 : i64, tpu.core_type = #tpu.core_type<tc>, window_params = [{transform_indices = @transform_0, window_bounds = array<i64: 128, 384>}, {pipeline_mode = #tpu.pipeline_mode<synchronous>, transform_indices = @transform_1, window_bounds = array<i64: 384, 32>}, {transform_indices = @transform_2, window_bounds = array<i64: 128, 32>}, {pipeline_mode = #tpu.pipeline_mode<synchronous>, transform_indices = @transform_3, window_bounds = array<i64: 1, 32>}, {pipeline_mode = #tpu.pipeline_mode<synchronous>, transform_indices = @transform_4, window_bounds = array<i64: 1, 32>}, {transform_indices = @transform_5, window_bounds = array<i64: 128, 32>}]} {
    %c0 = arith.constant 0 : index
    %c0_0 = arith.constant 0 : index
    %0 = vector.load %arg1[%c0, %c0_0] : memref<128x384xbf16, #tpu.memory_space<vmem>>, vector<128x384xbf16>
    %c0_1 = arith.constant 0 : index
    %c0_2 = arith.constant 0 : index
    %1 = vector.load %arg2[%c0_1, %c0_2] : memref<384x32xbf16, #tpu.memory_space<vmem>>, vector<384x32xbf16>
    %cst = arith.constant dense<0.000000e+00> : vector<128x32xf32>
    %2 = tpu.matmul %0, %1, %cst {dimension_numbers = #tpu.dot_dimension_numbers<[1], [0], [0], [1], [0, 0, 1, 1], [], []>} : vector<128x384xbf16>, vector<384x32xbf16>, vector<128x32xf32> -> vector<128x32xf32>
    %c0_3 = arith.constant 0 : index
    %c0_4 = arith.constant 0 : index
    %3 = vector.load %arg3[%c0_3, %c0_4] : memref<128x32xf32, #tpu.memory_space<vmem>>, vector<128x32xf32>
    %4 = arith.addf %2, %3 : vector<128x32xf32>
    %c0_5 = arith.constant 0 : index
    %c0_6 = arith.constant 0 : index
    %5 = vector.load %arg4[%c0_5, %c0_6] : memref<1x32xf32, #tpu.memory_space<vmem>>, vector<1x32xf32>
    %6 = vector.broadcast %5 : vector<1x32xf32> to vector<128x32xf32>
    %7 = arith.mulf %4, %6 : vector<128x32xf32>
    %c0_7 = arith.constant 0 : index
    %c0_8 = arith.constant 0 : index
    %8 = vector.load %arg5[%c0_7, %c0_8] : memref<1x32xf32, #tpu.memory_space<vmem>>, vector<1x32xf32>
    %9 = vector.broadcast %8 : vector<1x32xf32> to vector<128x32xf32>
    %10 = arith.addf %7, %9 : vector<128x32xf32>
    %cst_9 = arith.constant 0.000000e+00 : f32
    %11 = vector.broadcast %cst_9 : f32 to vector<128x32xf32>
    %12 = arith.maximumf %10, %11 : vector<128x32xf32>
    %c0_10 = arith.constant 0 : index
    %c0_11 = arith.constant 0 : index
    %13 = vector.load %arg6[%c0_10, %c0_11] : memref<128x32xf32, #tpu.memory_space<vmem>>, vector<128x32xf32>
    tpu.vector_store %arg6[%c0_10, %c0_11], %12 {strides = array<i32>} : memref<128x32xf32, #tpu.memory_space<vmem>>, vector<128x32xf32>,
    return
  }
  func.func @transform_0(%arg0: i32) -> (i32, i32) {
    %c0_i32 = arith.constant 0 : i32
    %c0_i32_0 = arith.constant 0 : i32
    return %arg0, %c0_i32 : i32, i32
  }
  func.func @transform_1(%arg0: i32) -> (i32, i32) {
    %c0_i32 = arith.constant 0 : i32
    %c0_i32_0 = arith.constant 0 : i32
    %c0_i32_1 = arith.constant 0 : i32
    return %c0_i32, %c0_i32_0 : i32, i32
  }
  func.func @transform_2(%arg0: i32) -> (i32, i32) {
    %c0_i32 = arith.constant 0 : i32
    %c0_i32_0 = arith.constant 0 : i32
    return %arg0, %c0_i32 : i32, i32
  }
  func.func @transform_3(%arg0: i32) -> (i32, i32) {
    %c0_i32 = arith.constant 0 : i32
    %c0_i32_0 = arith.constant 0 : i32
    %c0_i32_1 = arith.constant 0 : i32
    return %c0_i32, %c0_i32_0 : i32, i32
  }
  func.func @transform_4(%arg0: i32) -> (i32, i32) {
    %c0_i32 = arith.constant 0 : i32
    %c0_i32_0 = arith.constant 0 : i32
    %c0_i32_1 = arith.constant 0 : i32
    return %c0_i32, %c0_i32_0 : i32, i32
  }
  func.func @transform_5(%arg0: i32) -> (i32, i32) {
    %c0_i32 = arith.constant 0 : i32
    %c0_i32_0 = arith.constant 0 : i32
    return %arg0, %c0_i32 : i32, i32
  }
}

module attributes {stable_mosaic.version = 11 : i64} {
  func.func @_conv1_sc_kernel(%arg0: i32, %arg1: memref<64x384xbf16, #tpu.memory_space<vmem>>, %arg2: memref<384x64xbf16, #tpu.memory_space<vmem>>, %arg3: memref<128x64xbf16, #tpu.memory_space<vmem>>, %arg4: memref<1x64xf32, #tpu.memory_space<vmem>>, %arg5: memref<1x64xf32, #tpu.memory_space<vmem>>, %arg6: memref<64x64xf32, #tpu.memory_space<vmem>>, %arg7: memref<64x64xf32, #tpu.memory_space<vmem>>) attributes {dimension_semantics = [#tpu.dimension_semantics<parallel>], iteration_bounds = array<i64: 1>, scalar_prefetch = 0 : i64, scratch_operands = 0 : i64, tpu.core_type = #tpu.core_type<tc>, window_params = [{transform_indices = @transform_0, window_bounds = array<i64: 64, 384>}, {pipeline_mode = #tpu.pipeline_mode<synchronous>, transform_indices = @transform_1, window_bounds = array<i64: 384, 64>}, {pipeline_mode = #tpu.pipeline_mode<synchronous>, transform_indices = @transform_2, window_bounds = array<i64: 128, 64>}, {pipeline_mode = #tpu.pipeline_mode<synchronous>, transform_indices = @transform_3, window_bounds = array<i64: 1, 64>}, {pipeline_mode = #tpu.pipeline_mode<synchronous>, transform_indices = @transform_4, window_bounds = array<i64: 1, 64>}, {transform_indices = @transform_5, window_bounds = array<i64: 64, 64>}, {transform_indices = @transform_6, window_bounds = array<i64: 64, 64>}]} {
    %c0 = arith.constant 0 : index
    %c0_0 = arith.constant 0 : index
    %0 = vector.load %arg1[%c0, %c0_0] : memref<64x384xbf16, #tpu.memory_space<vmem>>, vector<64x384xbf16>
    %c0_1 = arith.constant 0 : index
    %c0_2 = arith.constant 0 : index
    %1 = vector.load %arg2[%c0_1, %c0_2] : memref<384x64xbf16, #tpu.memory_space<vmem>>, vector<384x64xbf16>
    %cst = arith.constant dense<0.000000e+00> : vector<64x64xf32>
    %2 = tpu.matmul %0, %1, %cst {dimension_numbers = #tpu.dot_dimension_numbers<[1], [0], [0], [1], [0, 0, 1, 1], [], []>} : vector<64x384xbf16>, vector<384x64xbf16>, vector<64x64xf32> -> vector<64x64xf32>
    %c0_3 = arith.constant 0 : index
    %c0_4 = arith.constant 0 : index
    %3 = vector.load %arg4[%c0_3, %c0_4] : memref<1x64xf32, #tpu.memory_space<vmem>>, vector<1x64xf32>
    %4 = vector.broadcast %3 : vector<1x64xf32> to vector<64x64xf32>
    %5 = arith.mulf %2, %4 : vector<64x64xf32>
    %c0_5 = arith.constant 0 : index
    %c0_6 = arith.constant 0 : index
    %6 = vector.load %arg5[%c0_5, %c0_6] : memref<1x64xf32, #tpu.memory_space<vmem>>, vector<1x64xf32>
    %7 = vector.broadcast %6 : vector<1x64xf32> to vector<64x64xf32>
    %8 = arith.addf %5, %7 : vector<64x64xf32>
    %cst_7 = arith.constant 0.000000e+00 : f32
    %9 = vector.broadcast %cst_7 : f32 to vector<64x64xf32>
    %10 = arith.maximumf %8, %9 : vector<64x64xf32>
    %c0_8 = arith.constant 0 : index
    %c0_9 = arith.constant 0 : index
    %11 = vector.load %arg6[%c0_8, %c0_9] : memref<64x64xf32, #tpu.memory_space<vmem>>, vector<64x64xf32>
    tpu.vector_store %arg6[%c0_8, %c0_9], %10 {strides = array<i32>} : memref<64x64xf32, #tpu.memory_space<vmem>>, vector<64x64xf32>,
    %12 = vector.extract_strided_slice %0 {offsets = [0, 128], sizes = [64, 128], strides = [1, 1]} : vector<64x384xbf16> to vector<64x128xbf16>
    %c0_10 = arith.constant 0 : index
    %c0_11 = arith.constant 0 : index
    %13 = vector.load %arg3[%c0_10, %c0_11] : memref<128x64xbf16, #tpu.memory_space<vmem>>, vector<128x64xbf16>
    %cst_12 = arith.constant dense<0.000000e+00> : vector<64x64xf32>
    %14 = tpu.matmul %12, %13, %cst_12 {dimension_numbers = #tpu.dot_dimension_numbers<[1], [0], [0], [1], [0, 0, 1, 1], [], []>} : vector<64x128xbf16>, vector<128x64xbf16>, vector<64x64xf32> -> vector<64x64xf32>
    %c0_13 = arith.constant 0 : index
    %c0_14 = arith.constant 0 : index
    %15 = vector.load %arg7[%c0_13, %c0_14] : memref<64x64xf32, #tpu.memory_space<vmem>>, vector<64x64xf32>
    tpu.vector_store %arg7[%c0_13, %c0_14], %14 {strides = array<i32>} : memref<64x64xf32, #tpu.memory_space<vmem>>, vector<64x64xf32>,
    return
  }
  func.func @transform_0(%arg0: i32) -> (i32, i32) {
    %c0_i32 = arith.constant 0 : i32
    %c0_i32_0 = arith.constant 0 : i32
    return %arg0, %c0_i32 : i32, i32
  }
  func.func @transform_1(%arg0: i32) -> (i32, i32) {
    %c0_i32 = arith.constant 0 : i32
    %c0_i32_0 = arith.constant 0 : i32
    %c0_i32_1 = arith.constant 0 : i32
    return %c0_i32, %c0_i32_0 : i32, i32
  }
  func.func @transform_2(%arg0: i32) -> (i32, i32) {
    %c0_i32 = arith.constant 0 : i32
    %c0_i32_0 = arith.constant 0 : i32
    %c0_i32_1 = arith.constant 0 : i32
    return %c0_i32, %c0_i32_0 : i32, i32
  }
  func.func @transform_3(%arg0: i32) -> (i32, i32) {
    %c0_i32 = arith.constant 0 : i32
    %c0_i32_0 = arith.constant 0 : i32
    %c0_i32_1 = arith.constant 0 : i32
    return %c0_i32, %c0_i32_0 : i32, i32
  }
  func.func @transform_4(%arg0: i32) -> (i32, i32) {
    %c0_i32 = arith.constant 0 : i32
    %c0_i32_0 = arith.constant 0 : i32
    %c0_i32_1 = arith.constant 0 : i32
    return %c0_i32, %c0_i32_0 : i32, i32
  }
  func.func @transform_5(%arg0: i32) -> (i32, i32) {
    %c0_i32 = arith.constant 0 : i32
    %c0_i32_0 = arith.constant 0 : i32
    return %arg0, %c0_i32 : i32, i32
  }
  func.func @transform_6(%arg0: i32) -> (i32, i32) {
    %c0_i32 = arith.constant 0 : i32
    %c0_i32_0 = arith.constant 0 : i32
    return %arg0, %c0_i32 : i32, i32
  }
}

module attributes {stable_mosaic.version = 11 : i64} {
  func.func @_conv2_res_kernel(%arg0: i32, %arg1: memref<64x640xbf16, #tpu.memory_space<vmem>>, %arg2: memref<640x64xbf16, #tpu.memory_space<vmem>>, %arg3: memref<64x64xf32, #tpu.memory_space<vmem>>, %arg4: memref<1x64xf32, #tpu.memory_space<vmem>>, %arg5: memref<1x64xf32, #tpu.memory_space<vmem>>, %arg6: memref<64x64xf32, #tpu.memory_space<vmem>>) attributes {dimension_semantics = [#tpu.dimension_semantics<parallel>], iteration_bounds = array<i64: 1>, scalar_prefetch = 0 : i64, scratch_operands = 0 : i64, tpu.core_type = #tpu.core_type<tc>, window_params = [{transform_indices = @transform_0, window_bounds = array<i64: 64, 640>}, {pipeline_mode = #tpu.pipeline_mode<synchronous>, transform_indices = @transform_1, window_bounds = array<i64: 640, 64>}, {transform_indices = @transform_2, window_bounds = array<i64: 64, 64>}, {pipeline_mode = #tpu.pipeline_mode<synchronous>, transform_indices = @transform_3, window_bounds = array<i64: 1, 64>}, {pipeline_mode = #tpu.pipeline_mode<synchronous>, transform_indices = @transform_4, window_bounds = array<i64: 1, 64>}, {transform_indices = @transform_5, window_bounds = array<i64: 64, 64>}]} {
    %c0 = arith.constant 0 : index
    %c0_0 = arith.constant 0 : index
    %0 = vector.load %arg1[%c0, %c0_0] : memref<64x640xbf16, #tpu.memory_space<vmem>>, vector<64x640xbf16>
    %c0_1 = arith.constant 0 : index
    %c0_2 = arith.constant 0 : index
    %1 = vector.load %arg2[%c0_1, %c0_2] : memref<640x64xbf16, #tpu.memory_space<vmem>>, vector<640x64xbf16>
    %cst = arith.constant dense<0.000000e+00> : vector<64x64xf32>
    %2 = tpu.matmul %0, %1, %cst {dimension_numbers = #tpu.dot_dimension_numbers<[1], [0], [0], [1], [0, 0, 1, 1], [], []>} : vector<64x640xbf16>, vector<640x64xbf16>, vector<64x64xf32> -> vector<64x64xf32>
    %c0_3 = arith.constant 0 : index
    %c0_4 = arith.constant 0 : index
    %3 = vector.load %arg3[%c0_3, %c0_4] : memref<64x64xf32, #tpu.memory_space<vmem>>, vector<64x64xf32>
    %4 = arith.addf %2, %3 : vector<64x64xf32>
    %c0_5 = arith.constant 0 : index
    %c0_6 = arith.constant 0 : index
    %5 = vector.load %arg4[%c0_5, %c0_6] : memref<1x64xf32, #tpu.memory_space<vmem>>, vector<1x64xf32>
    %6 = vector.broadcast %5 : vector<1x64xf32> to vector<64x64xf32>
    %7 = arith.mulf %4, %6 : vector<64x64xf32>
    %c0_7 = arith.constant 0 : index
    %c0_8 = arith.constant 0 : index
    %8 = vector.load %arg5[%c0_7, %c0_8] : memref<1x64xf32, #tpu.memory_space<vmem>>, vector<1x64xf32>
    %9 = vector.broadcast %8 : vector<1x64xf32> to vector<64x64xf32>
    %10 = arith.addf %7, %9 : vector<64x64xf32>
    %cst_9 = arith.constant 0.000000e+00 : f32
    %11 = vector.broadcast %cst_9 : f32 to vector<64x64xf32>
    %12 = arith.maximumf %10, %11 : vector<64x64xf32>
    %c0_10 = arith.constant 0 : index
    %c0_11 = arith.constant 0 : index
    %13 = vector.load %arg6[%c0_10, %c0_11] : memref<64x64xf32, #tpu.memory_space<vmem>>, vector<64x64xf32>
    tpu.vector_store %arg6[%c0_10, %c0_11], %12 {strides = array<i32>} : memref<64x64xf32, #tpu.memory_space<vmem>>, vector<64x64xf32>,
    return
  }
  func.func @transform_0(%arg0: i32) -> (i32, i32) {
    %c0_i32 = arith.constant 0 : i32
    %c0_i32_0 = arith.constant 0 : i32
    return %arg0, %c0_i32 : i32, i32
  }
  func.func @transform_1(%arg0: i32) -> (i32, i32) {
    %c0_i32 = arith.constant 0 : i32
    %c0_i32_0 = arith.constant 0 : i32
    %c0_i32_1 = arith.constant 0 : i32
    return %c0_i32, %c0_i32_0 : i32, i32
  }
  func.func @transform_2(%arg0: i32) -> (i32, i32) {
    %c0_i32 = arith.constant 0 : i32
    %c0_i32_0 = arith.constant 0 : i32
    return %arg0, %c0_i32 : i32, i32
  }
  func.func @transform_3(%arg0: i32) -> (i32, i32) {
    %c0_i32 = arith.constant 0 : i32
    %c0_i32_0 = arith.constant 0 : i32
    %c0_i32_1 = arith.constant 0 : i32
    return %c0_i32, %c0_i32_0 : i32, i32
  }
  func.func @transform_4(%arg0: i32) -> (i32, i32) {
    %c0_i32 = arith.constant 0 : i32
    %c0_i32_0 = arith.constant 0 : i32
    %c0_i32_1 = arith.constant 0 : i32
    return %c0_i32, %c0_i32_0 : i32, i32
  }
  func.func @transform_5(%arg0: i32) -> (i32, i32) {
    %c0_i32 = arith.constant 0 : i32
    %c0_i32_0 = arith.constant 0 : i32
    return %arg0, %c0_i32 : i32, i32
  }
}

module attributes {stable_mosaic.version = 11 : i64} {
  func.func @_conv1_sc_kernel(%arg0: i32, %arg1: memref<16x640xbf16, #tpu.memory_space<vmem>>, %arg2: memref<640x128xbf16, #tpu.memory_space<vmem>>, %arg3: memref<128x128xbf16, #tpu.memory_space<vmem>>, %arg4: memref<1x128xf32, #tpu.memory_space<vmem>>, %arg5: memref<1x128xf32, #tpu.memory_space<vmem>>, %arg6: memref<16x128xf32, #tpu.memory_space<vmem>>, %arg7: memref<16x128xf32, #tpu.memory_space<vmem>>) attributes {dimension_semantics = [#tpu.dimension_semantics<parallel>], iteration_bounds = array<i64: 1>, scalar_prefetch = 0 : i64, scratch_operands = 0 : i64, tpu.core_type = #tpu.core_type<tc>, window_params = [{transform_indices = @transform_0, window_bounds = array<i64: 16, 640>}, {pipeline_mode = #tpu.pipeline_mode<synchronous>, transform_indices = @transform_1, window_bounds = array<i64: 640, 128>}, {pipeline_mode = #tpu.pipeline_mode<synchronous>, transform_indices = @transform_2, window_bounds = array<i64: 128, 128>}, {pipeline_mode = #tpu.pipeline_mode<synchronous>, transform_indices = @transform_3, window_bounds = array<i64: 1, 128>}, {pipeline_mode = #tpu.pipeline_mode<synchronous>, transform_indices = @transform_4, window_bounds = array<i64: 1, 128>}, {transform_indices = @transform_5, window_bounds = array<i64: 16, 128>}, {transform_indices = @transform_6, window_bounds = array<i64: 16, 128>}]} {
    %c0 = arith.constant 0 : index
    %c0_0 = arith.constant 0 : index
    %0 = vector.load %arg1[%c0, %c0_0] : memref<16x640xbf16, #tpu.memory_space<vmem>>, vector<16x640xbf16>
    %c0_1 = arith.constant 0 : index
    %c0_2 = arith.constant 0 : index
    %1 = vector.load %arg2[%c0_1, %c0_2] : memref<640x128xbf16, #tpu.memory_space<vmem>>, vector<640x128xbf16>
    %cst = arith.constant dense<0.000000e+00> : vector<16x128xf32>
    %2 = tpu.matmul %0, %1, %cst {dimension_numbers = #tpu.dot_dimension_numbers<[1], [0], [0], [1], [0, 0, 1, 1], [], []>} : vector<16x640xbf16>, vector<640x128xbf16>, vector<16x128xf32> -> vector<16x128xf32>
    %c0_3 = arith.constant 0 : index
    %c0_4 = arith.constant 0 : index
    %3 = vector.load %arg4[%c0_3, %c0_4] : memref<1x128xf32, #tpu.memory_space<vmem>>, vector<1x128xf32>
    %4 = vector.broadcast %3 : vector<1x128xf32> to vector<16x128xf32>
    %5 = arith.mulf %2, %4 : vector<16x128xf32>
    %c0_5 = arith.constant 0 : index
    %c0_6 = arith.constant 0 : index
    %6 = vector.load %arg5[%c0_5, %c0_6] : memref<1x128xf32, #tpu.memory_space<vmem>>, vector<1x128xf32>
    %7 = vector.broadcast %6 : vector<1x128xf32> to vector<16x128xf32>
    %8 = arith.addf %5, %7 : vector<16x128xf32>
    %cst_7 = arith.constant 0.000000e+00 : f32
    %9 = vector.broadcast %cst_7 : f32 to vector<16x128xf32>
    %10 = arith.maximumf %8, %9 : vector<16x128xf32>
    %c0_8 = arith.constant 0 : index
    %c0_9 = arith.constant 0 : index
    %11 = vector.load %arg6[%c0_8, %c0_9] : memref<16x128xf32, #tpu.memory_space<vmem>>, vector<16x128xf32>
    tpu.vector_store %arg6[%c0_8, %c0_9], %10 {strides = array<i32>} : memref<16x128xf32, #tpu.memory_space<vmem>>, vector<16x128xf32>,
    %12 = vector.extract_strided_slice %0 {offsets = [0, 256], sizes = [16, 128], strides = [1, 1]} : vector<16x640xbf16> to vector<16x128xbf16>
    %c0_10 = arith.constant 0 : index
    %c0_11 = arith.constant 0 : index
    %13 = vector.load %arg3[%c0_10, %c0_11] : memref<128x128xbf16, #tpu.memory_space<vmem>>, vector<128x128xbf16>
    %cst_12 = arith.constant dense<0.000000e+00> : vector<16x128xf32>
    %14 = tpu.matmul %12, %13, %cst_12 {dimension_numbers = #tpu.dot_dimension_numbers<[1], [0], [0], [1], [0, 0, 1, 1], [], []>} : vector<16x128xbf16>, vector<128x128xbf16>, vector<16x128xf32> -> vector<16x128xf32>
    %c0_13 = arith.constant 0 : index
    %c0_14 = arith.constant 0 : index
    %15 = vector.load %arg7[%c0_13, %c0_14] : memref<16x128xf32, #tpu.memory_space<vmem>>, vector<16x128xf32>
    tpu.vector_store %arg7[%c0_13, %c0_14], %14 {strides = array<i32>} : memref<16x128xf32, #tpu.memory_space<vmem>>, vector<16x128xf32>,
    return
  }
  func.func @transform_0(%arg0: i32) -> (i32, i32) {
    %c0_i32 = arith.constant 0 : i32
    %c0_i32_0 = arith.constant 0 : i32
    return %arg0, %c0_i32 : i32, i32
  }
  func.func @transform_1(%arg0: i32) -> (i32, i32) {
    %c0_i32 = arith.constant 0 : i32
    %c0_i32_0 = arith.constant 0 : i32
    %c0_i32_1 = arith.constant 0 : i32
    return %c0_i32, %c0_i32_0 : i32, i32
  }
  func.func @transform_2(%arg0: i32) -> (i32, i32) {
    %c0_i32 = arith.constant 0 : i32
    %c0_i32_0 = arith.constant 0 : i32
    %c0_i32_1 = arith.constant 0 : i32
    return %c0_i32, %c0_i32_0 : i32, i32
  }
  func.func @transform_3(%arg0: i32) -> (i32, i32) {
    %c0_i32 = arith.constant 0 : i32
    %c0_i32_0 = arith.constant 0 : i32
    %c0_i32_1 = arith.constant 0 : i32
    return %c0_i32, %c0_i32_0 : i32, i32
  }
  func.func @transform_4(%arg0: i32) -> (i32, i32) {
    %c0_i32 = arith.constant 0 : i32
    %c0_i32_0 = arith.constant 0 : i32
    %c0_i32_1 = arith.constant 0 : i32
    return %c0_i32, %c0_i32_0 : i32, i32
  }
  func.func @transform_5(%arg0: i32) -> (i32, i32) {
    %c0_i32 = arith.constant 0 : i32
    %c0_i32_0 = arith.constant 0 : i32
    return %arg0, %c0_i32 : i32, i32
  }
  func.func @transform_6(%arg0: i32) -> (i32, i32) {
    %c0_i32 = arith.constant 0 : i32
    %c0_i32_0 = arith.constant 0 : i32
    return %arg0, %c0_i32 : i32, i32
  }
}

module attributes {stable_mosaic.version = 11 : i64} {
  func.func @_conv2_res_kernel(%arg0: i32, %arg1: memref<16x1152xbf16, #tpu.memory_space<vmem>>, %arg2: memref<1152x128xbf16, #tpu.memory_space<vmem>>, %arg3: memref<16x128xf32, #tpu.memory_space<vmem>>, %arg4: memref<1x128xf32, #tpu.memory_space<vmem>>, %arg5: memref<1x128xf32, #tpu.memory_space<vmem>>, %arg6: memref<16x128xf32, #tpu.memory_space<vmem>>) attributes {dimension_semantics = [#tpu.dimension_semantics<parallel>], iteration_bounds = array<i64: 1>, scalar_prefetch = 0 : i64, scratch_operands = 0 : i64, tpu.core_type = #tpu.core_type<tc>, window_params = [{transform_indices = @transform_0, window_bounds = array<i64: 16, 1152>}, {pipeline_mode = #tpu.pipeline_mode<synchronous>, transform_indices = @transform_1, window_bounds = array<i64: 1152, 128>}, {transform_indices = @transform_2, window_bounds = array<i64: 16, 128>}, {pipeline_mode = #tpu.pipeline_mode<synchronous>, transform_indices = @transform_3, window_bounds = array<i64: 1, 128>}, {pipeline_mode = #tpu.pipeline_mode<synchronous>, transform_indices = @transform_4, window_bounds = array<i64: 1, 128>}, {transform_indices = @transform_5, window_bounds = array<i64: 16, 128>}]} {
    %c0 = arith.constant 0 : index
    %c0_0 = arith.constant 0 : index
    %0 = vector.load %arg1[%c0, %c0_0] : memref<16x1152xbf16, #tpu.memory_space<vmem>>, vector<16x1152xbf16>
    %c0_1 = arith.constant 0 : index
    %c0_2 = arith.constant 0 : index
    %1 = vector.load %arg2[%c0_1, %c0_2] : memref<1152x128xbf16, #tpu.memory_space<vmem>>, vector<1152x128xbf16>
    %cst = arith.constant dense<0.000000e+00> : vector<16x128xf32>
    %2 = tpu.matmul %0, %1, %cst {dimension_numbers = #tpu.dot_dimension_numbers<[1], [0], [0], [1], [0, 0, 1, 1], [], []>} : vector<16x1152xbf16>, vector<1152x128xbf16>, vector<16x128xf32> -> vector<16x128xf32>
    %c0_3 = arith.constant 0 : index
    %c0_4 = arith.constant 0 : index
    %3 = vector.load %arg3[%c0_3, %c0_4] : memref<16x128xf32, #tpu.memory_space<vmem>>, vector<16x128xf32>
    %4 = arith.addf %2, %3 : vector<16x128xf32>
    %c0_5 = arith.constant 0 : index
    %c0_6 = arith.constant 0 : index
    %5 = vector.load %arg4[%c0_5, %c0_6] : memref<1x128xf32, #tpu.memory_space<vmem>>, vector<1x128xf32>
    %6 = vector.broadcast %5 : vector<1x128xf32> to vector<16x128xf32>
    %7 = arith.mulf %4, %6 : vector<16x128xf32>
    %c0_7 = arith.constant 0 : index
    %c0_8 = arith.constant 0 : index
    %8 = vector.load %arg5[%c0_7, %c0_8] : memref<1x128xf32, #tpu.memory_space<vmem>>, vector<1x128xf32>
    %9 = vector.broadcast %8 : vector<1x128xf32> to vector<16x128xf32>
    %10 = arith.addf %7, %9 : vector<16x128xf32>
    %cst_9 = arith.constant 0.000000e+00 : f32
    %11 = vector.broadcast %cst_9 : f32 to vector<16x128xf32>
    %12 = arith.maximumf %10, %11 : vector<16x128xf32>
    %c0_10 = arith.constant 0 : index
    %c0_11 = arith.constant 0 : index
    %13 = vector.load %arg6[%c0_10, %c0_11] : memref<16x128xf32, #tpu.memory_space<vmem>>, vector<16x128xf32>
    tpu.vector_store %arg6[%c0_10, %c0_11], %12 {strides = array<i32>} : memref<16x128xf32, #tpu.memory_space<vmem>>, vector<16x128xf32>,
    return
  }
  func.func @transform_0(%arg0: i32) -> (i32, i32) {
    %c0_i32 = arith.constant 0 : i32
    %c0_i32_0 = arith.constant 0 : i32
    return %arg0, %c0_i32 : i32, i32
  }
  func.func @transform_1(%arg0: i32) -> (i32, i32) {
    %c0_i32 = arith.constant 0 : i32
    %c0_i32_0 = arith.constant 0 : i32
    %c0_i32_1 = arith.constant 0 : i32
    return %c0_i32, %c0_i32_0 : i32, i32
  }
  func.func @transform_2(%arg0: i32) -> (i32, i32) {
    %c0_i32 = arith.constant 0 : i32
    %c0_i32_0 = arith.constant 0 : i32
    return %arg0, %c0_i32 : i32, i32
  }
  func.func @transform_3(%arg0: i32) -> (i32, i32) {
    %c0_i32 = arith.constant 0 : i32
    %c0_i32_0 = arith.constant 0 : i32
    %c0_i32_1 = arith.constant 0 : i32
    return %c0_i32, %c0_i32_0 : i32, i32
  }
  func.func @transform_4(%arg0: i32) -> (i32, i32) {
    %c0_i32 = arith.constant 0 : i32
    %c0_i32_0 = arith.constant 0 : i32
    %c0_i32_1 = arith.constant 0 : i32
    return %c0_i32, %c0_i32_0 : i32, i32
  }
  func.func @transform_5(%arg0: i32) -> (i32, i32) {
    %c0_i32 = arith.constant 0 : i32
    %c0_i32_0 = arith.constant 0 : i32
    return %arg0, %c0_i32 : i32, i32
  }
}

</mosaic_0001>

<llo_original>
// kernel: dronet_forward.7
$region0: #{dronet_forward.7}
  #allocation0 [shape = 'u32[]', space=smem, size = 0x4, offset = 0x4, fixed_abs, tag = 'smem constant byte address 0x4 - core index']
  #allocation1 [shape = 'u32[144,128]{1,0:T(1,128)}', space=vmem, size = 0x12000, scoped, tag = 'internal scratch']
  %s0 = inlined_call_operand.vmem [shape: bf16[4,1024,128], index: 0, kind: input, shape index: {}]
  %s1 = inlined_call_operand.vmem [shape: bf16[128,32], index: 1, kind: input, shape index: {}]
  %s2 = inlined_call_operand.vmem [shape: f32[1,32], index: 2, kind: input, shape index: {}]
  %s3 = inlined_call_operand.vmem [shape: f32[1,32], index: 3, kind: input, shape index: {}]
  %s4 = inlined_call_operand.vmem [shape: f32[1024,32], index: 4, kind: output, shape index: {}]
  %s5 = sld [smem:[#allocation0]]
  $region90: #{dronet_forward.7} parent=0
    _
  %s7 = ssub.s32 1, %s5
  %s8 = scalar_select 0, %s7, %s5
  $region1: #{dronet_forward.7} parent=0
    #allocation2 [shape = 'u8[524288]{0}', space=vmem, size = 0x80000, scoped, tag = 'input window, operand 0']
    loop: start=0, step=1, limit=6
    $region2: #{dronet_forward.7} parent=1 // loop_pre_header
      _
    $region3: #{dronet_forward.7} parent=1 // loop_header
      %s10 = sphi 0, %s14
      %p11 = scmp.ge.s32.totalorder %s10, 6
      %s20 = sphi 0, %s22
      %s23 = sphi 0, %s20
      %s24 = sphi 0, %s23
      %s40 = sphi 0, %s24
      %s44 = sphi 0, %s44
      %s46 = sphi 0, %s44
      %s47 = sphi 0, %s46
      %s61 = sphi 0, %s47
      %s65 = sphi 0, %s65
      %s67 = sphi 0, %s65
      %s68 = sphi 0, %s67
      %s82 = sphi 0, %s68
      %s86 = sphi 0, %s86
      %s88 = sphi 0, %s86
      %s89 = sphi 0, %s88
      %s103 = sphi 0, %s89
      %s109 = sphi 0, %s111
      %s112 = sphi 0, %s109
      %s113 = sphi 0, %s112
      %s129 = sphi 0, %s113
    $region4: #{dronet_forward.7} parent=1 // loop_header_branch
      %13 = sbr.rel (%p11) target = $region8
    $region5: #{dronet_forward.7} parent=1 // loop_body
      %s15 = ssub.s32 %s10, 1
      %s16 = ssub.s32 %s10, 2
      %s17 = sadd.s32 %s10, 1
      %s18 = ssub.s32 %s10, %s17
      %p19 = scmp.eq.s32.totalorder %s18, 0
      %s21 = sadd.s32 %s20, 1
      %s22 = scalar_select %p19, %s20, %s21
      %p25 = pneg %p19
      %p26 = scmp.eq.s32.totalorder %s10, 3
      %p27 = por %p25, %p26
      %p28 = scmp.ne.s32.totalorder %s20, %s23
      %p29 = scmp.eq.s32.totalorder %s10, 0
      %p30 = por %p28, %p29
      %p31 = scmp.ne.s32.totalorder %s20, %s23
      %p32 = scmp.eq.s32.totalorder %s15, 3
      %p33 = por %p31, %p32
      %p34 = scmp.ne.s32.totalorder %s23, %s24
      %p35 = scmp.eq.s32.totalorder %s15, 0
      %p36 = por %p34, %p35
      %p37 = scmp.ne.s32.totalorder %s23, %s24
      %p38 = scmp.eq.s32.totalorder %s16, 3
      %p39 = por %p37, %p38
      %p41 = scmp.ne.s32.totalorder %s24, %s40
      %p42 = scmp.eq.s32.totalorder %s16, 0
      %p43 = por %p41, %p42
      %s45 = sadd.s32 %s44, 1
      %p48 = scmp.eq.s32.totalorder %s10, 3
      %p49 = scmp.ne.s32.totalorder %s44, %s46
      %p50 = scmp.eq.s32.totalorder %s10, 0
      %p51 = por %p49, %p50
      %p52 = scmp.ne.s32.totalorder %s44, %s46
      %p53 = scmp.eq.s32.totalorder %s15, 3
      %p54 = por %p52, %p53
      %p55 = scmp.ne.s32.totalorder %s46, %s47
      %p56 = scmp.eq.s32.totalorder %s15, 0
      %p57 = por %p55, %p56
      %p58 = scmp.ne.s32.totalorder %s46, %s47
      %p59 = scmp.eq.s32.totalorder %s16, 3
      %p60 = por %p58, %p59
      %p62 = scmp.ne.s32.totalorder %s47, %s61
      %p63 = scmp.eq.s32.totalorder %s16, 0
      %p64 = por %p62, %p63
      %s66 = sadd.s32 %s65, 1
      %p69 = scmp.eq.s32.totalorder %s10, 3
      %p70 = scmp.ne.s32.totalorder %s65, %s67
      %p71 = scmp.eq.s32.totalorder %s10, 0
      %p72 = por %p70, %p71
      %p73 = scmp.ne.s32.totalorder %s65, %s67
      %p74 = scmp.eq.s32.totalorder %s15, 3
      %p75 = por %p73, %p74
      %p76 = scmp.ne.s32.totalorder %s67, %s68
      %p77 = scmp.eq.s32.totalorder %s15, 0
      %p78 = por %p76, %p77
      %p79 = scmp.ne.s32.totalorder %s67, %s68
      %p80 = scmp.eq.s32.totalorder %s16, 3
      %p81 = por %p79, %p80
      %p83 = scmp.ne.s32.totalorder %s68, %s82
      %p84 = scmp.eq.s32.totalorder %s16, 0
      %p85 = por %p83, %p84
      %s87 = sadd.s32 %s86, 1
      %p90 = scmp.eq.s32.totalorder %s10, 3
      %p91 = scmp.ne.s32.totalorder %s86, %s88
      %p92 = scmp.eq.s32.totalorder %s10, 0
      %p93 = por %p91, %p92
      %p94 = scmp.ne.s32.totalorder %s86, %s88
      %p95 = scmp.eq.s32.totalorder %s15, 3
      %p96 = por %p94, %p95
      %p97 = scmp.ne.s32.totalorder %s88, %s89
      %p98 = scmp.eq.s32.totalorder %s15, 0
      %p99 = por %p97, %p98
      %p100 = scmp.ne.s32.totalorder %s88, %s89
      %p101 = scmp.eq.s32.totalorder %s16, 3
      %p102 = por %p100, %p101
      %p104 = scmp.ne.s32.totalorder %s89, %s103
      %p105 = scmp.eq.s32.totalorder %s16, 0
      %p106 = por %p104, %p105
      %s107 = ssub.s32 %s10, %s17
      %p108 = scmp.eq.s32.totalorder %s107, 0
      %s110 = sadd.s32 %s109, 1
      %s111 = scalar_select %p108, %s109, %s110
      %p114 = pneg %p108
      %p115 = scmp.eq.s32.totalorder %s10, 3
      %p116 = por %p114, %p115
      %p117 = scmp.ne.s32.totalorder %s109, %s112
      %p118 = scmp.eq.s32.totalorder %s10, 0
      %p119 = por %p117, %p118
      %p120 = scmp.ne.s32.totalorder %s109, %s112
      %p121 = scmp.eq.s32.totalorder %s15, 3
      %p122 = por %p120, %p121
      %p123 = scmp.ne.s32.totalorder %s112, %s113
      %p124 = scmp.eq.s32.totalorder %s15, 0
      %p125 = por %p123, %p124
      %p126 = scmp.ne.s32.totalorder %s112, %s113
      %p127 = scmp.eq.s32.totalorder %s16, 3
      %p128 = por %p126, %p127
      %p130 = scmp.ne.s32.totalorder %s113, %s129
      %p131 = scmp.eq.s32.totalorder %s16, 0
      %p132 = por %p130, %p131
      %p133 = scmp.le.s32.totalorder 1, %s10
      %p134 = scmp.lt.s32.totalorder %s10, 5
      %p135 = pnand %p133, %p134
      %p136 = pneg %p135
      // Predicated region
      $region9: #{dronet_forward.7} parent=5 // pred_check
        _
      $region10: #{dronet_forward.7} parent=5 // pred_check_branch
        %138 = sbr.rel (%p135) target = $region12
      $region11: #{dronet_forward.7} parent=5 // pred_region
        %s139 = ssub.s32 %s10, 1
        // Predicated region
        $region13: #{dronet_forward.7} parent=11 // pred_check
          %p140 = pneg %p57
        $region14: #{dronet_forward.7} parent=11 // pred_check_branch
          %142 = sbr.rel (%p140) target = $region16
        $region15: #{dronet_forward.7} parent=11 // pred_region
          _
        $region16: #{dronet_forward.7} parent=11 // pred_fallthru
          _
        // Predicated region
        $region17: #{dronet_forward.7} parent=11 // pred_check
          %p143 = pneg %p78
        $region18: #{dronet_forward.7} parent=11 // pred_check_branch
          %145 = sbr.rel (%p143) target = $region20
        $region19: #{dronet_forward.7} parent=11 // pred_region
          _
        $region20: #{dronet_forward.7} parent=11 // pred_fallthru
          _
        // Predicated region
        $region21: #{dronet_forward.7} parent=11 // pred_check
          %p146 = pneg %p99
        $region22: #{dronet_forward.7} parent=11 // pred_check_branch
          %148 = sbr.rel (%p146) target = $region24
        $region23: #{dronet_forward.7} parent=11 // pred_region
          _
        $region24: #{dronet_forward.7} parent=11 // pred_fallthru
          _
      $region12: #{dronet_forward.7} parent=5 // pred_fallthru
        _
      %p149 = scmp.lt.s32.totalorder %s10, 4
      // Predicated region
      $region25: #{dronet_forward.7} parent=5 // pred_check
        %p150 = pneg %p149
      $region26: #{dronet_forward.7} parent=5 // pred_check_branch
        %152 = sbr.rel (%p150) target = $region28
      $region27: #{dronet_forward.7} parent=5 // pred_region
        // Predicated region
        $region29: #{dronet_forward.7} parent=27 // pred_check
          %p153 = pneg %p30
        $region30: #{dronet_forward.7} parent=27 // pred_check_branch
          %155 = sbr.rel (%p153) target = $region32
        $region31: #{dronet_forward.7} parent=27 // pred_region
          %s156 = sand.u32 %s20, 1
          %s157 = sand.u32 %s20, 1
          %s158 = smul.addr %s157, 512
          %s159 = scalar_lea.vmem [#allocation2], %s158
          %s160 = smul.u32 32, %s10
          %s161 = smul.addr %s160, 4
          %s162 = scalar_lea.vmem %s0, %s161
          // Predicated region
          $region33: #{dronet_forward.7} parent=31 // pred_check
            _
          $region34: #{dronet_forward.7} parent=31 // pred_check_branch
            %164 = sbr.rel (0) target = $region36
          $region35: #{dronet_forward.7} parent=31 // pred_region
            // Predicated region
            $region37: #{dronet_forward.7} parent=35 // pred_check
              _
            $region38: #{dronet_forward.7} parent=35 // pred_check_branch
              %166 = sbr.rel target = $region40
            $region39: #{dronet_forward.7} parent=35 // pred_region
              // Predicated region
              $region52: #{dronet_forward.7} parent=39 // pred_check
                _
              $region53: #{dronet_forward.7} parent=39 // pred_check_branch
                %435 = sbr.rel (0) target = $region55
              $region54: #{dronet_forward.7} parent=39 // pred_region
                loop: start=0, step=1, limit=1
                $region56: #{dronet_forward.7} parent=54 // loop_pre_header
                  _
                $region57: #{dronet_forward.7} parent=54 // loop_header
                  %s437 = sphi 0, %s441
                  %p438 = scmp.ge.s32.totalorder %s437, 1
                  %s442 = sphi %s162, %s162
                  %s443 = sphi %s159, %s159
                $region58: #{dronet_forward.7} parent=54 // loop_header_branch
                  %440 = sbr.rel (%p438) target = $region62
                $region59: #{dronet_forward.7} parent=54 // loop_body
                  _
                $region60: #{dronet_forward.7} parent=54 // loop_footer
                  %s441 = sadd.s32 1, %s437
                $region61: #{dronet_forward.7} parent=54 // loop_footer_branch
                  %436 = sbr.rel target = $region57
                $region62: #{dronet_forward.7} parent=54 // loop_exit
                  _
                loop: start=0, step=1, limit=1
                $region63: #{dronet_forward.7} parent=54 // loop_pre_header
                  _
                $region64: #{dronet_forward.7} parent=54 // loop_header
                  %s446 = sphi 0, %s450
                  %p447 = scmp.ge.s32.totalorder %s446, 1
                  %s451 = sphi %s162, %s162
                  %s452 = sphi %s159, %s159
                $region65: #{dronet_forward.7} parent=54 // loop_header_branch
                  %449 = sbr.rel (%p447) target = $region69
                $region66: #{dronet_forward.7} parent=54 // loop_body
                  %v453 = vld [vmem:[%s451] sm:$0xf]
                  %454 = vst [vmem:[%s452] sm:$0xf] %v453
                  %v455 = vld [vmem:[%s451 + $0x4] sm:$0xf]
                  %456 = vst [vmem:[%s452 + $0x4] sm:$0xf] %v455
                  %v457 = vld [vmem:[%s451 + $0x8] sm:$0xf]
                  %458 = vst [vmem:[%s452 + $0x8] sm:$0xf] %v457
                  %v459 = vld [vmem:[%s451 + $0xc] sm:$0xf]
                  %460 = vst [vmem:[%s452 + $0xc] sm:$0xf] %v459
                  %v461 = vld [vmem:[%s451 + $0x10] sm:$0xf]
                  %462 = vst [vmem:[%s452 + $0x10] sm:$0xf] %v461
                  %v463 = vld [vmem:[%s451 + $0x14] sm:$0xf]
                  %464 = vst [vmem:[%s452 + $0x14] sm:$0xf] %v463
                  %v465 = vld [vmem:[%s451 + $0x18] sm:$0xf]
                  %466 = vst [vmem:[%s452 + $0x18] sm:$0xf] %v465
                  %v467 = vld [vmem:[%s451 + $0x1c] sm:$0xf]
                  %468 = vst [vmem:[%s452 + $0x1c] sm:$0xf] %v467
                  %v469 = vld [vmem:[%s451 + $0x20] sm:$0xf]
                  %470 = vst [vmem:[%s452 + $0x20] sm:$0xf] %v469
                  %v471 = vld [vmem:[%s451 + $0x24] sm:$0xf]
                  %472 = vst [vmem:[%s452 + $0x24] sm:$0xf] %v471
                  %v473 = vld [vmem:[%s451 + $0x28] sm:$0xf]
                  %474 = vst [vmem:[%s452 + $0x28] sm:$0xf] %v473
                  %v475 = vld [vmem:[%s451 + $0x2c] sm:$0xf]
                  %476 = vst [vmem:[%s452 + $0x2c] sm:$0xf] %v475
                  %v477 = vld [vmem:[%s451 + $0x30] sm:$0xf]
                  %478 = vst [vmem:[%s452 + $0x30] sm:$0xf] %v477
                  %v479 = vld [vmem:[%s451 + $0x34] sm:$0xf]
                  %480 = vst [vmem:[%s452 + $0x34] sm:$0xf] %v479
                  %v481 = vld [vmem:[%s451 + $0x38] sm:$0xf]
                  %482 = vst [vmem:[%s452 + $0x38] sm:$0xf] %v481
                  %v483 = vld [vmem:[%s451 + $0x3c] sm:$0xf]
                  %484 = vst [vmem:[%s452 + $0x3c] sm:$0xf] %v483
                  %v485 = vld [vmem:[%s451 + $0x40] sm:$0xf]
                  %486 = vst [vmem:[%s452 + $0x40] sm:$0xf] %v485
                  %v487 = vld [vmem:[%s451 + $0x44] sm:$0xf]
                  %488 = vst [vmem:[%s452 + $0x44] sm:$0xf] %v487
                  %v489 = vld [vmem:[%s451 + $0x48] sm:$0xf]
                  %490 = vst [vmem:[%s452 + $0x48] sm:$0xf] %v489
                  %v491 = vld [vmem:[%s451 + $0x4c] sm:$0xf]
                  %492 = vst [vmem:[%s452 + $0x4c] sm:$0xf] %v491
                  %v493 = vld [vmem:[%s451 + $0x50] sm:$0xf]
                  %494 = vst [vmem:[%s452 + $0x50] sm:$0xf] %v493
                  %v495 = vld [vmem:[%s451 + $0x54] sm:$0xf]
                  %496 = vst [vmem:[%s452 + $0x54] sm:$0xf] %v495
                  %v497 = vld [vmem:[%s451 + $0x58] sm:$0xf]
                  %498 = vst [vmem:[%s452 + $0x58] sm:$0xf] %v497
                  %v499 = vld [vmem:[%s451 + $0x5c] sm:$0xf]
                  %500 = vst [vmem:[%s452 + $0x5c] sm:$0xf] %v499
                  %v501 = vld [vmem:[%s451 + $0x60] sm:$0xf]
                  %502 = vst [vmem:[%s452 + $0x60] sm:$0xf] %v501
                  %v503 = vld [vmem:[%s451 + $0x64] sm:$0xf]
                  %504 = vst [vmem:[%s452 + $0x64] sm:$0xf] %v503
                  %v505 = vld [vmem:[%s451 + $0x68] sm:$0xf]
                  %506 = vst [vmem:[%s452 + $0x68] sm:$0xf] %v505
                  %v507 = vld [vmem:[%s451 + $0x6c] sm:$0xf]
                  %508 = vst [vmem:[%s452 + $0x6c] sm:$0xf] %v507
                  %v509 = vld [vmem:[%s451 + $0x70] sm:$0xf]
                  %510 = vst [vmem:[%s452 + $0x70] sm:$0xf] %v509
                  %v511 = vld [vmem:[%s451 + $0x74] sm:$0xf]
                  %512 = vst [vmem:[%s452 + $0x74] sm:$0xf] %v511
                  %v513 = vld [vmem:[%s451 + $0x78] sm:$0xf]
                  %514 = vst [vmem:[%s452 + $0x78] sm:$0xf] %v513
                  %v515 = vld [vmem:[%s451 + $0x7c] sm:$0xf]
                  %516 = vst [vmem:[%s452 + $0x7c] sm:$0xf] %v515
                  %v517 = vld [vmem:[%s451 + $0x200] sm:$0xf]
                  %518 = vst [vmem:[%s452 + $0x80] sm:$0xf] %v517
                  %v519 = vld [vmem:[%s451 + $0x204] sm:$0xf]
                  %520 = vst [vmem:[%s452 + $0x84] sm:$0xf] %v519
                  %v521 = vld [vmem:[%s451 + $0x208] sm:$0xf]
                  %522 = vst [vmem:[%s452 + $0x88] sm:$0xf] %v521
                  %v523 = vld [vmem:[%s451 + $0x20c] sm:$0xf]
                  %524 = vst [vmem:[%s452 + $0x8c] sm:$0xf] %v523
                  %v525 = vld [vmem:[%s451 + $0x210] sm:$0xf]
                  %526 = vst [vmem:[%s452 + $0x90] sm:$0xf] %v525
                  %v527 = vld [vmem:[%s451 + $0x214] sm:$0xf]
                  %528 = vst [vmem:[%s452 + $0x94] sm:$0xf] %v527
                  %v529 = vld [vmem:[%s451 + $0x218] sm:$0xf]
                  %530 = vst [vmem:[%s452 + $0x98] sm:$0xf] %v529
                  %v531 = vld [vmem:[%s451 + $0x21c] sm:$0xf]
                  %532 = vst [vmem:[%s452 + $0x9c] sm:$0xf] %v531
                  %v533 = vld [vmem:[%s451 + $0x220] sm:$0xf]
                  %534 = vst [vmem:[%s452 + $0xa0] sm:$0xf] %v533
                  %v535 = vld [vmem:[%s451 + $0x224] sm:$0xf]
                  %536 = vst [vmem:[%s452 + $0xa4] sm:$0xf] %v535
                  %v537 = vld [vmem:[%s451 + $0x228] sm:$0xf]
                  %538 = vst [vmem:[%s452 + $0xa8] sm:$0xf] %v537
                  %v539 = vld [vmem:[%s451 + $0x22c] sm:$0xf]
                  %540 = vst [vmem:[%s452 + $0xac] sm:$0xf] %v539
                  %v541 = vld [vmem:[%s451 + $0x230] sm:$0xf]
                  %542 = vst [vmem:[%s452 + $0xb0] sm:$0xf] %v541
                  %v543 = vld [vmem:[%s451 + $0x234] sm:$0xf]
                  %544 = vst [vmem:[%s452 + $0xb4] sm:$0xf] %v543
                  %v545 = vld [vmem:[%s451 + $0x238] sm:$0xf]
                  %546 = vst [vmem:[%s452 + $0xb8] sm:$0xf] %v545
                  %v547 = vld [vmem:[%s451 + $0x23c] sm:$0xf]
                  %548 = vst [vmem:[%s452 + $0xbc] sm:$0xf] %v547
                  %v549 = vld [vmem:[%s451 + $0x240] sm:$0xf]
                  %550 = vst [vmem:[%s452 + $0xc0] sm:$0xf] %v549
                  %v551 = vld [vmem:[%s451 + $0x244] sm:$0xf]
                  %552 = vst [vmem:[%s452 + $0xc4] sm:$0xf] %v551
                  %v553 = vld [vmem:[%s451 + $0x248] sm:$0xf]
                  %554 = vst [vmem:[%s452 + $0xc8] sm:$0xf] %v553
                  %v555 = vld [vmem:[%s451 + $0x24c] sm:$0xf]
                  %556 = vst [vmem:[%s452 + $0xcc] sm:$0xf] %v555
                  %v557 = vld [vmem:[%s451 + $0x250] sm:$0xf]
                  %558 = vst [vmem:[%s452 + $0xd0] sm:$0xf] %v557
                  %v559 = vld [vmem:[%s451 + $0x254] sm:$0xf]
                  %560 = vst [vmem:[%s452 + $0xd4] sm:$0xf] %v559
                  %v561 = vld [vmem:[%s451 + $0x258] sm:$0xf]
                  %562 = vst [vmem:[%s452 + $0xd8] sm:$0xf] %v561
                  %v563 = vld [vmem:[%s451 + $0x25c] sm:$0xf]
                  %564 = vst [vmem:[%s452 + $0xdc] sm:$0xf] %v563
                  %v565 = vld [vmem:[%s451 + $0x260] sm:$0xf]
                  %566 = vst [vmem:[%s452 + $0xe0] sm:$0xf] %v565
                  %v567 = vld [vmem:[%s451 + $0x264] sm:$0xf]
                  %568 = vst [vmem:[%s452 + $0xe4] sm:$0xf] %v567
                  %v569 = vld [vmem:[%s451 + $0x268] sm:$0xf]
                  %570 = vst [vmem:[%s452 + $0xe8] sm:$0xf] %v569
                  %v571 = vld [vmem:[%s451 + $0x26c] sm:$0xf]
                  %572 = vst [vmem:[%s452 + $0xec] sm:$0xf] %v571
                  %v573 = vld [vmem:[%s451 + $0x270] sm:$0xf]
                  %574 = vst [vmem:[%s452 + $0xf0] sm:$0xf] %v573
                  %v575 = vld [vmem:[%s451 + $0x274] sm:$0xf]
                  %576 = vst [vmem:[%s452 + $0xf4] sm:$0xf] %v575
                  %v577 = vld [vmem:[%s451 + $0x278] sm:$0xf]
                  %578 = vst [vmem:[%s452 + $0xf8] sm:$0xf] %v577
                  %v579 = vld [vmem:[%s451 + $0x27c] sm:$0xf]
                  %580 = vst [vmem:[%s452 + $0xfc] sm:$0xf] %v579
                  %v581 = vld [vmem:[%s451 + $0x400] sm:$0xf]
                  %582 = vst [vmem:[%s452 + $0x100] sm:$0xf] %v581
                  %v583 = vld [vmem:[%s451 + $0x404] sm:$0xf]
                  %584 = vst [vmem:[%s452 + $0x104] sm:$0xf] %v583
                  %v585 = vld [vmem:[%s451 + $0x408] sm:$0xf]
                  %586 = vst [vmem:[%s452 + $0x108] sm:$0xf] %v585
                  %v587 = vld [vmem:[%s451 + $0x40c] sm:$0xf]
                  %588 = vst [vmem:[%s452 + $0x10c] sm:$0xf] %v587
                  %v589 = vld [vmem:[%s451 + $0x410] sm:$0xf]
                  %590 = vst [vmem:[%s452 + $0x110] sm:$0xf] %v589
                  %v591 = vld [vmem:[%s451 + $0x414] sm:$0xf]
                  %592 = vst [vmem:[%s452 + $0x114] sm:$0xf] %v591
                  %v593 = vld [vmem:[%s451 + $0x418] sm:$0xf]
                  %594 = vst [vmem:[%s452 + $0x118] sm:$0xf] %v593
                  %v595 = vld [vmem:[%s451 + $0x41c] sm:$0xf]
                  %596 = vst [vmem:[%s452 + $0x11c] sm:$0xf] %v595
                  %v597 = vld [vmem:[%s451 + $0x420] sm:$0xf]
                  %598 = vst [vmem:[%s452 + $0x120] sm:$0xf] %v597
                  %v599 = vld [vmem:[%s451 + $0x424] sm:$0xf]
                  %600 = vst [vmem:[%s452 + $0x124] sm:$0xf] %v599
                  %v601 = vld [vmem:[%s451 + $0x428] sm:$0xf]
                  %602 = vst [vmem:[%s452 + $0x128] sm:$0xf] %v601
                  %v603 = vld [vmem:[%s451 + $0x42c] sm:$0xf]
                  %604 = vst [vmem:[%s452 + $0x12c] sm:$0xf] %v603
                  %v605 = vld [vmem:[%s451 + $0x430] sm:$0xf]
                  %606 = vst [vmem:[%s452 + $0x130] sm:$0xf] %v605
                  %v607 = vld [vmem:[%s451 + $0x434] sm:$0xf]
                  %608 = vst [vmem:[%s452 + $0x134] sm:$0xf] %v607
                  %v609 = vld [vmem:[%s451 + $0x438] sm:$0xf]
                  %610 = vst [vmem:[%s452 + $0x138] sm:$0xf] %v609
                  %v611 = vld [vmem:[%s451 + $0x43c] sm:$0xf]
                  %612 = vst [vmem:[%s452 + $0x13c] sm:$0xf] %v611
                  %v613 = vld [vmem:[%s451 + $0x440] sm:$0xf]
                  %614 = vst [vmem:[%s452 + $0x140] sm:$0xf] %v613
                  %v615 = vld [vmem:[%s451 + $0x444] sm:$0xf]
                  %616 = vst [vmem:[%s452 + $0x144] sm:$0xf] %v615
                  %v617 = vld [vmem:[%s451 + $0x448] sm:$0xf]
                  %618 = vst [vmem:[%s452 + $0x148] sm:$0xf] %v617
                  %v619 = vld [vmem:[%s451 + $0x44c] sm:$0xf]
                  %620 = vst [vmem:[%s452 + $0x14c] sm:$0xf] %v619
                  %v621 = vld [vmem:[%s451 + $0x450] sm:$0xf]
                  %622 = vst [vmem:[%s452 + $0x150] sm:$0xf] %v621
                  %v623 = vld [vmem:[%s451 + $0x454] sm:$0xf]
                  %624 = vst [vmem:[%s452 + $0x154] sm:$0xf] %v623
                  %v625 = vld [vmem:[%s451 + $0x458] sm:$0xf]
                  %626 = vst [vmem:[%s452 + $0x158] sm:$0xf] %v625
                  %v627 = vld [vmem:[%s451 + $0x45c] sm:$0xf]
                  %628 = vst [vmem:[%s452 + $0x15c] sm:$0xf] %v627
                  %v629 = vld [vmem:[%s451 + $0x460] sm:$0xf]
                  %630 = vst [vmem:[%s452 + $0x160] sm:$0xf] %v629
                  %v631 = vld [vmem:[%s451 + $0x464] sm:$0xf]
                  %632 = vst [vmem:[%s452 + $0x164] sm:$0xf] %v631
                  %v633 = vld [vmem:[%s451 + $0x468] sm:$0xf]
                  %634 = vst [vmem:[%s452 + $0x168] sm:$0xf] %v633
                  %v635 = vld [vmem:[%s451 + $0x46c] sm:$0xf]
                  %636 = vst [vmem:[%s452 + $0x16c] sm:$0xf] %v635
                  %v637 = vld [vmem:[%s451 + $0x470] sm:$0xf]
                  %638 = vst [vmem:[%s452 + $0x170] sm:$0xf] %v637
                  %v639 = vld [vmem:[%s451 + $0x474] sm:$0xf]
                  %640 = vst [vmem:[%s452 + $0x174] sm:$0xf] %v639
                  %v641 = vld [vmem:[%s451 + $0x478] sm:$0xf]
                  %642 = vst [vmem:[%s452 + $0x178] sm:$0xf] %v641
                  %v643 = vld [vmem:[%s451 + $0x47c] sm:$0xf]
                  %644 = vst [vmem:[%s452 + $0x17c] sm:$0xf] %v643
                  %v645 = vld [vmem:[%s451 + $0x600] sm:$0xf]
                  %646 = vst [vmem:[%s452 + $0x180] sm:$0xf] %v645
                  %v647 = vld [vmem:[%s451 + $0x604] sm:$0xf]
                  %648 = vst [vmem:[%s452 + $0x184] sm:$0xf] %v647
                  %v649 = vld [vmem:[%s451 + $0x608] sm:$0xf]
                  %650 = vst [vmem:[%s452 + $0x188] sm:$0xf] %v649
                  %v651 = vld [vmem:[%s451 + $0x60c] sm:$0xf]
                  %652 = vst [vmem:[%s452 + $0x18c] sm:$0xf] %v651
                  %v653 = vld [vmem:[%s451 + $0x610] sm:$0xf]
                  %654 = vst [vmem:[%s452 + $0x190] sm:$0xf] %v653
                  %v655 = vld [vmem:[%s451 + $0x614] sm:$0xf]
                  %656 = vst [vmem:[%s452 + $0x194] sm:$0xf] %v655
                  %v657 = vld [vmem:[%s451 + $0x618] sm:$0xf]
                  %658 = vst [vmem:[%s452 + $0x198] sm:$0xf] %v657
                  %v659 = vld [vmem:[%s451 + $0x61c] sm:$0xf]
                  %660 = vst [vmem:[%s452 + $0x19c] sm:$0xf] %v659
                  %v661 = vld [vmem:[%s451 + $0x620] sm:$0xf]
                  %662 = vst [vmem:[%s452 + $0x1a0] sm:$0xf] %v661
                  %v663 = vld [vmem:[%s451 + $0x624] sm:$0xf]
                  %664 = vst [vmem:[%s452 + $0x1a4] sm:$0xf] %v663
                  %v665 = vld [vmem:[%s451 + $0x628] sm:$0xf]
                  %666 = vst [vmem:[%s452 + $0x1a8] sm:$0xf] %v665
                  %v667 = vld [vmem:[%s451 + $0x62c] sm:$0xf]
                  %668 = vst [vmem:[%s452 + $0x1ac] sm:$0xf] %v667
                  %v669 = vld [vmem:[%s451 + $0x630] sm:$0xf]
                  %670 = vst [vmem:[%s452 + $0x1b0] sm:$0xf] %v669
                  %v671 = vld [vmem:[%s451 + $0x634] sm:$0xf]
                  %672 = vst [vmem:[%s452 + $0x1b4] sm:$0xf] %v671
                  %v673 = vld [vmem:[%s451 + $0x638] sm:$0xf]
                  %674 = vst [vmem:[%s452 + $0x1b8] sm:$0xf] %v673
                  %v675 = vld [vmem:[%s451 + $0x63c] sm:$0xf]
                  %676 = vst [vmem:[%s452 + $0x1bc] sm:$0xf] %v675
                  %v677 = vld [vmem:[%s451 + $0x640] sm:$0xf]
                  %678 = vst [vmem:[%s452 + $0x1c0] sm:$0xf] %v677
                  %v679 = vld [vmem:[%s451 + $0x644] sm:$0xf]
                  %680 = vst [vmem:[%s452 + $0x1c4] sm:$0xf] %v679
                  %v681 = vld [vmem:[%s451 + $0x648] sm:$0xf]
                  %682 = vst [vmem:[%s452 + $0x1c8] sm:$0xf] %v681
                  %v683 = vld [vmem:[%s451 + $0x64c] sm:$0xf]
                  %684 = vst [vmem:[%s452 + $0x1cc] sm:$0xf] %v683
                  %v685 = vld [vmem:[%s451 + $0x650] sm:$0xf]
                  %686 = vst [vmem:[%s452 + $0x1d0] sm:$0xf] %v685
                  %v687 = vld [vmem:[%s451 + $0x654] sm:$0xf]
                  %688 = vst [vmem:[%s452 + $0x1d4] sm:$0xf] %v687
                  %v689 = vld [vmem:[%s451 + $0x658] sm:$0xf]
                  %690 = vst [vmem:[%s452 + $0x1d8] sm:$0xf] %v689
                  %v691 = vld [vmem:[%s451 + $0x65c] sm:$0xf]
                  %692 = vst [vmem:[%s452 + $0x1dc] sm:$0xf] %v691
                  %v693 = vld [vmem:[%s451 + $0x660] sm:$0xf]
                  %694 = vst [vmem:[%s452 + $0x1e0] sm:$0xf] %v693
                  %v695 = vld [vmem:[%s451 + $0x664] sm:$0xf]
                  %696 = vst [vmem:[%s452 + $0x1e4] sm:$0xf] %v695
                  %v697 = vld [vmem:[%s451 + $0x668] sm:$0xf]
                  %698 = vst [vmem:[%s452 + $0x1e8] sm:$0xf] %v697
                  %v699 = vld [vmem:[%s451 + $0x66c] sm:$0xf]
                  %700 = vst [vmem:[%s452 + $0x1ec] sm:$0xf] %v699
                  %v701 = vld [vmem:[%s451 + $0x670] sm:$0xf]
                  %702 = vst [vmem:[%s452 + $0x1f0] sm:$0xf] %v701
                  %v703 = vld [vmem:[%s451 + $0x674] sm:$0xf]
                  %704 = vst [vmem:[%s452 + $0x1f4] sm:$0xf] %v703
                  %v705 = vld [vmem:[%s451 + $0x678] sm:$0xf]
                  %706 = vst [vmem:[%s452 + $0x1f8] sm:$0xf] %v705
                  %v707 = vld [vmem:[%s451 + $0x67c] sm:$0xf]
                  %708 = vst [vmem:[%s452 + $0x1fc] sm:$0xf] %v707
                $region67: #{dronet_forward.7} parent=54 // loop_footer
                  %s450 = sadd.s32 1, %s446
                $region68: #{dronet_forward.7} parent=54 // loop_footer_branch
                  %445 = sbr.rel target = $region64
                $region69: #{dronet_forward.7} parent=54 // loop_exit
                  _
              $region55: #{dronet_forward.7} parent=39 // pred_fallthru
                _
            $region40: #{dronet_forward.7} parent=35 // pred_fallthru
              _
            // Predicated region
            $region41: #{dronet_forward.7} parent=35 // pred_check
              _
            $region42: #{dronet_forward.7} parent=35 // pred_check_branch
              %168 = sbr.rel (0) target = $region44
            $region43: #{dronet_forward.7} parent=35 // pred_region
              loop: start=0, step=1, limit=1
              $region45: #{dronet_forward.7} parent=43 // loop_pre_header
                _
              $region46: #{dronet_forward.7} parent=43 // loop_header
                %s171 = sphi 0, %s175
                %p172 = scmp.ge.s32.totalorder %s171, 1
                %s176 = sphi %s162, %s162
                %s177 = sphi %s159, %s159
              $region47: #{dronet_forward.7} parent=43 // loop_header_branch
                %174 = sbr.rel (%p172) target = $region51
              $region48: #{dronet_forward.7} parent=43 // loop_body
                %v178 = vld [vmem:[%s176] sm:$0xf]
                %179 = vst [vmem:[%s177] sm:$0xf] %v178
                %v180 = vld [vmem:[%s176 + $0x4] sm:$0xf]
                %181 = vst [vmem:[%s177 + $0x4] sm:$0xf] %v180
                %v182 = vld [vmem:[%s176 + $0x8] sm:$0xf]
                %183 = vst [vmem:[%s177 + $0x8] sm:$0xf] %v182
                %v184 = vld [vmem:[%s176 + $0xc] sm:$0xf]
                %185 = vst [vmem:[%s177 + $0xc] sm:$0xf] %v184
                %v186 = vld [vmem:[%s176 + $0x10] sm:$0xf]
                %187 = vst [vmem:[%s177 + $0x10] sm:$0xf] %v186
                %v188 = vld [vmem:[%s176 + $0x14] sm:$0xf]
                %189 = vst [vmem:[%s177 + $0x14] sm:$0xf] %v188
                %v190 = vld [vmem:[%s176 + $0x18] sm:$0xf]
                %191 = vst [vmem:[%s177 + $0x18] sm:$0xf] %v190
                %v192 = vld [vmem:[%s176 + $0x1c] sm:$0xf]
                %193 = vst [vmem:[%s177 + $0x1c] sm:$0xf] %v192
                %v194 = vld [vmem:[%s176 + $0x20] sm:$0xf]
                %195 = vst [vmem:[%s177 + $0x20] sm:$0xf] %v194
                %v196 = vld [vmem:[%s176 + $0x24] sm:$0xf]
                %197 = vst [vmem:[%s177 + $0x24] sm:$0xf] %v196
                %v198 = vld [vmem:[%s176 + $0x28] sm:$0xf]
                %199 = vst [vmem:[%s177 + $0x28] sm:$0xf] %v198
                %v200 = vld [vmem:[%s176 + $0x2c] sm:$0xf]
                %201 = vst [vmem:[%s177 + $0x2c] sm:$0xf] %v200
                %v202 = vld [vmem:[%s176 + $0x30] sm:$0xf]
                %203 = vst [vmem:[%s177 + $0x30] sm:$0xf] %v202
                %v204 = vld [vmem:[%s176 + $0x34] sm:$0xf]
                %205 = vst [vmem:[%s177 + $0x34] sm:$0xf] %v204
                %v206 = vld [vmem:[%s176 + $0x38] sm:$0xf]
                %207 = vst [vmem:[%s177 + $0x38] sm:$0xf] %v206
                %v208 = vld [vmem:[%s176 + $0x3c] sm:$0xf]
                %209 = vst [vmem:[%s177 + $0x3c] sm:$0xf] %v208
                %v210 = vld [vmem:[%s176 + $0x40] sm:$0xf]
                %211 = vst [vmem:[%s177 + $0x40] sm:$0xf] %v210
                %v212 = vld [vmem:[%s176 + $0x44] sm:$0xf]
                %213 = vst [vmem:[%s177 + $0x44] sm:$0xf] %v212
                %v214 = vld [vmem:[%s176 + $0x48] sm:$0xf]
                %215 = vst [vmem:[%s177 + $0x48] sm:$0xf] %v214
                %v216 = vld [vmem:[%s176 + $0x4c] sm:$0xf]
                %217 = vst [vmem:[%s177 + $0x4c] sm:$0xf] %v216
                %v218 = vld [vmem:[%s176 + $0x50] sm:$0xf]
                %219 = vst [vmem:[%s177 + $0x50] sm:$0xf] %v218
                %v220 = vld [vmem:[%s176 + $0x54] sm:$0xf]
                %221 = vst [vmem:[%s177 + $0x54] sm:$0xf] %v220
                %v222 = vld [vmem:[%s176 + $0x58] sm:$0xf]
                %223 = vst [vmem:[%s177 + $0x58] sm:$0xf] %v222
                %v224 = vld [vmem:[%s176 + $0x5c] sm:$0xf]
                %225 = vst [vmem:[%s177 + $0x5c] sm:$0xf] %v224
                %v226 = vld [vmem:[%s176 + $0x60] sm:$0xf]
                %227 = vst [vmem:[%s177 + $0x60] sm:$0xf] %v226
                %v228 = vld [vmem:[%s176 + $0x64] sm:$0xf]
                %229 = vst [vmem:[%s177 + $0x64] sm:$0xf] %v228
                %v230 = vld [vmem:[%s176 + $0x68] sm:$0xf]
                %231 = vst [vmem:[%s177 + $0x68] sm:$0xf] %v230
                %v232 = vld [vmem:[%s176 + $0x6c] sm:$0xf]
                %233 = vst [vmem:[%s177 + $0x6c] sm:$0xf] %v232
                %v234 = vld [vmem:[%s176 + $0x70] sm:$0xf]
                %235 = vst [vmem:[%s177 + $0x70] sm:$0xf] %v234
                %v236 = vld [vmem:[%s176 + $0x74] sm:$0xf]
                %237 = vst [vmem:[%s177 + $0x74] sm:$0xf] %v236
                %v238 = vld [vmem:[%s176 + $0x78] sm:$0xf]
                %239 = vst [vmem:[%s177 + $0x78] sm:$0xf] %v238
                %v240 = vld [vmem:[%s176 + $0x7c] sm:$0xf]
                %241 = vst [vmem:[%s177 + $0x7c] sm:$0xf] %v240
                %v242 = vld [vmem:[%s176 + $0x200] sm:$0xf]
                %243 = vst [vmem:[%s177 + $0x80] sm:$0xf] %v242
                %v244 = vld [vmem:[%s176 + $0x204] sm:$0xf]
                %245 = vst [vmem:[%s177 + $0x84] sm:$0xf] %v244
                %v246 = vld [vmem:[%s176 + $0x208] sm:$0xf]
                %247 = vst [vmem:[%s177 + $0x88] sm:$0xf] %v246
                %v248 = vld [vmem:[%s176 + $0x20c] sm:$0xf]
                %249 = vst [vmem:[%s177 + $0x8c] sm:$0xf] %v248
                %v250 = vld [vmem:[%s176 + $0x210] sm:$0xf]
                %251 = vst [vmem:[%s177 + $0x90] sm:$0xf] %v250
                %v252 = vld [vmem:[%s176 + $0x214] sm:$0xf]
                %253 = vst [vmem:[%s177 + $0x94] sm:$0xf] %v252
                %v254 = vld [vmem:[%s176 + $0x218] sm:$0xf]
                %255 = vst [vmem:[%s177 + $0x98] sm:$0xf] %v254
                %v256 = vld [vmem:[%s176 + $0x21c] sm:$0xf]
                %257 = vst [vmem:[%s177 + $0x9c] sm:$0xf] %v256
                %v258 = vld [vmem:[%s176 + $0x220] sm:$0xf]
                %259 = vst [vmem:[%s177 + $0xa0] sm:$0xf] %v258
                %v260 = vld [vmem:[%s176 + $0x224] sm:$0xf]
                %261 = vst [vmem:[%s177 + $0xa4] sm:$0xf] %v260
                %v262 = vld [vmem:[%s176 + $0x228] sm:$0xf]
                %263 = vst [vmem:[%s177 + $0xa8] sm:$0xf] %v262
                %v264 = vld [vmem:[%s176 + $0x22c] sm:$0xf]
                %265 = vst [vmem:[%s177 + $0xac] sm:$0xf] %v264
                %v266 = vld [vmem:[%s176 + $0x230] sm:$0xf]
                %267 = vst [vmem:[%s177 + $0xb0] sm:$0xf] %v266
                %v268 = vld [vmem:[%s176 + $0x234] sm:$0xf]
                %269 = vst [vmem:[%s177 + $0xb4] sm:$0xf] %v268
                %v270 = vld [vmem:[%s176 + $0x238] sm:$0xf]
                %271 = vst [vmem:[%s177 + $0xb8] sm:$0xf] %v270
                %v272 = vld [vmem:[%s176 + $0x23c] sm:$0xf]
                %273 = vst [vmem:[%s177 + $0xbc] sm:$0xf] %v272
                %v274 = vld [vmem:[%s176 + $0x240] sm:$0xf]
                %275 = vst [vmem:[%s177 + $0xc0] sm:$0xf] %v274
                %v276 = vld [vmem:[%s176 + $0x244] sm:$0xf]
                %277 = vst [vmem:[%s177 + $0xc4] sm:$0xf] %v276
                %v278 = vld [vmem:[%s176 + $0x248] sm:$0xf]
                %279 = vst [vmem:[%s177 + $0xc8] sm:$0xf] %v278
                %v280 = vld [vmem:[%s176 + $0x24c] sm:$0xf]
                %281 = vst [vmem:[%s177 + $0xcc] sm:$0xf] %v280
                %v282 = vld [vmem:[%s176 + $0x250] sm:$0xf]
                %283 = vst [vmem:[%s177 + $0xd0] sm:$0xf] %v282
                %v284 = vld [vmem:[%s176 + $0x254] sm:$0xf]
                %285 = vst [vmem:[%s177 + $0xd4] sm:$0xf] %v284
                %v286 = vld [vmem:[%s176 + $0x258] sm:$0xf]
                %287 = vst [vmem:[%s177 + $0xd8] sm:$0xf] %v286
                %v288 = vld [vmem:[%s176 + $0x25c] sm:$0xf]
                %289 = vst [vmem:[%s177 + $0xdc] sm:$0xf] %v288
                %v290 = vld [vmem:[%s176 + $0x260] sm:$0xf]
                %291 = vst [vmem:[%s177 + $0xe0] sm:$0xf] %v290
                %v292 = vld [vmem:[%s176 + $0x264] sm:$0xf]
                %293 = vst [vmem:[%s177 + $0xe4] sm:$0xf] %v292
                %v294 = vld [vmem:[%s176 + $0x268] sm:$0xf]
                %295 = vst [vmem:[%s177 + $0xe8] sm:$0xf] %v294
                %v296 = vld [vmem:[%s176 + $0x26c] sm:$0xf]
                %297 = vst [vmem:[%s177 + $0xec] sm:$0xf] %v296
                %v298 = vld [vmem:[%s176 + $0x270] sm:$0xf]
                %299 = vst [vmem:[%s177 + $0xf0] sm:$0xf] %v298
                %v300 = vld [vmem:[%s176 + $0x274] sm:$0xf]
                %301 = vst [vmem:[%s177 + $0xf4] sm:$0xf] %v300
                %v302 = vld [vmem:[%s176 + $0x278] sm:$0xf]
                %303 = vst [vmem:[%s177 + $0xf8] sm:$0xf] %v302
                %v304 = vld [vmem:[%s176 + $0x27c] sm:$0xf]
                %305 = vst [vmem:[%s177 + $0xfc] sm:$0xf] %v304
                %v306 = vld [vmem:[%s176 + $0x400] sm:$0xf]
                %307 = vst [vmem:[%s177 + $0x100] sm:$0xf] %v306
                %v308 = vld [vmem:[%s176 + $0x404] sm:$0xf]
                %309 = vst [vmem:[%s177 + $0x104] sm:$0xf] %v308
                %v310 = vld [vmem:[%s176 + $0x408] sm:$0xf]
                %311 = vst [vmem:[%s177 + $0x108] sm:$0xf] %v310
                %v312 = vld [vmem:[%s176 + $0x40c] sm:$0xf]
                %313 = vst [vmem:[%s177 + $0x10c] sm:$0xf] %v312
                %v314 = vld [vmem:[%s176 + $0x410] sm:$0xf]
                %315 = vst [vmem:[%s177 + $0x110] sm:$0xf] %v314
                %v316 = vld [vmem:[%s176 + $0x414] sm:$0xf]
                %317 = vst [vmem:[%s177 + $0x114] sm:$0xf] %v316
                %v318 = vld [vmem:[%s176 + $0x418] sm:$0xf]
                %319 = vst [vmem:[%s177 + $0x118] sm:$0xf] %v318
                %v320 = vld [vmem:[%s176 + $0x41c] sm:$0xf]
                %321 = vst [vmem:[%s177 + $0x11c] sm:$0xf] %v320
                %v322 = vld [vmem:[%s176 + $0x420] sm:$0xf]
                %323 = vst [vmem:[%s177 + $0x120] sm:$0xf] %v322
                %v324 = vld [vmem:[%s176 + $0x424] sm:$0xf]
                %325 = vst [vmem:[%s177 + $0x124] sm:$0xf] %v324
                %v326 = vld [vmem:[%s176 + $0x428] sm:$0xf]
                %327 = vst [vmem:[%s177 + $0x128] sm:$0xf] %v326
                %v328 = vld [vmem:[%s176 + $0x42c] sm:$0xf]
                %329 = vst [vmem:[%s177 + $0x12c] sm:$0xf] %v328
                %v330 = vld [vmem:[%s176 + $0x430] sm:$0xf]
                %331 = vst [vmem:[%s177 + $0x130] sm:$0xf] %v330
                %v332 = vld [vmem:[%s176 + $0x434] sm:$0xf]
                %333 = vst [vmem:[%s177 + $0x134] sm:$0xf] %v332
                %v334 = vld [vmem:[%s176 + $0x438] sm:$0xf]
                %335 = vst [vmem:[%s177 + $0x138] sm:$0xf] %v334
                %v336 = vld [vmem:[%s176 + $0x43c] sm:$0xf]
                %337 = vst [vmem:[%s177 + $0x13c] sm:$0xf] %v336
                %v338 = vld [vmem:[%s176 + $0x440] sm:$0xf]
                %339 = vst [vmem:[%s177 + $0x140] sm:$0xf] %v338
                %v340 = vld [vmem:[%s176 + $0x444] sm:$0xf]
                %341 = vst [vmem:[%s177 + $0x144] sm:$0xf] %v340
                %v342 = vld [vmem:[%s176 + $0x448] sm:$0xf]
                %343 = vst [vmem:[%s177 + $0x148] sm:$0xf] %v342
                %v344 = vld [vmem:[%s176 + $0x44c] sm:$0xf]
                %345 = vst [vmem:[%s177 + $0x14c] sm:$0xf] %v344
                %v346 = vld [vmem:[%s176 + $0x450] sm:$0xf]
                %347 = vst [vmem:[%s177 + $0x150] sm:$0xf] %v346
                %v348 = vld [vmem:[%s176 + $0x454] sm:$0xf]
                %349 = vst [vmem:[%s177 + $0x154] sm:$0xf] %v348
                %v350 = vld [vmem:[%s176 + $0x458] sm:$0xf]
                %351 = vst [vmem:[%s177 + $0x158] sm:$0xf] %v350
                %v352 = vld [vmem:[%s176 + $0x45c] sm:$0xf]
                %353 = vst [vmem:[%s177 + $0x15c] sm:$0xf] %v352
                %v354 = vld [vmem:[%s176 + $0x460] sm:$0xf]
                %355 = vst [vmem:[%s177 + $0x160] sm:$0xf] %v354
                %v356 = vld [vmem:[%s176 + $0x464] sm:$0xf]
                %357 = vst [vmem:[%s177 + $0x164] sm:$0xf] %v356
                %v358 = vld [vmem:[%s176 + $0x468] sm:$0xf]
                %359 = vst [vmem:[%s177 + $0x168] sm:$0xf] %v358
                %v360 = vld [vmem:[%s176 + $0x46c] sm:$0xf]
                %361 = vst [vmem:[%s177 + $0x16c] sm:$0xf] %v360
                %v362 = vld [vmem:[%s176 + $0x470] sm:$0xf]
                %363 = vst [vmem:[%s177 + $0x170] sm:$0xf] %v362
                %v364 = vld [vmem:[%s176 + $0x474] sm:$0xf]
                %365 = vst [vmem:[%s177 + $0x174] sm:$0xf] %v364
                %v366 = vld [vmem:[%s176 + $0x478] sm:$0xf]
                %367 = vst [vmem:[%s177 + $0x178] sm:$0xf] %v366
                %v368 = vld [vmem:[%s176 + $0x47c] sm:$0xf]
                %369 = vst [vmem:[%s177 + $0x17c] sm:$0xf] %v368
                %v370 = vld [vmem:[%s176 + $0x600] sm:$0xf]
                %371 = vst [vmem:[%s177 + $0x180] sm:$0xf] %v370
                %v372 = vld [vmem:[%s176 + $0x604] sm:$0xf]
                %373 = vst [vmem:[%s177 + $0x184] sm:$0xf] %v372
                %v374 = vld [vmem:[%s176 + $0x608] sm:$0xf]
                %375 = vst [vmem:[%s177 + $0x188] sm:$0xf] %v374
                %v376 = vld [vmem:[%s176 + $0x60c] sm:$0xf]
                %377 = vst [vmem:[%s177 + $0x18c] sm:$0xf] %v376
                %v378 = vld [vmem:[%s176 + $0x610] sm:$0xf]
                %379 = vst [vmem:[%s177 + $0x190] sm:$0xf] %v378
                %v380 = vld [vmem:[%s176 + $0x614] sm:$0xf]
                %381 = vst [vmem:[%s177 + $0x194] sm:$0xf] %v380
                %v382 = vld [vmem:[%s176 + $0x618] sm:$0xf]
                %383 = vst [vmem:[%s177 + $0x198] sm:$0xf] %v382
                %v384 = vld [vmem:[%s176 + $0x61c] sm:$0xf]
                %385 = vst [vmem:[%s177 + $0x19c] sm:$0xf] %v384
                %v386 = vld [vmem:[%s176 + $0x620] sm:$0xf]
                %387 = vst [vmem:[%s177 + $0x1a0] sm:$0xf] %v386
                %v388 = vld [vmem:[%s176 + $0x624] sm:$0xf]
                %389 = vst [vmem:[%s177 + $0x1a4] sm:$0xf] %v388
                %v390 = vld [vmem:[%s176 + $0x628] sm:$0xf]
                %391 = vst [vmem:[%s177 + $0x1a8] sm:$0xf] %v390
                %v392 = vld [vmem:[%s176 + $0x62c] sm:$0xf]
                %393 = vst [vmem:[%s177 + $0x1ac] sm:$0xf] %v392
                %v394 = vld [vmem:[%s176 + $0x630] sm:$0xf]
                %395 = vst [vmem:[%s177 + $0x1b0] sm:$0xf] %v394
                %v396 = vld [vmem:[%s176 + $0x634] sm:$0xf]
                %397 = vst [vmem:[%s177 + $0x1b4] sm:$0xf] %v396
                %v398 = vld [vmem:[%s176 + $0x638] sm:$0xf]
                %399 = vst [vmem:[%s177 + $0x1b8] sm:$0xf] %v398
                %v400 = vld [vmem:[%s176 + $0x63c] sm:$0xf]
                %401 = vst [vmem:[%s177 + $0x1bc] sm:$0xf] %v400
                %v402 = vld [vmem:[%s176 + $0x640] sm:$0xf]
                %403 = vst [vmem:[%s177 + $0x1c0] sm:$0xf] %v402
                %v404 = vld [vmem:[%s176 + $0x644] sm:$0xf]
                %405 = vst [vmem:[%s177 + $0x1c4] sm:$0xf] %v404
                %v406 = vld [vmem:[%s176 + $0x648] sm:$0xf]
                %407 = vst [vmem:[%s177 + $0x1c8] sm:$0xf] %v406
                %v408 = vld [vmem:[%s176 + $0x64c] sm:$0xf]
                %409 = vst [vmem:[%s177 + $0x1cc] sm:$0xf] %v408
                %v410 = vld [vmem:[%s176 + $0x650] sm:$0xf]
                %411 = vst [vmem:[%s177 + $0x1d0] sm:$0xf] %v410
                %v412 = vld [vmem:[%s176 + $0x654] sm:$0xf]
                %413 = vst [vmem:[%s177 + $0x1d4] sm:$0xf] %v412
                %v414 = vld [vmem:[%s176 + $0x658] sm:$0xf]
                %415 = vst [vmem:[%s177 + $0x1d8] sm:$0xf] %v414
                %v416 = vld [vmem:[%s176 + $0x65c] sm:$0xf]
                %417 = vst [vmem:[%s177 + $0x1dc] sm:$0xf] %v416
                %v418 = vld [vmem:[%s176 + $0x660] sm:$0xf]
                %419 = vst [vmem:[%s177 + $0x1e0] sm:$0xf] %v418
                %v420 = vld [vmem:[%s176 + $0x664] sm:$0xf]
                %421 = vst [vmem:[%s177 + $0x1e4] sm:$0xf] %v420
                %v422 = vld [vmem:[%s176 + $0x668] sm:$0xf]
                %423 = vst [vmem:[%s177 + $0x1e8] sm:$0xf] %v422
                %v424 = vld [vmem:[%s176 + $0x66c] sm:$0xf]
                %425 = vst [vmem:[%s177 + $0x1ec] sm:$0xf] %v424
                %v426 = vld [vmem:[%s176 + $0x670] sm:$0xf]
                %427 = vst [vmem:[%s177 + $0x1f0] sm:$0xf] %v426
                %v428 = vld [vmem:[%s176 + $0x674] sm:$0xf]
                %429 = vst [vmem:[%s177 + $0x1f4] sm:$0xf] %v428
                %v430 = vld [vmem:[%s176 + $0x678] sm:$0xf]
                %431 = vst [vmem:[%s177 + $0x1f8] sm:$0xf] %v430
                %v432 = vld [vmem:[%s176 + $0x67c] sm:$0xf]
                %433 = vst [vmem:[%s177 + $0x1fc] sm:$0xf] %v432
              $region49: #{dronet_forward.7} parent=43 // loop_footer
                %s175 = sadd.s32 1, %s171
              $region50: #{dronet_forward.7} parent=43 // loop_footer_branch
                %170 = sbr.rel target = $region46
              $region51: #{dronet_forward.7} parent=43 // loop_exit
                _
            $region44: #{dronet_forward.7} parent=35 // pred_fallthru
              _
          $region36: #{dronet_forward.7} parent=31 // pred_fallthru
            _
          %709 = vnop
        $region32: #{dronet_forward.7} parent=27 // pred_fallthru
          _
      $region28: #{dronet_forward.7} parent=5 // pred_fallthru
        _
      %p710 = scmp.le.s32.totalorder 1, %s10
      %p711 = scmp.lt.s32.totalorder %s10, 5
      %p712 = pnand %p710, %p711
      %p713 = pneg %p712
      // Predicated region
      $region70: #{dronet_forward.7} parent=5 // pred_check
        _
      $region71: #{dronet_forward.7} parent=5 // pred_check_branch
        %715 = sbr.rel (%p712) target = $region73
      $region72: #{dronet_forward.7} parent=5 // pred_region
        %s716 = ssub.s32 %s10, 1
        %s717 = sand.u32 %s23, 1
        %s718 = sand.u32 %s23, 1
        %s719 = smul.addr %s718, 512
        %s720 = scalar_lea.vmem [#allocation2], %s719
        // Predicated region
        $region74: #{dronet_forward.7} parent=72 // pred_check
          %p721 = pneg %p36
        $region75: #{dronet_forward.7} parent=72 // pred_check_branch
          %723 = sbr.rel (%p721) target = $region77
        $region76: #{dronet_forward.7} parent=72 // pred_region
          _
        $region77: #{dronet_forward.7} parent=72 // pred_fallthru
          _
        %s724 = sand.u32 %s23, 1
        %s725 = sand.u32 %s23, 1
        %s726 = smul.addr %s725, 512
        %s727 = scalar_lea.vmem [#allocation2], %s726
        %p728 = pneg %p36
        %p729 = pneg %p33
        %p730 = pneg %p57
        %p731 = pneg %p54
        %p732 = pneg %p78
        %p733 = pneg %p75
        %p734 = pneg %p99
        %p735 = pneg %p96
        %p736 = pneg %p125
        %p737 = pneg %p122
        %s738 = smul.u32 32, %s15
        %p739 = scmp.lt.s32.totalorder %s738, 127
        %s740 = scalar_select %p739, %s738, 127
        %s741 = smul.addr %s740, 8
        %s742 = scalar_lea.vmem %s4, %s741
        %s743 = smul.u32 32, %s15
        %s744 = smul.u32 32, %s15
        %p745 = scmp.lt.s32.totalorder %s744, 127
        %s746 = scalar_select %p745, %s744, 127
        %s747 = smul.addr %s746, 8
        %s748 = scalar_lea.vmem %s4, %s747
        %s749 = smul.u32 32, %s15
        %v751 = vld [vmem:[%s1] sm:$0xf]
        %v752 = vld [vmem:[%s1 + $0x4] sm:$0xf]
        %v753 = vld [vmem:[%s1 + $0x8] sm:$0xf]
        %v754 = vld [vmem:[%s1 + $0xc] sm:$0xf]
        %v755 = vld [vmem:[%s1 + $0x10] sm:$0xf]
        %v756 = vld [vmem:[%s1 + $0x14] sm:$0xf]
        %v757 = vld [vmem:[%s1 + $0x18] sm:$0xf]
        %v758 = vld [vmem:[%s1 + $0x1c] sm:$0xf]
        %v759 = vld [vmem:[%s1 + $0x20] sm:$0xf]
        %v760 = vld [vmem:[%s1 + $0x24] sm:$0xf]
        %v761 = vld [vmem:[%s1 + $0x28] sm:$0xf]
        %v762 = vld [vmem:[%s1 + $0x2c] sm:$0xf]
        %v763 = vld [vmem:[%s1 + $0x30] sm:$0xf]
        %v764 = vld [vmem:[%s1 + $0x34] sm:$0xf]
        %v765 = vld [vmem:[%s1 + $0x38] sm:$0xf]
        %v766 = vld [vmem:[%s1 + $0x3c] sm:$0xf]
        %v767 = vld [vmem:[%s720] sm:$0xf]
        %v768 = vld [vmem:[%s720 + $0x4] sm:$0xf]
        %v769 = vld [vmem:[%s720 + $0x8] sm:$0xf]
        %v770 = vld [vmem:[%s720 + $0xc] sm:$0xf]
        %v771 = vld [vmem:[%s720 + $0x10] sm:$0xf]
        %v772 = vld [vmem:[%s720 + $0x14] sm:$0xf]
        %v773 = vld [vmem:[%s720 + $0x18] sm:$0xf]
        %v774 = vld [vmem:[%s720 + $0x1c] sm:$0xf]
        %v775 = vld [vmem:[%s720 + $0x20] sm:$0xf]
        %v776 = vld [vmem:[%s720 + $0x24] sm:$0xf]
        %v777 = vld [vmem:[%s720 + $0x28] sm:$0xf]
        %v778 = vld [vmem:[%s720 + $0x2c] sm:$0xf]
        %v779 = vld [vmem:[%s720 + $0x30] sm:$0xf]
        %v780 = vld [vmem:[%s720 + $0x34] sm:$0xf]
        %v781 = vld [vmem:[%s720 + $0x38] sm:$0xf]
        %v782 = vld [vmem:[%s720 + $0x3c] sm:$0xf]
        %v783 = vld [vmem:[%s720 + $0x40] sm:$0xf]
        %v784 = vld [vmem:[%s720 + $0x44] sm:$0xf]
        %v785 = vld [vmem:[%s720 + $0x48] sm:$0xf]
        %v786 = vld [vmem:[%s720 + $0x4c] sm:$0xf]
        %v787 = vld [vmem:[%s720 + $0x50] sm:$0xf]
        %v788 = vld [vmem:[%s720 + $0x54] sm:$0xf]
        %v789 = vld [vmem:[%s720 + $0x58] sm:$0xf]
        %v790 = vld [vmem:[%s720 + $0x5c] sm:$0xf]
        %v791 = vld [vmem:[%s720 + $0x60] sm:$0xf]
        %v792 = vld [vmem:[%s720 + $0x64] sm:$0xf]
        %v793 = vld [vmem:[%s720 + $0x68] sm:$0xf]
        %v794 = vld [vmem:[%s720 + $0x6c] sm:$0xf]
        %v795 = vld [vmem:[%s720 + $0x70] sm:$0xf]
        %v796 = vld [vmem:[%s720 + $0x74] sm:$0xf]
        %v797 = vld [vmem:[%s720 + $0x78] sm:$0xf]
        %v798 = vld [vmem:[%s720 + $0x7c] sm:$0xf]
        %v831 = vunpack.c.l.b16 %v767
        %v832 = vunpack.c.l.b16 %v768
        %v833 = vunpack.c.l.b16 %v769
        %v834 = vunpack.c.l.b16 %v770
        %v835 = vunpack.c.l.b16 %v771
        %v836 = vunpack.c.l.b16 %v772
        %v837 = vunpack.c.l.b16 %v773
        %v838 = vunpack.c.l.b16 %v774
        %v839 = vunpack.c.l.b16 %v775
        %v840 = vunpack.c.l.b16 %v776
        %v841 = vunpack.c.l.b16 %v777
        %v842 = vunpack.c.l.b16 %v778
        %v843 = vunpack.c.l.b16 %v779
        %v844 = vunpack.c.l.b16 %v780
        %v845 = vunpack.c.l.b16 %v781
        %v846 = vunpack.c.l.b16 %v782
        %v847 = vunpack.c.l.b16 %v783
        %v848 = vunpack.c.l.b16 %v784
        %v849 = vunpack.c.l.b16 %v785
        %v850 = vunpack.c.l.b16 %v786
        %v851 = vunpack.c.l.b16 %v787
        %v852 = vunpack.c.l.b16 %v788
        %v853 = vunpack.c.l.b16 %v789
        %v854 = vunpack.c.l.b16 %v790
        %v855 = vunpack.c.l.b16 %v791
        %v856 = vunpack.c.l.b16 %v792
        %v857 = vunpack.c.l.b16 %v793
        %v858 = vunpack.c.l.b16 %v794
        %v859 = vunpack.c.l.b16 %v795
        %v860 = vunpack.c.l.b16 %v796
        %v861 = vunpack.c.l.b16 %v797
        %v862 = vunpack.c.l.b16 %v798
        %v863 = vpack.c.b16 %v832, %v831
        %v864 = vpack.c.b16 %v834, %v833
        %v865 = vpack.c.b16 %v836, %v835
        %v866 = vpack.c.b16 %v838, %v837
        %v867 = vpack.c.b16 %v840, %v839
        %v868 = vpack.c.b16 %v842, %v841
        %v869 = vpack.c.b16 %v844, %v843
        %v870 = vpack.c.b16 %v846, %v845
        %v871 = vpack.c.b16 %v848, %v847
        %v872 = vpack.c.b16 %v850, %v849
        %v873 = vpack.c.b16 %v852, %v851
        %v874 = vpack.c.b16 %v854, %v853
        %v875 = vpack.c.b16 %v856, %v855
        %v876 = vpack.c.b16 %v858, %v857
        %v877 = vpack.c.b16 %v860, %v859
        %v878 = vpack.c.b16 %v862, %v861
        %v911 = vunpack.c.l.b16 %v751
        %v912 = vunpack.c.l.b16 %v752
        %v913 = vunpack.c.l.b16 %v753
        %v914 = vunpack.c.l.b16 %v754
        %v915 = vunpack.c.l.b16 %v755
        %v916 = vunpack.c.l.b16 %v756
        %v917 = vunpack.c.l.b16 %v757
        %v918 = vunpack.c.l.b16 %v758
        %v919 = vunpack.c.l.b16 %v759
        %v920 = vunpack.c.l.b16 %v760
        %v921 = vunpack.c.l.b16 %v761
        %v922 = vunpack.c.l.b16 %v762
        %v923 = vunpack.c.l.b16 %v763
        %v924 = vunpack.c.l.b16 %v764
        %v925 = vunpack.c.l.b16 %v765
        %v926 = vunpack.c.l.b16 %v766
        %v927 = vpack.c.b16 %v912, %v911
        %v928 = vpack.c.b16 %v914, %v913
        %v929 = vpack.c.b16 %v916, %v915
        %v930 = vpack.c.b16 %v918, %v917
        %v931 = vpack.c.b16 %v920, %v919
        %v932 = vpack.c.b16 %v922, %v921
        %v933 = vpack.c.b16 %v924, %v923
        %v934 = vpack.c.b16 %v926, %v925
        %943 = vmatprep.subr.bf16.mxu0 0
        %944 = vmatpush1.bf16.msra.mxu0 %v927
        %945 = vmatprep.subr.bf16.mxu0 0
        %946 = vmatpush1.bf16.msra.mxu0 %v928
        %947 = vmatprep.subr.bf16.mxu0 0
        %948 = vmatpush1.bf16.msra.mxu0 %v929
        %949 = vmatprep.subr.bf16.mxu0 0
        %950 = vmatpush1.bf16.msra.mxu0 %v930
        %951 = vmatprep.subr.bf16.mxu0 0
        %952 = vmatpush1.bf16.msra.mxu0 %v931
        %953 = vmatprep.subr.bf16.mxu0 0
        %954 = vmatpush1.bf16.msra.mxu0 %v932
        %955 = vmatprep.subr.bf16.mxu0 0
        %956 = vmatpush1.bf16.msra.mxu0 %v933
        %957 = vmatprep.subr.bf16.mxu0 0
        %958 = vmatpush1.bf16.msra.mxu0 %v934
        %959 = vmatprep.subr.bf16.mxu0 0
        %960 = vmatpush1.bf16.msra.mxu0 0
        %961 = vmatprep.subr.bf16.mxu0 0
        %962 = vmatpush1.bf16.msra.mxu0 0
        %963 = vmatprep.subr.bf16.mxu0 0
        %964 = vmatpush1.bf16.msra.mxu0 0
        %965 = vmatprep.subr.bf16.mxu0 0
        %966 = vmatpush1.bf16.msra.mxu0 0
        %967 = vmatprep.subr.bf16.mxu0 0
        %968 = vmatpush1.bf16.msra.mxu0 0
        %969 = vmatprep.subr.bf16.mxu0 0
        %970 = vmatpush1.bf16.msra.mxu0 0
        %971 = vmatprep.subr.bf16.mxu0 0
        %972 = vmatpush1.bf16.msra.mxu0 0
        %973 = vmatprep.subr.bf16.mxu0 0
        %974 = vmatpush1.bf16.msra.mxu0 0
        %975 = vmatprep.mubr.bf16.mxu0 0
        %976 = vmatmul.mubr.bf16.gmra.mrb[0].mxu0 %v863
        %v977 = vpop.f32.mrb[0].mxu0
        %v978 = vadd.f32 0.0, %v977
        %v979 = vpop.f32.mrb[0].mxu0
        %v980 = vpop.f32.mrb[0].mxu0
        %v981 = vadd.f32 0.0, %v980
        %v982 = vpop.f32.mrb[0].mxu0
        %983 = vmatprep.mubr.bf16.mxu0 0
        %984 = vmatmul.mubr.bf16.gmra.mrb[0].mxu0 %v864
        %v985 = vpop.f32.mrb[0].mxu0
        %v986 = vadd.f32 0.0, %v985
        %v987 = vpop.f32.mrb[0].mxu0
        %v988 = vpop.f32.mrb[0].mxu0
        %v989 = vadd.f32 0.0, %v988
        %v990 = vpop.f32.mrb[0].mxu0
        %991 = vmatprep.mubr.bf16.mxu0 0
        %992 = vmatmul.mubr.bf16.gmra.mrb[0].mxu0 %v865
        %v993 = vpop.f32.mrb[0].mxu0
        %v994 = vadd.f32 0.0, %v993
        %v995 = vpop.f32.mrb[0].mxu0
        %v996 = vpop.f32.mrb[0].mxu0
        %v997 = vadd.f32 0.0, %v996
        %v998 = vpop.f32.mrb[0].mxu0
        %999 = vmatprep.mubr.bf16.mxu0 0
        %1000 = vmatmul.mubr.bf16.gmra.mrb[0].mxu0 %v866
        %v1001 = vpop.f32.mrb[0].mxu0
        %v1002 = vadd.f32 0.0, %v1001
        %v1003 = vpop.f32.mrb[0].mxu0
        %v1004 = vpop.f32.mrb[0].mxu0
        %v1005 = vadd.f32 0.0, %v1004
        %v1006 = vpop.f32.mrb[0].mxu0
        %1007 = vmatprep.mubr.bf16.mxu0 0
        %1008 = vmatmul.mubr.bf16.gmra.mrb[0].mxu0 %v867
        %v1009 = vpop.f32.mrb[0].mxu0
        %v1010 = vadd.f32 0.0, %v1009
        %v1011 = vpop.f32.mrb[0].mxu0
        %v1012 = vpop.f32.mrb[0].mxu0
        %v1013 = vadd.f32 0.0, %v1012
        %v1014 = vpop.f32.mrb[0].mxu0
        %1015 = vmatprep.mubr.bf16.mxu0 0
        %1016 = vmatmul.mubr.bf16.gmra.mrb[0].mxu0 %v868
        %v1017 = vpop.f32.mrb[0].mxu0
        %v1018 = vadd.f32 0.0, %v1017
        %v1019 = vpop.f32.mrb[0].mxu0
        %v1020 = vpop.f32.mrb[0].mxu0
        %v1021 = vadd.f32 0.0, %v1020
        %v1022 = vpop.f32.mrb[0].mxu0
        %1023 = vmatprep.mubr.bf16.mxu0 0
        %1024 = vmatmul.mubr.bf16.gmra.mrb[0].mxu0 %v869
        %v1025 = vpop.f32.mrb[0].mxu0
        %v1026 = vadd.f32 0.0, %v1025
        %v1027 = vpop.f32.mrb[0].mxu0
        %v1028 = vpop.f32.mrb[0].mxu0
        %v1029 = vadd.f32 0.0, %v1028
        %v1030 = vpop.f32.mrb[0].mxu0
        %1031 = vmatprep.mubr.bf16.mxu0 0
        %1032 = vmatmul.mubr.bf16.gmra.mrb[0].mxu0 %v870
        %v1033 = vpop.f32.mrb[0].mxu0
        %v1034 = vadd.f32 0.0, %v1033
        %v1035 = vpop.f32.mrb[0].mxu0
        %v1036 = vpop.f32.mrb[0].mxu0
        %v1037 = vadd.f32 0.0, %v1036
        %v1038 = vpop.f32.mrb[0].mxu0
        %1039 = vmatprep.mubr.bf16.mxu0 0
        %1040 = vmatmul.mubr.bf16.gmra.mrb[0].mxu0 %v871
        %v1041 = vpop.f32.mrb[0].mxu0
        %v1042 = vadd.f32 0.0, %v1041
        %v1043 = vpop.f32.mrb[0].mxu0
        %v1044 = vpop.f32.mrb[0].mxu0
        %v1045 = vadd.f32 0.0, %v1044
        %v1046 = vpop.f32.mrb[0].mxu0
        %1047 = vmatprep.mubr.bf16.mxu0 0
        %1048 = vmatmul.mubr.bf16.gmra.mrb[0].mxu0 %v872
        %v1049 = vpop.f32.mrb[0].mxu0
        %v1050 = vadd.f32 0.0, %v1049
        %v1051 = vpop.f32.mrb[0].mxu0
        %v1052 = vpop.f32.mrb[0].mxu0
        %v1053 = vadd.f32 0.0, %v1052
        %v1054 = vpop.f32.mrb[0].mxu0
        %1055 = vmatprep.mubr.bf16.mxu0 0
        %1056 = vmatmul.mubr.bf16.gmra.mrb[0].mxu0 %v873
        %v1057 = vpop.f32.mrb[0].mxu0
        %v1058 = vadd.f32 0.0, %v1057
        %v1059 = vpop.f32.mrb[0].mxu0
        %v1060 = vpop.f32.mrb[0].mxu0
        %v1061 = vadd.f32 0.0, %v1060
        %v1062 = vpop.f32.mrb[0].mxu0
        %1063 = vmatprep.mubr.bf16.mxu0 0
        %1064 = vmatmul.mubr.bf16.gmra.mrb[0].mxu0 %v874
        %v1065 = vpop.f32.mrb[0].mxu0
        %v1066 = vadd.f32 0.0, %v1065
        %v1067 = vpop.f32.mrb[0].mxu0
        %v1068 = vpop.f32.mrb[0].mxu0
        %v1069 = vadd.f32 0.0, %v1068
        %v1070 = vpop.f32.mrb[0].mxu0
        %1071 = vmatprep.mubr.bf16.mxu0 0
        %1072 = vmatmul.mubr.bf16.gmra.mrb[0].mxu0 %v875
        %v1073 = vpop.f32.mrb[0].mxu0
        %v1074 = vadd.f32 0.0, %v1073
        %v1075 = vpop.f32.mrb[0].mxu0
        %v1076 = vpop.f32.mrb[0].mxu0
        %v1077 = vadd.f32 0.0, %v1076
        %v1078 = vpop.f32.mrb[0].mxu0
        %1079 = vmatprep.mubr.bf16.mxu0 0
        %1080 = vmatmul.mubr.bf16.gmra.mrb[0].mxu0 %v876
        %v1081 = vpop.f32.mrb[0].mxu0
        %v1082 = vadd.f32 0.0, %v1081
        %v1083 = vpop.f32.mrb[0].mxu0
        %v1084 = vpop.f32.mrb[0].mxu0
        %v1085 = vadd.f32 0.0, %v1084
        %v1086 = vpop.f32.mrb[0].mxu0
        %1087 = vmatprep.mubr.bf16.mxu0 0
        %1088 = vmatmul.mubr.bf16.gmra.mrb[0].mxu0 %v877
        %v1089 = vpop.f32.mrb[0].mxu0
        %v1090 = vadd.f32 0.0, %v1089
        %v1091 = vpop.f32.mrb[0].mxu0
        %v1092 = vpop.f32.mrb[0].mxu0
        %v1093 = vadd.f32 0.0, %v1092
        %v1094 = vpop.f32.mrb[0].mxu0
        %1095 = vmatprep.mubr.bf16.mxu0 0
        %1096 = vmatmul.mubr.bf16.gmra.mrb[0].mxu0 %v878
        %v1097 = vpop.f32.mrb[0].mxu0
        %v1098 = vadd.f32 0.0, %v1097
        %v1099 = vpop.f32.mrb[0].mxu0
        %v1100 = vpop.f32.mrb[0].mxu0
        %v1101 = vadd.f32 0.0, %v1100
        %v1102 = vpop.f32.mrb[0].mxu0
        %1103 = vdwg.mxu0
        %s1104 = scalar_lea.vmem %s720, 128 [#allocation2]
        %v1105 = vld [vmem:[%s1104] sm:$0xf]
        %v1106 = vld [vmem:[%s1104 + $0x4] sm:$0xf]
        %v1107 = vld [vmem:[%s1104 + $0x8] sm:$0xf]
        %v1108 = vld [vmem:[%s1104 + $0xc] sm:$0xf]
        %v1109 = vld [vmem:[%s1104 + $0x10] sm:$0xf]
        %v1110 = vld [vmem:[%s1104 + $0x14] sm:$0xf]
        %v1111 = vld [vmem:[%s1104 + $0x18] sm:$0xf]
        %v1112 = vld [vmem:[%s1104 + $0x1c] sm:$0xf]
        %v1113 = vld [vmem:[%s1104 + $0x20] sm:$0xf]
        %v1114 = vld [vmem:[%s1104 + $0x24] sm:$0xf]
        %v1115 = vld [vmem:[%s1104 + $0x28] sm:$0xf]
        %v1116 = vld [vmem:[%s1104 + $0x2c] sm:$0xf]
        %v1117 = vld [vmem:[%s1104 + $0x30] sm:$0xf]
        %v1118 = vld [vmem:[%s1104 + $0x34] sm:$0xf]
        %v1119 = vld [vmem:[%s1104 + $0x38] sm:$0xf]
        %v1120 = vld [vmem:[%s1104 + $0x3c] sm:$0xf]
        %v1121 = vld [vmem:[%s1104 + $0x40] sm:$0xf]
        %v1122 = vld [vmem:[%s1104 + $0x44] sm:$0xf]
        %v1123 = vld [vmem:[%s1104 + $0x48] sm:$0xf]
        %v1124 = vld [vmem:[%s1104 + $0x4c] sm:$0xf]
        %v1125 = vld [vmem:[%s1104 + $0x50] sm:$0xf]
        %v1126 = vld [vmem:[%s1104 + $0x54] sm:$0xf]
        %v1127 = vld [vmem:[%s1104 + $0x58] sm:$0xf]
        %v1128 = vld [vmem:[%s1104 + $0x5c] sm:$0xf]
        %v1129 = vld [vmem:[%s1104 + $0x60] sm:$0xf]
        %v1130 = vld [vmem:[%s1104 + $0x64] sm:$0xf]
        %v1131 = vld [vmem:[%s1104 + $0x68] sm:$0xf]
        %v1132 = vld [vmem:[%s1104 + $0x6c] sm:$0xf]
        %v1133 = vld [vmem:[%s1104 + $0x70] sm:$0xf]
        %v1134 = vld [vmem:[%s1104 + $0x74] sm:$0xf]
        %v1135 = vld [vmem:[%s1104 + $0x78] sm:$0xf]
        %v1136 = vld [vmem:[%s1104 + $0x7c] sm:$0xf]
        %v1169 = vunpack.c.l.b16 %v1105
        %v1170 = vunpack.c.l.b16 %v1106
        %v1171 = vunpack.c.l.b16 %v1107
        %v1172 = vunpack.c.l.b16 %v1108
        %v1173 = vunpack.c.l.b16 %v1109
        %v1174 = vunpack.c.l.b16 %v1110
        %v1175 = vunpack.c.l.b16 %v1111
        %v1176 = vunpack.c.l.b16 %v1112
        %v1177 = vunpack.c.l.b16 %v1113
        %v1178 = vunpack.c.l.b16 %v1114
        %v1179 = vunpack.c.l.b16 %v1115
        %v1180 = vunpack.c.l.b16 %v1116
        %v1181 = vunpack.c.l.b16 %v1117
        %v1182 = vunpack.c.l.b16 %v1118
        %v1183 = vunpack.c.l.b16 %v1119
        %v1184 = vunpack.c.l.b16 %v1120
        %v1185 = vunpack.c.l.b16 %v1121
        %v1186 = vunpack.c.l.b16 %v1122
        %v1187 = vunpack.c.l.b16 %v1123
        %v1188 = vunpack.c.l.b16 %v1124
        %v1189 = vunpack.c.l.b16 %v1125
        %v1190 = vunpack.c.l.b16 %v1126
        %v1191 = vunpack.c.l.b16 %v1127
        %v1192 = vunpack.c.l.b16 %v1128
        %v1193 = vunpack.c.l.b16 %v1129
        %v1194 = vunpack.c.l.b16 %v1130
        %v1195 = vunpack.c.l.b16 %v1131
        %v1196 = vunpack.c.l.b16 %v1132
        %v1197 = vunpack.c.l.b16 %v1133
        %v1198 = vunpack.c.l.b16 %v1134
        %v1199 = vunpack.c.l.b16 %v1135
        %v1200 = vunpack.c.l.b16 %v1136
        %v1201 = vpack.c.b16 %v1170, %v1169
        %v1202 = vpack.c.b16 %v1172, %v1171
        %v1203 = vpack.c.b16 %v1174, %v1173
        %v1204 = vpack.c.b16 %v1176, %v1175
        %v1205 = vpack.c.b16 %v1178, %v1177
        %v1206 = vpack.c.b16 %v1180, %v1179
        %v1207 = vpack.c.b16 %v1182, %v1181
        %v1208 = vpack.c.b16 %v1184, %v1183
        %v1209 = vpack.c.b16 %v1186, %v1185
        %v1210 = vpack.c.b16 %v1188, %v1187
        %v1211 = vpack.c.b16 %v1190, %v1189
        %v1212 = vpack.c.b16 %v1192, %v1191
        %v1213 = vpack.c.b16 %v1194, %v1193
        %v1214 = vpack.c.b16 %v1196, %v1195
        %v1215 = vpack.c.b16 %v1198, %v1197
        %v1216 = vpack.c.b16 %v1200, %v1199
        %1233 = vmatprep.subr.bf16.mxu0 0
        %1234 = vmatpush1.bf16.msra.mxu0 %v927
        %1235 = vmatprep.subr.bf16.mxu0 0
        %1236 = vmatpush1.bf16.msra.mxu0 %v928
        %1237 = vmatprep.subr.bf16.mxu0 0
        %1238 = vmatpush1.bf16.msra.mxu0 %v929
        %1239 = vmatprep.subr.bf16.mxu0 0
        %1240 = vmatpush1.bf16.msra.mxu0 %v930
        %1241 = vmatprep.subr.bf16.mxu0 0
        %1242 = vmatpush1.bf16.msra.mxu0 %v931
        %1243 = vmatprep.subr.bf16.mxu0 0
        %1244 = vmatpush1.bf16.msra.mxu0 %v932
        %1245 = vmatprep.subr.bf16.mxu0 0
        %1246 = vmatpush1.bf16.msra.mxu0 %v933
        %1247 = vmatprep.subr.bf16.mxu0 0
        %1248 = vmatpush1.bf16.msra.mxu0 %v934
        %1249 = vmatprep.subr.bf16.mxu0 0
        %1250 = vmatpush1.bf16.msra.mxu0 0
        %1251 = vmatprep.subr.bf16.mxu0 0
        %1252 = vmatpush1.bf16.msra.mxu0 0
        %1253 = vmatprep.subr.bf16.mxu0 0
        %1254 = vmatpush1.bf16.msra.mxu0 0
        %1255 = vmatprep.subr.bf16.mxu0 0
        %1256 = vmatpush1.bf16.msra.mxu0 0
        %1257 = vmatprep.subr.bf16.mxu0 0
        %1258 = vmatpush1.bf16.msra.mxu0 0
        %1259 = vmatprep.subr.bf16.mxu0 0
        %1260 = vmatpush1.bf16.msra.mxu0 0
        %1261 = vmatprep.subr.bf16.mxu0 0
        %1262 = vmatpush1.bf16.msra.mxu0 0
        %1263 = vmatprep.subr.bf16.mxu0 0
        %1264 = vmatpush1.bf16.msra.mxu0 0
        %1265 = vmatprep.mubr.bf16.mxu0 0
        %1266 = vmatmul.mubr.bf16.gmra.mrb[0].mxu0 %v1201
        %v1267 = vpop.f32.mrb[0].mxu0
        %v1268 = vadd.f32 0.0, %v1267
        %v1269 = vpop.f32.mrb[0].mxu0
        %v1270 = vpop.f32.mrb[0].mxu0
        %v1271 = vadd.f32 0.0, %v1270
        %v1272 = vpop.f32.mrb[0].mxu0
        %1273 = vmatprep.mubr.bf16.mxu0 0
        %1274 = vmatmul.mubr.bf16.gmra.mrb[0].mxu0 %v1202
        %v1275 = vpop.f32.mrb[0].mxu0
        %v1276 = vadd.f32 0.0, %v1275
        %v1277 = vpop.f32.mrb[0].mxu0
        %v1278 = vpop.f32.mrb[0].mxu0
        %v1279 = vadd.f32 0.0, %v1278
        %v1280 = vpop.f32.mrb[0].mxu0
        %1281 = vmatprep.mubr.bf16.mxu0 0
        %1282 = vmatmul.mubr.bf16.gmra.mrb[0].mxu0 %v1203
        %v1283 = vpop.f32.mrb[0].mxu0
        %v1284 = vadd.f32 0.0, %v1283
        %v1285 = vpop.f32.mrb[0].mxu0
        %v1286 = vpop.f32.mrb[0].mxu0
        %v1287 = vadd.f32 0.0, %v1286
        %v1288 = vpop.f32.mrb[0].mxu0
        %1289 = vmatprep.mubr.bf16.mxu0 0
        %1290 = vmatmul.mubr.bf16.gmra.mrb[0].mxu0 %v1204
        %v1291 = vpop.f32.mrb[0].mxu0
        %v1292 = vadd.f32 0.0, %v1291
        %v1293 = vpop.f32.mrb[0].mxu0
        %v1294 = vpop.f32.mrb[0].mxu0
        %v1295 = vadd.f32 0.0, %v1294
        %v1296 = vpop.f32.mrb[0].mxu0
        %1297 = vmatprep.mubr.bf16.mxu0 0
        %1298 = vmatmul.mubr.bf16.gmra.mrb[0].mxu0 %v1205
        %v1299 = vpop.f32.mrb[0].mxu0
        %v1300 = vadd.f32 0.0, %v1299
        %v1301 = vpop.f32.mrb[0].mxu0
        %v1302 = vpop.f32.mrb[0].mxu0
        %v1303 = vadd.f32 0.0, %v1302
        %v1304 = vpop.f32.mrb[0].mxu0
        %1305 = vmatprep.mubr.bf16.mxu0 0
        %1306 = vmatmul.mubr.bf16.gmra.mrb[0].mxu0 %v1206
        %v1307 = vpop.f32.mrb[0].mxu0
        %v1308 = vadd.f32 0.0, %v1307
        %v1309 = vpop.f32.mrb[0].mxu0
        %v1310 = vpop.f32.mrb[0].mxu0
        %v1311 = vadd.f32 0.0, %v1310
        %v1312 = vpop.f32.mrb[0].mxu0
        %1313 = vmatprep.mubr.bf16.mxu0 0
        %1314 = vmatmul.mubr.bf16.gmra.mrb[0].mxu0 %v1207
        %v1315 = vpop.f32.mrb[0].mxu0
        %v1316 = vadd.f32 0.0, %v1315
        %v1317 = vpop.f32.mrb[0].mxu0
        %v1318 = vpop.f32.mrb[0].mxu0
        %v1319 = vadd.f32 0.0, %v1318
        %v1320 = vpop.f32.mrb[0].mxu0
        %1321 = vmatprep.mubr.bf16.mxu0 0
        %1322 = vmatmul.mubr.bf16.gmra.mrb[0].mxu0 %v1208
        %v1323 = vpop.f32.mrb[0].mxu0
        %v1324 = vadd.f32 0.0, %v1323
        %v1325 = vpop.f32.mrb[0].mxu0
        %v1326 = vpop.f32.mrb[0].mxu0
        %v1327 = vadd.f32 0.0, %v1326
        %v1328 = vpop.f32.mrb[0].mxu0
        %1329 = vmatprep.mubr.bf16.mxu0 0
        %1330 = vmatmul.mubr.bf16.gmra.mrb[0].mxu0 %v1209
        %v1331 = vpop.f32.mrb[0].mxu0
        %v1332 = vadd.f32 0.0, %v1331
        %v1333 = vpop.f32.mrb[0].mxu0
        %v1334 = vpop.f32.mrb[0].mxu0
        %v1335 = vadd.f32 0.0, %v1334
        %v1336 = vpop.f32.mrb[0].mxu0
        %1337 = vmatprep.mubr.bf16.mxu0 0
        %1338 = vmatmul.mubr.bf16.gmra.mrb[0].mxu0 %v1210
        %v1339 = vpop.f32.mrb[0].mxu0
        %v1340 = vadd.f32 0.0, %v1339
        %v1341 = vpop.f32.mrb[0].mxu0
        %v1342 = vpop.f32.mrb[0].mxu0
        %v1343 = vadd.f32 0.0, %v1342
        %v1344 = vpop.f32.mrb[0].mxu0
        %1345 = vmatprep.mubr.bf16.mxu0 0
        %1346 = vmatmul.mubr.bf16.gmra.mrb[0].mxu0 %v1211
        %v1347 = vpop.f32.mrb[0].mxu0
        %v1348 = vadd.f32 0.0, %v1347
        %v1349 = vpop.f32.mrb[0].mxu0
        %v1350 = vpop.f32.mrb[0].mxu0
        %v1351 = vadd.f32 0.0, %v1350
        %v1352 = vpop.f32.mrb[0].mxu0
        %1353 = vmatprep.mubr.bf16.mxu0 0
        %1354 = vmatmul.mubr.bf16.gmra.mrb[0].mxu0 %v1212
        %v1355 = vpop.f32.mrb[0].mxu0
        %v1356 = vadd.f32 0.0, %v1355
        %v1357 = vpop.f32.mrb[0].mxu0
        %v1358 = vpop.f32.mrb[0].mxu0
        %v1359 = vadd.f32 0.0, %v1358
        %v1360 = vpop.f32.mrb[0].mxu0
        %1361 = vmatprep.mubr.bf16.mxu0 0
        %1362 = vmatmul.mubr.bf16.gmra.mrb[0].mxu0 %v1213
        %v1363 = vpop.f32.mrb[0].mxu0
        %v1364 = vadd.f32 0.0, %v1363
        %v1365 = vpop.f32.mrb[0].mxu0
        %v1366 = vpop.f32.mrb[0].mxu0
        %v1367 = vadd.f32 0.0, %v1366
        %v1368 = vpop.f32.mrb[0].mxu0
        %1369 = vmatprep.mubr.bf16.mxu0 0
        %1370 = vmatmul.mubr.bf16.gmra.mrb[0].mxu0 %v1214
        %v1371 = vpop.f32.mrb[0].mxu0
        %v1372 = vadd.f32 0.0, %v1371
        %v1373 = vpop.f32.mrb[0].mxu0
        %v1374 = vpop.f32.mrb[0].mxu0
        %v1375 = vadd.f32 0.0, %v1374
        %v1376 = vpop.f32.mrb[0].mxu0
        %1377 = vmatprep.mubr.bf16.mxu0 0
        %1378 = vmatmul.mubr.bf16.gmra.mrb[0].mxu0 %v1215
        %v1379 = vpop.f32.mrb[0].mxu0
        %v1380 = vadd.f32 0.0, %v1379
        %v1381 = vpop.f32.mrb[0].mxu0
        %v1382 = vpop.f32.mrb[0].mxu0
        %v1383 = vadd.f32 0.0, %v1382
        %v1384 = vpop.f32.mrb[0].mxu0
        %1385 = vmatprep.mubr.bf16.mxu0 0
        %1386 = vmatmul.mubr.bf16.gmra.mrb[0].mxu0 %v1216
        %v1387 = vpop.f32.mrb[0].mxu0
        %v1388 = vadd.f32 0.0, %v1387
        %v1389 = vpop.f32.mrb[0].mxu0
        %v1390 = vpop.f32.mrb[0].mxu0
        %v1391 = vadd.f32 0.0, %v1390
        %v1392 = vpop.f32.mrb[0].mxu0
        %1393 = vdwg.mxu0
        %v1394 = vmax.f32 %v978, %v1268
        %v1395 = vmax.f32 %v981, %v1271
        %v1396 = vmax.f32 %v986, %v1276
        %v1397 = vmax.f32 %v989, %v1279
        %v1398 = vmax.f32 %v994, %v1284
        %v1399 = vmax.f32 %v997, %v1287
        %v1400 = vmax.f32 %v1002, %v1292
        %v1401 = vmax.f32 %v1005, %v1295
        %v1402 = vmax.f32 %v1010, %v1300
        %v1403 = vmax.f32 %v1013, %v1303
        %v1404 = vmax.f32 %v1018, %v1308
        %v1405 = vmax.f32 %v1021, %v1311
        %v1406 = vmax.f32 %v1026, %v1316
        %v1407 = vmax.f32 %v1029, %v1319
        %v1408 = vmax.f32 %v1034, %v1324
        %v1409 = vmax.f32 %v1037, %v1327
        %v1410 = vmax.f32 %v1042, %v1332
        %v1411 = vmax.f32 %v1045, %v1335
        %v1412 = vmax.f32 %v1050, %v1340
        %v1413 = vmax.f32 %v1053, %v1343
        %v1414 = vmax.f32 %v1058, %v1348
        %v1415 = vmax.f32 %v1061, %v1351
        %v1416 = vmax.f32 %v1066, %v1356
        %v1417 = vmax.f32 %v1069, %v1359
        %v1418 = vmax.f32 %v1074, %v1364
        %v1419 = vmax.f32 %v1077, %v1367
        %v1420 = vmax.f32 %v1082, %v1372
        %v1421 = vmax.f32 %v1085, %v1375
        %v1422 = vmax.f32 %v1090, %v1380
        %v1423 = vmax.f32 %v1093, %v1383
        %v1424 = vmax.f32 %v1098, %v1388
        %v1425 = vmax.f32 %v1101, %v1391
        %s1426 = scalar_lea.vmem %s720, 256 [#allocation2]
        %v1427 = vld [vmem:[%s1426] sm:$0xf]
        %v1428 = vld [vmem:[%s1426 + $0x4] sm:$0xf]
        %v1429 = vld [vmem:[%s1426 + $0x8] sm:$0xf]
        %v1430 = vld [vmem:[%s1426 + $0xc] sm:$0xf]
        %v1431 = vld [vmem:[%s1426 + $0x10] sm:$0xf]
        %v1432 = vld [vmem:[%s1426 + $0x14] sm:$0xf]
        %v1433 = vld [vmem:[%s1426 + $0x18] sm:$0xf]
        %v1434 = vld [vmem:[%s1426 + $0x1c] sm:$0xf]
        %v1435 = vld [vmem:[%s1426 + $0x20] sm:$0xf]
        %v1436 = vld [vmem:[%s1426 + $0x24] sm:$0xf]
        %v1437 = vld [vmem:[%s1426 + $0x28] sm:$0xf]
        %v1438 = vld [vmem:[%s1426 + $0x2c] sm:$0xf]
        %v1439 = vld [vmem:[%s1426 + $0x30] sm:$0xf]
        %v1440 = vld [vmem:[%s1426 + $0x34] sm:$0xf]
        %v1441 = vld [vmem:[%s1426 + $0x38] sm:$0xf]
        %v1442 = vld [vmem:[%s1426 + $0x3c] sm:$0xf]
        %v1443 = vld [vmem:[%s1426 + $0x40] sm:$0xf]
        %v1444 = vld [vmem:[%s1426 + $0x44] sm:$0xf]
        %v1445 = vld [vmem:[%s1426 + $0x48] sm:$0xf]
        %v1446 = vld [vmem:[%s1426 + $0x4c] sm:$0xf]
        %v1447 = vld [vmem:[%s1426 + $0x50] sm:$0xf]
        %v1448 = vld [vmem:[%s1426 + $0x54] sm:$0xf]
        %v1449 = vld [vmem:[%s1426 + $0x58] sm:$0xf]
        %v1450 = vld [vmem:[%s1426 + $0x5c] sm:$0xf]
        %v1451 = vld [vmem:[%s1426 + $0x60] sm:$0xf]
        %v1452 = vld [vmem:[%s1426 + $0x64] sm:$0xf]
        %v1453 = vld [vmem:[%s1426 + $0x68] sm:$0xf]
        %v1454 = vld [vmem:[%s1426 + $0x6c] sm:$0xf]
        %v1455 = vld [vmem:[%s1426 + $0x70] sm:$0xf]
        %v1456 = vld [vmem:[%s1426 + $0x74] sm:$0xf]
        %v1457 = vld [vmem:[%s1426 + $0x78] sm:$0xf]
        %v1458 = vld [vmem:[%s1426 + $0x7c] sm:$0xf]
        %v1491 = vunpack.c.l.b16 %v1427
        %v1492 = vunpack.c.l.b16 %v1428
        %v1493 = vunpack.c.l.b16 %v1429
        %v1494 = vunpack.c.l.b16 %v1430
        %v1495 = vunpack.c.l.b16 %v1431
        %v1496 = vunpack.c.l.b16 %v1432
        %v1497 = vunpack.c.l.b16 %v1433
        %v1498 = vunpack.c.l.b16 %v1434
        %v1499 = vunpack.c.l.b16 %v1435
        %v1500 = vunpack.c.l.b16 %v1436
        %v1501 = vunpack.c.l.b16 %v1437
        %v1502 = vunpack.c.l.b16 %v1438
        %v1503 = vunpack.c.l.b16 %v1439
        %v1504 = vunpack.c.l.b16 %v1440
        %v1505 = vunpack.c.l.b16 %v1441
        %v1506 = vunpack.c.l.b16 %v1442
        %v1507 = vunpack.c.l.b16 %v1443
        %v1508 = vunpack.c.l.b16 %v1444
        %v1509 = vunpack.c.l.b16 %v1445
        %v1510 = vunpack.c.l.b16 %v1446
        %v1511 = vunpack.c.l.b16 %v1447
        %v1512 = vunpack.c.l.b16 %v1448
        %v1513 = vunpack.c.l.b16 %v1449
        %v1514 = vunpack.c.l.b16 %v1450
        %v1515 = vunpack.c.l.b16 %v1451
        %v1516 = vunpack.c.l.b16 %v1452
        %v1517 = vunpack.c.l.b16 %v1453
        %v1518 = vunpack.c.l.b16 %v1454
        %v1519 = vunpack.c.l.b16 %v1455
        %v1520 = vunpack.c.l.b16 %v1456
        %v1521 = vunpack.c.l.b16 %v1457
        %v1522 = vunpack.c.l.b16 %v1458
        %v1523 = vpack.c.b16 %v1492, %v1491
        %v1524 = vpack.c.b16 %v1494, %v1493
        %v1525 = vpack.c.b16 %v1496, %v1495
        %v1526 = vpack.c.b16 %v1498, %v1497
        %v1527 = vpack.c.b16 %v1500, %v1499
        %v1528 = vpack.c.b16 %v1502, %v1501
        %v1529 = vpack.c.b16 %v1504, %v1503
        %v1530 = vpack.c.b16 %v1506, %v1505
        %v1531 = vpack.c.b16 %v1508, %v1507
        %v1532 = vpack.c.b16 %v1510, %v1509
        %v1533 = vpack.c.b16 %v1512, %v1511
        %v1534 = vpack.c.b16 %v1514, %v1513
        %v1535 = vpack.c.b16 %v1516, %v1515
        %v1536 = vpack.c.b16 %v1518, %v1517
        %v1537 = vpack.c.b16 %v1520, %v1519
        %v1538 = vpack.c.b16 %v1522, %v1521
        %1555 = vmatprep.subr.bf16.mxu0 0
        %1556 = vmatpush1.bf16.msra.mxu0 %v927
        %1557 = vmatprep.subr.bf16.mxu0 0
        %1558 = vmatpush1.bf16.msra.mxu0 %v928
        %1559 = vmatprep.subr.bf16.mxu0 0
        %1560 = vmatpush1.bf16.msra.mxu0 %v929
        %1561 = vmatprep.subr.bf16.mxu0 0
        %1562 = vmatpush1.bf16.msra.mxu0 %v930
        %1563 = vmatprep.subr.bf16.mxu0 0
        %1564 = vmatpush1.bf16.msra.mxu0 %v931
        %1565 = vmatprep.subr.bf16.mxu0 0
        %1566 = vmatpush1.bf16.msra.mxu0 %v932
        %1567 = vmatprep.subr.bf16.mxu0 0
        %1568 = vmatpush1.bf16.msra.mxu0 %v933
        %1569 = vmatprep.subr.bf16.mxu0 0
        %1570 = vmatpush1.bf16.msra.mxu0 %v934
        %1571 = vmatprep.subr.bf16.mxu0 0
        %1572 = vmatpush1.bf16.msra.mxu0 0
        %1573 = vmatprep.subr.bf16.mxu0 0
        %1574 = vmatpush1.bf16.msra.mxu0 0
        %1575 = vmatprep.subr.bf16.mxu0 0
        %1576 = vmatpush1.bf16.msra.mxu0 0
        %1577 = vmatprep.subr.bf16.mxu0 0
        %1578 = vmatpush1.bf16.msra.mxu0 0
        %1579 = vmatprep.subr.bf16.mxu0 0
        %1580 = vmatpush1.bf16.msra.mxu0 0
        %1581 = vmatprep.subr.bf16.mxu0 0
        %1582 = vmatpush1.bf16.msra.mxu0 0
        %1583 = vmatprep.subr.bf16.mxu0 0
        %1584 = vmatpush1.bf16.msra.mxu0 0
        %1585 = vmatprep.subr.bf16.mxu0 0
        %1586 = vmatpush1.bf16.msra.mxu0 0
        %1587 = vmatprep.mubr.bf16.mxu0 0
        %1588 = vmatmul.mubr.bf16.gmra.mrb[0].mxu0 %v1523
        %v1589 = vpop.f32.mrb[0].mxu0
        %v1590 = vadd.f32 0.0, %v1589
        %v1591 = vpop.f32.mrb[0].mxu0
        %v1592 = vpop.f32.mrb[0].mxu0
        %v1593 = vadd.f32 0.0, %v1592
        %v1594 = vpop.f32.mrb[0].mxu0
        %1595 = vmatprep.mubr.bf16.mxu0 0
        %1596 = vmatmul.mubr.bf16.gmra.mrb[0].mxu0 %v1524
        %v1597 = vpop.f32.mrb[0].mxu0
        %v1598 = vadd.f32 0.0, %v1597
        %v1599 = vpop.f32.mrb[0].mxu0
        %v1600 = vpop.f32.mrb[0].mxu0
        %v1601 = vadd.f32 0.0, %v1600
        %v1602 = vpop.f32.mrb[0].mxu0
        %1603 = vmatprep.mubr.bf16.mxu0 0
        %1604 = vmatmul.mubr.bf16.gmra.mrb[0].mxu0 %v1525
        %v1605 = vpop.f32.mrb[0].mxu0
        %v1606 = vadd.f32 0.0, %v1605
        %v1607 = vpop.f32.mrb[0].mxu0
        %v1608 = vpop.f32.mrb[0].mxu0
        %v1609 = vadd.f32 0.0, %v1608
        %v1610 = vpop.f32.mrb[0].mxu0
        %1611 = vmatprep.mubr.bf16.mxu0 0
        %1612 = vmatmul.mubr.bf16.gmra.mrb[0].mxu0 %v1526
        %v1613 = vpop.f32.mrb[0].mxu0
        %v1614 = vadd.f32 0.0, %v1613
        %v1615 = vpop.f32.mrb[0].mxu0
        %v1616 = vpop.f32.mrb[0].mxu0
        %v1617 = vadd.f32 0.0, %v1616
        %v1618 = vpop.f32.mrb[0].mxu0
        %1619 = vmatprep.mubr.bf16.mxu0 0
        %1620 = vmatmul.mubr.bf16.gmra.mrb[0].mxu0 %v1527
        %v1621 = vpop.f32.mrb[0].mxu0
        %v1622 = vadd.f32 0.0, %v1621
        %v1623 = vpop.f32.mrb[0].mxu0
        %v1624 = vpop.f32.mrb[0].mxu0
        %v1625 = vadd.f32 0.0, %v1624
        %v1626 = vpop.f32.mrb[0].mxu0
        %1627 = vmatprep.mubr.bf16.mxu0 0
        %1628 = vmatmul.mubr.bf16.gmra.mrb[0].mxu0 %v1528
        %v1629 = vpop.f32.mrb[0].mxu0
        %v1630 = vadd.f32 0.0, %v1629
        %v1631 = vpop.f32.mrb[0].mxu0
        %v1632 = vpop.f32.mrb[0].mxu0
        %v1633 = vadd.f32 0.0, %v1632
        %v1634 = vpop.f32.mrb[0].mxu0
        %1635 = vmatprep.mubr.bf16.mxu0 0
        %1636 = vmatmul.mubr.bf16.gmra.mrb[0].mxu0 %v1529
        %v1637 = vpop.f32.mrb[0].mxu0
        %v1638 = vadd.f32 0.0, %v1637
        %v1639 = vpop.f32.mrb[0].mxu0
        %v1640 = vpop.f32.mrb[0].mxu0
        %v1641 = vadd.f32 0.0, %v1640
        %v1642 = vpop.f32.mrb[0].mxu0
        %1643 = vmatprep.mubr.bf16.mxu0 0
        %1644 = vmatmul.mubr.bf16.gmra.mrb[0].mxu0 %v1530
        %v1645 = vpop.f32.mrb[0].mxu0
        %v1646 = vadd.f32 0.0, %v1645
        %v1647 = vpop.f32.mrb[0].mxu0
        %v1648 = vpop.f32.mrb[0].mxu0
        %v1649 = vadd.f32 0.0, %v1648
        %v1650 = vpop.f32.mrb[0].mxu0
        %1651 = vmatprep.mubr.bf16.mxu0 0
        %1652 = vmatmul.mubr.bf16.gmra.mrb[0].mxu0 %v1531
        %v1653 = vpop.f32.mrb[0].mxu0
        %v1654 = vadd.f32 0.0, %v1653
        %v1655 = vpop.f32.mrb[0].mxu0
        %v1656 = vpop.f32.mrb[0].mxu0
        %v1657 = vadd.f32 0.0, %v1656
        %v1658 = vpop.f32.mrb[0].mxu0
        %1659 = vmatprep.mubr.bf16.mxu0 0
        %1660 = vmatmul.mubr.bf16.gmra.mrb[0].mxu0 %v1532
        %v1661 = vpop.f32.mrb[0].mxu0
        %v1662 = vadd.f32 0.0, %v1661
        %v1663 = vpop.f32.mrb[0].mxu0
        %v1664 = vpop.f32.mrb[0].mxu0
        %v1665 = vadd.f32 0.0, %v1664
        %v1666 = vpop.f32.mrb[0].mxu0
        %1667 = vmatprep.mubr.bf16.mxu0 0
        %1668 = vmatmul.mubr.bf16.gmra.mrb[0].mxu0 %v1533
        %v1669 = vpop.f32.mrb[0].mxu0
        %v1670 = vadd.f32 0.0, %v1669
        %v1671 = vpop.f32.mrb[0].mxu0
        %v1672 = vpop.f32.mrb[0].mxu0
        %v1673 = vadd.f32 0.0, %v1672
        %v1674 = vpop.f32.mrb[0].mxu0
        %1675 = vmatprep.mubr.bf16.mxu0 0
        %1676 = vmatmul.mubr.bf16.gmra.mrb[0].mxu0 %v1534
        %v1677 = vpop.f32.mrb[0].mxu0
        %v1678 = vadd.f32 0.0, %v1677
        %v1679 = vpop.f32.mrb[0].mxu0
        %v1680 = vpop.f32.mrb[0].mxu0
        %v1681 = vadd.f32 0.0, %v1680
        %v1682 = vpop.f32.mrb[0].mxu0
        %1683 = vmatprep.mubr.bf16.mxu0 0
        %1684 = vmatmul.mubr.bf16.gmra.mrb[0].mxu0 %v1535
        %v1685 = vpop.f32.mrb[0].mxu0
        %v1686 = vadd.f32 0.0, %v1685
        %v1687 = vpop.f32.mrb[0].mxu0
        %v1688 = vpop.f32.mrb[0].mxu0
        %v1689 = vadd.f32 0.0, %v1688
        %v1690 = vpop.f32.mrb[0].mxu0
        %1691 = vmatprep.mubr.bf16.mxu0 0
        %1692 = vmatmul.mubr.bf16.gmra.mrb[0].mxu0 %v1536
        %v1693 = vpop.f32.mrb[0].mxu0
        %v1694 = vadd.f32 0.0, %v1693
        %v1695 = vpop.f32.mrb[0].mxu0
        %v1696 = vpop.f32.mrb[0].mxu0
        %v1697 = vadd.f32 0.0, %v1696
        %v1698 = vpop.f32.mrb[0].mxu0
        %1699 = vmatprep.mubr.bf16.mxu0 0
        %1700 = vmatmul.mubr.bf16.gmra.mrb[0].mxu0 %v1537
        %v1701 = vpop.f32.mrb[0].mxu0
        %v1702 = vadd.f32 0.0, %v1701
        %v1703 = vpop.f32.mrb[0].mxu0
        %v1704 = vpop.f32.mrb[0].mxu0
        %v1705 = vadd.f32 0.0, %v1704
        %v1706 = vpop.f32.mrb[0].mxu0
        %1707 = vmatprep.mubr.bf16.mxu0 0
        %1708 = vmatmul.mubr.bf16.gmra.mrb[0].mxu0 %v1538
        %v1709 = vpop.f32.mrb[0].mxu0
        %v1710 = vadd.f32 0.0, %v1709
        %v1711 = vpop.f32.mrb[0].mxu0
        %v1712 = vpop.f32.mrb[0].mxu0
        %v1713 = vadd.f32 0.0, %v1712
        %v1714 = vpop.f32.mrb[0].mxu0
        %1715 = vdwg.mxu0
        %v1716 = vmax.f32 %v1394, %v1590
        %v1717 = vmax.f32 %v1395, %v1593
        %v1718 = vmax.f32 %v1396, %v1598
        %v1719 = vmax.f32 %v1397, %v1601
        %v1720 = vmax.f32 %v1398, %v1606
        %v1721 = vmax.f32 %v1399, %v1609
        %v1722 = vmax.f32 %v1400, %v1614
        %v1723 = vmax.f32 %v1401, %v1617
        %v1724 = vmax.f32 %v1402, %v1622
        %v1725 = vmax.f32 %v1403, %v1625
        %v1726 = vmax.f32 %v1404, %v1630
        %v1727 = vmax.f32 %v1405, %v1633
        %v1728 = vmax.f32 %v1406, %v1638
        %v1729 = vmax.f32 %v1407, %v1641
        %v1730 = vmax.f32 %v1408, %v1646
        %v1731 = vmax.f32 %v1409, %v1649
        %v1732 = vmax.f32 %v1410, %v1654
        %v1733 = vmax.f32 %v1411, %v1657
        %v1734 = vmax.f32 %v1412, %v1662
        %v1735 = vmax.f32 %v1413, %v1665
        %v1736 = vmax.f32 %v1414, %v1670
        %v1737 = vmax.f32 %v1415, %v1673
        %v1738 = vmax.f32 %v1416, %v1678
        %v1739 = vmax.f32 %v1417, %v1681
        %v1740 = vmax.f32 %v1418, %v1686
        %v1741 = vmax.f32 %v1419, %v1689
        %v1742 = vmax.f32 %v1420, %v1694
        %v1743 = vmax.f32 %v1421, %v1697
        %v1744 = vmax.f32 %v1422, %v1702
        %v1745 = vmax.f32 %v1423, %v1705
        %v1746 = vmax.f32 %v1424, %v1710
        %v1747 = vmax.f32 %v1425, %v1713
        %s1748 = scalar_lea.vmem %s720, 384 [#allocation2]
        %v1749 = vld [vmem:[%s1748] sm:$0xf]
        %v1750 = vld [vmem:[%s1748 + $0x4] sm:$0xf]
        %v1751 = vld [vmem:[%s1748 + $0x8] sm:$0xf]
        %v1752 = vld [vmem:[%s1748 + $0xc] sm:$0xf]
        %v1753 = vld [vmem:[%s1748 + $0x10] sm:$0xf]
        %v1754 = vld [vmem:[%s1748 + $0x14] sm:$0xf]
        %v1755 = vld [vmem:[%s1748 + $0x18] sm:$0xf]
        %v1756 = vld [vmem:[%s1748 + $0x1c] sm:$0xf]
        %v1757 = vld [vmem:[%s1748 + $0x20] sm:$0xf]
        %v1758 = vld [vmem:[%s1748 + $0x24] sm:$0xf]
        %v1759 = vld [vmem:[%s1748 + $0x28] sm:$0xf]
        %v1760 = vld [vmem:[%s1748 + $0x2c] sm:$0xf]
        %v1761 = vld [vmem:[%s1748 + $0x30] sm:$0xf]
        %v1762 = vld [vmem:[%s1748 + $0x34] sm:$0xf]
        %v1763 = vld [vmem:[%s1748 + $0x38] sm:$0xf]
        %v1764 = vld [vmem:[%s1748 + $0x3c] sm:$0xf]
        %v1765 = vld [vmem:[%s1748 + $0x40] sm:$0xf]
        %v1766 = vld [vmem:[%s1748 + $0x44] sm:$0xf]
        %v1767 = vld [vmem:[%s1748 + $0x48] sm:$0xf]
        %v1768 = vld [vmem:[%s1748 + $0x4c] sm:$0xf]
        %v1769 = vld [vmem:[%s1748 + $0x50] sm:$0xf]
        %v1770 = vld [vmem:[%s1748 + $0x54] sm:$0xf]
        %v1771 = vld [vmem:[%s1748 + $0x58] sm:$0xf]
        %v1772 = vld [vmem:[%s1748 + $0x5c] sm:$0xf]
        %v1773 = vld [vmem:[%s1748 + $0x60] sm:$0xf]
        %v1774 = vld [vmem:[%s1748 + $0x64] sm:$0xf]
        %v1775 = vld [vmem:[%s1748 + $0x68] sm:$0xf]
        %v1776 = vld [vmem:[%s1748 + $0x6c] sm:$0xf]
        %v1777 = vld [vmem:[%s1748 + $0x70] sm:$0xf]
        %v1778 = vld [vmem:[%s1748 + $0x74] sm:$0xf]
        %v1779 = vld [vmem:[%s1748 + $0x78] sm:$0xf]
        %v1780 = vld [vmem:[%s1748 + $0x7c] sm:$0xf]
        %v1813 = vunpack.c.l.b16 %v1749
        %v1814 = vunpack.c.l.b16 %v1750
        %v1815 = vunpack.c.l.b16 %v1751
        %v1816 = vunpack.c.l.b16 %v1752
        %v1817 = vunpack.c.l.b16 %v1753
        %v1818 = vunpack.c.l.b16 %v1754
        %v1819 = vunpack.c.l.b16 %v1755
        %v1820 = vunpack.c.l.b16 %v1756
        %v1821 = vunpack.c.l.b16 %v1757
        %v1822 = vunpack.c.l.b16 %v1758
        %v1823 = vunpack.c.l.b16 %v1759
        %v1824 = vunpack.c.l.b16 %v1760
        %v1825 = vunpack.c.l.b16 %v1761
        %v1826 = vunpack.c.l.b16 %v1762
        %v1827 = vunpack.c.l.b16 %v1763
        %v1828 = vunpack.c.l.b16 %v1764
        %v1829 = vunpack.c.l.b16 %v1765
        %v1830 = vunpack.c.l.b16 %v1766
        %v1831 = vunpack.c.l.b16 %v1767
        %v1832 = vunpack.c.l.b16 %v1768
        %v1833 = vunpack.c.l.b16 %v1769
        %v1834 = vunpack.c.l.b16 %v1770
        %v1835 = vunpack.c.l.b16 %v1771
        %v1836 = vunpack.c.l.b16 %v1772
        %v1837 = vunpack.c.l.b16 %v1773
        %v1838 = vunpack.c.l.b16 %v1774
        %v1839 = vunpack.c.l.b16 %v1775
        %v1840 = vunpack.c.l.b16 %v1776
        %v1841 = vunpack.c.l.b16 %v1777
        %v1842 = vunpack.c.l.b16 %v1778
        %v1843 = vunpack.c.l.b16 %v1779
        %v1844 = vunpack.c.l.b16 %v1780
        %v1845 = vpack.c.b16 %v1814, %v1813
        %v1846 = vpack.c.b16 %v1816, %v1815
        %v1847 = vpack.c.b16 %v1818, %v1817
        %v1848 = vpack.c.b16 %v1820, %v1819
        %v1849 = vpack.c.b16 %v1822, %v1821
        %v1850 = vpack.c.b16 %v1824, %v1823
        %v1851 = vpack.c.b16 %v1826, %v1825
        %v1852 = vpack.c.b16 %v1828, %v1827
        %v1853 = vpack.c.b16 %v1830, %v1829
        %v1854 = vpack.c.b16 %v1832, %v1831
        %v1855 = vpack.c.b16 %v1834, %v1833
        %v1856 = vpack.c.b16 %v1836, %v1835
        %v1857 = vpack.c.b16 %v1838, %v1837
        %v1858 = vpack.c.b16 %v1840, %v1839
        %v1859 = vpack.c.b16 %v1842, %v1841
        %v1860 = vpack.c.b16 %v1844, %v1843
        %1877 = vmatprep.subr.bf16.mxu0 0
        %1878 = vmatpush1.bf16.msra.mxu0 %v927
        %1879 = vmatprep.subr.bf16.mxu0 0
        %1880 = vmatpush1.bf16.msra.mxu0 %v928
        %1881 = vmatprep.subr.bf16.mxu0 0
        %1882 = vmatpush1.bf16.msra.mxu0 %v929
        %1883 = vmatprep.subr.bf16.mxu0 0
        %1884 = vmatpush1.bf16.msra.mxu0 %v930
        %1885 = vmatprep.subr.bf16.mxu0 0
        %1886 = vmatpush1.bf16.msra.mxu0 %v931
        %1887 = vmatprep.subr.bf16.mxu0 0
        %1888 = vmatpush1.bf16.msra.mxu0 %v932
        %1889 = vmatprep.subr.bf16.mxu0 0
        %1890 = vmatpush1.bf16.msra.mxu0 %v933
        %1891 = vmatprep.subr.bf16.mxu0 0
        %1892 = vmatpush1.bf16.msra.mxu0 %v934
        %1893 = vmatprep.subr.bf16.mxu0 0
        %1894 = vmatpush1.bf16.msra.mxu0 0
        %1895 = vmatprep.subr.bf16.mxu0 0
        %1896 = vmatpush1.bf16.msra.mxu0 0
        %1897 = vmatprep.subr.bf16.mxu0 0
        %1898 = vmatpush1.bf16.msra.mxu0 0
        %1899 = vmatprep.subr.bf16.mxu0 0
        %1900 = vmatpush1.bf16.msra.mxu0 0
        %1901 = vmatprep.subr.bf16.mxu0 0
        %1902 = vmatpush1.bf16.msra.mxu0 0
        %1903 = vmatprep.subr.bf16.mxu0 0
        %1904 = vmatpush1.bf16.msra.mxu0 0
        %1905 = vmatprep.subr.bf16.mxu0 0
        %1906 = vmatpush1.bf16.msra.mxu0 0
        %1907 = vmatprep.subr.bf16.mxu0 0
        %1908 = vmatpush1.bf16.msra.mxu0 0
        %1909 = vmatprep.mubr.bf16.mxu0 0
        %1910 = vmatmul.mubr.bf16.gmra.mrb[0].mxu0 %v1845
        %v1911 = vpop.f32.mrb[0].mxu0
        %v1912 = vadd.f32 0.0, %v1911
        %v1913 = vpop.f32.mrb[0].mxu0
        %v1914 = vpop.f32.mrb[0].mxu0
        %v1915 = vadd.f32 0.0, %v1914
        %v1916 = vpop.f32.mrb[0].mxu0
        %1917 = vmatprep.mubr.bf16.mxu0 0
        %1918 = vmatmul.mubr.bf16.gmra.mrb[0].mxu0 %v1846
        %v1919 = vpop.f32.mrb[0].mxu0
        %v1920 = vadd.f32 0.0, %v1919
        %v1921 = vpop.f32.mrb[0].mxu0
        %v1922 = vpop.f32.mrb[0].mxu0
        %v1923 = vadd.f32 0.0, %v1922
        %v1924 = vpop.f32.mrb[0].mxu0
        %1925 = vmatprep.mubr.bf16.mxu0 0
        %1926 = vmatmul.mubr.bf16.gmra.mrb[0].mxu0 %v1847
        %v1927 = vpop.f32.mrb[0].mxu0
        %v1928 = vadd.f32 0.0, %v1927
        %v1929 = vpop.f32.mrb[0].mxu0
        %v1930 = vpop.f32.mrb[0].mxu0
        %v1931 = vadd.f32 0.0, %v1930
        %v1932 = vpop.f32.mrb[0].mxu0
        %1933 = vmatprep.mubr.bf16.mxu0 0
        %1934 = vmatmul.mubr.bf16.gmra.mrb[0].mxu0 %v1848
        %v1935 = vpop.f32.mrb[0].mxu0
        %v1936 = vadd.f32 0.0, %v1935
        %v1937 = vpop.f32.mrb[0].mxu0
        %v1938 = vpop.f32.mrb[0].mxu0
        %v1939 = vadd.f32 0.0, %v1938
        %v1940 = vpop.f32.mrb[0].mxu0
        %1941 = vmatprep.mubr.bf16.mxu0 0
        %1942 = vmatmul.mubr.bf16.gmra.mrb[0].mxu0 %v1849
        %v1943 = vpop.f32.mrb[0].mxu0
        %v1944 = vadd.f32 0.0, %v1943
        %v1945 = vpop.f32.mrb[0].mxu0
        %v1946 = vpop.f32.mrb[0].mxu0
        %v1947 = vadd.f32 0.0, %v1946
        %v1948 = vpop.f32.mrb[0].mxu0
        %1949 = vmatprep.mubr.bf16.mxu0 0
        %1950 = vmatmul.mubr.bf16.gmra.mrb[0].mxu0 %v1850
        %v1951 = vpop.f32.mrb[0].mxu0
        %v1952 = vadd.f32 0.0, %v1951
        %v1953 = vpop.f32.mrb[0].mxu0
        %v1954 = vpop.f32.mrb[0].mxu0
        %v1955 = vadd.f32 0.0, %v1954
        %v1956 = vpop.f32.mrb[0].mxu0
        %1957 = vmatprep.mubr.bf16.mxu0 0
        %1958 = vmatmul.mubr.bf16.gmra.mrb[0].mxu0 %v1851
        %v1959 = vpop.f32.mrb[0].mxu0
        %v1960 = vadd.f32 0.0, %v1959
        %v1961 = vpop.f32.mrb[0].mxu0
        %v1962 = vpop.f32.mrb[0].mxu0
        %v1963 = vadd.f32 0.0, %v1962
        %v1964 = vpop.f32.mrb[0].mxu0
        %1965 = vmatprep.mubr.bf16.mxu0 0
        %1966 = vmatmul.mubr.bf16.gmra.mrb[0].mxu0 %v1852
        %v1967 = vpop.f32.mrb[0].mxu0
        %v1968 = vadd.f32 0.0, %v1967
        %v1969 = vpop.f32.mrb[0].mxu0
        %v1970 = vpop.f32.mrb[0].mxu0
        %v1971 = vadd.f32 0.0, %v1970
        %v1972 = vpop.f32.mrb[0].mxu0
        %1973 = vmatprep.mubr.bf16.mxu0 0
        %1974 = vmatmul.mubr.bf16.gmra.mrb[0].mxu0 %v1853
        %v1975 = vpop.f32.mrb[0].mxu0
        %v1976 = vadd.f32 0.0, %v1975
        %v1977 = vpop.f32.mrb[0].mxu0
        %v1978 = vpop.f32.mrb[0].mxu0
        %v1979 = vadd.f32 0.0, %v1978
        %v1980 = vpop.f32.mrb[0].mxu0
        %1981 = vmatprep.mubr.bf16.mxu0 0
        %1982 = vmatmul.mubr.bf16.gmra.mrb[0].mxu0 %v1854
        %v1983 = vpop.f32.mrb[0].mxu0
        %v1984 = vadd.f32 0.0, %v1983
        %v1985 = vpop.f32.mrb[0].mxu0
        %v1986 = vpop.f32.mrb[0].mxu0
        %v1987 = vadd.f32 0.0, %v1986
        %v1988 = vpop.f32.mrb[0].mxu0
        %1989 = vmatprep.mubr.bf16.mxu0 0
        %1990 = vmatmul.mubr.bf16.gmra.mrb[0].mxu0 %v1855
        %v1991 = vpop.f32.mrb[0].mxu0
        %v1992 = vadd.f32 0.0, %v1991
        %v1993 = vpop.f32.mrb[0].mxu0
        %v1994 = vpop.f32.mrb[0].mxu0
        %v1995 = vadd.f32 0.0, %v1994
        %v1996 = vpop.f32.mrb[0].mxu0
        %1997 = vmatprep.mubr.bf16.mxu0 0
        %1998 = vmatmul.mubr.bf16.gmra.mrb[0].mxu0 %v1856
        %v1999 = vpop.f32.mrb[0].mxu0
        %v2000 = vadd.f32 0.0, %v1999
        %v2001 = vpop.f32.mrb[0].mxu0
        %v2002 = vpop.f32.mrb[0].mxu0
        %v2003 = vadd.f32 0.0, %v2002
        %v2004 = vpop.f32.mrb[0].mxu0
        %2005 = vmatprep.mubr.bf16.mxu0 0
        %2006 = vmatmul.mubr.bf16.gmra.mrb[0].mxu0 %v1857
        %v2007 = vpop.f32.mrb[0].mxu0
        %v2008 = vadd.f32 0.0, %v2007
        %v2009 = vpop.f32.mrb[0].mxu0
        %v2010 = vpop.f32.mrb[0].mxu0
        %v2011 = vadd.f32 0.0, %v2010
        %v2012 = vpop.f32.mrb[0].mxu0
        %2013 = vmatprep.mubr.bf16.mxu0 0
        %2014 = vmatmul.mubr.bf16.gmra.mrb[0].mxu0 %v1858
        %v2015 = vpop.f32.mrb[0].mxu0
        %v2016 = vadd.f32 0.0, %v2015
        %v2017 = vpop.f32.mrb[0].mxu0
        %v2018 = vpop.f32.mrb[0].mxu0
        %v2019 = vadd.f32 0.0, %v2018
        %v2020 = vpop.f32.mrb[0].mxu0
        %2021 = vmatprep.mubr.bf16.mxu0 0
        %2022 = vmatmul.mubr.bf16.gmra.mrb[0].mxu0 %v1859
        %v2023 = vpop.f32.mrb[0].mxu0
        %v2024 = vadd.f32 0.0, %v2023
        %v2025 = vpop.f32.mrb[0].mxu0
        %v2026 = vpop.f32.mrb[0].mxu0
        %v2027 = vadd.f32 0.0, %v2026
        %v2028 = vpop.f32.mrb[0].mxu0
        %2029 = vmatprep.mubr.bf16.mxu0 0
        %2030 = vmatmul.mubr.bf16.gmra.mrb[0].mxu0 %v1860
        %v2031 = vpop.f32.mrb[0].mxu0
        %v2032 = vadd.f32 0.0, %v2031
        %v2033 = vpop.f32.mrb[0].mxu0
        %v2034 = vpop.f32.mrb[0].mxu0
        %v2035 = vadd.f32 0.0, %v2034
        %v2036 = vpop.f32.mrb[0].mxu0
        %2037 = vdwg.mxu0
        %v2038 = vmax.f32 %v1716, %v1912
        %v2039 = vmax.f32 %v1717, %v1915
        %v2040 = vmax.f32 %v1718, %v1920
        %v2041 = vmax.f32 %v1719, %v1923
        %v2042 = vmax.f32 %v1720, %v1928
        %v2043 = vmax.f32 %v1721, %v1931
        %v2044 = vmax.f32 %v1722, %v1936
        %v2045 = vmax.f32 %v1723, %v1939
        %v2046 = vmax.f32 %v1724, %v1944
        %v2047 = vmax.f32 %v1725, %v1947
        %v2048 = vmax.f32 %v1726, %v1952
        %v2049 = vmax.f32 %v1727, %v1955
        %v2050 = vmax.f32 %v1728, %v1960
        %v2051 = vmax.f32 %v1729, %v1963
        %v2052 = vmax.f32 %v1730, %v1968
        %v2053 = vmax.f32 %v1731, %v1971
        %v2054 = vmax.f32 %v1732, %v1976
        %v2055 = vmax.f32 %v1733, %v1979
        %v2056 = vmax.f32 %v1734, %v1984
        %v2057 = vmax.f32 %v1735, %v1987
        %v2058 = vmax.f32 %v1736, %v1992
        %v2059 = vmax.f32 %v1737, %v1995
        %v2060 = vmax.f32 %v1738, %v2000
        %v2061 = vmax.f32 %v1739, %v2003
        %v2062 = vmax.f32 %v1740, %v2008
        %v2063 = vmax.f32 %v1741, %v2011
        %v2064 = vmax.f32 %v1742, %v2016
        %v2065 = vmax.f32 %v1743, %v2019
        %v2066 = vmax.f32 %v1744, %v2024
        %v2067 = vmax.f32 %v1745, %v2027
        %v2068 = vmax.f32 %v1746, %v2032
        %v2069 = vmax.f32 %v1747, %v2035
        %v2070 = vld [vmem:[%s2] sm:$0x1]
        %v2072 = vlaneseq
        %v2073 = vshrl.u32 %v2072, 7
        %v2074 = vsub.s32 0, %v2073
        %v2075 = vrot.slane %v2070, %v2074
        %v2077 = vmul.f32 %v2038, %v2075
        %v2078 = vmul.f32 %v2039, %v2075
        %v2079 = vmul.f32 %v2040, %v2075
        %v2080 = vmul.f32 %v2041, %v2075
        %v2081 = vmul.f32 %v2042, %v2075
        %v2082 = vmul.f32 %v2043, %v2075
        %v2083 = vmul.f32 %v2044, %v2075
        %v2084 = vmul.f32 %v2045, %v2075
        %v2085 = vmul.f32 %v2046, %v2075
        %v2086 = vmul.f32 %v2047, %v2075
        %v2087 = vmul.f32 %v2048, %v2075
        %v2088 = vmul.f32 %v2049, %v2075
        %v2089 = vmul.f32 %v2050, %v2075
        %v2090 = vmul.f32 %v2051, %v2075
        %v2091 = vmul.f32 %v2052, %v2075
        %v2092 = vmul.f32 %v2053, %v2075
        %v2093 = vmul.f32 %v2054, %v2075
        %v2094 = vmul.f32 %v2055, %v2075
        %v2095 = vmul.f32 %v2056, %v2075
        %v2096 = vmul.f32 %v2057, %v2075
        %v2097 = vmul.f32 %v2058, %v2075
        %v2098 = vmul.f32 %v2059, %v2075
        %v2099 = vmul.f32 %v2060, %v2075
        %v2100 = vmul.f32 %v2061, %v2075
        %v2101 = vmul.f32 %v2062, %v2075
        %v2102 = vmul.f32 %v2063, %v2075
        %v2103 = vmul.f32 %v2064, %v2075
        %v2104 = vmul.f32 %v2065, %v2075
        %v2105 = vmul.f32 %v2066, %v2075
        %v2106 = vmul.f32 %v2067, %v2075
        %v2107 = vmul.f32 %v2068, %v2075
        %v2108 = vmul.f32 %v2069, %v2075
        %v2109 = vld [vmem:[%s3] sm:$0x1]
        %v2111 = vlaneseq
        %v2112 = vshrl.u32 %v2111, 7
        %v2113 = vsub.s32 0, %v2112
        %v2114 = vrot.slane %v2109, %v2113
        %v2116 = vadd.f32 %v2077, %v2114
        %v2117 = vadd.f32 %v2078, %v2114
        %v2118 = vadd.f32 %v2079, %v2114
        %v2119 = vadd.f32 %v2080, %v2114
        %v2120 = vadd.f32 %v2081, %v2114
        %v2121 = vadd.f32 %v2082, %v2114
        %v2122 = vadd.f32 %v2083, %v2114
        %v2123 = vadd.f32 %v2084, %v2114
        %v2124 = vadd.f32 %v2085, %v2114
        %v2125 = vadd.f32 %v2086, %v2114
        %v2126 = vadd.f32 %v2087, %v2114
        %v2127 = vadd.f32 %v2088, %v2114
        %v2128 = vadd.f32 %v2089, %v2114
        %v2129 = vadd.f32 %v2090, %v2114
        %v2130 = vadd.f32 %v2091, %v2114
        %v2131 = vadd.f32 %v2092, %v2114
        %v2132 = vadd.f32 %v2093, %v2114
        %v2133 = vadd.f32 %v2094, %v2114
        %v2134 = vadd.f32 %v2095, %v2114
        %v2135 = vadd.f32 %v2096, %v2114
        %v2136 = vadd.f32 %v2097, %v2114
        %v2137 = vadd.f32 %v2098, %v2114
        %v2138 = vadd.f32 %v2099, %v2114
        %v2139 = vadd.f32 %v2100, %v2114
        %v2140 = vadd.f32 %v2101, %v2114
        %v2141 = vadd.f32 %v2102, %v2114
        %v2142 = vadd.f32 %v2103, %v2114
        %v2143 = vadd.f32 %v2104, %v2114
        %v2144 = vadd.f32 %v2105, %v2114
        %v2145 = vadd.f32 %v2106, %v2114
        %v2146 = vadd.f32 %v2107, %v2114
        %v2147 = vadd.f32 %v2108, %v2114
        %v2148 = vmax.f32 %v2116, 0.0
        %v2149 = vmax.f32 %v2117, 0.0
        %v2150 = vmax.f32 %v2118, 0.0
        %v2151 = vmax.f32 %v2119, 0.0
        %v2152 = vmax.f32 %v2120, 0.0
        %v2153 = vmax.f32 %v2121, 0.0
        %v2154 = vmax.f32 %v2122, 0.0
        %v2155 = vmax.f32 %v2123, 0.0
        %v2156 = vmax.f32 %v2124, 0.0
        %v2157 = vmax.f32 %v2125, 0.0
        %v2158 = vmax.f32 %v2126, 0.0
        %v2159 = vmax.f32 %v2127, 0.0
        %v2160 = vmax.f32 %v2128, 0.0
        %v2161 = vmax.f32 %v2129, 0.0
        %v2162 = vmax.f32 %v2130, 0.0
        %v2163 = vmax.f32 %v2131, 0.0
        %v2164 = vmax.f32 %v2132, 0.0
        %v2165 = vmax.f32 %v2133, 0.0
        %v2166 = vmax.f32 %v2134, 0.0
        %v2167 = vmax.f32 %v2135, 0.0
        %v2168 = vmax.f32 %v2136, 0.0
        %v2169 = vmax.f32 %v2137, 0.0
        %v2170 = vmax.f32 %v2138, 0.0
        %v2171 = vmax.f32 %v2139, 0.0
        %v2172 = vmax.f32 %v2140, 0.0
        %v2173 = vmax.f32 %v2141, 0.0
        %v2174 = vmax.f32 %v2142, 0.0
        %v2175 = vmax.f32 %v2143, 0.0
        %v2176 = vmax.f32 %v2144, 0.0
        %v2177 = vmax.f32 %v2145, 0.0
        %v2178 = vmax.f32 %v2146, 0.0
        %v2179 = vmax.f32 %v2147, 0.0
        %vm2180 = vcmask 261120
        %2181 = vst.msk [vmem:[%s748] sm:$0xff] %vm2180, %v2148
        %2182 = vst.msk [vmem:[%s748 + $0x8] sm:$0xff] %vm2180, %v2149
        %2183 = vst.msk [vmem:[%s748 + $0x10] sm:$0xff] %vm2180, %v2150
        %2184 = vst.msk [vmem:[%s748 + $0x18] sm:$0xff] %vm2180, %v2151
        %2185 = vst.msk [vmem:[%s748 + $0x20] sm:$0xff] %vm2180, %v2152
        %2186 = vst.msk [vmem:[%s748 + $0x28] sm:$0xff] %vm2180, %v2153
        %2187 = vst.msk [vmem:[%s748 + $0x30] sm:$0xff] %vm2180, %v2154
        %2188 = vst.msk [vmem:[%s748 + $0x38] sm:$0xff] %vm2180, %v2155
        %2189 = vst.msk [vmem:[%s748 + $0x40] sm:$0xff] %vm2180, %v2156
        %2190 = vst.msk [vmem:[%s748 + $0x48] sm:$0xff] %vm2180, %v2157
        %2191 = vst.msk [vmem:[%s748 + $0x50] sm:$0xff] %vm2180, %v2158
        %2192 = vst.msk [vmem:[%s748 + $0x58] sm:$0xff] %vm2180, %v2159
        %2193 = vst.msk [vmem:[%s748 + $0x60] sm:$0xff] %vm2180, %v2160
        %2194 = vst.msk [vmem:[%s748 + $0x68] sm:$0xff] %vm2180, %v2161
        %2195 = vst.msk [vmem:[%s748 + $0x70] sm:$0xff] %vm2180, %v2162
        %2196 = vst.msk [vmem:[%s748 + $0x78] sm:$0xff] %vm2180, %v2163
        %2197 = vst.msk [vmem:[%s748 + $0x80] sm:$0xff] %vm2180, %v2164
        %2198 = vst.msk [vmem:[%s748 + $0x88] sm:$0xff] %vm2180, %v2165
        %2199 = vst.msk [vmem:[%s748 + $0x90] sm:$0xff] %vm2180, %v2166
        %2200 = vst.msk [vmem:[%s748 + $0x98] sm:$0xff] %vm2180, %v2167
        %2201 = vst.msk [vmem:[%s748 + $0xa0] sm:$0xff] %vm2180, %v2168
        %2202 = vst.msk [vmem:[%s748 + $0xa8] sm:$0xff] %vm2180, %v2169
        %2203 = vst.msk [vmem:[%s748 + $0xb0] sm:$0xff] %vm2180, %v2170
        %2204 = vst.msk [vmem:[%s748 + $0xb8] sm:$0xff] %vm2180, %v2171
        %2205 = vst.msk [vmem:[%s748 + $0xc0] sm:$0xff] %vm2180, %v2172
        %2206 = vst.msk [vmem:[%s748 + $0xc8] sm:$0xff] %vm2180, %v2173
        %2207 = vst.msk [vmem:[%s748 + $0xd0] sm:$0xff] %vm2180, %v2174
        %2208 = vst.msk [vmem:[%s748 + $0xd8] sm:$0xff] %vm2180, %v2175
        %2209 = vst.msk [vmem:[%s748 + $0xe0] sm:$0xff] %vm2180, %v2176
        %2210 = vst.msk [vmem:[%s748 + $0xe8] sm:$0xff] %vm2180, %v2177
        %2211 = vst.msk [vmem:[%s748 + $0xf0] sm:$0xff] %vm2180, %v2178
        %2212 = vst.msk [vmem:[%s748 + $0xf8] sm:$0xff] %vm2180, %v2179
        %s2213 = smul.u32 32, %s15
        %p2214 = scmp.lt.s32.totalorder %s2213, 127
        %s2215 = scalar_select %p2214, %s2213, 127
        %s2216 = smul.addr %s2215, 8
        %s2217 = scalar_lea.vmem %s4, %s2216
        // Predicated region
        $region78: #{dronet_forward.7} parent=72 // pred_check
          %p2218 = pneg %p122
        $region79: #{dronet_forward.7} parent=72 // pred_check_branch
          %2220 = sbr.rel (%p2218) target = $region81
        $region80: #{dronet_forward.7} parent=72 // pred_region
          %s2221 = smul.u32 32, %s15
        $region81: #{dronet_forward.7} parent=72 // pred_fallthru
          _
      $region73: #{dronet_forward.7} parent=5 // pred_fallthru
        _
      %p2222 = scmp.le.s32.totalorder 2, %s10
      // Predicated region
      $region82: #{dronet_forward.7} parent=5 // pred_check
        %p2223 = pneg %p2222
      $region83: #{dronet_forward.7} parent=5 // pred_check_branch
        %2225 = sbr.rel (%p2223) target = $region85
      $region84: #{dronet_forward.7} parent=5 // pred_region
        %s2226 = ssub.s32 %s10, 2
        // Predicated region
        $region86: #{dronet_forward.7} parent=84 // pred_check
          %p2227 = pneg %p128
        $region87: #{dronet_forward.7} parent=84 // pred_check_branch
          %2229 = sbr.rel (%p2227) target = $region89
        $region88: #{dronet_forward.7} parent=84 // pred_region
          %s2230 = smul.u32 32, %s16
          %p2231 = scmp.lt.s32.totalorder %s2230, 127
          %s2232 = scalar_select %p2231, %s2230, 127
          %s2233 = smul.addr %s2232, 8
          %s2234 = scalar_lea.vmem %s4, %s2233
        $region89: #{dronet_forward.7} parent=84 // pred_fallthru
          _
      $region85: #{dronet_forward.7} parent=5 // pred_fallthru
        _
    $region6: #{dronet_forward.7} parent=1 // loop_footer
      %s14 = sadd.s32 1, %s10
    $region7: #{dronet_forward.7} parent=1 // loop_footer_branch
      %9 = sbr.rel target = $region3
    $region8: #{dronet_forward.7} parent=1 // loop_exit
      _

// kernel: dronet_forward.8
$region0: #{dronet_forward.8}
  #allocation0 [shape = 'u32[]', space=smem, size = 0x4, offset = 0x4, fixed_abs, tag = 'smem constant byte address 0x4 - core index']
  #allocation1 [shape = 'u32[144,128]{1,0:T(1,128)}', space=vmem, size = 0x12000, scoped, tag = 'internal scratch']
  %s0 = inlined_call_operand.vmem [shape: bf16[256,384], index: 0, kind: input, shape index: {}]
  %s1 = inlined_call_operand.vmem [shape: bf16[384,32], index: 1, kind: input, shape index: {}]
  %s2 = inlined_call_operand.vmem [shape: bf16[128,32], index: 2, kind: input, shape index: {}]
  %s3 = inlined_call_operand.vmem [shape: f32[1,32], index: 3, kind: input, shape index: {}]
  %s4 = inlined_call_operand.vmem [shape: f32[1,32], index: 4, kind: input, shape index: {}]
  %s5 = inlined_call_operand.vmem [shape: f32[256,32], index: 5, kind: output, shape index: {0}]
  %s6 = inlined_call_operand.vmem [shape: f32[256,32], index: 6, kind: output, shape index: {1}]
  %7 = xla_tuple %s5, %s6
  %s8 = sld [smem:[#allocation0]]
  $region61: #{dronet_forward.8} parent=0
    _
  %s10 = ssub.s32 1, %s8
  %s11 = scalar_select 0, %s10, %s8
  loop: start=0, step=1, limit=4
  $region2: #{dronet_forward.8} parent=0 // loop_pre_header
    _
  $region3: #{dronet_forward.8} parent=0 // loop_header
    %s13 = sphi 0, %s17
    %p14 = scmp.ge.s32.totalorder %s13, 4
    %s23 = sphi 0, %s25
    %s26 = sphi 0, %s23
    %s27 = sphi 0, %s26
    %s43 = sphi 0, %s27
    %s47 = sphi 0, %s47
    %s49 = sphi 0, %s47
    %s50 = sphi 0, %s49
    %s64 = sphi 0, %s50
    %s68 = sphi 0, %s68
    %s70 = sphi 0, %s68
    %s71 = sphi 0, %s70
    %s85 = sphi 0, %s71
    %s89 = sphi 0, %s89
    %s91 = sphi 0, %s89
    %s92 = sphi 0, %s91
    %s106 = sphi 0, %s92
    %s110 = sphi 0, %s110
    %s112 = sphi 0, %s110
    %s113 = sphi 0, %s112
    %s127 = sphi 0, %s113
    %s133 = sphi 0, %s135
    %s136 = sphi 0, %s133
    %s137 = sphi 0, %s136
    %s153 = sphi 0, %s137
    %s159 = sphi 0, %s161
    %s162 = sphi 0, %s159
    %s163 = sphi 0, %s162
    %s179 = sphi 0, %s163
  $region4: #{dronet_forward.8} parent=0 // loop_header_branch
    %16 = sbr.rel (%p14) target = $region8
  $region5: #{dronet_forward.8} parent=0 // loop_body
    %s18 = ssub.s32 %s13, 1
    %s19 = ssub.s32 %s13, 2
    %s20 = sadd.s32 %s13, 1
    %s21 = ssub.s32 %s13, %s20
    %p22 = scmp.eq.s32.totalorder %s21, 0
    %s24 = sadd.s32 %s23, 1
    %s25 = scalar_select %p22, %s23, %s24
    %p28 = pneg %p22
    %p29 = scmp.eq.s32.totalorder %s13, 1
    %p30 = por %p28, %p29
    %p31 = scmp.ne.s32.totalorder %s23, %s26
    %p32 = scmp.eq.s32.totalorder %s13, 0
    %p33 = por %p31, %p32
    %p34 = scmp.ne.s32.totalorder %s23, %s26
    %p35 = scmp.eq.s32.totalorder %s18, 1
    %p36 = por %p34, %p35
    %p37 = scmp.ne.s32.totalorder %s26, %s27
    %p38 = scmp.eq.s32.totalorder %s18, 0
    %p39 = por %p37, %p38
    %p40 = scmp.ne.s32.totalorder %s26, %s27
    %p41 = scmp.eq.s32.totalorder %s19, 1
    %p42 = por %p40, %p41
    %p44 = scmp.ne.s32.totalorder %s27, %s43
    %p45 = scmp.eq.s32.totalorder %s19, 0
    %p46 = por %p44, %p45
    %s48 = sadd.s32 %s47, 1
    %p51 = scmp.eq.s32.totalorder %s13, 1
    %p52 = scmp.ne.s32.totalorder %s47, %s49
    %p53 = scmp.eq.s32.totalorder %s13, 0
    %p54 = por %p52, %p53
    %p55 = scmp.ne.s32.totalorder %s47, %s49
    %p56 = scmp.eq.s32.totalorder %s18, 1
    %p57 = por %p55, %p56
    %p58 = scmp.ne.s32.totalorder %s49, %s50
    %p59 = scmp.eq.s32.totalorder %s18, 0
    %p60 = por %p58, %p59
    %p61 = scmp.ne.s32.totalorder %s49, %s50
    %p62 = scmp.eq.s32.totalorder %s19, 1
    %p63 = por %p61, %p62
    %p65 = scmp.ne.s32.totalorder %s50, %s64
    %p66 = scmp.eq.s32.totalorder %s19, 0
    %p67 = por %p65, %p66
    %s69 = sadd.s32 %s68, 1
    %p72 = scmp.eq.s32.totalorder %s13, 1
    %p73 = scmp.ne.s32.totalorder %s68, %s70
    %p74 = scmp.eq.s32.totalorder %s13, 0
    %p75 = por %p73, %p74
    %p76 = scmp.ne.s32.totalorder %s68, %s70
    %p77 = scmp.eq.s32.totalorder %s18, 1
    %p78 = por %p76, %p77
    %p79 = scmp.ne.s32.totalorder %s70, %s71
    %p80 = scmp.eq.s32.totalorder %s18, 0
    %p81 = por %p79, %p80
    %p82 = scmp.ne.s32.totalorder %s70, %s71
    %p83 = scmp.eq.s32.totalorder %s19, 1
    %p84 = por %p82, %p83
    %p86 = scmp.ne.s32.totalorder %s71, %s85
    %p87 = scmp.eq.s32.totalorder %s19, 0
    %p88 = por %p86, %p87
    %s90 = sadd.s32 %s89, 1
    %p93 = scmp.eq.s32.totalorder %s13, 1
    %p94 = scmp.ne.s32.totalorder %s89, %s91
    %p95 = scmp.eq.s32.totalorder %s13, 0
    %p96 = por %p94, %p95
    %p97 = scmp.ne.s32.totalorder %s89, %s91
    %p98 = scmp.eq.s32.totalorder %s18, 1
    %p99 = por %p97, %p98
    %p100 = scmp.ne.s32.totalorder %s91, %s92
    %p101 = scmp.eq.s32.totalorder %s18, 0
    %p102 = por %p100, %p101
    %p103 = scmp.ne.s32.totalorder %s91, %s92
    %p104 = scmp.eq.s32.totalorder %s19, 1
    %p105 = por %p103, %p104
    %p107 = scmp.ne.s32.totalorder %s92, %s106
    %p108 = scmp.eq.s32.totalorder %s19, 0
    %p109 = por %p107, %p108
    %s111 = sadd.s32 %s110, 1
    %p114 = scmp.eq.s32.totalorder %s13, 1
    %p115 = scmp.ne.s32.totalorder %s110, %s112
    %p116 = scmp.eq.s32.totalorder %s13, 0
    %p117 = por %p115, %p116
    %p118 = scmp.ne.s32.totalorder %s110, %s112
    %p119 = scmp.eq.s32.totalorder %s18, 1
    %p120 = por %p118, %p119
    %p121 = scmp.ne.s32.totalorder %s112, %s113
    %p122 = scmp.eq.s32.totalorder %s18, 0
    %p123 = por %p121, %p122
    %p124 = scmp.ne.s32.totalorder %s112, %s113
    %p125 = scmp.eq.s32.totalorder %s19, 1
    %p126 = por %p124, %p125
    %p128 = scmp.ne.s32.totalorder %s113, %s127
    %p129 = scmp.eq.s32.totalorder %s19, 0
    %p130 = por %p128, %p129
    %s131 = ssub.s32 %s13, %s20
    %p132 = scmp.eq.s32.totalorder %s131, 0
    %s134 = sadd.s32 %s133, 1
    %s135 = scalar_select %p132, %s133, %s134
    %p138 = pneg %p132
    %p139 = scmp.eq.s32.totalorder %s13, 1
    %p140 = por %p138, %p139
    %p141 = scmp.ne.s32.totalorder %s133, %s136
    %p142 = scmp.eq.s32.totalorder %s13, 0
    %p143 = por %p141, %p142
    %p144 = scmp.ne.s32.totalorder %s133, %s136
    %p145 = scmp.eq.s32.totalorder %s18, 1
    %p146 = por %p144, %p145
    %p147 = scmp.ne.s32.totalorder %s136, %s137
    %p148 = scmp.eq.s32.totalorder %s18, 0
    %p149 = por %p147, %p148
    %p150 = scmp.ne.s32.totalorder %s136, %s137
    %p151 = scmp.eq.s32.totalorder %s19, 1
    %p152 = por %p150, %p151
    %p154 = scmp.ne.s32.totalorder %s137, %s153
    %p155 = scmp.eq.s32.totalorder %s19, 0
    %p156 = por %p154, %p155
    %s157 = ssub.s32 %s13, %s20
    %p158 = scmp.eq.s32.totalorder %s157, 0
    %s160 = sadd.s32 %s159, 1
    %s161 = scalar_select %p158, %s159, %s160
    %p164 = pneg %p158
    %p165 = scmp.eq.s32.totalorder %s13, 1
    %p166 = por %p164, %p165
    %p167 = scmp.ne.s32.totalorder %s159, %s162
    %p168 = scmp.eq.s32.totalorder %s13, 0
    %p169 = por %p167, %p168
    %p170 = scmp.ne.s32.totalorder %s159, %s162
    %p171 = scmp.eq.s32.totalorder %s18, 1
    %p172 = por %p170, %p171
    %p173 = scmp.ne.s32.totalorder %s162, %s163
    %p174 = scmp.eq.s32.totalorder %s18, 0
    %p175 = por %p173, %p174
    %p176 = scmp.ne.s32.totalorder %s162, %s163
    %p177 = scmp.eq.s32.totalorder %s19, 1
    %p178 = por %p176, %p177
    %p180 = scmp.ne.s32.totalorder %s163, %s179
    %p181 = scmp.eq.s32.totalorder %s19, 0
    %p182 = por %p180, %p181
    %p183 = scmp.le.s32.totalorder 1, %s13
    %p184 = scmp.lt.s32.totalorder %s13, 3
    %p185 = pnand %p183, %p184
    %p186 = pneg %p185
    // Predicated region
    $region9: #{dronet_forward.8} parent=5 // pred_check
      _
    $region10: #{dronet_forward.8} parent=5 // pred_check_branch
      %188 = sbr.rel (%p185) target = $region12
    $region11: #{dronet_forward.8} parent=5 // pred_region
      %s189 = ssub.s32 %s13, 1
      // Predicated region
      $region13: #{dronet_forward.8} parent=11 // pred_check
        %p190 = pneg %p60
      $region14: #{dronet_forward.8} parent=11 // pred_check_branch
        %192 = sbr.rel (%p190) target = $region16
      $region15: #{dronet_forward.8} parent=11 // pred_region
        _
      $region16: #{dronet_forward.8} parent=11 // pred_fallthru
        _
      // Predicated region
      $region17: #{dronet_forward.8} parent=11 // pred_check
        %p193 = pneg %p81
      $region18: #{dronet_forward.8} parent=11 // pred_check_branch
        %195 = sbr.rel (%p193) target = $region20
      $region19: #{dronet_forward.8} parent=11 // pred_region
        _
      $region20: #{dronet_forward.8} parent=11 // pred_fallthru
        _
      // Predicated region
      $region21: #{dronet_forward.8} parent=11 // pred_check
        %p196 = pneg %p102
      $region22: #{dronet_forward.8} parent=11 // pred_check_branch
        %198 = sbr.rel (%p196) target = $region24
      $region23: #{dronet_forward.8} parent=11 // pred_region
        _
      $region24: #{dronet_forward.8} parent=11 // pred_fallthru
        _
      // Predicated region
      $region25: #{dronet_forward.8} parent=11 // pred_check
        %p199 = pneg %p123
      $region26: #{dronet_forward.8} parent=11 // pred_check_branch
        %201 = sbr.rel (%p199) target = $region28
      $region27: #{dronet_forward.8} parent=11 // pred_region
        _
      $region28: #{dronet_forward.8} parent=11 // pred_fallthru
        _
    $region12: #{dronet_forward.8} parent=5 // pred_fallthru
      _
    %p202 = scmp.lt.s32.totalorder %s13, 2
    // Predicated region
    $region29: #{dronet_forward.8} parent=5 // pred_check
      %p203 = pneg %p202
    $region30: #{dronet_forward.8} parent=5 // pred_check_branch
      %205 = sbr.rel (%p203) target = $region32
    $region31: #{dronet_forward.8} parent=5 // pred_region
      // Predicated region
      $region33: #{dronet_forward.8} parent=31 // pred_check
        %p206 = pneg %p33
      $region34: #{dronet_forward.8} parent=31 // pred_check_branch
        %208 = sbr.rel (%p206) target = $region36
      $region35: #{dronet_forward.8} parent=31 // pred_region
        %s209 = smul.u32 16, %s13
        %p210 = scmp.lt.s32.totalorder %s209, 31
        %s211 = scalar_select %p210, %s209, 31
        %s212 = smul.addr %s211, 3
        %s213 = smul.addr %s212, 4
        %s214 = scalar_lea.vmem %s0, %s213
        %s215 = smul.u32 16, %s13
      $region36: #{dronet_forward.8} parent=31 // pred_fallthru
        _
    $region32: #{dronet_forward.8} parent=5 // pred_fallthru
      _
    %p216 = scmp.le.s32.totalorder 1, %s13
    %p217 = scmp.lt.s32.totalorder %s13, 3
    %p218 = pnand %p216, %p217
    %p219 = pneg %p218
    // Predicated region
    $region37: #{dronet_forward.8} parent=5 // pred_check
      _
    $region38: #{dronet_forward.8} parent=5 // pred_check_branch
      %221 = sbr.rel (%p218) target = $region40
    $region39: #{dronet_forward.8} parent=5 // pred_region
      %s222 = ssub.s32 %s13, 1
      %s223 = smul.u32 16, %s18
      %p224 = scmp.lt.s32.totalorder %s223, 31
      %s225 = scalar_select %p224, %s223, 31
      %s226 = smul.addr %s225, 3
      %s227 = smul.addr %s226, 4
      %s228 = scalar_lea.vmem %s0, %s227
      %p229 = pneg %p39
      %p230 = pneg %p36
      %p231 = pneg %p60
      %p232 = pneg %p57
      %p233 = pneg %p81
      %p234 = pneg %p78
      %p235 = pneg %p102
      %p236 = pneg %p99
      %p237 = pneg %p123
      %p238 = pneg %p120
      %p239 = pneg %p149
      %p240 = pneg %p146
      %s241 = smul.u32 16, %s18
      %p242 = scmp.lt.s32.totalorder %s241, 31
      %s243 = scalar_select %p242, %s241, 31
      %s244 = smul.addr %s243, 8
      %s245 = scalar_lea.vmem %s5, %s244
      %p246 = pneg %p175
      %p247 = pneg %p172
      %s248 = smul.u32 16, %s18
      %p249 = scmp.lt.s32.totalorder %s248, 31
      %s250 = scalar_select %p249, %s248, 31
      %s251 = smul.addr %s250, 8
      %s252 = scalar_lea.vmem %s6, %s251
      %s253 = smul.u32 16, %s18
      %p254 = scmp.lt.s32.totalorder %s253, 31
      %s255 = scalar_select %p254, %s253, 31
      %s256 = smul.addr %s255, 3
      %s257 = smul.addr %s256, 4
      %s258 = scalar_lea.vmem %s0, %s257
      %s259 = smul.u32 16, %s18
      %s260 = smul.u32 16, %s18
      %p261 = scmp.lt.s32.totalorder %s260, 31
      %s262 = scalar_select %p261, %s260, 31
      %s263 = smul.addr %s262, 8
      %s264 = scalar_lea.vmem %s5, %s263
      %s265 = smul.u32 16, %s18
      %s266 = smul.u32 16, %s18
      %p267 = scmp.lt.s32.totalorder %s266, 31
      %s268 = scalar_select %p267, %s266, 31
      %s269 = smul.addr %s268, 8
      %s270 = scalar_lea.vmem %s6, %s269
      %s271 = smul.u32 16, %s18
      %v273 = vld [vmem:[%s258] sm:$0xff]
      %v274 = vld [vmem:[%s258 + $0x8] sm:$0xf]
      %v275 = vld [vmem:[%s258 + $0xc] sm:$0xff]
      %v276 = vld [vmem:[%s258 + $0x14] sm:$0xf]
      %v277 = vld [vmem:[%s258 + $0x18] sm:$0xff]
      %v278 = vld [vmem:[%s258 + $0x20] sm:$0xf]
      %v279 = vld [vmem:[%s258 + $0x24] sm:$0xff]
      %v280 = vld [vmem:[%s258 + $0x2c] sm:$0xf]
      %v281 = vld [vmem:[%s258 + $0x30] sm:$0xff]
      %v282 = vld [vmem:[%s258 + $0x38] sm:$0xf]
      %v283 = vld [vmem:[%s258 + $0x3c] sm:$0xff]
      %v284 = vld [vmem:[%s258 + $0x44] sm:$0xf]
      %v285 = vld [vmem:[%s258 + $0x48] sm:$0xff]
      %v286 = vld [vmem:[%s258 + $0x50] sm:$0xf]
      %v287 = vld [vmem:[%s258 + $0x54] sm:$0xff]
      %v288 = vld [vmem:[%s258 + $0x5c] sm:$0xf]
      %v289 = vld [vmem:[%s258 + $0x60] sm:$0xff]
      %v290 = vld [vmem:[%s258 + $0x68] sm:$0xf]
      %v291 = vld [vmem:[%s258 + $0x6c] sm:$0xff]
      %v292 = vld [vmem:[%s258 + $0x74] sm:$0xf]
      %v293 = vld [vmem:[%s258 + $0x78] sm:$0xff]
      %v294 = vld [vmem:[%s258 + $0x80] sm:$0xf]
      %v295 = vld [vmem:[%s258 + $0x84] sm:$0xff]
      %v296 = vld [vmem:[%s258 + $0x8c] sm:$0xf]
      %v297 = vld [vmem:[%s258 + $0x90] sm:$0xff]
      %v298 = vld [vmem:[%s258 + $0x98] sm:$0xf]
      %v299 = vld [vmem:[%s258 + $0x9c] sm:$0xff]
      %v300 = vld [vmem:[%s258 + $0xa4] sm:$0xf]
      %v301 = vld [vmem:[%s258 + $0xa8] sm:$0xff]
      %v302 = vld [vmem:[%s258 + $0xb0] sm:$0xf]
      %v303 = vld [vmem:[%s258 + $0xb4] sm:$0xff]
      %v304 = vld [vmem:[%s258 + $0xbc] sm:$0xf]
      %v305 = vld [vmem:[%s1] sm:$0xf]
      %v306 = vld [vmem:[%s1 + $0x4] sm:$0xf]
      %v307 = vld [vmem:[%s1 + $0x8] sm:$0xf]
      %v308 = vld [vmem:[%s1 + $0xc] sm:$0xf]
      %v309 = vld [vmem:[%s1 + $0x10] sm:$0xf]
      %v310 = vld [vmem:[%s1 + $0x14] sm:$0xf]
      %v311 = vld [vmem:[%s1 + $0x18] sm:$0xf]
      %v312 = vld [vmem:[%s1 + $0x1c] sm:$0xf]
      %v313 = vld [vmem:[%s1 + $0x20] sm:$0xf]
      %v314 = vld [vmem:[%s1 + $0x24] sm:$0xf]
      %v315 = vld [vmem:[%s1 + $0x28] sm:$0xf]
      %v316 = vld [vmem:[%s1 + $0x2c] sm:$0xf]
      %v317 = vld [vmem:[%s1 + $0x30] sm:$0xf]
      %v318 = vld [vmem:[%s1 + $0x34] sm:$0xf]
      %v319 = vld [vmem:[%s1 + $0x38] sm:$0xf]
      %v320 = vld [vmem:[%s1 + $0x3c] sm:$0xf]
      %v321 = vld [vmem:[%s1 + $0x40] sm:$0xf]
      %v322 = vld [vmem:[%s1 + $0x44] sm:$0xf]
      %v323 = vld [vmem:[%s1 + $0x48] sm:$0xf]
      %v324 = vld [vmem:[%s1 + $0x4c] sm:$0xf]
      %v325 = vld [vmem:[%s1 + $0x50] sm:$0xf]
      %v326 = vld [vmem:[%s1 + $0x54] sm:$0xf]
      %v327 = vld [vmem:[%s1 + $0x58] sm:$0xf]
      %v328 = vld [vmem:[%s1 + $0x5c] sm:$0xf]
      %v329 = vld [vmem:[%s1 + $0x60] sm:$0xf]
      %v330 = vld [vmem:[%s1 + $0x64] sm:$0xf]
      %v331 = vld [vmem:[%s1 + $0x68] sm:$0xf]
      %v332 = vld [vmem:[%s1 + $0x6c] sm:$0xf]
      %v333 = vld [vmem:[%s1 + $0x70] sm:$0xf]
      %v334 = vld [vmem:[%s1 + $0x74] sm:$0xf]
      %v335 = vld [vmem:[%s1 + $0x78] sm:$0xf]
      %v336 = vld [vmem:[%s1 + $0x7c] sm:$0xf]
      %v337 = vld [vmem:[%s1 + $0x80] sm:$0xf]
      %v338 = vld [vmem:[%s1 + $0x84] sm:$0xf]
      %v339 = vld [vmem:[%s1 + $0x88] sm:$0xf]
      %v340 = vld [vmem:[%s1 + $0x8c] sm:$0xf]
      %v341 = vld [vmem:[%s1 + $0x90] sm:$0xf]
      %v342 = vld [vmem:[%s1 + $0x94] sm:$0xf]
      %v343 = vld [vmem:[%s1 + $0x98] sm:$0xf]
      %v344 = vld [vmem:[%s1 + $0x9c] sm:$0xf]
      %v345 = vld [vmem:[%s1 + $0xa0] sm:$0xf]
      %v346 = vld [vmem:[%s1 + $0xa4] sm:$0xf]
      %v347 = vld [vmem:[%s1 + $0xa8] sm:$0xf]
      %v348 = vld [vmem:[%s1 + $0xac] sm:$0xf]
      %v349 = vld [vmem:[%s1 + $0xb0] sm:$0xf]
      %v350 = vld [vmem:[%s1 + $0xb4] sm:$0xf]
      %v351 = vld [vmem:[%s1 + $0xb8] sm:$0xf]
      %v352 = vld [vmem:[%s1 + $0xbc] sm:$0xf]
      %v385 = vunpack.c.l.b16 %v273
      %v386 = vunpack.c.h.b16 %v273
      %v387 = vunpack.c.l.b16 %v274
      %v388 = vunpack.c.l.b16 %v275
      %v389 = vunpack.c.h.b16 %v275
      %v390 = vunpack.c.l.b16 %v276
      %v391 = vunpack.c.l.b16 %v277
      %v392 = vunpack.c.h.b16 %v277
      %v393 = vunpack.c.l.b16 %v278
      %v394 = vunpack.c.l.b16 %v279
      %v395 = vunpack.c.h.b16 %v279
      %v396 = vunpack.c.l.b16 %v280
      %v397 = vunpack.c.l.b16 %v281
      %v398 = vunpack.c.h.b16 %v281
      %v399 = vunpack.c.l.b16 %v282
      %v400 = vunpack.c.l.b16 %v283
      %v401 = vunpack.c.h.b16 %v283
      %v402 = vunpack.c.l.b16 %v284
      %v403 = vunpack.c.l.b16 %v285
      %v404 = vunpack.c.h.b16 %v285
      %v405 = vunpack.c.l.b16 %v286
      %v406 = vunpack.c.l.b16 %v287
      %v407 = vunpack.c.h.b16 %v287
      %v408 = vunpack.c.l.b16 %v288
      %v409 = vunpack.c.l.b16 %v289
      %v410 = vunpack.c.h.b16 %v289
      %v411 = vunpack.c.l.b16 %v290
      %v412 = vunpack.c.l.b16 %v291
      %v413 = vunpack.c.h.b16 %v291
      %v414 = vunpack.c.l.b16 %v292
      %v415 = vunpack.c.l.b16 %v293
      %v416 = vunpack.c.h.b16 %v293
      %v417 = vunpack.c.l.b16 %v294
      %v418 = vunpack.c.l.b16 %v295
      %v419 = vunpack.c.h.b16 %v295
      %v420 = vunpack.c.l.b16 %v296
      %v421 = vunpack.c.l.b16 %v297
      %v422 = vunpack.c.h.b16 %v297
      %v423 = vunpack.c.l.b16 %v298
      %v424 = vunpack.c.l.b16 %v299
      %v425 = vunpack.c.h.b16 %v299
      %v426 = vunpack.c.l.b16 %v300
      %v427 = vunpack.c.l.b16 %v301
      %v428 = vunpack.c.h.b16 %v301
      %v429 = vunpack.c.l.b16 %v302
      %v430 = vunpack.c.l.b16 %v303
      %v431 = vunpack.c.h.b16 %v303
      %v432 = vunpack.c.l.b16 %v304
      %v433 = vpack.c.b16 %v388, %v385
      %v434 = vpack.c.b16 %v389, %v386
      %v435 = vpack.c.b16 %v390, %v387
      %v436 = vpack.c.b16 %v394, %v391
      %v437 = vpack.c.b16 %v395, %v392
      %v438 = vpack.c.b16 %v396, %v393
      %v439 = vpack.c.b16 %v400, %v397
      %v440 = vpack.c.b16 %v401, %v398
      %v441 = vpack.c.b16 %v402, %v399
      %v442 = vpack.c.b16 %v406, %v403
      %v443 = vpack.c.b16 %v407, %v404
      %v444 = vpack.c.b16 %v408, %v405
      %v445 = vpack.c.b16 %v412, %v409
      %v446 = vpack.c.b16 %v413, %v410
      %v447 = vpack.c.b16 %v414, %v411
      %v448 = vpack.c.b16 %v418, %v415
      %v449 = vpack.c.b16 %v419, %v416
      %v450 = vpack.c.b16 %v420, %v417
      %v451 = vpack.c.b16 %v424, %v421
      %v452 = vpack.c.b16 %v425, %v422
      %v453 = vpack.c.b16 %v426, %v423
      %v454 = vpack.c.b16 %v430, %v427
      %v455 = vpack.c.b16 %v431, %v428
      %v456 = vpack.c.b16 %v432, %v429
      %v529 = vunpack.c.l.b16 %v305
      %v530 = vunpack.c.l.b16 %v306
      %v531 = vunpack.c.l.b16 %v307
      %v532 = vunpack.c.l.b16 %v308
      %v533 = vunpack.c.l.b16 %v309
      %v534 = vunpack.c.l.b16 %v310
      %v535 = vunpack.c.l.b16 %v311
      %v536 = vunpack.c.l.b16 %v312
      %v537 = vunpack.c.l.b16 %v313
      %v538 = vunpack.c.l.b16 %v314
      %v539 = vunpack.c.l.b16 %v315
      %v540 = vunpack.c.l.b16 %v316
      %v541 = vunpack.c.l.b16 %v317
      %v542 = vunpack.c.l.b16 %v318
      %v543 = vunpack.c.l.b16 %v319
      %v544 = vunpack.c.l.b16 %v320
      %v545 = vunpack.c.l.b16 %v321
      %v546 = vunpack.c.l.b16 %v322
      %v547 = vunpack.c.l.b16 %v323
      %v548 = vunpack.c.l.b16 %v324
      %v549 = vunpack.c.l.b16 %v325
      %v550 = vunpack.c.l.b16 %v326
      %v551 = vunpack.c.l.b16 %v327
      %v552 = vunpack.c.l.b16 %v328
      %v553 = vunpack.c.l.b16 %v329
      %v554 = vunpack.c.l.b16 %v330
      %v555 = vunpack.c.l.b16 %v331
      %v556 = vunpack.c.l.b16 %v332
      %v557 = vunpack.c.l.b16 %v333
      %v558 = vunpack.c.l.b16 %v334
      %v559 = vunpack.c.l.b16 %v335
      %v560 = vunpack.c.l.b16 %v336
      %v561 = vunpack.c.l.b16 %v337
      %v562 = vunpack.c.l.b16 %v338
      %v563 = vunpack.c.l.b16 %v339
      %v564 = vunpack.c.l.b16 %v340
      %v565 = vunpack.c.l.b16 %v341
      %v566 = vunpack.c.l.b16 %v342
      %v567 = vunpack.c.l.b16 %v343
      %v568 = vunpack.c.l.b16 %v344
      %v569 = vunpack.c.l.b16 %v345
      %v570 = vunpack.c.l.b16 %v346
      %v571 = vunpack.c.l.b16 %v347
      %v572 = vunpack.c.l.b16 %v348
      %v573 = vunpack.c.l.b16 %v349
      %v574 = vunpack.c.l.b16 %v350
      %v575 = vunpack.c.l.b16 %v351
      %v576 = vunpack.c.l.b16 %v352
      %v577 = vpack.c.b16 %v530, %v529
      %v578 = vpack.c.b16 %v532, %v531
      %v579 = vpack.c.b16 %v534, %v533
      %v580 = vpack.c.b16 %v536, %v535
      %v581 = vpack.c.b16 %v538, %v537
      %v582 = vpack.c.b16 %v540, %v539
      %v583 = vpack.c.b16 %v542, %v541
      %v584 = vpack.c.b16 %v544, %v543
      %v585 = vpack.c.b16 %v546, %v545
      %v586 = vpack.c.b16 %v548, %v547
      %v587 = vpack.c.b16 %v550, %v549
      %v588 = vpack.c.b16 %v552, %v551
      %v589 = vpack.c.b16 %v554, %v553
      %v590 = vpack.c.b16 %v556, %v555
      %v591 = vpack.c.b16 %v558, %v557
      %v592 = vpack.c.b16 %v560, %v559
      %v593 = vpack.c.b16 %v562, %v561
      %v594 = vpack.c.b16 %v564, %v563
      %v595 = vpack.c.b16 %v566, %v565
      %v596 = vpack.c.b16 %v568, %v567
      %v597 = vpack.c.b16 %v570, %v569
      %v598 = vpack.c.b16 %v572, %v571
      %v599 = vpack.c.b16 %v574, %v573
      %v600 = vpack.c.b16 %v576, %v575
      %625 = vmatprep.subr.bf16.mxu0 0
      %626 = vmatpush1.bf16.msra.mxu0 %v577
      %627 = vmatprep.subr.bf16.mxu0 0
      %628 = vmatpush1.bf16.msra.mxu0 %v578
      %629 = vmatprep.subr.bf16.mxu0 0
      %630 = vmatpush1.bf16.msra.mxu0 %v579
      %631 = vmatprep.subr.bf16.mxu0 0
      %632 = vmatpush1.bf16.msra.mxu0 %v580
      %633 = vmatprep.subr.bf16.mxu0 0
      %634 = vmatpush1.bf16.msra.mxu0 %v581
      %635 = vmatprep.subr.bf16.mxu0 0
      %636 = vmatpush1.bf16.msra.mxu0 %v582
      %637 = vmatprep.subr.bf16.mxu0 0
      %638 = vmatpush1.bf16.msra.mxu0 %v583
      %639 = vmatprep.subr.bf16.mxu0 0
      %640 = vmatpush1.bf16.msra.mxu0 %v584
      %641 = vmatprep.subr.bf16.mxu0 0
      %642 = vmatpush1.bf16.msra.mxu0 %v585
      %643 = vmatprep.subr.bf16.mxu0 0
      %644 = vmatpush1.bf16.msra.mxu0 %v586
      %645 = vmatprep.subr.bf16.mxu0 0
      %646 = vmatpush1.bf16.msra.mxu0 %v587
      %647 = vmatprep.subr.bf16.mxu0 0
      %648 = vmatpush1.bf16.msra.mxu0 %v588
      %649 = vmatprep.subr.bf16.mxu0 0
      %650 = vmatpush1.bf16.msra.mxu0 %v589
      %651 = vmatprep.subr.bf16.mxu0 0
      %652 = vmatpush1.bf16.msra.mxu0 %v590
      %653 = vmatprep.subr.bf16.mxu0 0
      %654 = vmatpush1.bf16.msra.mxu0 %v591
      %655 = vmatprep.subr.bf16.mxu0 0
      %656 = vmatpush1.bf16.msra.mxu0 %v592
      %657 = vmatprep.mubr.bf16.mxu0 %v434
      %658 = vmatmul.mubr.bf16.gmra.mrb[0].mxu0 %v433
      %v659 = vpop.f32.mrb[0].mxu0
      %v660 = vadd.f32 0.0, %v659
      %v661 = vpop.f32.mrb[0].mxu0
      %v662 = vpop.f32.mrb[0].mxu0
      %v663 = vadd.f32 0.0, %v662
      %v664 = vpop.f32.mrb[0].mxu0
      %665 = vmatprep.mubr.bf16.mxu0 %v437
      %666 = vmatmul.mubr.bf16.gmra.mrb[0].mxu0 %v436
      %v667 = vpop.f32.mrb[0].mxu0
      %v668 = vadd.f32 0.0, %v667
      %v669 = vpop.f32.mrb[0].mxu0
      %v670 = vpop.f32.mrb[0].mxu0
      %v671 = vadd.f32 0.0, %v670
      %v672 = vpop.f32.mrb[0].mxu0
      %673 = vmatprep.mubr.bf16.mxu0 %v440
      %674 = vmatmul.mubr.bf16.gmra.mrb[0].mxu0 %v439
      %v675 = vpop.f32.mrb[0].mxu0
      %v676 = vadd.f32 0.0, %v675
      %v677 = vpop.f32.mrb[0].mxu0
      %v678 = vpop.f32.mrb[0].mxu0
      %v679 = vadd.f32 0.0, %v678
      %v680 = vpop.f32.mrb[0].mxu0
      %681 = vmatprep.mubr.bf16.mxu0 %v443
      %682 = vmatmul.mubr.bf16.gmra.mrb[0].mxu0 %v442
      %v683 = vpop.f32.mrb[0].mxu0
      %v684 = vadd.f32 0.0, %v683
      %v685 = vpop.f32.mrb[0].mxu0
      %v686 = vpop.f32.mrb[0].mxu0
      %v687 = vadd.f32 0.0, %v686
      %v688 = vpop.f32.mrb[0].mxu0
      %689 = vmatprep.mubr.bf16.mxu0 %v446
      %690 = vmatmul.mubr.bf16.gmra.mrb[0].mxu0 %v445
      %v691 = vpop.f32.mrb[0].mxu0
      %v692 = vadd.f32 0.0, %v691
      %v693 = vpop.f32.mrb[0].mxu0
      %v694 = vpop.f32.mrb[0].mxu0
      %v695 = vadd.f32 0.0, %v694
      %v696 = vpop.f32.mrb[0].mxu0
      %697 = vmatprep.mubr.bf16.mxu0 %v449
      %698 = vmatmul.mubr.bf16.gmra.mrb[0].mxu0 %v448
      %v699 = vpop.f32.mrb[0].mxu0
      %v700 = vadd.f32 0.0, %v699
      %v701 = vpop.f32.mrb[0].mxu0
      %v702 = vpop.f32.mrb[0].mxu0
      %v703 = vadd.f32 0.0, %v702
      %v704 = vpop.f32.mrb[0].mxu0
      %705 = vmatprep.mubr.bf16.mxu0 %v452
      %706 = vmatmul.mubr.bf16.gmra.mrb[0].mxu0 %v451
      %v707 = vpop.f32.mrb[0].mxu0
      %v708 = vadd.f32 0.0, %v707
      %v709 = vpop.f32.mrb[0].mxu0
      %v710 = vpop.f32.mrb[0].mxu0
      %v711 = vadd.f32 0.0, %v710
      %v712 = vpop.f32.mrb[0].mxu0
      %713 = vmatprep.mubr.bf16.mxu0 %v455
      %714 = vmatmul.mubr.bf16.gmra.mrb[0].mxu0 %v454
      %v715 = vpop.f32.mrb[0].mxu0
      %v716 = vadd.f32 0.0, %v715
      %v717 = vpop.f32.mrb[0].mxu0
      %v718 = vpop.f32.mrb[0].mxu0
      %v719 = vadd.f32 0.0, %v718
      %v720 = vpop.f32.mrb[0].mxu0
      %721 = vdwg.mxu0
      %722 = vmatprep.subr.bf16.mxu0 0
      %723 = vmatpush1.bf16.msra.mxu0 %v593
      %724 = vmatprep.subr.bf16.mxu0 0
      %725 = vmatpush1.bf16.msra.mxu0 %v594
      %726 = vmatprep.subr.bf16.mxu0 0
      %727 = vmatpush1.bf16.msra.mxu0 %v595
      %728 = vmatprep.subr.bf16.mxu0 0
      %729 = vmatpush1.bf16.msra.mxu0 %v596
      %730 = vmatprep.subr.bf16.mxu0 0
      %731 = vmatpush1.bf16.msra.mxu0 %v597
      %732 = vmatprep.subr.bf16.mxu0 0
      %733 = vmatpush1.bf16.msra.mxu0 %v598
      %734 = vmatprep.subr.bf16.mxu0 0
      %735 = vmatpush1.bf16.msra.mxu0 %v599
      %736 = vmatprep.subr.bf16.mxu0 0
      %737 = vmatpush1.bf16.msra.mxu0 %v600
      %738 = vmatprep.subr.bf16.mxu0 0
      %739 = vmatpush1.bf16.msra.mxu0 0
      %740 = vmatprep.subr.bf16.mxu0 0
      %741 = vmatpush1.bf16.msra.mxu0 0
      %742 = vmatprep.subr.bf16.mxu0 0
      %743 = vmatpush1.bf16.msra.mxu0 0
      %744 = vmatprep.subr.bf16.mxu0 0
      %745 = vmatpush1.bf16.msra.mxu0 0
      %746 = vmatprep.subr.bf16.mxu0 0
      %747 = vmatpush1.bf16.msra.mxu0 0
      %748 = vmatprep.subr.bf16.mxu0 0
      %749 = vmatpush1.bf16.msra.mxu0 0
      %750 = vmatprep.subr.bf16.mxu0 0
      %751 = vmatpush1.bf16.msra.mxu0 0
      %752 = vmatprep.subr.bf16.mxu0 0
      %753 = vmatpush1.bf16.msra.mxu0 0
      %754 = vmatprep.mubr.bf16.mxu0 0
      %755 = vmatmul.mubr.bf16.gmra.mrb[0].mxu0 %v435
      %v756 = vpop.f32.mrb[0].mxu0
      %v757 = vadd.f32 %v660, %v756
      %v758 = vpop.f32.mrb[0].mxu0
      %v759 = vpop.f32.mrb[0].mxu0
      %v760 = vadd.f32 %v663, %v759
      %v761 = vpop.f32.mrb[0].mxu0
      %762 = vmatprep.mubr.bf16.mxu0 0
      %763 = vmatmul.mubr.bf16.gmra.mrb[0].mxu0 %v438
      %v764 = vpop.f32.mrb[0].mxu0
      %v765 = vadd.f32 %v668, %v764
      %v766 = vpop.f32.mrb[0].mxu0
      %v767 = vpop.f32.mrb[0].mxu0
      %v768 = vadd.f32 %v671, %v767
      %v769 = vpop.f32.mrb[0].mxu0
      %770 = vmatprep.mubr.bf16.mxu0 0
      %771 = vmatmul.mubr.bf16.gmra.mrb[0].mxu0 %v441
      %v772 = vpop.f32.mrb[0].mxu0
      %v773 = vadd.f32 %v676, %v772
      %v774 = vpop.f32.mrb[0].mxu0
      %v775 = vpop.f32.mrb[0].mxu0
      %v776 = vadd.f32 %v679, %v775
      %v777 = vpop.f32.mrb[0].mxu0
      %778 = vmatprep.mubr.bf16.mxu0 0
      %779 = vmatmul.mubr.bf16.gmra.mrb[0].mxu0 %v444
      %v780 = vpop.f32.mrb[0].mxu0
      %v781 = vadd.f32 %v684, %v780
      %v782 = vpop.f32.mrb[0].mxu0
      %v783 = vpop.f32.mrb[0].mxu0
      %v784 = vadd.f32 %v687, %v783
      %v785 = vpop.f32.mrb[0].mxu0
      %786 = vmatprep.mubr.bf16.mxu0 0
      %787 = vmatmul.mubr.bf16.gmra.mrb[0].mxu0 %v447
      %v788 = vpop.f32.mrb[0].mxu0
      %v789 = vadd.f32 %v692, %v788
      %v790 = vpop.f32.mrb[0].mxu0
      %v791 = vpop.f32.mrb[0].mxu0
      %v792 = vadd.f32 %v695, %v791
      %v793 = vpop.f32.mrb[0].mxu0
      %794 = vmatprep.mubr.bf16.mxu0 0
      %795 = vmatmul.mubr.bf16.gmra.mrb[0].mxu0 %v450
      %v796 = vpop.f32.mrb[0].mxu0
      %v797 = vadd.f32 %v700, %v796
      %v798 = vpop.f32.mrb[0].mxu0
      %v799 = vpop.f32.mrb[0].mxu0
      %v800 = vadd.f32 %v703, %v799
      %v801 = vpop.f32.mrb[0].mxu0
      %802 = vmatprep.mubr.bf16.mxu0 0
      %803 = vmatmul.mubr.bf16.gmra.mrb[0].mxu0 %v453
      %v804 = vpop.f32.mrb[0].mxu0
      %v805 = vadd.f32 %v708, %v804
      %v806 = vpop.f32.mrb[0].mxu0
      %v807 = vpop.f32.mrb[0].mxu0
      %v808 = vadd.f32 %v711, %v807
      %v809 = vpop.f32.mrb[0].mxu0
      %810 = vmatprep.mubr.bf16.mxu0 0
      %811 = vmatmul.mubr.bf16.gmra.mrb[0].mxu0 %v456
      %v812 = vpop.f32.mrb[0].mxu0
      %v813 = vadd.f32 %v716, %v812
      %v814 = vpop.f32.mrb[0].mxu0
      %v815 = vpop.f32.mrb[0].mxu0
      %v816 = vadd.f32 %v719, %v815
      %v817 = vpop.f32.mrb[0].mxu0
      %818 = vdwg.mxu0
      %v819 = vld [vmem:[%s3] sm:$0x1]
      %v821 = vlaneseq
      %v822 = vshrl.u32 %v821, 7
      %v823 = vsub.s32 0, %v822
      %v824 = vrot.slane %v819, %v823
      %v826 = vmul.f32 %v757, %v824
      %v827 = vmul.f32 %v760, %v824
      %v828 = vmul.f32 %v765, %v824
      %v829 = vmul.f32 %v768, %v824
      %v830 = vmul.f32 %v773, %v824
      %v831 = vmul.f32 %v776, %v824
      %v832 = vmul.f32 %v781, %v824
      %v833 = vmul.f32 %v784, %v824
      %v834 = vmul.f32 %v789, %v824
      %v835 = vmul.f32 %v792, %v824
      %v836 = vmul.f32 %v797, %v824
      %v837 = vmul.f32 %v800, %v824
      %v838 = vmul.f32 %v805, %v824
      %v839 = vmul.f32 %v808, %v824
      %v840 = vmul.f32 %v813, %v824
      %v841 = vmul.f32 %v816, %v824
      %v842 = vld [vmem:[%s4] sm:$0x1]
      %v844 = vlaneseq
      %v845 = vshrl.u32 %v844, 7
      %v846 = vsub.s32 0, %v845
      %v847 = vrot.slane %v842, %v846
      %v849 = vadd.f32 %v826, %v847
      %v850 = vadd.f32 %v827, %v847
      %v851 = vadd.f32 %v828, %v847
      %v852 = vadd.f32 %v829, %v847
      %v853 = vadd.f32 %v830, %v847
      %v854 = vadd.f32 %v831, %v847
      %v855 = vadd.f32 %v832, %v847
      %v856 = vadd.f32 %v833, %v847
      %v857 = vadd.f32 %v834, %v847
      %v858 = vadd.f32 %v835, %v847
      %v859 = vadd.f32 %v836, %v847
      %v860 = vadd.f32 %v837, %v847
      %v861 = vadd.f32 %v838, %v847
      %v862 = vadd.f32 %v839, %v847
      %v863 = vadd.f32 %v840, %v847
      %v864 = vadd.f32 %v841, %v847
      %v865 = vmax.f32 %v849, 0.0
      %v866 = vmax.f32 %v850, 0.0
      %v867 = vmax.f32 %v851, 0.0
      %v868 = vmax.f32 %v852, 0.0
      %v869 = vmax.f32 %v853, 0.0
      %v870 = vmax.f32 %v854, 0.0
      %v871 = vmax.f32 %v855, 0.0
      %v872 = vmax.f32 %v856, 0.0
      %v873 = vmax.f32 %v857, 0.0
      %v874 = vmax.f32 %v858, 0.0
      %v875 = vmax.f32 %v859, 0.0
      %v876 = vmax.f32 %v860, 0.0
      %v877 = vmax.f32 %v861, 0.0
      %v878 = vmax.f32 %v862, 0.0
      %v879 = vmax.f32 %v863, 0.0
      %v880 = vmax.f32 %v864, 0.0
      %vm881 = vcmask 261120
      %882 = vst.msk [vmem:[%s264] sm:$0xff] %vm881, %v865
      %883 = vst.msk [vmem:[%s264 + $0x8] sm:$0xff] %vm881, %v866
      %884 = vst.msk [vmem:[%s264 + $0x10] sm:$0xff] %vm881, %v867
      %885 = vst.msk [vmem:[%s264 + $0x18] sm:$0xff] %vm881, %v868
      %886 = vst.msk [vmem:[%s264 + $0x20] sm:$0xff] %vm881, %v869
      %887 = vst.msk [vmem:[%s264 + $0x28] sm:$0xff] %vm881, %v870
      %888 = vst.msk [vmem:[%s264 + $0x30] sm:$0xff] %vm881, %v871
      %889 = vst.msk [vmem:[%s264 + $0x38] sm:$0xff] %vm881, %v872
      %890 = vst.msk [vmem:[%s264 + $0x40] sm:$0xff] %vm881, %v873
      %891 = vst.msk [vmem:[%s264 + $0x48] sm:$0xff] %vm881, %v874
      %892 = vst.msk [vmem:[%s264 + $0x50] sm:$0xff] %vm881, %v875
      %893 = vst.msk [vmem:[%s264 + $0x58] sm:$0xff] %vm881, %v876
      %894 = vst.msk [vmem:[%s264 + $0x60] sm:$0xff] %vm881, %v877
      %895 = vst.msk [vmem:[%s264 + $0x68] sm:$0xff] %vm881, %v878
      %896 = vst.msk [vmem:[%s264 + $0x70] sm:$0xff] %vm881, %v879
      %897 = vst.msk [vmem:[%s264 + $0x78] sm:$0xff] %vm881, %v880
      %v898 = vld [vmem:[%s2] sm:$0xf]
      %v899 = vld [vmem:[%s2 + $0x4] sm:$0xf]
      %v900 = vld [vmem:[%s2 + $0x8] sm:$0xf]
      %v901 = vld [vmem:[%s2 + $0xc] sm:$0xf]
      %v902 = vld [vmem:[%s2 + $0x10] sm:$0xf]
      %v903 = vld [vmem:[%s2 + $0x14] sm:$0xf]
      %v904 = vld [vmem:[%s2 + $0x18] sm:$0xf]
      %v905 = vld [vmem:[%s2 + $0x1c] sm:$0xf]
      %v906 = vld [vmem:[%s2 + $0x20] sm:$0xf]
      %v907 = vld [vmem:[%s2 + $0x24] sm:$0xf]
      %v908 = vld [vmem:[%s2 + $0x28] sm:$0xf]
      %v909 = vld [vmem:[%s2 + $0x2c] sm:$0xf]
      %v910 = vld [vmem:[%s2 + $0x30] sm:$0xf]
      %v911 = vld [vmem:[%s2 + $0x34] sm:$0xf]
      %v912 = vld [vmem:[%s2 + $0x38] sm:$0xf]
      %v913 = vld [vmem:[%s2 + $0x3c] sm:$0xf]
      %v930 = vunpack.c.l.b16 %v898
      %v931 = vunpack.c.l.b16 %v899
      %v932 = vunpack.c.l.b16 %v900
      %v933 = vunpack.c.l.b16 %v901
      %v934 = vunpack.c.l.b16 %v902
      %v935 = vunpack.c.l.b16 %v903
      %v936 = vunpack.c.l.b16 %v904
      %v937 = vunpack.c.l.b16 %v905
      %v938 = vunpack.c.l.b16 %v906
      %v939 = vunpack.c.l.b16 %v907
      %v940 = vunpack.c.l.b16 %v908
      %v941 = vunpack.c.l.b16 %v909
      %v942 = vunpack.c.l.b16 %v910
      %v943 = vunpack.c.l.b16 %v911
      %v944 = vunpack.c.l.b16 %v912
      %v945 = vunpack.c.l.b16 %v913
      %v946 = vpack.c.b16 %v931, %v930
      %v947 = vpack.c.b16 %v933, %v932
      %v948 = vpack.c.b16 %v935, %v934
      %v949 = vpack.c.b16 %v937, %v936
      %v950 = vpack.c.b16 %v939, %v938
      %v951 = vpack.c.b16 %v941, %v940
      %v952 = vpack.c.b16 %v943, %v942
      %v953 = vpack.c.b16 %v945, %v944
      %962 = vmatprep.subr.bf16.mxu0 0
      %963 = vmatpush1.bf16.msra.mxu0 %v946
      %964 = vmatprep.subr.bf16.mxu0 0
      %965 = vmatpush1.bf16.msra.mxu0 %v947
      %966 = vmatprep.subr.bf16.mxu0 0
      %967 = vmatpush1.bf16.msra.mxu0 %v948
      %968 = vmatprep.subr.bf16.mxu0 0
      %969 = vmatpush1.bf16.msra.mxu0 %v949
      %970 = vmatprep.subr.bf16.mxu0 0
      %971 = vmatpush1.bf16.msra.mxu0 %v950
      %972 = vmatprep.subr.bf16.mxu0 0
      %973 = vmatpush1.bf16.msra.mxu0 %v951
      %974 = vmatprep.subr.bf16.mxu0 0
      %975 = vmatpush1.bf16.msra.mxu0 %v952
      %976 = vmatprep.subr.bf16.mxu0 0
      %977 = vmatpush1.bf16.msra.mxu0 %v953
      %978 = vmatprep.subr.bf16.mxu0 0
      %979 = vmatpush1.bf16.msra.mxu0 0
      %980 = vmatprep.subr.bf16.mxu0 0
      %981 = vmatpush1.bf16.msra.mxu0 0
      %982 = vmatprep.subr.bf16.mxu0 0
      %983 = vmatpush1.bf16.msra.mxu0 0
      %984 = vmatprep.subr.bf16.mxu0 0
      %985 = vmatpush1.bf16.msra.mxu0 0
      %986 = vmatprep.subr.bf16.mxu0 0
      %987 = vmatpush1.bf16.msra.mxu0 0
      %988 = vmatprep.subr.bf16.mxu0 0
      %989 = vmatpush1.bf16.msra.mxu0 0
      %990 = vmatprep.subr.bf16.mxu0 0
      %991 = vmatpush1.bf16.msra.mxu0 0
      %992 = vmatprep.subr.bf16.mxu0 0
      %993 = vmatpush1.bf16.msra.mxu0 0
      %994 = vmatprep.mubr.bf16.mxu0 0
      %995 = vmatmul.mubr.bf16.gmra.mrb[0].mxu0 %v434
      %v996 = vpop.f32.mrb[0].mxu0
      %v997 = vadd.f32 0.0, %v996
      %v998 = vpop.f32.mrb[0].mxu0
      %v999 = vpop.f32.mrb[0].mxu0
      %v1000 = vadd.f32 0.0, %v999
      %v1001 = vpop.f32.mrb[0].mxu0
      %1002 = vmatprep.mubr.bf16.mxu0 0
      %1003 = vmatmul.mubr.bf16.gmra.mrb[0].mxu0 %v437
      %v1004 = vpop.f32.mrb[0].mxu0
      %v1005 = vadd.f32 0.0, %v1004
      %v1006 = vpop.f32.mrb[0].mxu0
      %v1007 = vpop.f32.mrb[0].mxu0
      %v1008 = vadd.f32 0.0, %v1007
      %v1009 = vpop.f32.mrb[0].mxu0
      %1010 = vmatprep.mubr.bf16.mxu0 0
      %1011 = vmatmul.mubr.bf16.gmra.mrb[0].mxu0 %v440
      %v1012 = vpop.f32.mrb[0].mxu0
      %v1013 = vadd.f32 0.0, %v1012
      %v1014 = vpop.f32.mrb[0].mxu0
      %v1015 = vpop.f32.mrb[0].mxu0
      %v1016 = vadd.f32 0.0, %v1015
      %v1017 = vpop.f32.mrb[0].mxu0
      %1018 = vmatprep.mubr.bf16.mxu0 0
      %1019 = vmatmul.mubr.bf16.gmra.mrb[0].mxu0 %v443
      %v1020 = vpop.f32.mrb[0].mxu0
      %v1021 = vadd.f32 0.0, %v1020
      %v1022 = vpop.f32.mrb[0].mxu0
      %v1023 = vpop.f32.mrb[0].mxu0
      %v1024 = vadd.f32 0.0, %v1023
      %v1025 = vpop.f32.mrb[0].mxu0
      %1026 = vmatprep.mubr.bf16.mxu0 0
      %1027 = vmatmul.mubr.bf16.gmra.mrb[0].mxu0 %v446
      %v1028 = vpop.f32.mrb[0].mxu0
      %v1029 = vadd.f32 0.0, %v1028
      %v1030 = vpop.f32.mrb[0].mxu0
      %v1031 = vpop.f32.mrb[0].mxu0
      %v1032 = vadd.f32 0.0, %v1031
      %v1033 = vpop.f32.mrb[0].mxu0
      %1034 = vmatprep.mubr.bf16.mxu0 0
      %1035 = vmatmul.mubr.bf16.gmra.mrb[0].mxu0 %v449
      %v1036 = vpop.f32.mrb[0].mxu0
      %v1037 = vadd.f32 0.0, %v1036
      %v1038 = vpop.f32.mrb[0].mxu0
      %v1039 = vpop.f32.mrb[0].mxu0
      %v1040 = vadd.f32 0.0, %v1039
      %v1041 = vpop.f32.mrb[0].mxu0
      %1042 = vmatprep.mubr.bf16.mxu0 0
      %1043 = vmatmul.mubr.bf16.gmra.mrb[0].mxu0 %v452
      %v1044 = vpop.f32.mrb[0].mxu0
      %v1045 = vadd.f32 0.0, %v1044
      %v1046 = vpop.f32.mrb[0].mxu0
      %v1047 = vpop.f32.mrb[0].mxu0
      %v1048 = vadd.f32 0.0, %v1047
      %v1049 = vpop.f32.mrb[0].mxu0
      %1050 = vmatprep.mubr.bf16.mxu0 0
      %1051 = vmatmul.mubr.bf16.gmra.mrb[0].mxu0 %v455
      %v1052 = vpop.f32.mrb[0].mxu0
      %v1053 = vadd.f32 0.0, %v1052
      %v1054 = vpop.f32.mrb[0].mxu0
      %v1055 = vpop.f32.mrb[0].mxu0
      %v1056 = vadd.f32 0.0, %v1055
      %v1057 = vpop.f32.mrb[0].mxu0
      %1058 = vdwg.mxu0
      %1059 = vst.msk [vmem:[%s270] sm:$0xff] %vm881, %v997
      %1060 = vst.msk [vmem:[%s270 + $0x8] sm:$0xff] %vm881, %v1000
      %1061 = vst.msk [vmem:[%s270 + $0x10] sm:$0xff] %vm881, %v1005
      %1062 = vst.msk [vmem:[%s270 + $0x18] sm:$0xff] %vm881, %v1008
      %1063 = vst.msk [vmem:[%s270 + $0x20] sm:$0xff] %vm881, %v1013
      %1064 = vst.msk [vmem:[%s270 + $0x28] sm:$0xff] %vm881, %v1016
      %1065 = vst.msk [vmem:[%s270 + $0x30] sm:$0xff] %vm881, %v1021
      %1066 = vst.msk [vmem:[%s270 + $0x38] sm:$0xff] %vm881, %v1024
      %1067 = vst.msk [vmem:[%s270 + $0x40] sm:$0xff] %vm881, %v1029
      %1068 = vst.msk [vmem:[%s270 + $0x48] sm:$0xff] %vm881, %v1032
      %1069 = vst.msk [vmem:[%s270 + $0x50] sm:$0xff] %vm881, %v1037
      %1070 = vst.msk [vmem:[%s270 + $0x58] sm:$0xff] %vm881, %v1040
      %1071 = vst.msk [vmem:[%s270 + $0x60] sm:$0xff] %vm881, %v1045
      %1072 = vst.msk [vmem:[%s270 + $0x68] sm:$0xff] %vm881, %v1048
      %1073 = vst.msk [vmem:[%s270 + $0x70] sm:$0xff] %vm881, %v1053
      %1074 = vst.msk [vmem:[%s270 + $0x78] sm:$0xff] %vm881, %v1056
      %s1075 = smul.u32 16, %s18
      %p1076 = scmp.lt.s32.totalorder %s1075, 31
      %s1077 = scalar_select %p1076, %s1075, 31
      %s1078 = smul.addr %s1077, 8
      %s1079 = scalar_lea.vmem %s5, %s1078
      %s1080 = smul.u32 16, %s18
      %p1081 = scmp.lt.s32.totalorder %s1080, 31
      %s1082 = scalar_select %p1081, %s1080, 31
      %s1083 = smul.addr %s1082, 8
      %s1084 = scalar_lea.vmem %s6, %s1083
      // Predicated region
      $region41: #{dronet_forward.8} parent=39 // pred_check
        %p1085 = pneg %p146
      $region42: #{dronet_forward.8} parent=39 // pred_check_branch
        %1087 = sbr.rel (%p1085) target = $region44
      $region43: #{dronet_forward.8} parent=39 // pred_region
        %s1088 = smul.u32 16, %s18
      $region44: #{dronet_forward.8} parent=39 // pred_fallthru
        _
      // Predicated region
      $region45: #{dronet_forward.8} parent=39 // pred_check
        %p1089 = pneg %p172
      $region46: #{dronet_forward.8} parent=39 // pred_check_branch
        %1091 = sbr.rel (%p1089) target = $region48
      $region47: #{dronet_forward.8} parent=39 // pred_region
        %s1092 = smul.u32 16, %s18
      $region48: #{dronet_forward.8} parent=39 // pred_fallthru
        _
    $region40: #{dronet_forward.8} parent=5 // pred_fallthru
      _
    %p1093 = scmp.le.s32.totalorder 2, %s13
    // Predicated region
    $region49: #{dronet_forward.8} parent=5 // pred_check
      %p1094 = pneg %p1093
    $region50: #{dronet_forward.8} parent=5 // pred_check_branch
      %1096 = sbr.rel (%p1094) target = $region52
    $region51: #{dronet_forward.8} parent=5 // pred_region
      %s1097 = ssub.s32 %s13, 2
      // Predicated region
      $region53: #{dronet_forward.8} parent=51 // pred_check
        %p1098 = pneg %p152
      $region54: #{dronet_forward.8} parent=51 // pred_check_branch
        %1100 = sbr.rel (%p1098) target = $region56
      $region55: #{dronet_forward.8} parent=51 // pred_region
        %s1101 = smul.u32 16, %s19
        %p1102 = scmp.lt.s32.totalorder %s1101, 31
        %s1103 = scalar_select %p1102, %s1101, 31
        %s1104 = smul.addr %s1103, 8
        %s1105 = scalar_lea.vmem %s5, %s1104
      $region56: #{dronet_forward.8} parent=51 // pred_fallthru
        _
      // Predicated region
      $region57: #{dronet_forward.8} parent=51 // pred_check
        %p1106 = pneg %p178
      $region58: #{dronet_forward.8} parent=51 // pred_check_branch
        %1108 = sbr.rel (%p1106) target = $region60
      $region59: #{dronet_forward.8} parent=51 // pred_region
        %s1109 = smul.u32 16, %s19
        %p1110 = scmp.lt.s32.totalorder %s1109, 31
        %s1111 = scalar_select %p1110, %s1109, 31
        %s1112 = smul.addr %s1111, 8
        %s1113 = scalar_lea.vmem %s6, %s1112
      $region60: #{dronet_forward.8} parent=51 // pred_fallthru
        _
    $region52: #{dronet_forward.8} parent=5 // pred_fallthru
      _
  $region6: #{dronet_forward.8} parent=0 // loop_footer
    %s17 = sadd.s32 1, %s13
  $region7: #{dronet_forward.8} parent=0 // loop_footer_branch
    %12 = sbr.rel target = $region3
  $region8: #{dronet_forward.8} parent=0 // loop_exit
    _

// kernel: dronet_forward.9
$region0: #{dronet_forward.9}
  #allocation0 [shape = 'u32[]', space=smem, size = 0x4, offset = 0x4, fixed_abs, tag = 'smem constant byte address 0x4 - core index']
  #allocation1 [shape = 'u32[144,128]{1,0:T(1,128)}', space=vmem, size = 0x12000, scoped, tag = 'internal scratch']
  %s0 = inlined_call_operand.vmem [shape: bf16[256,384], index: 0, kind: input, shape index: {}]
  %s1 = inlined_call_operand.vmem [shape: bf16[384,32], index: 1, kind: input, shape index: {}]
  %s2 = inlined_call_operand.vmem [shape: f32[256,32], index: 2, kind: input, shape index: {}]
  %s3 = inlined_call_operand.vmem [shape: f32[1,32], index: 3, kind: input, shape index: {}]
  %s4 = inlined_call_operand.vmem [shape: f32[1,32], index: 4, kind: input, shape index: {}]
  %s5 = inlined_call_operand.vmem [shape: f32[256,32], index: 5, kind: output, shape index: {}]
  %s6 = sld [smem:[#allocation0]]
  $region53: #{dronet_forward.9} parent=0
    _
  %s8 = ssub.s32 1, %s6
  %s9 = scalar_select 0, %s8, %s6
  loop: start=0, step=1, limit=4
  $region2: #{dronet_forward.9} parent=0 // loop_pre_header
    _
  $region3: #{dronet_forward.9} parent=0 // loop_header
    %s11 = sphi 0, %s15
    %p12 = scmp.ge.s32.totalorder %s11, 4
    %s21 = sphi 0, %s23
    %s24 = sphi 0, %s21
    %s25 = sphi 0, %s24
    %s41 = sphi 0, %s25
    %s45 = sphi 0, %s45
    %s47 = sphi 0, %s45
    %s48 = sphi 0, %s47
    %s62 = sphi 0, %s48
    %s68 = sphi 0, %s70
    %s71 = sphi 0, %s68
    %s72 = sphi 0, %s71
    %s88 = sphi 0, %s72
    %s92 = sphi 0, %s92
    %s94 = sphi 0, %s92
    %s95 = sphi 0, %s94
    %s109 = sphi 0, %s95
    %s113 = sphi 0, %s113
    %s115 = sphi 0, %s113
    %s116 = sphi 0, %s115
    %s130 = sphi 0, %s116
    %s136 = sphi 0, %s138
    %s139 = sphi 0, %s136
    %s140 = sphi 0, %s139
    %s156 = sphi 0, %s140
  $region4: #{dronet_forward.9} parent=0 // loop_header_branch
    %14 = sbr.rel (%p12) target = $region8
  $region5: #{dronet_forward.9} parent=0 // loop_body
    %s16 = ssub.s32 %s11, 1
    %s17 = ssub.s32 %s11, 2
    %s18 = sadd.s32 %s11, 1
    %s19 = ssub.s32 %s11, %s18
    %p20 = scmp.eq.s32.totalorder %s19, 0
    %s22 = sadd.s32 %s21, 1
    %s23 = scalar_select %p20, %s21, %s22
    %p26 = pneg %p20
    %p27 = scmp.eq.s32.totalorder %s11, 1
    %p28 = por %p26, %p27
    %p29 = scmp.ne.s32.totalorder %s21, %s24
    %p30 = scmp.eq.s32.totalorder %s11, 0
    %p31 = por %p29, %p30
    %p32 = scmp.ne.s32.totalorder %s21, %s24
    %p33 = scmp.eq.s32.totalorder %s16, 1
    %p34 = por %p32, %p33
    %p35 = scmp.ne.s32.totalorder %s24, %s25
    %p36 = scmp.eq.s32.totalorder %s16, 0
    %p37 = por %p35, %p36
    %p38 = scmp.ne.s32.totalorder %s24, %s25
    %p39 = scmp.eq.s32.totalorder %s17, 1
    %p40 = por %p38, %p39
    %p42 = scmp.ne.s32.totalorder %s25, %s41
    %p43 = scmp.eq.s32.totalorder %s17, 0
    %p44 = por %p42, %p43
    %s46 = sadd.s32 %s45, 1
    %p49 = scmp.eq.s32.totalorder %s11, 1
    %p50 = scmp.ne.s32.totalorder %s45, %s47
    %p51 = scmp.eq.s32.totalorder %s11, 0
    %p52 = por %p50, %p51
    %p53 = scmp.ne.s32.totalorder %s45, %s47
    %p54 = scmp.eq.s32.totalorder %s16, 1
    %p55 = por %p53, %p54
    %p56 = scmp.ne.s32.totalorder %s47, %s48
    %p57 = scmp.eq.s32.totalorder %s16, 0
    %p58 = por %p56, %p57
    %p59 = scmp.ne.s32.totalorder %s47, %s48
    %p60 = scmp.eq.s32.totalorder %s17, 1
    %p61 = por %p59, %p60
    %p63 = scmp.ne.s32.totalorder %s48, %s62
    %p64 = scmp.eq.s32.totalorder %s17, 0
    %p65 = por %p63, %p64
    %s66 = ssub.s32 %s11, %s18
    %p67 = scmp.eq.s32.totalorder %s66, 0
    %s69 = sadd.s32 %s68, 1
    %s70 = scalar_select %p67, %s68, %s69
    %p73 = pneg %p67
    %p74 = scmp.eq.s32.totalorder %s11, 1
    %p75 = por %p73, %p74
    %p76 = scmp.ne.s32.totalorder %s68, %s71
    %p77 = scmp.eq.s32.totalorder %s11, 0
    %p78 = por %p76, %p77
    %p79 = scmp.ne.s32.totalorder %s68, %s71
    %p80 = scmp.eq.s32.totalorder %s16, 1
    %p81 = por %p79, %p80
    %p82 = scmp.ne.s32.totalorder %s71, %s72
    %p83 = scmp.eq.s32.totalorder %s16, 0
    %p84 = por %p82, %p83
    %p85 = scmp.ne.s32.totalorder %s71, %s72
    %p86 = scmp.eq.s32.totalorder %s17, 1
    %p87 = por %p85, %p86
    %p89 = scmp.ne.s32.totalorder %s72, %s88
    %p90 = scmp.eq.s32.totalorder %s17, 0
    %p91 = por %p89, %p90
    %s93 = sadd.s32 %s92, 1
    %p96 = scmp.eq.s32.totalorder %s11, 1
    %p97 = scmp.ne.s32.totalorder %s92, %s94
    %p98 = scmp.eq.s32.totalorder %s11, 0
    %p99 = por %p97, %p98
    %p100 = scmp.ne.s32.totalorder %s92, %s94
    %p101 = scmp.eq.s32.totalorder %s16, 1
    %p102 = por %p100, %p101
    %p103 = scmp.ne.s32.totalorder %s94, %s95
    %p104 = scmp.eq.s32.totalorder %s16, 0
    %p105 = por %p103, %p104
    %p106 = scmp.ne.s32.totalorder %s94, %s95
    %p107 = scmp.eq.s32.totalorder %s17, 1
    %p108 = por %p106, %p107
    %p110 = scmp.ne.s32.totalorder %s95, %s109
    %p111 = scmp.eq.s32.totalorder %s17, 0
    %p112 = por %p110, %p111
    %s114 = sadd.s32 %s113, 1
    %p117 = scmp.eq.s32.totalorder %s11, 1
    %p118 = scmp.ne.s32.totalorder %s113, %s115
    %p119 = scmp.eq.s32.totalorder %s11, 0
    %p120 = por %p118, %p119
    %p121 = scmp.ne.s32.totalorder %s113, %s115
    %p122 = scmp.eq.s32.totalorder %s16, 1
    %p123 = por %p121, %p122
    %p124 = scmp.ne.s32.totalorder %s115, %s116
    %p125 = scmp.eq.s32.totalorder %s16, 0
    %p126 = por %p124, %p125
    %p127 = scmp.ne.s32.totalorder %s115, %s116
    %p128 = scmp.eq.s32.totalorder %s17, 1
    %p129 = por %p127, %p128
    %p131 = scmp.ne.s32.totalorder %s116, %s130
    %p132 = scmp.eq.s32.totalorder %s17, 0
    %p133 = por %p131, %p132
    %s134 = ssub.s32 %s11, %s18
    %p135 = scmp.eq.s32.totalorder %s134, 0
    %s137 = sadd.s32 %s136, 1
    %s138 = scalar_select %p135, %s136, %s137
    %p141 = pneg %p135
    %p142 = scmp.eq.s32.totalorder %s11, 1
    %p143 = por %p141, %p142
    %p144 = scmp.ne.s32.totalorder %s136, %s139
    %p145 = scmp.eq.s32.totalorder %s11, 0
    %p146 = por %p144, %p145
    %p147 = scmp.ne.s32.totalorder %s136, %s139
    %p148 = scmp.eq.s32.totalorder %s16, 1
    %p149 = por %p147, %p148
    %p150 = scmp.ne.s32.totalorder %s139, %s140
    %p151 = scmp.eq.s32.totalorder %s16, 0
    %p152 = por %p150, %p151
    %p153 = scmp.ne.s32.totalorder %s139, %s140
    %p154 = scmp.eq.s32.totalorder %s17, 1
    %p155 = por %p153, %p154
    %p157 = scmp.ne.s32.totalorder %s140, %s156
    %p158 = scmp.eq.s32.totalorder %s17, 0
    %p159 = por %p157, %p158
    %p160 = scmp.le.s32.totalorder 1, %s11
    %p161 = scmp.lt.s32.totalorder %s11, 3
    %p162 = pnand %p160, %p161
    %p163 = pneg %p162
    // Predicated region
    $region9: #{dronet_forward.9} parent=5 // pred_check
      _
    $region10: #{dronet_forward.9} parent=5 // pred_check_branch
      %165 = sbr.rel (%p162) target = $region12
    $region11: #{dronet_forward.9} parent=5 // pred_region
      %s166 = ssub.s32 %s11, 1
      // Predicated region
      $region13: #{dronet_forward.9} parent=11 // pred_check
        %p167 = pneg %p58
      $region14: #{dronet_forward.9} parent=11 // pred_check_branch
        %169 = sbr.rel (%p167) target = $region16
      $region15: #{dronet_forward.9} parent=11 // pred_region
        _
      $region16: #{dronet_forward.9} parent=11 // pred_fallthru
        _
      // Predicated region
      $region17: #{dronet_forward.9} parent=11 // pred_check
        %p170 = pneg %p105
      $region18: #{dronet_forward.9} parent=11 // pred_check_branch
        %172 = sbr.rel (%p170) target = $region20
      $region19: #{dronet_forward.9} parent=11 // pred_region
        _
      $region20: #{dronet_forward.9} parent=11 // pred_fallthru
        _
      // Predicated region
      $region21: #{dronet_forward.9} parent=11 // pred_check
        %p173 = pneg %p126
      $region22: #{dronet_forward.9} parent=11 // pred_check_branch
        %175 = sbr.rel (%p173) target = $region24
      $region23: #{dronet_forward.9} parent=11 // pred_region
        _
      $region24: #{dronet_forward.9} parent=11 // pred_fallthru
        _
    $region12: #{dronet_forward.9} parent=5 // pred_fallthru
      _
    %p176 = scmp.lt.s32.totalorder %s11, 2
    // Predicated region
    $region25: #{dronet_forward.9} parent=5 // pred_check
      %p177 = pneg %p176
    $region26: #{dronet_forward.9} parent=5 // pred_check_branch
      %179 = sbr.rel (%p177) target = $region28
    $region27: #{dronet_forward.9} parent=5 // pred_region
      // Predicated region
      $region29: #{dronet_forward.9} parent=27 // pred_check
        %p180 = pneg %p31
      $region30: #{dronet_forward.9} parent=27 // pred_check_branch
        %182 = sbr.rel (%p180) target = $region32
      $region31: #{dronet_forward.9} parent=27 // pred_region
        %s183 = smul.u32 16, %s11
        %p184 = scmp.lt.s32.totalorder %s183, 31
        %s185 = scalar_select %p184, %s183, 31
        %s186 = smul.addr %s185, 3
        %s187 = smul.addr %s186, 4
        %s188 = scalar_lea.vmem %s0, %s187
        %s189 = smul.u32 16, %s11
      $region32: #{dronet_forward.9} parent=27 // pred_fallthru
        _
      // Predicated region
      $region33: #{dronet_forward.9} parent=27 // pred_check
        %p190 = pneg %p78
      $region34: #{dronet_forward.9} parent=27 // pred_check_branch
        %192 = sbr.rel (%p190) target = $region36
      $region35: #{dronet_forward.9} parent=27 // pred_region
        %s193 = smul.u32 16, %s11
        %p194 = scmp.lt.s32.totalorder %s193, 31
        %s195 = scalar_select %p194, %s193, 31
        %s196 = smul.addr %s195, 8
        %s197 = scalar_lea.vmem %s2, %s196
        %s198 = smul.u32 16, %s11
      $region36: #{dronet_forward.9} parent=27 // pred_fallthru
        _
    $region28: #{dronet_forward.9} parent=5 // pred_fallthru
      _
    %p199 = scmp.le.s32.totalorder 1, %s11
    %p200 = scmp.lt.s32.totalorder %s11, 3
    %p201 = pnand %p199, %p200
    %p202 = pneg %p201
    // Predicated region
    $region37: #{dronet_forward.9} parent=5 // pred_check
      _
    $region38: #{dronet_forward.9} parent=5 // pred_check_branch
      %204 = sbr.rel (%p201) target = $region40
    $region39: #{dronet_forward.9} parent=5 // pred_region
      %s205 = ssub.s32 %s11, 1
      %s206 = smul.u32 16, %s16
      %p207 = scmp.lt.s32.totalorder %s206, 31
      %s208 = scalar_select %p207, %s206, 31
      %s209 = smul.addr %s208, 3
      %s210 = smul.addr %s209, 4
      %s211 = scalar_lea.vmem %s0, %s210
      %p212 = pneg %p37
      %p213 = pneg %p34
      %p214 = pneg %p58
      %p215 = pneg %p55
      %s216 = smul.u32 16, %s16
      %p217 = scmp.lt.s32.totalorder %s216, 31
      %s218 = scalar_select %p217, %s216, 31
      %s219 = smul.addr %s218, 8
      %s220 = scalar_lea.vmem %s2, %s219
      %p221 = pneg %p84
      %p222 = pneg %p81
      %p223 = pneg %p105
      %p224 = pneg %p102
      %p225 = pneg %p126
      %p226 = pneg %p123
      %p227 = pneg %p152
      %p228 = pneg %p149
      %s229 = smul.u32 16, %s16
      %p230 = scmp.lt.s32.totalorder %s229, 31
      %s231 = scalar_select %p230, %s229, 31
      %s232 = smul.addr %s231, 8
      %s233 = scalar_lea.vmem %s5, %s232
      %s234 = smul.u32 16, %s16
      %p235 = scmp.lt.s32.totalorder %s234, 31
      %s236 = scalar_select %p235, %s234, 31
      %s237 = smul.addr %s236, 3
      %s238 = smul.addr %s237, 4
      %s239 = scalar_lea.vmem %s0, %s238
      %s240 = smul.u32 16, %s16
      %s241 = smul.u32 16, %s16
      %p242 = scmp.lt.s32.totalorder %s241, 31
      %s243 = scalar_select %p242, %s241, 31
      %s244 = smul.addr %s243, 8
      %s245 = scalar_lea.vmem %s2, %s244
      %s246 = smul.u32 16, %s16
      %s247 = smul.u32 16, %s16
      %p248 = scmp.lt.s32.totalorder %s247, 31
      %s249 = scalar_select %p248, %s247, 31
      %s250 = smul.addr %s249, 8
      %s251 = scalar_lea.vmem %s5, %s250
      %s252 = smul.u32 16, %s16
      %v254 = vld [vmem:[%s239] sm:$0xff]
      %v255 = vld [vmem:[%s239 + $0x8] sm:$0xf]
      %v256 = vld [vmem:[%s239 + $0xc] sm:$0xff]
      %v257 = vld [vmem:[%s239 + $0x14] sm:$0xf]
      %v258 = vld [vmem:[%s239 + $0x18] sm:$0xff]
      %v259 = vld [vmem:[%s239 + $0x20] sm:$0xf]
      %v260 = vld [vmem:[%s239 + $0x24] sm:$0xff]
      %v261 = vld [vmem:[%s239 + $0x2c] sm:$0xf]
      %v262 = vld [vmem:[%s239 + $0x30] sm:$0xff]
      %v263 = vld [vmem:[%s239 + $0x38] sm:$0xf]
      %v264 = vld [vmem:[%s239 + $0x3c] sm:$0xff]
      %v265 = vld [vmem:[%s239 + $0x44] sm:$0xf]
      %v266 = vld [vmem:[%s239 + $0x48] sm:$0xff]
      %v267 = vld [vmem:[%s239 + $0x50] sm:$0xf]
      %v268 = vld [vmem:[%s239 + $0x54] sm:$0xff]
      %v269 = vld [vmem:[%s239 + $0x5c] sm:$0xf]
      %v270 = vld [vmem:[%s239 + $0x60] sm:$0xff]
      %v271 = vld [vmem:[%s239 + $0x68] sm:$0xf]
      %v272 = vld [vmem:[%s239 + $0x6c] sm:$0xff]
      %v273 = vld [vmem:[%s239 + $0x74] sm:$0xf]
      %v274 = vld [vmem:[%s239 + $0x78] sm:$0xff]
      %v275 = vld [vmem:[%s239 + $0x80] sm:$0xf]
      %v276 = vld [vmem:[%s239 + $0x84] sm:$0xff]
      %v277 = vld [vmem:[%s239 + $0x8c] sm:$0xf]
      %v278 = vld [vmem:[%s239 + $0x90] sm:$0xff]
      %v279 = vld [vmem:[%s239 + $0x98] sm:$0xf]
      %v280 = vld [vmem:[%s239 + $0x9c] sm:$0xff]
      %v281 = vld [vmem:[%s239 + $0xa4] sm:$0xf]
      %v282 = vld [vmem:[%s239 + $0xa8] sm:$0xff]
      %v283 = vld [vmem:[%s239 + $0xb0] sm:$0xf]
      %v284 = vld [vmem:[%s239 + $0xb4] sm:$0xff]
      %v285 = vld [vmem:[%s239 + $0xbc] sm:$0xf]
      %v286 = vld [vmem:[%s1] sm:$0xf]
      %v287 = vld [vmem:[%s1 + $0x4] sm:$0xf]
      %v288 = vld [vmem:[%s1 + $0x8] sm:$0xf]
      %v289 = vld [vmem:[%s1 + $0xc] sm:$0xf]
      %v290 = vld [vmem:[%s1 + $0x10] sm:$0xf]
      %v291 = vld [vmem:[%s1 + $0x14] sm:$0xf]
      %v292 = vld [vmem:[%s1 + $0x18] sm:$0xf]
      %v293 = vld [vmem:[%s1 + $0x1c] sm:$0xf]
      %v294 = vld [vmem:[%s1 + $0x20] sm:$0xf]
      %v295 = vld [vmem:[%s1 + $0x24] sm:$0xf]
      %v296 = vld [vmem:[%s1 + $0x28] sm:$0xf]
      %v297 = vld [vmem:[%s1 + $0x2c] sm:$0xf]
      %v298 = vld [vmem:[%s1 + $0x30] sm:$0xf]
      %v299 = vld [vmem:[%s1 + $0x34] sm:$0xf]
      %v300 = vld [vmem:[%s1 + $0x38] sm:$0xf]
      %v301 = vld [vmem:[%s1 + $0x3c] sm:$0xf]
      %v302 = vld [vmem:[%s1 + $0x40] sm:$0xf]
      %v303 = vld [vmem:[%s1 + $0x44] sm:$0xf]
      %v304 = vld [vmem:[%s1 + $0x48] sm:$0xf]
      %v305 = vld [vmem:[%s1 + $0x4c] sm:$0xf]
      %v306 = vld [vmem:[%s1 + $0x50] sm:$0xf]
      %v307 = vld [vmem:[%s1 + $0x54] sm:$0xf]
      %v308 = vld [vmem:[%s1 + $0x58] sm:$0xf]
      %v309 = vld [vmem:[%s1 + $0x5c] sm:$0xf]
      %v310 = vld [vmem:[%s1 + $0x60] sm:$0xf]
      %v311 = vld [vmem:[%s1 + $0x64] sm:$0xf]
      %v312 = vld [vmem:[%s1 + $0x68] sm:$0xf]
      %v313 = vld [vmem:[%s1 + $0x6c] sm:$0xf]
      %v314 = vld [vmem:[%s1 + $0x70] sm:$0xf]
      %v315 = vld [vmem:[%s1 + $0x74] sm:$0xf]
      %v316 = vld [vmem:[%s1 + $0x78] sm:$0xf]
      %v317 = vld [vmem:[%s1 + $0x7c] sm:$0xf]
      %v318 = vld [vmem:[%s1 + $0x80] sm:$0xf]
      %v319 = vld [vmem:[%s1 + $0x84] sm:$0xf]
      %v320 = vld [vmem:[%s1 + $0x88] sm:$0xf]
      %v321 = vld [vmem:[%s1 + $0x8c] sm:$0xf]
      %v322 = vld [vmem:[%s1 + $0x90] sm:$0xf]
      %v323 = vld [vmem:[%s1 + $0x94] sm:$0xf]
      %v324 = vld [vmem:[%s1 + $0x98] sm:$0xf]
      %v325 = vld [vmem:[%s1 + $0x9c] sm:$0xf]
      %v326 = vld [vmem:[%s1 + $0xa0] sm:$0xf]
      %v327 = vld [vmem:[%s1 + $0xa4] sm:$0xf]
      %v328 = vld [vmem:[%s1 + $0xa8] sm:$0xf]
      %v329 = vld [vmem:[%s1 + $0xac] sm:$0xf]
      %v330 = vld [vmem:[%s1 + $0xb0] sm:$0xf]
      %v331 = vld [vmem:[%s1 + $0xb4] sm:$0xf]
      %v332 = vld [vmem:[%s1 + $0xb8] sm:$0xf]
      %v333 = vld [vmem:[%s1 + $0xbc] sm:$0xf]
      %v334 = vld [vmem:[%s245] sm:$0xff]
      %v335 = vld [vmem:[%s245 + $0x8] sm:$0xff]
      %v336 = vld [vmem:[%s245 + $0x10] sm:$0xff]
      %v337 = vld [vmem:[%s245 + $0x18] sm:$0xff]
      %v338 = vld [vmem:[%s245 + $0x20] sm:$0xff]
      %v339 = vld [vmem:[%s245 + $0x28] sm:$0xff]
      %v340 = vld [vmem:[%s245 + $0x30] sm:$0xff]
      %v341 = vld [vmem:[%s245 + $0x38] sm:$0xff]
      %v342 = vld [vmem:[%s245 + $0x40] sm:$0xff]
      %v343 = vld [vmem:[%s245 + $0x48] sm:$0xff]
      %v344 = vld [vmem:[%s245 + $0x50] sm:$0xff]
      %v345 = vld [vmem:[%s245 + $0x58] sm:$0xff]
      %v346 = vld [vmem:[%s245 + $0x60] sm:$0xff]
      %v347 = vld [vmem:[%s245 + $0x68] sm:$0xff]
      %v348 = vld [vmem:[%s245 + $0x70] sm:$0xff]
      %v349 = vld [vmem:[%s245 + $0x78] sm:$0xff]
      %v382 = vunpack.c.l.b16 %v254
      %v383 = vunpack.c.h.b16 %v254
      %v384 = vunpack.c.l.b16 %v255
      %v385 = vunpack.c.l.b16 %v256
      %v386 = vunpack.c.h.b16 %v256
      %v387 = vunpack.c.l.b16 %v257
      %v388 = vunpack.c.l.b16 %v258
      %v389 = vunpack.c.h.b16 %v258
      %v390 = vunpack.c.l.b16 %v259
      %v391 = vunpack.c.l.b16 %v260
      %v392 = vunpack.c.h.b16 %v260
      %v393 = vunpack.c.l.b16 %v261
      %v394 = vunpack.c.l.b16 %v262
      %v395 = vunpack.c.h.b16 %v262
      %v396 = vunpack.c.l.b16 %v263
      %v397 = vunpack.c.l.b16 %v264
      %v398 = vunpack.c.h.b16 %v264
      %v399 = vunpack.c.l.b16 %v265
      %v400 = vunpack.c.l.b16 %v266
      %v401 = vunpack.c.h.b16 %v266
      %v402 = vunpack.c.l.b16 %v267
      %v403 = vunpack.c.l.b16 %v268
      %v404 = vunpack.c.h.b16 %v268
      %v405 = vunpack.c.l.b16 %v269
      %v406 = vunpack.c.l.b16 %v270
      %v407 = vunpack.c.h.b16 %v270
      %v408 = vunpack.c.l.b16 %v271
      %v409 = vunpack.c.l.b16 %v272
      %v410 = vunpack.c.h.b16 %v272
      %v411 = vunpack.c.l.b16 %v273
      %v412 = vunpack.c.l.b16 %v274
      %v413 = vunpack.c.h.b16 %v274
      %v414 = vunpack.c.l.b16 %v275
      %v415 = vunpack.c.l.b16 %v276
      %v416 = vunpack.c.h.b16 %v276
      %v417 = vunpack.c.l.b16 %v277
      %v418 = vunpack.c.l.b16 %v278
      %v419 = vunpack.c.h.b16 %v278
      %v420 = vunpack.c.l.b16 %v279
      %v421 = vunpack.c.l.b16 %v280
      %v422 = vunpack.c.h.b16 %v280
      %v423 = vunpack.c.l.b16 %v281
      %v424 = vunpack.c.l.b16 %v282
      %v425 = vunpack.c.h.b16 %v282
      %v426 = vunpack.c.l.b16 %v283
      %v427 = vunpack.c.l.b16 %v284
      %v428 = vunpack.c.h.b16 %v284
      %v429 = vunpack.c.l.b16 %v285
      %v430 = vpack.c.b16 %v385, %v382
      %v431 = vpack.c.b16 %v386, %v383
      %v432 = vpack.c.b16 %v387, %v384
      %v433 = vpack.c.b16 %v391, %v388
      %v434 = vpack.c.b16 %v392, %v389
      %v435 = vpack.c.b16 %v393, %v390
      %v436 = vpack.c.b16 %v397, %v394
      %v437 = vpack.c.b16 %v398, %v395
      %v438 = vpack.c.b16 %v399, %v396
      %v439 = vpack.c.b16 %v403, %v400
      %v440 = vpack.c.b16 %v404, %v401
      %v441 = vpack.c.b16 %v405, %v402
      %v442 = vpack.c.b16 %v409, %v406
      %v443 = vpack.c.b16 %v410, %v407
      %v444 = vpack.c.b16 %v411, %v408
      %v445 = vpack.c.b16 %v415, %v412
      %v446 = vpack.c.b16 %v416, %v413
      %v447 = vpack.c.b16 %v417, %v414
      %v448 = vpack.c.b16 %v421, %v418
      %v449 = vpack.c.b16 %v422, %v419
      %v450 = vpack.c.b16 %v423, %v420
      %v451 = vpack.c.b16 %v427, %v424
      %v452 = vpack.c.b16 %v428, %v425
      %v453 = vpack.c.b16 %v429, %v426
      %v526 = vunpack.c.l.b16 %v286
      %v527 = vunpack.c.l.b16 %v287
      %v528 = vunpack.c.l.b16 %v288
      %v529 = vunpack.c.l.b16 %v289
      %v530 = vunpack.c.l.b16 %v290
      %v531 = vunpack.c.l.b16 %v291
      %v532 = vunpack.c.l.b16 %v292
      %v533 = vunpack.c.l.b16 %v293
      %v534 = vunpack.c.l.b16 %v294
      %v535 = vunpack.c.l.b16 %v295
      %v536 = vunpack.c.l.b16 %v296
      %v537 = vunpack.c.l.b16 %v297
      %v538 = vunpack.c.l.b16 %v298
      %v539 = vunpack.c.l.b16 %v299
      %v540 = vunpack.c.l.b16 %v300
      %v541 = vunpack.c.l.b16 %v301
      %v542 = vunpack.c.l.b16 %v302
      %v543 = vunpack.c.l.b16 %v303
      %v544 = vunpack.c.l.b16 %v304
      %v545 = vunpack.c.l.b16 %v305
      %v546 = vunpack.c.l.b16 %v306
      %v547 = vunpack.c.l.b16 %v307
      %v548 = vunpack.c.l.b16 %v308
      %v549 = vunpack.c.l.b16 %v309
      %v550 = vunpack.c.l.b16 %v310
      %v551 = vunpack.c.l.b16 %v311
      %v552 = vunpack.c.l.b16 %v312
      %v553 = vunpack.c.l.b16 %v313
      %v554 = vunpack.c.l.b16 %v314
      %v555 = vunpack.c.l.b16 %v315
      %v556 = vunpack.c.l.b16 %v316
      %v557 = vunpack.c.l.b16 %v317
      %v558 = vunpack.c.l.b16 %v318
      %v559 = vunpack.c.l.b16 %v319
      %v560 = vunpack.c.l.b16 %v320
      %v561 = vunpack.c.l.b16 %v321
      %v562 = vunpack.c.l.b16 %v322
      %v563 = vunpack.c.l.b16 %v323
      %v564 = vunpack.c.l.b16 %v324
      %v565 = vunpack.c.l.b16 %v325
      %v566 = vunpack.c.l.b16 %v326
      %v567 = vunpack.c.l.b16 %v327
      %v568 = vunpack.c.l.b16 %v328
      %v569 = vunpack.c.l.b16 %v329
      %v570 = vunpack.c.l.b16 %v330
      %v571 = vunpack.c.l.b16 %v331
      %v572 = vunpack.c.l.b16 %v332
      %v573 = vunpack.c.l.b16 %v333
      %v574 = vpack.c.b16 %v527, %v526
      %v575 = vpack.c.b16 %v529, %v528
      %v576 = vpack.c.b16 %v531, %v530
      %v577 = vpack.c.b16 %v533, %v532
      %v578 = vpack.c.b16 %v535, %v534
      %v579 = vpack.c.b16 %v537, %v536
      %v580 = vpack.c.b16 %v539, %v538
      %v581 = vpack.c.b16 %v541, %v540
      %v582 = vpack.c.b16 %v543, %v542
      %v583 = vpack.c.b16 %v545, %v544
      %v584 = vpack.c.b16 %v547, %v546
      %v585 = vpack.c.b16 %v549, %v548
      %v586 = vpack.c.b16 %v551, %v550
      %v587 = vpack.c.b16 %v553, %v552
      %v588 = vpack.c.b16 %v555, %v554
      %v589 = vpack.c.b16 %v557, %v556
      %v590 = vpack.c.b16 %v559, %v558
      %v591 = vpack.c.b16 %v561, %v560
      %v592 = vpack.c.b16 %v563, %v562
      %v593 = vpack.c.b16 %v565, %v564
      %v594 = vpack.c.b16 %v567, %v566
      %v595 = vpack.c.b16 %v569, %v568
      %v596 = vpack.c.b16 %v571, %v570
      %v597 = vpack.c.b16 %v573, %v572
      %622 = vmatprep.subr.bf16.mxu0 0
      %623 = vmatpush1.bf16.msra.mxu0 %v574
      %624 = vmatprep.subr.bf16.mxu0 0
      %625 = vmatpush1.bf16.msra.mxu0 %v575
      %626 = vmatprep.subr.bf16.mxu0 0
      %627 = vmatpush1.bf16.msra.mxu0 %v576
      %628 = vmatprep.subr.bf16.mxu0 0
      %629 = vmatpush1.bf16.msra.mxu0 %v577
      %630 = vmatprep.subr.bf16.mxu0 0
      %631 = vmatpush1.bf16.msra.mxu0 %v578
      %632 = vmatprep.subr.bf16.mxu0 0
      %633 = vmatpush1.bf16.msra.mxu0 %v579
      %634 = vmatprep.subr.bf16.mxu0 0
      %635 = vmatpush1.bf16.msra.mxu0 %v580
      %636 = vmatprep.subr.bf16.mxu0 0
      %637 = vmatpush1.bf16.msra.mxu0 %v581
      %638 = vmatprep.subr.bf16.mxu0 0
      %639 = vmatpush1.bf16.msra.mxu0 %v582
      %640 = vmatprep.subr.bf16.mxu0 0
      %641 = vmatpush1.bf16.msra.mxu0 %v583
      %642 = vmatprep.subr.bf16.mxu0 0
      %643 = vmatpush1.bf16.msra.mxu0 %v584
      %644 = vmatprep.subr.bf16.mxu0 0
      %645 = vmatpush1.bf16.msra.mxu0 %v585
      %646 = vmatprep.subr.bf16.mxu0 0
      %647 = vmatpush1.bf16.msra.mxu0 %v586
      %648 = vmatprep.subr.bf16.mxu0 0
      %649 = vmatpush1.bf16.msra.mxu0 %v587
      %650 = vmatprep.subr.bf16.mxu0 0
      %651 = vmatpush1.bf16.msra.mxu0 %v588
      %652 = vmatprep.subr.bf16.mxu0 0
      %653 = vmatpush1.bf16.msra.mxu0 %v589
      %654 = vmatprep.mubr.bf16.mxu0 %v431
      %655 = vmatmul.mubr.bf16.gmra.mrb[0].mxu0 %v430
      %v656 = vpop.f32.mrb[0].mxu0
      %v657 = vadd.f32 %v334, %v656
      %v658 = vpop.f32.mrb[0].mxu0
      %v659 = vpop.f32.mrb[0].mxu0
      %v660 = vadd.f32 %v335, %v659
      %v661 = vpop.f32.mrb[0].mxu0
      %662 = vmatprep.mubr.bf16.mxu0 %v434
      %663 = vmatmul.mubr.bf16.gmra.mrb[0].mxu0 %v433
      %v664 = vpop.f32.mrb[0].mxu0
      %v665 = vadd.f32 %v336, %v664
      %v666 = vpop.f32.mrb[0].mxu0
      %v667 = vpop.f32.mrb[0].mxu0
      %v668 = vadd.f32 %v337, %v667
      %v669 = vpop.f32.mrb[0].mxu0
      %670 = vmatprep.mubr.bf16.mxu0 %v437
      %671 = vmatmul.mubr.bf16.gmra.mrb[0].mxu0 %v436
      %v672 = vpop.f32.mrb[0].mxu0
      %v673 = vadd.f32 %v338, %v672
      %v674 = vpop.f32.mrb[0].mxu0
      %v675 = vpop.f32.mrb[0].mxu0
      %v676 = vadd.f32 %v339, %v675
      %v677 = vpop.f32.mrb[0].mxu0
      %678 = vmatprep.mubr.bf16.mxu0 %v440
      %679 = vmatmul.mubr.bf16.gmra.mrb[0].mxu0 %v439
      %v680 = vpop.f32.mrb[0].mxu0
      %v681 = vadd.f32 %v340, %v680
      %v682 = vpop.f32.mrb[0].mxu0
      %v683 = vpop.f32.mrb[0].mxu0
      %v684 = vadd.f32 %v341, %v683
      %v685 = vpop.f32.mrb[0].mxu0
      %686 = vmatprep.mubr.bf16.mxu0 %v443
      %687 = vmatmul.mubr.bf16.gmra.mrb[0].mxu0 %v442
      %v688 = vpop.f32.mrb[0].mxu0
      %v689 = vadd.f32 %v342, %v688
      %v690 = vpop.f32.mrb[0].mxu0
      %v691 = vpop.f32.mrb[0].mxu0
      %v692 = vadd.f32 %v343, %v691
      %v693 = vpop.f32.mrb[0].mxu0
      %694 = vmatprep.mubr.bf16.mxu0 %v446
      %695 = vmatmul.mubr.bf16.gmra.mrb[0].mxu0 %v445
      %v696 = vpop.f32.mrb[0].mxu0
      %v697 = vadd.f32 %v344, %v696
      %v698 = vpop.f32.mrb[0].mxu0
      %v699 = vpop.f32.mrb[0].mxu0
      %v700 = vadd.f32 %v345, %v699
      %v701 = vpop.f32.mrb[0].mxu0
      %702 = vmatprep.mubr.bf16.mxu0 %v449
      %703 = vmatmul.mubr.bf16.gmra.mrb[0].mxu0 %v448
      %v704 = vpop.f32.mrb[0].mxu0
      %v705 = vadd.f32 %v346, %v704
      %v706 = vpop.f32.mrb[0].mxu0
      %v707 = vpop.f32.mrb[0].mxu0
      %v708 = vadd.f32 %v347, %v707
      %v709 = vpop.f32.mrb[0].mxu0
      %710 = vmatprep.mubr.bf16.mxu0 %v452
      %711 = vmatmul.mubr.bf16.gmra.mrb[0].mxu0 %v451
      %v712 = vpop.f32.mrb[0].mxu0
      %v713 = vadd.f32 %v348, %v712
      %v714 = vpop.f32.mrb[0].mxu0
      %v715 = vpop.f32.mrb[0].mxu0
      %v716 = vadd.f32 %v349, %v715
      %v717 = vpop.f32.mrb[0].mxu0
      %718 = vdwg.mxu0
      %719 = vmatprep.subr.bf16.mxu0 0
      %720 = vmatpush1.bf16.msra.mxu0 %v590
      %721 = vmatprep.subr.bf16.mxu0 0
      %722 = vmatpush1.bf16.msra.mxu0 %v591
      %723 = vmatprep.subr.bf16.mxu0 0
      %724 = vmatpush1.bf16.msra.mxu0 %v592
      %725 = vmatprep.subr.bf16.mxu0 0
      %726 = vmatpush1.bf16.msra.mxu0 %v593
      %727 = vmatprep.subr.bf16.mxu0 0
      %728 = vmatpush1.bf16.msra.mxu0 %v594
      %729 = vmatprep.subr.bf16.mxu0 0
      %730 = vmatpush1.bf16.msra.mxu0 %v595
      %731 = vmatprep.subr.bf16.mxu0 0
      %732 = vmatpush1.bf16.msra.mxu0 %v596
      %733 = vmatprep.subr.bf16.mxu0 0
      %734 = vmatpush1.bf16.msra.mxu0 %v597
      %735 = vmatprep.subr.bf16.mxu0 0
      %736 = vmatpush1.bf16.msra.mxu0 0
      %737 = vmatprep.subr.bf16.mxu0 0
      %738 = vmatpush1.bf16.msra.mxu0 0
      %739 = vmatprep.subr.bf16.mxu0 0
      %740 = vmatpush1.bf16.msra.mxu0 0
      %741 = vmatprep.subr.bf16.mxu0 0
      %742 = vmatpush1.bf16.msra.mxu0 0
      %743 = vmatprep.subr.bf16.mxu0 0
      %744 = vmatpush1.bf16.msra.mxu0 0
      %745 = vmatprep.subr.bf16.mxu0 0
      %746 = vmatpush1.bf16.msra.mxu0 0
      %747 = vmatprep.subr.bf16.mxu0 0
      %748 = vmatpush1.bf16.msra.mxu0 0
      %749 = vmatprep.subr.bf16.mxu0 0
      %750 = vmatpush1.bf16.msra.mxu0 0
      %751 = vmatprep.mubr.bf16.mxu0 0
      %752 = vmatmul.mubr.bf16.gmra.mrb[0].mxu0 %v432
      %v753 = vpop.f32.mrb[0].mxu0
      %v754 = vadd.f32 %v657, %v753
      %v755 = vpop.f32.mrb[0].mxu0
      %v756 = vpop.f32.mrb[0].mxu0
      %v757 = vadd.f32 %v660, %v756
      %v758 = vpop.f32.mrb[0].mxu0
      %759 = vmatprep.mubr.bf16.mxu0 0
      %760 = vmatmul.mubr.bf16.gmra.mrb[0].mxu0 %v435
      %v761 = vpop.f32.mrb[0].mxu0
      %v762 = vadd.f32 %v665, %v761
      %v763 = vpop.f32.mrb[0].mxu0
      %v764 = vpop.f32.mrb[0].mxu0
      %v765 = vadd.f32 %v668, %v764
      %v766 = vpop.f32.mrb[0].mxu0
      %767 = vmatprep.mubr.bf16.mxu0 0
      %768 = vmatmul.mubr.bf16.gmra.mrb[0].mxu0 %v438
      %v769 = vpop.f32.mrb[0].mxu0
      %v770 = vadd.f32 %v673, %v769
      %v771 = vpop.f32.mrb[0].mxu0
      %v772 = vpop.f32.mrb[0].mxu0
      %v773 = vadd.f32 %v676, %v772
      %v774 = vpop.f32.mrb[0].mxu0
      %775 = vmatprep.mubr.bf16.mxu0 0
      %776 = vmatmul.mubr.bf16.gmra.mrb[0].mxu0 %v441
      %v777 = vpop.f32.mrb[0].mxu0
      %v778 = vadd.f32 %v681, %v777
      %v779 = vpop.f32.mrb[0].mxu0
      %v780 = vpop.f32.mrb[0].mxu0
      %v781 = vadd.f32 %v684, %v780
      %v782 = vpop.f32.mrb[0].mxu0
      %783 = vmatprep.mubr.bf16.mxu0 0
      %784 = vmatmul.mubr.bf16.gmra.mrb[0].mxu0 %v444
      %v785 = vpop.f32.mrb[0].mxu0
      %v786 = vadd.f32 %v689, %v785
      %v787 = vpop.f32.mrb[0].mxu0
      %v788 = vpop.f32.mrb[0].mxu0
      %v789 = vadd.f32 %v692, %v788
      %v790 = vpop.f32.mrb[0].mxu0
      %791 = vmatprep.mubr.bf16.mxu0 0
      %792 = vmatmul.mubr.bf16.gmra.mrb[0].mxu0 %v447
      %v793 = vpop.f32.mrb[0].mxu0
      %v794 = vadd.f32 %v697, %v793
      %v795 = vpop.f32.mrb[0].mxu0
      %v796 = vpop.f32.mrb[0].mxu0
      %v797 = vadd.f32 %v700, %v796
      %v798 = vpop.f32.mrb[0].mxu0
      %799 = vmatprep.mubr.bf16.mxu0 0
      %800 = vmatmul.mubr.bf16.gmra.mrb[0].mxu0 %v450
      %v801 = vpop.f32.mrb[0].mxu0
      %v802 = vadd.f32 %v705, %v801
      %v803 = vpop.f32.mrb[0].mxu0
      %v804 = vpop.f32.mrb[0].mxu0
      %v805 = vadd.f32 %v708, %v804
      %v806 = vpop.f32.mrb[0].mxu0
      %807 = vmatprep.mubr.bf16.mxu0 0
      %808 = vmatmul.mubr.bf16.gmra.mrb[0].mxu0 %v453
      %v809 = vpop.f32.mrb[0].mxu0
      %v810 = vadd.f32 %v713, %v809
      %v811 = vpop.f32.mrb[0].mxu0
      %v812 = vpop.f32.mrb[0].mxu0
      %v813 = vadd.f32 %v716, %v812
      %v814 = vpop.f32.mrb[0].mxu0
      %815 = vdwg.mxu0
      %v816 = vld [vmem:[%s3] sm:$0x1]
      %v818 = vlaneseq
      %v819 = vshrl.u32 %v818, 7
      %v820 = vsub.s32 0, %v819
      %v821 = vrot.slane %v816, %v820
      %v823 = vmul.f32 %v754, %v821
      %v824 = vmul.f32 %v757, %v821
      %v825 = vmul.f32 %v762, %v821
      %v826 = vmul.f32 %v765, %v821
      %v827 = vmul.f32 %v770, %v821
      %v828 = vmul.f32 %v773, %v821
      %v829 = vmul.f32 %v778, %v821
      %v830 = vmul.f32 %v781, %v821
      %v831 = vmul.f32 %v786, %v821
      %v832 = vmul.f32 %v789, %v821
      %v833 = vmul.f32 %v794, %v821
      %v834 = vmul.f32 %v797, %v821
      %v835 = vmul.f32 %v802, %v821
      %v836 = vmul.f32 %v805, %v821
      %v837 = vmul.f32 %v810, %v821
      %v838 = vmul.f32 %v813, %v821
      %v839 = vld [vmem:[%s4] sm:$0x1]
      %v841 = vlaneseq
      %v842 = vshrl.u32 %v841, 7
      %v843 = vsub.s32 0, %v842
      %v844 = vrot.slane %v839, %v843
      %v846 = vadd.f32 %v823, %v844
      %v847 = vadd.f32 %v824, %v844
      %v848 = vadd.f32 %v825, %v844
      %v849 = vadd.f32 %v826, %v844
      %v850 = vadd.f32 %v827, %v844
      %v851 = vadd.f32 %v828, %v844
      %v852 = vadd.f32 %v829, %v844
      %v853 = vadd.f32 %v830, %v844
      %v854 = vadd.f32 %v831, %v844
      %v855 = vadd.f32 %v832, %v844
      %v856 = vadd.f32 %v833, %v844
      %v857 = vadd.f32 %v834, %v844
      %v858 = vadd.f32 %v835, %v844
      %v859 = vadd.f32 %v836, %v844
      %v860 = vadd.f32 %v837, %v844
      %v861 = vadd.f32 %v838, %v844
      %v862 = vmax.f32 %v846, 0.0
      %v863 = vmax.f32 %v847, 0.0
      %v864 = vmax.f32 %v848, 0.0
      %v865 = vmax.f32 %v849, 0.0
      %v866 = vmax.f32 %v850, 0.0
      %v867 = vmax.f32 %v851, 0.0
      %v868 = vmax.f32 %v852, 0.0
      %v869 = vmax.f32 %v853, 0.0
      %v870 = vmax.f32 %v854, 0.0
      %v871 = vmax.f32 %v855, 0.0
      %v872 = vmax.f32 %v856, 0.0
      %v873 = vmax.f32 %v857, 0.0
      %v874 = vmax.f32 %v858, 0.0
      %v875 = vmax.f32 %v859, 0.0
      %v876 = vmax.f32 %v860, 0.0
      %v877 = vmax.f32 %v861, 0.0
      %vm878 = vcmask 261120
      %879 = vst.msk [vmem:[%s251] sm:$0xff] %vm878, %v862
      %880 = vst.msk [vmem:[%s251 + $0x8] sm:$0xff] %vm878, %v863
      %881 = vst.msk [vmem:[%s251 + $0x10] sm:$0xff] %vm878, %v864
      %882 = vst.msk [vmem:[%s251 + $0x18] sm:$0xff] %vm878, %v865
      %883 = vst.msk [vmem:[%s251 + $0x20] sm:$0xff] %vm878, %v866
      %884 = vst.msk [vmem:[%s251 + $0x28] sm:$0xff] %vm878, %v867
      %885 = vst.msk [vmem:[%s251 + $0x30] sm:$0xff] %vm878, %v868
      %886 = vst.msk [vmem:[%s251 + $0x38] sm:$0xff] %vm878, %v869
      %887 = vst.msk [vmem:[%s251 + $0x40] sm:$0xff] %vm878, %v870
      %888 = vst.msk [vmem:[%s251 + $0x48] sm:$0xff] %vm878, %v871
      %889 = vst.msk [vmem:[%s251 + $0x50] sm:$0xff] %vm878, %v872
      %890 = vst.msk [vmem:[%s251 + $0x58] sm:$0xff] %vm878, %v873
      %891 = vst.msk [vmem:[%s251 + $0x60] sm:$0xff] %vm878, %v874
      %892 = vst.msk [vmem:[%s251 + $0x68] sm:$0xff] %vm878, %v875
      %893 = vst.msk [vmem:[%s251 + $0x70] sm:$0xff] %vm878, %v876
      %894 = vst.msk [vmem:[%s251 + $0x78] sm:$0xff] %vm878, %v877
      %s895 = smul.u32 16, %s16
      %p896 = scmp.lt.s32.totalorder %s895, 31
      %s897 = scalar_select %p896, %s895, 31
      %s898 = smul.addr %s897, 8
      %s899 = scalar_lea.vmem %s5, %s898
      // Predicated region
      $region41: #{dronet_forward.9} parent=39 // pred_check
        %p900 = pneg %p149
      $region42: #{dronet_forward.9} parent=39 // pred_check_branch
        %902 = sbr.rel (%p900) target = $region44
      $region43: #{dronet_forward.9} parent=39 // pred_region
        %s903 = smul.u32 16, %s16
      $region44: #{dronet_forward.9} parent=39 // pred_fallthru
        _
    $region40: #{dronet_forward.9} parent=5 // pred_fallthru
      _
    %p904 = scmp.le.s32.totalorder 2, %s11
    // Predicated region
    $region45: #{dronet_forward.9} parent=5 // pred_check
      %p905 = pneg %p904
    $region46: #{dronet_forward.9} parent=5 // pred_check_branch
      %907 = sbr.rel (%p905) target = $region48
    $region47: #{dronet_forward.9} parent=5 // pred_region
      %s908 = ssub.s32 %s11, 2
      // Predicated region
      $region49: #{dronet_forward.9} parent=47 // pred_check
        %p909 = pneg %p155
      $region50: #{dronet_forward.9} parent=47 // pred_check_branch
        %911 = sbr.rel (%p909) target = $region52
      $region51: #{dronet_forward.9} parent=47 // pred_region
        %s912 = smul.u32 16, %s17
        %p913 = scmp.lt.s32.totalorder %s912, 31
        %s914 = scalar_select %p913, %s912, 31
        %s915 = smul.addr %s914, 8
        %s916 = scalar_lea.vmem %s5, %s915
      $region52: #{dronet_forward.9} parent=47 // pred_fallthru
        _
    $region48: #{dronet_forward.9} parent=5 // pred_fallthru
      _
  $region6: #{dronet_forward.9} parent=0 // loop_footer
    %s15 = sadd.s32 1, %s11
  $region7: #{dronet_forward.9} parent=0 // loop_footer_branch
    %10 = sbr.rel target = $region3
  $region8: #{dronet_forward.9} parent=0 // loop_exit
    _

// kernel: dronet_forward.10
$region0: #{dronet_forward.10}
  #allocation0 [shape = 'u32[]', space=smem, size = 0x4, offset = 0x4, fixed_abs, tag = 'smem constant byte address 0x4 - core index']
  #allocation1 [shape = 'u32[144,128]{1,0:T(1,128)}', space=vmem, size = 0x12000, scoped, tag = 'internal scratch']
  %s0 = inlined_call_operand.vmem [shape: bf16[64,384], index: 0, kind: input, shape index: {}]
  %s1 = inlined_call_operand.vmem [shape: bf16[384,64], index: 1, kind: input, shape index: {}]
  %s2 = inlined_call_operand.vmem [shape: bf16[128,64], index: 2, kind: input, shape index: {}]
  %s3 = inlined_call_operand.vmem [shape: f32[1,64], index: 3, kind: input, shape index: {}]
  %s4 = inlined_call_operand.vmem [shape: f32[1,64], index: 4, kind: input, shape index: {}]
  %s5 = inlined_call_operand.vmem [shape: f32[64,64], index: 5, kind: output, shape index: {0}]
  %s6 = inlined_call_operand.vmem [shape: f32[64,64], index: 6, kind: output, shape index: {1}]
  %7 = xla_tuple %s5, %s6
  %s8 = sld [smem:[#allocation0]]
  $region38: #{dronet_forward.10} parent=0
    _
  %s10 = ssub.s32 1, %s8
  %s11 = scalar_select 0, %s10, %s8
  // Predicated region
  $region2: #{dronet_forward.10} parent=0 // pred_check
    _
  $region3: #{dronet_forward.10} parent=0 // pred_check_branch
    %13 = sbr.rel (0) target = $region5
  $region4: #{dronet_forward.10} parent=0 // pred_region
    _
  $region5: #{dronet_forward.10} parent=0 // pred_fallthru
    _
  // Predicated region
  $region6: #{dronet_forward.10} parent=0 // pred_check
    _
  $region7: #{dronet_forward.10} parent=0 // pred_check_branch
    %15 = sbr.rel (0) target = $region9
  $region8: #{dronet_forward.10} parent=0 // pred_region
    _
  $region9: #{dronet_forward.10} parent=0 // pred_fallthru
    _
  // Predicated region
  $region10: #{dronet_forward.10} parent=0 // pred_check
    _
  $region11: #{dronet_forward.10} parent=0 // pred_check_branch
    %17 = sbr.rel (0) target = $region13
  $region12: #{dronet_forward.10} parent=0 // pred_region
    _
  $region13: #{dronet_forward.10} parent=0 // pred_fallthru
    _
  // Predicated region
  $region14: #{dronet_forward.10} parent=0 // pred_check
    _
  $region15: #{dronet_forward.10} parent=0 // pred_check_branch
    %19 = sbr.rel (0) target = $region17
  $region16: #{dronet_forward.10} parent=0 // pred_region
    _
  $region17: #{dronet_forward.10} parent=0 // pred_fallthru
    _
  // Predicated region
  $region18: #{dronet_forward.10} parent=0 // pred_check
    _
  $region19: #{dronet_forward.10} parent=0 // pred_check_branch
    %21 = sbr.rel (0) target = $region21
  $region20: #{dronet_forward.10} parent=0 // pred_region
    _
  $region21: #{dronet_forward.10} parent=0 // pred_fallthru
    _
  %v23 = vld [vmem:[%s0] sm:$0xff]
  %v24 = vld [vmem:[%s0 + $0x8] sm:$0xf]
  %v25 = vld [vmem:[%s0 + $0xc] sm:$0xff]
  %v26 = vld [vmem:[%s0 + $0x14] sm:$0xf]
  %v27 = vld [vmem:[%s0 + $0x18] sm:$0xff]
  %v28 = vld [vmem:[%s0 + $0x20] sm:$0xf]
  %v29 = vld [vmem:[%s0 + $0x24] sm:$0xff]
  %v30 = vld [vmem:[%s0 + $0x2c] sm:$0xf]
  %v31 = vld [vmem:[%s0 + $0x30] sm:$0xff]
  %v32 = vld [vmem:[%s0 + $0x38] sm:$0xf]
  %v33 = vld [vmem:[%s0 + $0x3c] sm:$0xff]
  %v34 = vld [vmem:[%s0 + $0x44] sm:$0xf]
  %v35 = vld [vmem:[%s0 + $0x48] sm:$0xff]
  %v36 = vld [vmem:[%s0 + $0x50] sm:$0xf]
  %v37 = vld [vmem:[%s0 + $0x54] sm:$0xff]
  %v38 = vld [vmem:[%s0 + $0x5c] sm:$0xf]
  %v39 = vld [vmem:[%s1] sm:$0xf]
  %v40 = vld [vmem:[%s1 + $0x4] sm:$0xf]
  %v41 = vld [vmem:[%s1 + $0x8] sm:$0xf]
  %v42 = vld [vmem:[%s1 + $0xc] sm:$0xf]
  %v43 = vld [vmem:[%s1 + $0x10] sm:$0xf]
  %v44 = vld [vmem:[%s1 + $0x14] sm:$0xf]
  %v45 = vld [vmem:[%s1 + $0x18] sm:$0xf]
  %v46 = vld [vmem:[%s1 + $0x1c] sm:$0xf]
  %v47 = vld [vmem:[%s1 + $0x20] sm:$0xf]
  %v48 = vld [vmem:[%s1 + $0x24] sm:$0xf]
  %v49 = vld [vmem:[%s1 + $0x28] sm:$0xf]
  %v50 = vld [vmem:[%s1 + $0x2c] sm:$0xf]
  %v51 = vld [vmem:[%s1 + $0x30] sm:$0xf]
  %v52 = vld [vmem:[%s1 + $0x34] sm:$0xf]
  %v53 = vld [vmem:[%s1 + $0x38] sm:$0xf]
  %v54 = vld [vmem:[%s1 + $0x3c] sm:$0xf]
  %v55 = vld [vmem:[%s1 + $0x40] sm:$0xf]
  %v56 = vld [vmem:[%s1 + $0x44] sm:$0xf]
  %v57 = vld [vmem:[%s1 + $0x48] sm:$0xf]
  %v58 = vld [vmem:[%s1 + $0x4c] sm:$0xf]
  %v59 = vld [vmem:[%s1 + $0x50] sm:$0xf]
  %v60 = vld [vmem:[%s1 + $0x54] sm:$0xf]
  %v61 = vld [vmem:[%s1 + $0x58] sm:$0xf]
  %v62 = vld [vmem:[%s1 + $0x5c] sm:$0xf]
  %v63 = vld [vmem:[%s1 + $0x60] sm:$0xf]
  %v64 = vld [vmem:[%s1 + $0x64] sm:$0xf]
  %v65 = vld [vmem:[%s1 + $0x68] sm:$0xf]
  %v66 = vld [vmem:[%s1 + $0x6c] sm:$0xf]
  %v67 = vld [vmem:[%s1 + $0x70] sm:$0xf]
  %v68 = vld [vmem:[%s1 + $0x74] sm:$0xf]
  %v69 = vld [vmem:[%s1 + $0x78] sm:$0xf]
  %v70 = vld [vmem:[%s1 + $0x7c] sm:$0xf]
  %v71 = vld [vmem:[%s1 + $0x80] sm:$0xf]
  %v72 = vld [vmem:[%s1 + $0x84] sm:$0xf]
  %v73 = vld [vmem:[%s1 + $0x88] sm:$0xf]
  %v74 = vld [vmem:[%s1 + $0x8c] sm:$0xf]
  %v75 = vld [vmem:[%s1 + $0x90] sm:$0xf]
  %v76 = vld [vmem:[%s1 + $0x94] sm:$0xf]
  %v77 = vld [vmem:[%s1 + $0x98] sm:$0xf]
  %v78 = vld [vmem:[%s1 + $0x9c] sm:$0xf]
  %v79 = vld [vmem:[%s1 + $0xa0] sm:$0xf]
  %v80 = vld [vmem:[%s1 + $0xa4] sm:$0xf]
  %v81 = vld [vmem:[%s1 + $0xa8] sm:$0xf]
  %v82 = vld [vmem:[%s1 + $0xac] sm:$0xf]
  %v83 = vld [vmem:[%s1 + $0xb0] sm:$0xf]
  %v84 = vld [vmem:[%s1 + $0xb4] sm:$0xf]
  %v85 = vld [vmem:[%s1 + $0xb8] sm:$0xf]
  %v86 = vld [vmem:[%s1 + $0xbc] sm:$0xf]
  %v103 = vunpack.c.l.b16 %v23
  %v104 = vunpack.c.h.b16 %v23
  %v105 = vunpack.c.l.b16 %v24
  %v106 = vunpack.c.l.b16 %v25
  %v107 = vunpack.c.h.b16 %v25
  %v108 = vunpack.c.l.b16 %v26
  %v109 = vunpack.c.l.b16 %v27
  %v110 = vunpack.c.h.b16 %v27
  %v111 = vunpack.c.l.b16 %v28
  %v112 = vunpack.c.l.b16 %v29
  %v113 = vunpack.c.h.b16 %v29
  %v114 = vunpack.c.l.b16 %v30
  %v115 = vunpack.c.l.b16 %v31
  %v116 = vunpack.c.h.b16 %v31
  %v117 = vunpack.c.l.b16 %v32
  %v118 = vunpack.c.l.b16 %v33
  %v119 = vunpack.c.h.b16 %v33
  %v120 = vunpack.c.l.b16 %v34
  %v121 = vunpack.c.l.b16 %v35
  %v122 = vunpack.c.h.b16 %v35
  %v123 = vunpack.c.l.b16 %v36
  %v124 = vunpack.c.l.b16 %v37
  %v125 = vunpack.c.h.b16 %v37
  %v126 = vunpack.c.l.b16 %v38
  %v127 = vpack.c.b16 %v106, %v103
  %v128 = vpack.c.b16 %v107, %v104
  %v129 = vpack.c.b16 %v108, %v105
  %v130 = vpack.c.b16 %v112, %v109
  %v131 = vpack.c.b16 %v113, %v110
  %v132 = vpack.c.b16 %v114, %v111
  %v133 = vpack.c.b16 %v118, %v115
  %v134 = vpack.c.b16 %v119, %v116
  %v135 = vpack.c.b16 %v120, %v117
  %v136 = vpack.c.b16 %v124, %v121
  %v137 = vpack.c.b16 %v125, %v122
  %v138 = vpack.c.b16 %v126, %v123
  %v199 = vunpack.c.l.b16 %v39
  %v200 = vunpack.c.l.b16 %v40
  %v201 = vunpack.c.l.b16 %v41
  %v202 = vunpack.c.l.b16 %v42
  %v203 = vunpack.c.l.b16 %v43
  %v204 = vunpack.c.l.b16 %v44
  %v205 = vunpack.c.l.b16 %v45
  %v206 = vunpack.c.l.b16 %v46
  %v207 = vunpack.c.l.b16 %v47
  %v208 = vunpack.c.l.b16 %v48
  %v209 = vunpack.c.l.b16 %v49
  %v210 = vunpack.c.l.b16 %v50
  %v211 = vunpack.c.l.b16 %v51
  %v212 = vunpack.c.l.b16 %v52
  %v213 = vunpack.c.l.b16 %v53
  %v214 = vunpack.c.l.b16 %v54
  %v215 = vunpack.c.l.b16 %v55
  %v216 = vunpack.c.l.b16 %v56
  %v217 = vunpack.c.l.b16 %v57
  %v218 = vunpack.c.l.b16 %v58
  %v219 = vunpack.c.l.b16 %v59
  %v220 = vunpack.c.l.b16 %v60
  %v221 = vunpack.c.l.b16 %v61
  %v222 = vunpack.c.l.b16 %v62
  %v223 = vunpack.c.l.b16 %v63
  %v224 = vunpack.c.l.b16 %v64
  %v225 = vunpack.c.l.b16 %v65
  %v226 = vunpack.c.l.b16 %v66
  %v227 = vunpack.c.l.b16 %v67
  %v228 = vunpack.c.l.b16 %v68
  %v229 = vunpack.c.l.b16 %v69
  %v230 = vunpack.c.l.b16 %v70
  %v231 = vunpack.c.l.b16 %v71
  %v232 = vunpack.c.l.b16 %v72
  %v233 = vunpack.c.l.b16 %v73
  %v234 = vunpack.c.l.b16 %v74
  %v235 = vunpack.c.l.b16 %v75
  %v236 = vunpack.c.l.b16 %v76
  %v237 = vunpack.c.l.b16 %v77
  %v238 = vunpack.c.l.b16 %v78
  %v239 = vunpack.c.l.b16 %v79
  %v240 = vunpack.c.l.b16 %v80
  %v241 = vunpack.c.l.b16 %v81
  %v242 = vunpack.c.l.b16 %v82
  %v243 = vunpack.c.l.b16 %v83
  %v244 = vunpack.c.l.b16 %v84
  %v245 = vunpack.c.l.b16 %v85
  %v246 = vunpack.c.l.b16 %v86
  %v247 = vpack.c.b16 %v200, %v199
  %v248 = vpack.c.b16 %v202, %v201
  %v249 = vpack.c.b16 %v204, %v203
  %v250 = vpack.c.b16 %v206, %v205
  %v251 = vpack.c.b16 %v208, %v207
  %v252 = vpack.c.b16 %v210, %v209
  %v253 = vpack.c.b16 %v212, %v211
  %v254 = vpack.c.b16 %v214, %v213
  %v255 = vpack.c.b16 %v216, %v215
  %v256 = vpack.c.b16 %v218, %v217
  %v257 = vpack.c.b16 %v220, %v219
  %v258 = vpack.c.b16 %v222, %v221
  %v259 = vpack.c.b16 %v224, %v223
  %v260 = vpack.c.b16 %v226, %v225
  %v261 = vpack.c.b16 %v228, %v227
  %v262 = vpack.c.b16 %v230, %v229
  %v263 = vpack.c.b16 %v232, %v231
  %v264 = vpack.c.b16 %v234, %v233
  %v265 = vpack.c.b16 %v236, %v235
  %v266 = vpack.c.b16 %v238, %v237
  %v267 = vpack.c.b16 %v240, %v239
  %v268 = vpack.c.b16 %v242, %v241
  %v269 = vpack.c.b16 %v244, %v243
  %v270 = vpack.c.b16 %v246, %v245
  %295 = vmatprep.subr.bf16.mxu0 0
  %296 = vmatpush1.bf16.msra.mxu0 %v247
  %297 = vmatprep.subr.bf16.mxu0 0
  %298 = vmatpush1.bf16.msra.mxu0 %v248
  %299 = vmatprep.subr.bf16.mxu0 0
  %300 = vmatpush1.bf16.msra.mxu0 %v249
  %301 = vmatprep.subr.bf16.mxu0 0
  %302 = vmatpush1.bf16.msra.mxu0 %v250
  %303 = vmatprep.subr.bf16.mxu0 0
  %304 = vmatpush1.bf16.msra.mxu0 %v251
  %305 = vmatprep.subr.bf16.mxu0 0
  %306 = vmatpush1.bf16.msra.mxu0 %v252
  %307 = vmatprep.subr.bf16.mxu0 0
  %308 = vmatpush1.bf16.msra.mxu0 %v253
  %309 = vmatprep.subr.bf16.mxu0 0
  %310 = vmatpush1.bf16.msra.mxu0 %v254
  %311 = vmatprep.subr.bf16.mxu0 0
  %312 = vmatpush1.bf16.msra.mxu0 %v255
  %313 = vmatprep.subr.bf16.mxu0 0
  %314 = vmatpush1.bf16.msra.mxu0 %v256
  %315 = vmatprep.subr.bf16.mxu0 0
  %316 = vmatpush1.bf16.msra.mxu0 %v257
  %317 = vmatprep.subr.bf16.mxu0 0
  %318 = vmatpush1.bf16.msra.mxu0 %v258
  %319 = vmatprep.subr.bf16.mxu0 0
  %320 = vmatpush1.bf16.msra.mxu0 %v259
  %321 = vmatprep.subr.bf16.mxu0 0
  %322 = vmatpush1.bf16.msra.mxu0 %v260
  %323 = vmatprep.subr.bf16.mxu0 0
  %324 = vmatpush1.bf16.msra.mxu0 %v261
  %325 = vmatprep.subr.bf16.mxu0 0
  %326 = vmatpush1.bf16.msra.mxu0 %v262
  %327 = vmatprep.mubr.bf16.mxu0 %v128
  %328 = vmatmul.mubr.bf16.gmra.mrb[0].mxu0 %v127
  %v329 = vpop.f32.mrb[0].mxu0
  %v330 = vadd.f32 0.0, %v329
  %v331 = vpop.f32.mrb[0].mxu0
  %v332 = vpop.f32.mrb[0].mxu0
  %v333 = vadd.f32 0.0, %v332
  %v334 = vpop.f32.mrb[0].mxu0
  %335 = vmatprep.mubr.bf16.mxu0 %v131
  %336 = vmatmul.mubr.bf16.gmra.mrb[0].mxu0 %v130
  %v337 = vpop.f32.mrb[0].mxu0
  %v338 = vadd.f32 0.0, %v337
  %v339 = vpop.f32.mrb[0].mxu0
  %v340 = vpop.f32.mrb[0].mxu0
  %v341 = vadd.f32 0.0, %v340
  %v342 = vpop.f32.mrb[0].mxu0
  %343 = vmatprep.mubr.bf16.mxu0 %v134
  %344 = vmatmul.mubr.bf16.gmra.mrb[0].mxu0 %v133
  %v345 = vpop.f32.mrb[0].mxu0
  %v346 = vadd.f32 0.0, %v345
  %v347 = vpop.f32.mrb[0].mxu0
  %v348 = vpop.f32.mrb[0].mxu0
  %v349 = vadd.f32 0.0, %v348
  %v350 = vpop.f32.mrb[0].mxu0
  %351 = vmatprep.mubr.bf16.mxu0 %v137
  %352 = vmatmul.mubr.bf16.gmra.mrb[0].mxu0 %v136
  %v353 = vpop.f32.mrb[0].mxu0
  %v354 = vadd.f32 0.0, %v353
  %v355 = vpop.f32.mrb[0].mxu0
  %v356 = vpop.f32.mrb[0].mxu0
  %v357 = vadd.f32 0.0, %v356
  %v358 = vpop.f32.mrb[0].mxu0
  %359 = vdwg.mxu0
  %360 = vmatprep.subr.bf16.mxu0 0
  %361 = vmatpush1.bf16.msra.mxu0 %v263
  %362 = vmatprep.subr.bf16.mxu0 0
  %363 = vmatpush1.bf16.msra.mxu0 %v264
  %364 = vmatprep.subr.bf16.mxu0 0
  %365 = vmatpush1.bf16.msra.mxu0 %v265
  %366 = vmatprep.subr.bf16.mxu0 0
  %367 = vmatpush1.bf16.msra.mxu0 %v266
  %368 = vmatprep.subr.bf16.mxu0 0
  %369 = vmatpush1.bf16.msra.mxu0 %v267
  %370 = vmatprep.subr.bf16.mxu0 0
  %371 = vmatpush1.bf16.msra.mxu0 %v268
  %372 = vmatprep.subr.bf16.mxu0 0
  %373 = vmatpush1.bf16.msra.mxu0 %v269
  %374 = vmatprep.subr.bf16.mxu0 0
  %375 = vmatpush1.bf16.msra.mxu0 %v270
  %376 = vmatprep.subr.bf16.mxu0 0
  %377 = vmatpush1.bf16.msra.mxu0 0
  %378 = vmatprep.subr.bf16.mxu0 0
  %379 = vmatpush1.bf16.msra.mxu0 0
  %380 = vmatprep.subr.bf16.mxu0 0
  %381 = vmatpush1.bf16.msra.mxu0 0
  %382 = vmatprep.subr.bf16.mxu0 0
  %383 = vmatpush1.bf16.msra.mxu0 0
  %384 = vmatprep.subr.bf16.mxu0 0
  %385 = vmatpush1.bf16.msra.mxu0 0
  %386 = vmatprep.subr.bf16.mxu0 0
  %387 = vmatpush1.bf16.msra.mxu0 0
  %388 = vmatprep.subr.bf16.mxu0 0
  %389 = vmatpush1.bf16.msra.mxu0 0
  %390 = vmatprep.subr.bf16.mxu0 0
  %391 = vmatpush1.bf16.msra.mxu0 0
  %392 = vmatprep.mubr.bf16.mxu0 0
  %393 = vmatmul.mubr.bf16.gmra.mrb[0].mxu0 %v129
  %v394 = vpop.f32.mrb[0].mxu0
  %v395 = vadd.f32 %v330, %v394
  %v396 = vpop.f32.mrb[0].mxu0
  %v397 = vpop.f32.mrb[0].mxu0
  %v398 = vadd.f32 %v333, %v397
  %v399 = vpop.f32.mrb[0].mxu0
  %400 = vmatprep.mubr.bf16.mxu0 0
  %401 = vmatmul.mubr.bf16.gmra.mrb[0].mxu0 %v132
  %v402 = vpop.f32.mrb[0].mxu0
  %v403 = vadd.f32 %v338, %v402
  %v404 = vpop.f32.mrb[0].mxu0
  %v405 = vpop.f32.mrb[0].mxu0
  %v406 = vadd.f32 %v341, %v405
  %v407 = vpop.f32.mrb[0].mxu0
  %408 = vmatprep.mubr.bf16.mxu0 0
  %409 = vmatmul.mubr.bf16.gmra.mrb[0].mxu0 %v135
  %v410 = vpop.f32.mrb[0].mxu0
  %v411 = vadd.f32 %v346, %v410
  %v412 = vpop.f32.mrb[0].mxu0
  %v413 = vpop.f32.mrb[0].mxu0
  %v414 = vadd.f32 %v349, %v413
  %v415 = vpop.f32.mrb[0].mxu0
  %416 = vmatprep.mubr.bf16.mxu0 0
  %417 = vmatmul.mubr.bf16.gmra.mrb[0].mxu0 %v138
  %v418 = vpop.f32.mrb[0].mxu0
  %v419 = vadd.f32 %v354, %v418
  %v420 = vpop.f32.mrb[0].mxu0
  %v421 = vpop.f32.mrb[0].mxu0
  %v422 = vadd.f32 %v357, %v421
  %v423 = vpop.f32.mrb[0].mxu0
  %424 = vdwg.mxu0
  %v425 = vld [vmem:[%s3] sm:$0x1]
  %v427 = vlaneseq
  %v428 = vshrl.u32 %v427, 7
  %v429 = vsub.s32 0, %v428
  %v430 = vrot.slane %v425, %v429
  %v432 = vmul.f32 %v395, %v430
  %v433 = vmul.f32 %v398, %v430
  %v434 = vmul.f32 %v403, %v430
  %v435 = vmul.f32 %v406, %v430
  %v436 = vmul.f32 %v411, %v430
  %v437 = vmul.f32 %v414, %v430
  %v438 = vmul.f32 %v419, %v430
  %v439 = vmul.f32 %v422, %v430
  %v440 = vld [vmem:[%s4] sm:$0x1]
  %v442 = vlaneseq
  %v443 = vshrl.u32 %v442, 7
  %v444 = vsub.s32 0, %v443
  %v445 = vrot.slane %v440, %v444
  %v447 = vadd.f32 %v432, %v445
  %v448 = vadd.f32 %v433, %v445
  %v449 = vadd.f32 %v434, %v445
  %v450 = vadd.f32 %v435, %v445
  %v451 = vadd.f32 %v436, %v445
  %v452 = vadd.f32 %v437, %v445
  %v453 = vadd.f32 %v438, %v445
  %v454 = vadd.f32 %v439, %v445
  %v455 = vmax.f32 %v447, 0.0
  %v456 = vmax.f32 %v448, 0.0
  %v457 = vmax.f32 %v449, 0.0
  %v458 = vmax.f32 %v450, 0.0
  %v459 = vmax.f32 %v451, 0.0
  %v460 = vmax.f32 %v452, 0.0
  %v461 = vmax.f32 %v453, 0.0
  %v462 = vmax.f32 %v454, 0.0
  %vm463 = vcmask 523264
  %464 = vst.msk [vmem:[%s5] sm:$0xff] %vm463, %v455
  %465 = vst.msk [vmem:[%s5 + $0x8] sm:$0xff] %vm463, %v456
  %466 = vst.msk [vmem:[%s5 + $0x10] sm:$0xff] %vm463, %v457
  %467 = vst.msk [vmem:[%s5 + $0x18] sm:$0xff] %vm463, %v458
  %468 = vst.msk [vmem:[%s5 + $0x20] sm:$0xff] %vm463, %v459
  %469 = vst.msk [vmem:[%s5 + $0x28] sm:$0xff] %vm463, %v460
  %470 = vst.msk [vmem:[%s5 + $0x30] sm:$0xff] %vm463, %v461
  %471 = vst.msk [vmem:[%s5 + $0x38] sm:$0xff] %vm463, %v462
  %v472 = vld [vmem:[%s2] sm:$0xf]
  %v473 = vld [vmem:[%s2 + $0x4] sm:$0xf]
  %v474 = vld [vmem:[%s2 + $0x8] sm:$0xf]
  %v475 = vld [vmem:[%s2 + $0xc] sm:$0xf]
  %v476 = vld [vmem:[%s2 + $0x10] sm:$0xf]
  %v477 = vld [vmem:[%s2 + $0x14] sm:$0xf]
  %v478 = vld [vmem:[%s2 + $0x18] sm:$0xf]
  %v479 = vld [vmem:[%s2 + $0x1c] sm:$0xf]
  %v480 = vld [vmem:[%s2 + $0x20] sm:$0xf]
  %v481 = vld [vmem:[%s2 + $0x24] sm:$0xf]
  %v482 = vld [vmem:[%s2 + $0x28] sm:$0xf]
  %v483 = vld [vmem:[%s2 + $0x2c] sm:$0xf]
  %v484 = vld [vmem:[%s2 + $0x30] sm:$0xf]
  %v485 = vld [vmem:[%s2 + $0x34] sm:$0xf]
  %v486 = vld [vmem:[%s2 + $0x38] sm:$0xf]
  %v487 = vld [vmem:[%s2 + $0x3c] sm:$0xf]
  %v504 = vunpack.c.l.b16 %v472
  %v505 = vunpack.c.l.b16 %v473
  %v506 = vunpack.c.l.b16 %v474
  %v507 = vunpack.c.l.b16 %v475
  %v508 = vunpack.c.l.b16 %v476
  %v509 = vunpack.c.l.b16 %v477
  %v510 = vunpack.c.l.b16 %v478
  %v511 = vunpack.c.l.b16 %v479
  %v512 = vunpack.c.l.b16 %v480
  %v513 = vunpack.c.l.b16 %v481
  %v514 = vunpack.c.l.b16 %v482
  %v515 = vunpack.c.l.b16 %v483
  %v516 = vunpack.c.l.b16 %v484
  %v517 = vunpack.c.l.b16 %v485
  %v518 = vunpack.c.l.b16 %v486
  %v519 = vunpack.c.l.b16 %v487
  %v520 = vpack.c.b16 %v505, %v504
  %v521 = vpack.c.b16 %v507, %v506
  %v522 = vpack.c.b16 %v509, %v508
  %v523 = vpack.c.b16 %v511, %v510
  %v524 = vpack.c.b16 %v513, %v512
  %v525 = vpack.c.b16 %v515, %v514
  %v526 = vpack.c.b16 %v517, %v516
  %v527 = vpack.c.b16 %v519, %v518
  %536 = vmatprep.subr.bf16.mxu0 0
  %537 = vmatpush1.bf16.msra.mxu0 %v520
  %538 = vmatprep.subr.bf16.mxu0 0
  %539 = vmatpush1.bf16.msra.mxu0 %v521
  %540 = vmatprep.subr.bf16.mxu0 0
  %541 = vmatpush1.bf16.msra.mxu0 %v522
  %542 = vmatprep.subr.bf16.mxu0 0
  %543 = vmatpush1.bf16.msra.mxu0 %v523
  %544 = vmatprep.subr.bf16.mxu0 0
  %545 = vmatpush1.bf16.msra.mxu0 %v524
  %546 = vmatprep.subr.bf16.mxu0 0
  %547 = vmatpush1.bf16.msra.mxu0 %v525
  %548 = vmatprep.subr.bf16.mxu0 0
  %549 = vmatpush1.bf16.msra.mxu0 %v526
  %550 = vmatprep.subr.bf16.mxu0 0
  %551 = vmatpush1.bf16.msra.mxu0 %v527
  %552 = vmatprep.subr.bf16.mxu0 0
  %553 = vmatpush1.bf16.msra.mxu0 0
  %554 = vmatprep.subr.bf16.mxu0 0
  %555 = vmatpush1.bf16.msra.mxu0 0
  %556 = vmatprep.subr.bf16.mxu0 0
  %557 = vmatpush1.bf16.msra.mxu0 0
  %558 = vmatprep.subr.bf16.mxu0 0
  %559 = vmatpush1.bf16.msra.mxu0 0
  %560 = vmatprep.subr.bf16.mxu0 0
  %561 = vmatpush1.bf16.msra.mxu0 0
  %562 = vmatprep.subr.bf16.mxu0 0
  %563 = vmatpush1.bf16.msra.mxu0 0
  %564 = vmatprep.subr.bf16.mxu0 0
  %565 = vmatpush1.bf16.msra.mxu0 0
  %566 = vmatprep.subr.bf16.mxu0 0
  %567 = vmatpush1.bf16.msra.mxu0 0
  %568 = vmatprep.mubr.bf16.mxu0 0
  %569 = vmatmul.mubr.bf16.gmra.mrb[0].mxu0 %v128
  %v570 = vpop.f32.mrb[0].mxu0
  %v571 = vadd.f32 0.0, %v570
  %v572 = vpop.f32.mrb[0].mxu0
  %v573 = vpop.f32.mrb[0].mxu0
  %v574 = vadd.f32 0.0, %v573
  %v575 = vpop.f32.mrb[0].mxu0
  %576 = vmatprep.mubr.bf16.mxu0 0
  %577 = vmatmul.mubr.bf16.gmra.mrb[0].mxu0 %v131
  %v578 = vpop.f32.mrb[0].mxu0
  %v579 = vadd.f32 0.0, %v578
  %v580 = vpop.f32.mrb[0].mxu0
  %v581 = vpop.f32.mrb[0].mxu0
  %v582 = vadd.f32 0.0, %v581
  %v583 = vpop.f32.mrb[0].mxu0
  %584 = vmatprep.mubr.bf16.mxu0 0
  %585 = vmatmul.mubr.bf16.gmra.mrb[0].mxu0 %v134
  %v586 = vpop.f32.mrb[0].mxu0
  %v587 = vadd.f32 0.0, %v586
  %v588 = vpop.f32.mrb[0].mxu0
  %v589 = vpop.f32.mrb[0].mxu0
  %v590 = vadd.f32 0.0, %v589
  %v591 = vpop.f32.mrb[0].mxu0
  %592 = vmatprep.mubr.bf16.mxu0 0
  %593 = vmatmul.mubr.bf16.gmra.mrb[0].mxu0 %v137
  %v594 = vpop.f32.mrb[0].mxu0
  %v595 = vadd.f32 0.0, %v594
  %v596 = vpop.f32.mrb[0].mxu0
  %v597 = vpop.f32.mrb[0].mxu0
  %v598 = vadd.f32 0.0, %v597
  %v599 = vpop.f32.mrb[0].mxu0
  %600 = vdwg.mxu0
  %601 = vst.msk [vmem:[%s6] sm:$0xff] %vm463, %v571
  %602 = vst.msk [vmem:[%s6 + $0x8] sm:$0xff] %vm463, %v574
  %603 = vst.msk [vmem:[%s6 + $0x10] sm:$0xff] %vm463, %v579
  %604 = vst.msk [vmem:[%s6 + $0x18] sm:$0xff] %vm463, %v582
  %605 = vst.msk [vmem:[%s6 + $0x20] sm:$0xff] %vm463, %v587
  %606 = vst.msk [vmem:[%s6 + $0x28] sm:$0xff] %vm463, %v590
  %607 = vst.msk [vmem:[%s6 + $0x30] sm:$0xff] %vm463, %v595
  %608 = vst.msk [vmem:[%s6 + $0x38] sm:$0xff] %vm463, %v598
  // Predicated region
  $region22: #{dronet_forward.10} parent=0 // pred_check
    _
  $region23: #{dronet_forward.10} parent=0 // pred_check_branch
    %610 = sbr.rel (0) target = $region25
  $region24: #{dronet_forward.10} parent=0 // pred_region
    _
  $region25: #{dronet_forward.10} parent=0 // pred_fallthru
    _
  // Predicated region
  $region26: #{dronet_forward.10} parent=0 // pred_check
    _
  $region27: #{dronet_forward.10} parent=0 // pred_check_branch
    %612 = sbr.rel (0) target = $region29
  $region28: #{dronet_forward.10} parent=0 // pred_region
    _
  $region29: #{dronet_forward.10} parent=0 // pred_fallthru
    _
  // Predicated region
  $region30: #{dronet_forward.10} parent=0 // pred_check
    _
  $region31: #{dronet_forward.10} parent=0 // pred_check_branch
    %614 = sbr.rel (0) target = $region33
  $region32: #{dronet_forward.10} parent=0 // pred_region
    _
  $region33: #{dronet_forward.10} parent=0 // pred_fallthru
    _
  // Predicated region
  $region34: #{dronet_forward.10} parent=0 // pred_check
    _
  $region35: #{dronet_forward.10} parent=0 // pred_check_branch
    %616 = sbr.rel (0) target = $region37
  $region36: #{dronet_forward.10} parent=0 // pred_region
    _
  $region37: #{dronet_forward.10} parent=0 // pred_fallthru
    _

// kernel: dronet_forward.11
$region0: #{dronet_forward.11}
  #allocation0 [shape = 'u32[]', space=smem, size = 0x4, offset = 0x4, fixed_abs, tag = 'smem constant byte address 0x4 - core index']
  #allocation1 [shape = 'u32[144,128]{1,0:T(1,128)}', space=vmem, size = 0x12000, scoped, tag = 'internal scratch']
  %s0 = inlined_call_operand.vmem [shape: bf16[64,640], index: 0, kind: input, shape index: {}]
  %s1 = inlined_call_operand.vmem [shape: bf16[640,64], index: 1, kind: input, shape index: {}]
  %s2 = inlined_call_operand.vmem [shape: f32[64,64], index: 2, kind: input, shape index: {}]
  %s3 = inlined_call_operand.vmem [shape: f32[1,64], index: 3, kind: input, shape index: {}]
  %s4 = inlined_call_operand.vmem [shape: f32[1,64], index: 4, kind: input, shape index: {}]
  %s5 = inlined_call_operand.vmem [shape: f32[64,64], index: 5, kind: output, shape index: {}]
  %s6 = sld [smem:[#allocation0]]
  $region30: #{dronet_forward.11} parent=0
    _
  %s8 = ssub.s32 1, %s6
  %s9 = scalar_select 0, %s8, %s6
  // Predicated region
  $region2: #{dronet_forward.11} parent=0 // pred_check
    _
  $region3: #{dronet_forward.11} parent=0 // pred_check_branch
    %11 = sbr.rel (0) target = $region5
  $region4: #{dronet_forward.11} parent=0 // pred_region
    _
  $region5: #{dronet_forward.11} parent=0 // pred_fallthru
    _
  // Predicated region
  $region6: #{dronet_forward.11} parent=0 // pred_check
    _
  $region7: #{dronet_forward.11} parent=0 // pred_check_branch
    %13 = sbr.rel (0) target = $region9
  $region8: #{dronet_forward.11} parent=0 // pred_region
    _
  $region9: #{dronet_forward.11} parent=0 // pred_fallthru
    _
  // Predicated region
  $region10: #{dronet_forward.11} parent=0 // pred_check
    _
  $region11: #{dronet_forward.11} parent=0 // pred_check_branch
    %15 = sbr.rel (0) target = $region13
  $region12: #{dronet_forward.11} parent=0 // pred_region
    _
  $region13: #{dronet_forward.11} parent=0 // pred_fallthru
    _
  // Predicated region
  $region14: #{dronet_forward.11} parent=0 // pred_check
    _
  $region15: #{dronet_forward.11} parent=0 // pred_check_branch
    %17 = sbr.rel (0) target = $region17
  $region16: #{dronet_forward.11} parent=0 // pred_region
    _
  $region17: #{dronet_forward.11} parent=0 // pred_fallthru
    _
  // Predicated region
  $region18: #{dronet_forward.11} parent=0 // pred_check
    _
  $region19: #{dronet_forward.11} parent=0 // pred_check_branch
    %19 = sbr.rel (0) target = $region21
  $region20: #{dronet_forward.11} parent=0 // pred_region
    _
  $region21: #{dronet_forward.11} parent=0 // pred_fallthru
    _
  %v21 = vld [vmem:[%s0] sm:$0xff]
  %v22 = vld [vmem:[%s0 + $0x8] sm:$0xff]
  %v23 = vld [vmem:[%s0 + $0x10] sm:$0xf]
  %v24 = vld [vmem:[%s0 + $0x14] sm:$0xff]
  %v25 = vld [vmem:[%s0 + $0x1c] sm:$0xff]
  %v26 = vld [vmem:[%s0 + $0x24] sm:$0xf]
  %v27 = vld [vmem:[%s0 + $0x28] sm:$0xff]
  %v28 = vld [vmem:[%s0 + $0x30] sm:$0xff]
  %v29 = vld [vmem:[%s0 + $0x38] sm:$0xf]
  %v30 = vld [vmem:[%s0 + $0x3c] sm:$0xff]
  %v31 = vld [vmem:[%s0 + $0x44] sm:$0xff]
  %v32 = vld [vmem:[%s0 + $0x4c] sm:$0xf]
  %v33 = vld [vmem:[%s0 + $0x50] sm:$0xff]
  %v34 = vld [vmem:[%s0 + $0x58] sm:$0xff]
  %v35 = vld [vmem:[%s0 + $0x60] sm:$0xf]
  %v36 = vld [vmem:[%s0 + $0x64] sm:$0xff]
  %v37 = vld [vmem:[%s0 + $0x6c] sm:$0xff]
  %v38 = vld [vmem:[%s0 + $0x74] sm:$0xf]
  %v39 = vld [vmem:[%s0 + $0x78] sm:$0xff]
  %v40 = vld [vmem:[%s0 + $0x80] sm:$0xff]
  %v41 = vld [vmem:[%s0 + $0x88] sm:$0xf]
  %v42 = vld [vmem:[%s0 + $0x8c] sm:$0xff]
  %v43 = vld [vmem:[%s0 + $0x94] sm:$0xff]
  %v44 = vld [vmem:[%s0 + $0x9c] sm:$0xf]
  %v45 = vld [vmem:[%s1] sm:$0xf]
  %v46 = vld [vmem:[%s1 + $0x4] sm:$0xf]
  %v47 = vld [vmem:[%s1 + $0x8] sm:$0xf]
  %v48 = vld [vmem:[%s1 + $0xc] sm:$0xf]
  %v49 = vld [vmem:[%s1 + $0x10] sm:$0xf]
  %v50 = vld [vmem:[%s1 + $0x14] sm:$0xf]
  %v51 = vld [vmem:[%s1 + $0x18] sm:$0xf]
  %v52 = vld [vmem:[%s1 + $0x1c] sm:$0xf]
  %v53 = vld [vmem:[%s1 + $0x20] sm:$0xf]
  %v54 = vld [vmem:[%s1 + $0x24] sm:$0xf]
  %v55 = vld [vmem:[%s1 + $0x28] sm:$0xf]
  %v56 = vld [vmem:[%s1 + $0x2c] sm:$0xf]
  %v57 = vld [vmem:[%s1 + $0x30] sm:$0xf]
  %v58 = vld [vmem:[%s1 + $0x34] sm:$0xf]
  %v59 = vld [vmem:[%s1 + $0x38] sm:$0xf]
  %v60 = vld [vmem:[%s1 + $0x3c] sm:$0xf]
  %v61 = vld [vmem:[%s1 + $0x40] sm:$0xf]
  %v62 = vld [vmem:[%s1 + $0x44] sm:$0xf]
  %v63 = vld [vmem:[%s1 + $0x48] sm:$0xf]
  %v64 = vld [vmem:[%s1 + $0x4c] sm:$0xf]
  %v65 = vld [vmem:[%s1 + $0x50] sm:$0xf]
  %v66 = vld [vmem:[%s1 + $0x54] sm:$0xf]
  %v67 = vld [vmem:[%s1 + $0x58] sm:$0xf]
  %v68 = vld [vmem:[%s1 + $0x5c] sm:$0xf]
  %v69 = vld [vmem:[%s1 + $0x60] sm:$0xf]
  %v70 = vld [vmem:[%s1 + $0x64] sm:$0xf]
  %v71 = vld [vmem:[%s1 + $0x68] sm:$0xf]
  %v72 = vld [vmem:[%s1 + $0x6c] sm:$0xf]
  %v73 = vld [vmem:[%s1 + $0x70] sm:$0xf]
  %v74 = vld [vmem:[%s1 + $0x74] sm:$0xf]
  %v75 = vld [vmem:[%s1 + $0x78] sm:$0xf]
  %v76 = vld [vmem:[%s1 + $0x7c] sm:$0xf]
  %v77 = vld [vmem:[%s1 + $0x80] sm:$0xf]
  %v78 = vld [vmem:[%s1 + $0x84] sm:$0xf]
  %v79 = vld [vmem:[%s1 + $0x88] sm:$0xf]
  %v80 = vld [vmem:[%s1 + $0x8c] sm:$0xf]
  %v81 = vld [vmem:[%s1 + $0x90] sm:$0xf]
  %v82 = vld [vmem:[%s1 + $0x94] sm:$0xf]
  %v83 = vld [vmem:[%s1 + $0x98] sm:$0xf]
  %v84 = vld [vmem:[%s1 + $0x9c] sm:$0xf]
  %v85 = vld [vmem:[%s1 + $0xa0] sm:$0xf]
  %v86 = vld [vmem:[%s1 + $0xa4] sm:$0xf]
  %v87 = vld [vmem:[%s1 + $0xa8] sm:$0xf]
  %v88 = vld [vmem:[%s1 + $0xac] sm:$0xf]
  %v89 = vld [vmem:[%s1 + $0xb0] sm:$0xf]
  %v90 = vld [vmem:[%s1 + $0xb4] sm:$0xf]
  %v91 = vld [vmem:[%s1 + $0xb8] sm:$0xf]
  %v92 = vld [vmem:[%s1 + $0xbc] sm:$0xf]
  %v93 = vld [vmem:[%s1 + $0xc0] sm:$0xf]
  %v94 = vld [vmem:[%s1 + $0xc4] sm:$0xf]
  %v95 = vld [vmem:[%s1 + $0xc8] sm:$0xf]
  %v96 = vld [vmem:[%s1 + $0xcc] sm:$0xf]
  %v97 = vld [vmem:[%s1 + $0xd0] sm:$0xf]
  %v98 = vld [vmem:[%s1 + $0xd4] sm:$0xf]
  %v99 = vld [vmem:[%s1 + $0xd8] sm:$0xf]
  %v100 = vld [vmem:[%s1 + $0xdc] sm:$0xf]
  %v101 = vld [vmem:[%s1 + $0xe0] sm:$0xf]
  %v102 = vld [vmem:[%s1 + $0xe4] sm:$0xf]
  %v103 = vld [vmem:[%s1 + $0xe8] sm:$0xf]
  %v104 = vld [vmem:[%s1 + $0xec] sm:$0xf]
  %v105 = vld [vmem:[%s1 + $0xf0] sm:$0xf]
  %v106 = vld [vmem:[%s1 + $0xf4] sm:$0xf]
  %v107 = vld [vmem:[%s1 + $0xf8] sm:$0xf]
  %v108 = vld [vmem:[%s1 + $0xfc] sm:$0xf]
  %v109 = vld [vmem:[%s1 + $0x100] sm:$0xf]
  %v110 = vld [vmem:[%s1 + $0x104] sm:$0xf]
  %v111 = vld [vmem:[%s1 + $0x108] sm:$0xf]
  %v112 = vld [vmem:[%s1 + $0x10c] sm:$0xf]
  %v113 = vld [vmem:[%s1 + $0x110] sm:$0xf]
  %v114 = vld [vmem:[%s1 + $0x114] sm:$0xf]
  %v115 = vld [vmem:[%s1 + $0x118] sm:$0xf]
  %v116 = vld [vmem:[%s1 + $0x11c] sm:$0xf]
  %v117 = vld [vmem:[%s1 + $0x120] sm:$0xf]
  %v118 = vld [vmem:[%s1 + $0x124] sm:$0xf]
  %v119 = vld [vmem:[%s1 + $0x128] sm:$0xf]
  %v120 = vld [vmem:[%s1 + $0x12c] sm:$0xf]
  %v121 = vld [vmem:[%s1 + $0x130] sm:$0xf]
  %v122 = vld [vmem:[%s1 + $0x134] sm:$0xf]
  %v123 = vld [vmem:[%s1 + $0x138] sm:$0xf]
  %v124 = vld [vmem:[%s1 + $0x13c] sm:$0xf]
  %v125 = vld [vmem:[%s2] sm:$0xff]
  %v126 = vld [vmem:[%s2 + $0x8] sm:$0xff]
  %v127 = vld [vmem:[%s2 + $0x10] sm:$0xff]
  %v128 = vld [vmem:[%s2 + $0x18] sm:$0xff]
  %v129 = vld [vmem:[%s2 + $0x20] sm:$0xff]
  %v130 = vld [vmem:[%s2 + $0x28] sm:$0xff]
  %v131 = vld [vmem:[%s2 + $0x30] sm:$0xff]
  %v132 = vld [vmem:[%s2 + $0x38] sm:$0xff]
  %v157 = vunpack.c.l.b16 %v21
  %v158 = vunpack.c.h.b16 %v21
  %v159 = vunpack.c.l.b16 %v22
  %v160 = vunpack.c.h.b16 %v22
  %v161 = vunpack.c.l.b16 %v23
  %v162 = vunpack.c.l.b16 %v24
  %v163 = vunpack.c.h.b16 %v24
  %v164 = vunpack.c.l.b16 %v25
  %v165 = vunpack.c.h.b16 %v25
  %v166 = vunpack.c.l.b16 %v26
  %v167 = vunpack.c.l.b16 %v27
  %v168 = vunpack.c.h.b16 %v27
  %v169 = vunpack.c.l.b16 %v28
  %v170 = vunpack.c.h.b16 %v28
  %v171 = vunpack.c.l.b16 %v29
  %v172 = vunpack.c.l.b16 %v30
  %v173 = vunpack.c.h.b16 %v30
  %v174 = vunpack.c.l.b16 %v31
  %v175 = vunpack.c.h.b16 %v31
  %v176 = vunpack.c.l.b16 %v32
  %v177 = vunpack.c.l.b16 %v33
  %v178 = vunpack.c.h.b16 %v33
  %v179 = vunpack.c.l.b16 %v34
  %v180 = vunpack.c.h.b16 %v34
  %v181 = vunpack.c.l.b16 %v35
  %v182 = vunpack.c.l.b16 %v36
  %v183 = vunpack.c.h.b16 %v36
  %v184 = vunpack.c.l.b16 %v37
  %v185 = vunpack.c.h.b16 %v37
  %v186 = vunpack.c.l.b16 %v38
  %v187 = vunpack.c.l.b16 %v39
  %v188 = vunpack.c.h.b16 %v39
  %v189 = vunpack.c.l.b16 %v40
  %v190 = vunpack.c.h.b16 %v40
  %v191 = vunpack.c.l.b16 %v41
  %v192 = vunpack.c.l.b16 %v42
  %v193 = vunpack.c.h.b16 %v42
  %v194 = vunpack.c.l.b16 %v43
  %v195 = vunpack.c.h.b16 %v43
  %v196 = vunpack.c.l.b16 %v44
  %v197 = vpack.c.b16 %v162, %v157
  %v198 = vpack.c.b16 %v163, %v158
  %v199 = vpack.c.b16 %v164, %v159
  %v200 = vpack.c.b16 %v165, %v160
  %v201 = vpack.c.b16 %v166, %v161
  %v202 = vpack.c.b16 %v172, %v167
  %v203 = vpack.c.b16 %v173, %v168
  %v204 = vpack.c.b16 %v174, %v169
  %v205 = vpack.c.b16 %v175, %v170
  %v206 = vpack.c.b16 %v176, %v171
  %v207 = vpack.c.b16 %v182, %v177
  %v208 = vpack.c.b16 %v183, %v178
  %v209 = vpack.c.b16 %v184, %v179
  %v210 = vpack.c.b16 %v185, %v180
  %v211 = vpack.c.b16 %v186, %v181
  %v212 = vpack.c.b16 %v192, %v187
  %v213 = vpack.c.b16 %v193, %v188
  %v214 = vpack.c.b16 %v194, %v189
  %v215 = vpack.c.b16 %v195, %v190
  %v216 = vpack.c.b16 %v196, %v191
  %v317 = vunpack.c.l.b16 %v45
  %v318 = vunpack.c.l.b16 %v46
  %v319 = vunpack.c.l.b16 %v47
  %v320 = vunpack.c.l.b16 %v48
  %v321 = vunpack.c.l.b16 %v49
  %v322 = vunpack.c.l.b16 %v50
  %v323 = vunpack.c.l.b16 %v51
  %v324 = vunpack.c.l.b16 %v52
  %v325 = vunpack.c.l.b16 %v53
  %v326 = vunpack.c.l.b16 %v54
  %v327 = vunpack.c.l.b16 %v55
  %v328 = vunpack.c.l.b16 %v56
  %v329 = vunpack.c.l.b16 %v57
  %v330 = vunpack.c.l.b16 %v58
  %v331 = vunpack.c.l.b16 %v59
  %v332 = vunpack.c.l.b16 %v60
  %v333 = vunpack.c.l.b16 %v61
  %v334 = vunpack.c.l.b16 %v62
  %v335 = vunpack.c.l.b16 %v63
  %v336 = vunpack.c.l.b16 %v64
  %v337 = vunpack.c.l.b16 %v65
  %v338 = vunpack.c.l.b16 %v66
  %v339 = vunpack.c.l.b16 %v67
  %v340 = vunpack.c.l.b16 %v68
  %v341 = vunpack.c.l.b16 %v69
  %v342 = vunpack.c.l.b16 %v70
  %v343 = vunpack.c.l.b16 %v71
  %v344 = vunpack.c.l.b16 %v72
  %v345 = vunpack.c.l.b16 %v73
  %v346 = vunpack.c.l.b16 %v74
  %v347 = vunpack.c.l.b16 %v75
  %v348 = vunpack.c.l.b16 %v76
  %v349 = vunpack.c.l.b16 %v77
  %v350 = vunpack.c.l.b16 %v78
  %v351 = vunpack.c.l.b16 %v79
  %v352 = vunpack.c.l.b16 %v80
  %v353 = vunpack.c.l.b16 %v81
  %v354 = vunpack.c.l.b16 %v82
  %v355 = vunpack.c.l.b16 %v83
  %v356 = vunpack.c.l.b16 %v84
  %v357 = vunpack.c.l.b16 %v85
  %v358 = vunpack.c.l.b16 %v86
  %v359 = vunpack.c.l.b16 %v87
  %v360 = vunpack.c.l.b16 %v88
  %v361 = vunpack.c.l.b16 %v89
  %v362 = vunpack.c.l.b16 %v90
  %v363 = vunpack.c.l.b16 %v91
  %v364 = vunpack.c.l.b16 %v92
  %v365 = vunpack.c.l.b16 %v93
  %v366 = vunpack.c.l.b16 %v94
  %v367 = vunpack.c.l.b16 %v95
  %v368 = vunpack.c.l.b16 %v96
  %v369 = vunpack.c.l.b16 %v97
  %v370 = vunpack.c.l.b16 %v98
  %v371 = vunpack.c.l.b16 %v99
  %v372 = vunpack.c.l.b16 %v100
  %v373 = vunpack.c.l.b16 %v101
  %v374 = vunpack.c.l.b16 %v102
  %v375 = vunpack.c.l.b16 %v103
  %v376 = vunpack.c.l.b16 %v104
  %v377 = vunpack.c.l.b16 %v105
  %v378 = vunpack.c.l.b16 %v106
  %v379 = vunpack.c.l.b16 %v107
  %v380 = vunpack.c.l.b16 %v108
  %v381 = vunpack.c.l.b16 %v109
  %v382 = vunpack.c.l.b16 %v110
  %v383 = vunpack.c.l.b16 %v111
  %v384 = vunpack.c.l.b16 %v112
  %v385 = vunpack.c.l.b16 %v113
  %v386 = vunpack.c.l.b16 %v114
  %v387 = vunpack.c.l.b16 %v115
  %v388 = vunpack.c.l.b16 %v116
  %v389 = vunpack.c.l.b16 %v117
  %v390 = vunpack.c.l.b16 %v118
  %v391 = vunpack.c.l.b16 %v119
  %v392 = vunpack.c.l.b16 %v120
  %v393 = vunpack.c.l.b16 %v121
  %v394 = vunpack.c.l.b16 %v122
  %v395 = vunpack.c.l.b16 %v123
  %v396 = vunpack.c.l.b16 %v124
  %v397 = vpack.c.b16 %v318, %v317
  %v398 = vpack.c.b16 %v320, %v319
  %v399 = vpack.c.b16 %v322, %v321
  %v400 = vpack.c.b16 %v324, %v323
  %v401 = vpack.c.b16 %v326, %v325
  %v402 = vpack.c.b16 %v328, %v327
  %v403 = vpack.c.b16 %v330, %v329
  %v404 = vpack.c.b16 %v332, %v331
  %v405 = vpack.c.b16 %v334, %v333
  %v406 = vpack.c.b16 %v336, %v335
  %v407 = vpack.c.b16 %v338, %v337
  %v408 = vpack.c.b16 %v340, %v339
  %v409 = vpack.c.b16 %v342, %v341
  %v410 = vpack.c.b16 %v344, %v343
  %v411 = vpack.c.b16 %v346, %v345
  %v412 = vpack.c.b16 %v348, %v347
  %v413 = vpack.c.b16 %v350, %v349
  %v414 = vpack.c.b16 %v352, %v351
  %v415 = vpack.c.b16 %v354, %v353
  %v416 = vpack.c.b16 %v356, %v355
  %v417 = vpack.c.b16 %v358, %v357
  %v418 = vpack.c.b16 %v360, %v359
  %v419 = vpack.c.b16 %v362, %v361
  %v420 = vpack.c.b16 %v364, %v363
  %v421 = vpack.c.b16 %v366, %v365
  %v422 = vpack.c.b16 %v368, %v367
  %v423 = vpack.c.b16 %v370, %v369
  %v424 = vpack.c.b16 %v372, %v371
  %v425 = vpack.c.b16 %v374, %v373
  %v426 = vpack.c.b16 %v376, %v375
  %v427 = vpack.c.b16 %v378, %v377
  %v428 = vpack.c.b16 %v380, %v379
  %v429 = vpack.c.b16 %v382, %v381
  %v430 = vpack.c.b16 %v384, %v383
  %v431 = vpack.c.b16 %v386, %v385
  %v432 = vpack.c.b16 %v388, %v387
  %v433 = vpack.c.b16 %v390, %v389
  %v434 = vpack.c.b16 %v392, %v391
  %v435 = vpack.c.b16 %v394, %v393
  %v436 = vpack.c.b16 %v396, %v395
  %477 = vmatprep.subr.bf16.mxu0 0
  %478 = vmatpush1.bf16.msra.mxu0 %v397
  %479 = vmatprep.subr.bf16.mxu0 0
  %480 = vmatpush1.bf16.msra.mxu0 %v398
  %481 = vmatprep.subr.bf16.mxu0 0
  %482 = vmatpush1.bf16.msra.mxu0 %v399
  %483 = vmatprep.subr.bf16.mxu0 0
  %484 = vmatpush1.bf16.msra.mxu0 %v400
  %485 = vmatprep.subr.bf16.mxu0 0
  %486 = vmatpush1.bf16.msra.mxu0 %v401
  %487 = vmatprep.subr.bf16.mxu0 0
  %488 = vmatpush1.bf16.msra.mxu0 %v402
  %489 = vmatprep.subr.bf16.mxu0 0
  %490 = vmatpush1.bf16.msra.mxu0 %v403
  %491 = vmatprep.subr.bf16.mxu0 0
  %492 = vmatpush1.bf16.msra.mxu0 %v404
  %493 = vmatprep.subr.bf16.mxu0 0
  %494 = vmatpush1.bf16.msra.mxu0 %v405
  %495 = vmatprep.subr.bf16.mxu0 0
  %496 = vmatpush1.bf16.msra.mxu0 %v406
  %497 = vmatprep.subr.bf16.mxu0 0
  %498 = vmatpush1.bf16.msra.mxu0 %v407
  %499 = vmatprep.subr.bf16.mxu0 0
  %500 = vmatpush1.bf16.msra.mxu0 %v408
  %501 = vmatprep.subr.bf16.mxu0 0
  %502 = vmatpush1.bf16.msra.mxu0 %v409
  %503 = vmatprep.subr.bf16.mxu0 0
  %504 = vmatpush1.bf16.msra.mxu0 %v410
  %505 = vmatprep.subr.bf16.mxu0 0
  %506 = vmatpush1.bf16.msra.mxu0 %v411
  %507 = vmatprep.subr.bf16.mxu0 0
  %508 = vmatpush1.bf16.msra.mxu0 %v412
  %509 = vmatprep.mubr.bf16.mxu0 %v198
  %510 = vmatmul.mubr.bf16.gmra.mrb[0].mxu0 %v197
  %v511 = vpop.f32.mrb[0].mxu0
  %v512 = vadd.f32 %v125, %v511
  %v513 = vpop.f32.mrb[0].mxu0
  %v514 = vpop.f32.mrb[0].mxu0
  %v515 = vadd.f32 %v126, %v514
  %v516 = vpop.f32.mrb[0].mxu0
  %517 = vmatprep.mubr.bf16.mxu0 %v203
  %518 = vmatmul.mubr.bf16.gmra.mrb[0].mxu0 %v202
  %v519 = vpop.f32.mrb[0].mxu0
  %v520 = vadd.f32 %v127, %v519
  %v521 = vpop.f32.mrb[0].mxu0
  %v522 = vpop.f32.mrb[0].mxu0
  %v523 = vadd.f32 %v128, %v522
  %v524 = vpop.f32.mrb[0].mxu0
  %525 = vmatprep.mubr.bf16.mxu0 %v208
  %526 = vmatmul.mubr.bf16.gmra.mrb[0].mxu0 %v207
  %v527 = vpop.f32.mrb[0].mxu0
  %v528 = vadd.f32 %v129, %v527
  %v529 = vpop.f32.mrb[0].mxu0
  %v530 = vpop.f32.mrb[0].mxu0
  %v531 = vadd.f32 %v130, %v530
  %v532 = vpop.f32.mrb[0].mxu0
  %533 = vmatprep.mubr.bf16.mxu0 %v213
  %534 = vmatmul.mubr.bf16.gmra.mrb[0].mxu0 %v212
  %v535 = vpop.f32.mrb[0].mxu0
  %v536 = vadd.f32 %v131, %v535
  %v537 = vpop.f32.mrb[0].mxu0
  %v538 = vpop.f32.mrb[0].mxu0
  %v539 = vadd.f32 %v132, %v538
  %v540 = vpop.f32.mrb[0].mxu0
  %541 = vdwg.mxu0
  %542 = vmatprep.subr.bf16.mxu0 0
  %543 = vmatpush1.bf16.msra.mxu0 %v413
  %544 = vmatprep.subr.bf16.mxu0 0
  %545 = vmatpush1.bf16.msra.mxu0 %v414
  %546 = vmatprep.subr.bf16.mxu0 0
  %547 = vmatpush1.bf16.msra.mxu0 %v415
  %548 = vmatprep.subr.bf16.mxu0 0
  %549 = vmatpush1.bf16.msra.mxu0 %v416
  %550 = vmatprep.subr.bf16.mxu0 0
  %551 = vmatpush1.bf16.msra.mxu0 %v417
  %552 = vmatprep.subr.bf16.mxu0 0
  %553 = vmatpush1.bf16.msra.mxu0 %v418
  %554 = vmatprep.subr.bf16.mxu0 0
  %555 = vmatpush1.bf16.msra.mxu0 %v419
  %556 = vmatprep.subr.bf16.mxu0 0
  %557 = vmatpush1.bf16.msra.mxu0 %v420
  %558 = vmatprep.subr.bf16.mxu0 0
  %559 = vmatpush1.bf16.msra.mxu0 %v421
  %560 = vmatprep.subr.bf16.mxu0 0
  %561 = vmatpush1.bf16.msra.mxu0 %v422
  %562 = vmatprep.subr.bf16.mxu0 0
  %563 = vmatpush1.bf16.msra.mxu0 %v423
  %564 = vmatprep.subr.bf16.mxu0 0
  %565 = vmatpush1.bf16.msra.mxu0 %v424
  %566 = vmatprep.subr.bf16.mxu0 0
  %567 = vmatpush1.bf16.msra.mxu0 %v425
  %568 = vmatprep.subr.bf16.mxu0 0
  %569 = vmatpush1.bf16.msra.mxu0 %v426
  %570 = vmatprep.subr.bf16.mxu0 0
  %571 = vmatpush1.bf16.msra.mxu0 %v427
  %572 = vmatprep.subr.bf16.mxu0 0
  %573 = vmatpush1.bf16.msra.mxu0 %v428
  %574 = vmatprep.mubr.bf16.mxu0 %v200
  %575 = vmatmul.mubr.bf16.gmra.mrb[0].mxu0 %v199
  %v576 = vpop.f32.mrb[0].mxu0
  %v577 = vadd.f32 %v512, %v576
  %v578 = vpop.f32.mrb[0].mxu0
  %v579 = vpop.f32.mrb[0].mxu0
  %v580 = vadd.f32 %v515, %v579
  %v581 = vpop.f32.mrb[0].mxu0
  %582 = vmatprep.mubr.bf16.mxu0 %v205
  %583 = vmatmul.mubr.bf16.gmra.mrb[0].mxu0 %v204
  %v584 = vpop.f32.mrb[0].mxu0
  %v585 = vadd.f32 %v520, %v584
  %v586 = vpop.f32.mrb[0].mxu0
  %v587 = vpop.f32.mrb[0].mxu0
  %v588 = vadd.f32 %v523, %v587
  %v589 = vpop.f32.mrb[0].mxu0
  %590 = vmatprep.mubr.bf16.mxu0 %v210
  %591 = vmatmul.mubr.bf16.gmra.mrb[0].mxu0 %v209
  %v592 = vpop.f32.mrb[0].mxu0
  %v593 = vadd.f32 %v528, %v592
  %v594 = vpop.f32.mrb[0].mxu0
  %v595 = vpop.f32.mrb[0].mxu0
  %v596 = vadd.f32 %v531, %v595
  %v597 = vpop.f32.mrb[0].mxu0
  %598 = vmatprep.mubr.bf16.mxu0 %v215
  %599 = vmatmul.mubr.bf16.gmra.mrb[0].mxu0 %v214
  %v600 = vpop.f32.mrb[0].mxu0
  %v601 = vadd.f32 %v536, %v600
  %v602 = vpop.f32.mrb[0].mxu0
  %v603 = vpop.f32.mrb[0].mxu0
  %v604 = vadd.f32 %v539, %v603
  %v605 = vpop.f32.mrb[0].mxu0
  %606 = vdwg.mxu0
  %607 = vmatprep.subr.bf16.mxu0 0
  %608 = vmatpush1.bf16.msra.mxu0 %v429
  %609 = vmatprep.subr.bf16.mxu0 0
  %610 = vmatpush1.bf16.msra.mxu0 %v430
  %611 = vmatprep.subr.bf16.mxu0 0
  %612 = vmatpush1.bf16.msra.mxu0 %v431
  %613 = vmatprep.subr.bf16.mxu0 0
  %614 = vmatpush1.bf16.msra.mxu0 %v432
  %615 = vmatprep.subr.bf16.mxu0 0
  %616 = vmatpush1.bf16.msra.mxu0 %v433
  %617 = vmatprep.subr.bf16.mxu0 0
  %618 = vmatpush1.bf16.msra.mxu0 %v434
  %619 = vmatprep.subr.bf16.mxu0 0
  %620 = vmatpush1.bf16.msra.mxu0 %v435
  %621 = vmatprep.subr.bf16.mxu0 0
  %622 = vmatpush1.bf16.msra.mxu0 %v436
  %623 = vmatprep.subr.bf16.mxu0 0
  %624 = vmatpush1.bf16.msra.mxu0 0
  %625 = vmatprep.subr.bf16.mxu0 0
  %626 = vmatpush1.bf16.msra.mxu0 0
  %627 = vmatprep.subr.bf16.mxu0 0
  %628 = vmatpush1.bf16.msra.mxu0 0
  %629 = vmatprep.subr.bf16.mxu0 0
  %630 = vmatpush1.bf16.msra.mxu0 0
  %631 = vmatprep.subr.bf16.mxu0 0
  %632 = vmatpush1.bf16.msra.mxu0 0
  %633 = vmatprep.subr.bf16.mxu0 0
  %634 = vmatpush1.bf16.msra.mxu0 0
  %635 = vmatprep.subr.bf16.mxu0 0
  %636 = vmatpush1.bf16.msra.mxu0 0
  %637 = vmatprep.subr.bf16.mxu0 0
  %638 = vmatpush1.bf16.msra.mxu0 0
  %639 = vmatprep.mubr.bf16.mxu0 0
  %640 = vmatmul.mubr.bf16.gmra.mrb[0].mxu0 %v201
  %v641 = vpop.f32.mrb[0].mxu0
  %v642 = vadd.f32 %v577, %v641
  %v643 = vpop.f32.mrb[0].mxu0
  %v644 = vpop.f32.mrb[0].mxu0
  %v645 = vadd.f32 %v580, %v644
  %v646 = vpop.f32.mrb[0].mxu0
  %647 = vmatprep.mubr.bf16.mxu0 0
  %648 = vmatmul.mubr.bf16.gmra.mrb[0].mxu0 %v206
  %v649 = vpop.f32.mrb[0].mxu0
  %v650 = vadd.f32 %v585, %v649
  %v651 = vpop.f32.mrb[0].mxu0
  %v652 = vpop.f32.mrb[0].mxu0
  %v653 = vadd.f32 %v588, %v652
  %v654 = vpop.f32.mrb[0].mxu0
  %655 = vmatprep.mubr.bf16.mxu0 0
  %656 = vmatmul.mubr.bf16.gmra.mrb[0].mxu0 %v211
  %v657 = vpop.f32.mrb[0].mxu0
  %v658 = vadd.f32 %v593, %v657
  %v659 = vpop.f32.mrb[0].mxu0
  %v660 = vpop.f32.mrb[0].mxu0
  %v661 = vadd.f32 %v596, %v660
  %v662 = vpop.f32.mrb[0].mxu0
  %663 = vmatprep.mubr.bf16.mxu0 0
  %664 = vmatmul.mubr.bf16.gmra.mrb[0].mxu0 %v216
  %v665 = vpop.f32.mrb[0].mxu0
  %v666 = vadd.f32 %v601, %v665
  %v667 = vpop.f32.mrb[0].mxu0
  %v668 = vpop.f32.mrb[0].mxu0
  %v669 = vadd.f32 %v604, %v668
  %v670 = vpop.f32.mrb[0].mxu0
  %671 = vdwg.mxu0
  %v672 = vld [vmem:[%s3] sm:$0x1]
  %v674 = vlaneseq
  %v675 = vshrl.u32 %v674, 7
  %v676 = vsub.s32 0, %v675
  %v677 = vrot.slane %v672, %v676
  %v679 = vmul.f32 %v642, %v677
  %v680 = vmul.f32 %v645, %v677
  %v681 = vmul.f32 %v650, %v677
  %v682 = vmul.f32 %v653, %v677
  %v683 = vmul.f32 %v658, %v677
  %v684 = vmul.f32 %v661, %v677
  %v685 = vmul.f32 %v666, %v677
  %v686 = vmul.f32 %v669, %v677
  %v687 = vld [vmem:[%s4] sm:$0x1]
  %v689 = vlaneseq
  %v690 = vshrl.u32 %v689, 7
  %v691 = vsub.s32 0, %v690
  %v692 = vrot.slane %v687, %v691
  %v694 = vadd.f32 %v679, %v692
  %v695 = vadd.f32 %v680, %v692
  %v696 = vadd.f32 %v681, %v692
  %v697 = vadd.f32 %v682, %v692
  %v698 = vadd.f32 %v683, %v692
  %v699 = vadd.f32 %v684, %v692
  %v700 = vadd.f32 %v685, %v692
  %v701 = vadd.f32 %v686, %v692
  %v702 = vmax.f32 %v694, 0.0
  %v703 = vmax.f32 %v695, 0.0
  %v704 = vmax.f32 %v696, 0.0
  %v705 = vmax.f32 %v697, 0.0
  %v706 = vmax.f32 %v698, 0.0
  %v707 = vmax.f32 %v699, 0.0
  %v708 = vmax.f32 %v700, 0.0
  %v709 = vmax.f32 %v701, 0.0
  %vm710 = vcmask 523264
  %711 = vst.msk [vmem:[%s5] sm:$0xff] %vm710, %v702
  %712 = vst.msk [vmem:[%s5 + $0x8] sm:$0xff] %vm710, %v703
  %713 = vst.msk [vmem:[%s5 + $0x10] sm:$0xff] %vm710, %v704
  %714 = vst.msk [vmem:[%s5 + $0x18] sm:$0xff] %vm710, %v705
  %715 = vst.msk [vmem:[%s5 + $0x20] sm:$0xff] %vm710, %v706
  %716 = vst.msk [vmem:[%s5 + $0x28] sm:$0xff] %vm710, %v707
  %717 = vst.msk [vmem:[%s5 + $0x30] sm:$0xff] %vm710, %v708
  %718 = vst.msk [vmem:[%s5 + $0x38] sm:$0xff] %vm710, %v709
  // Predicated region
  $region22: #{dronet_forward.11} parent=0 // pred_check
    _
  $region23: #{dronet_forward.11} parent=0 // pred_check_branch
    %720 = sbr.rel (0) target = $region25
  $region24: #{dronet_forward.11} parent=0 // pred_region
    _
  $region25: #{dronet_forward.11} parent=0 // pred_fallthru
    _
  // Predicated region
  $region26: #{dronet_forward.11} parent=0 // pred_check
    _
  $region27: #{dronet_forward.11} parent=0 // pred_check_branch
    %722 = sbr.rel (0) target = $region29
  $region28: #{dronet_forward.11} parent=0 // pred_region
    _
  $region29: #{dronet_forward.11} parent=0 // pred_fallthru
    _

// kernel: dronet_forward.12
$region0: #{dronet_forward.12}
  #allocation0 [shape = 'u32[]', space=smem, size = 0x4, offset = 0x4, fixed_abs, tag = 'smem constant byte address 0x4 - core index']
  #allocation1 [shape = 'u32[144,128]{1,0:T(1,128)}', space=vmem, size = 0x12000, scoped, tag = 'internal scratch']
  %s0 = inlined_call_operand.vmem [shape: bf16[16,640], index: 0, kind: input, shape index: {}]
  %s1 = inlined_call_operand.vmem [shape: bf16[640,128], index: 1, kind: input, shape index: {}]
  %s2 = inlined_call_operand.vmem [shape: bf16[128,128], index: 2, kind: input, shape index: {}]
  %s3 = inlined_call_operand.vmem [shape: f32[1,128], index: 3, kind: input, shape index: {}]
  %s4 = inlined_call_operand.vmem [shape: f32[1,128], index: 4, kind: input, shape index: {}]
  %s5 = inlined_call_operand.vmem [shape: f32[16,128], index: 5, kind: output, shape index: {0}]
  %s6 = inlined_call_operand.vmem [shape: f32[16,128], index: 6, kind: output, shape index: {1}]
  %7 = xla_tuple %s5, %s6
  %s8 = sld [smem:[#allocation0]]
  $region38: #{dronet_forward.12} parent=0
    _
  %s10 = ssub.s32 1, %s8
  %s11 = scalar_select 0, %s10, %s8
  // Predicated region
  $region2: #{dronet_forward.12} parent=0 // pred_check
    _
  $region3: #{dronet_forward.12} parent=0 // pred_check_branch
    %13 = sbr.rel (0) target = $region5
  $region4: #{dronet_forward.12} parent=0 // pred_region
    _
  $region5: #{dronet_forward.12} parent=0 // pred_fallthru
    _
  // Predicated region
  $region6: #{dronet_forward.12} parent=0 // pred_check
    _
  $region7: #{dronet_forward.12} parent=0 // pred_check_branch
    %15 = sbr.rel (0) target = $region9
  $region8: #{dronet_forward.12} parent=0 // pred_region
    _
  $region9: #{dronet_forward.12} parent=0 // pred_fallthru
    _
  // Predicated region
  $region10: #{dronet_forward.12} parent=0 // pred_check
    _
  $region11: #{dronet_forward.12} parent=0 // pred_check_branch
    %17 = sbr.rel (0) target = $region13
  $region12: #{dronet_forward.12} parent=0 // pred_region
    _
  $region13: #{dronet_forward.12} parent=0 // pred_fallthru
    _
  // Predicated region
  $region14: #{dronet_forward.12} parent=0 // pred_check
    _
  $region15: #{dronet_forward.12} parent=0 // pred_check_branch
    %19 = sbr.rel (0) target = $region17
  $region16: #{dronet_forward.12} parent=0 // pred_region
    _
  $region17: #{dronet_forward.12} parent=0 // pred_fallthru
    _
  // Predicated region
  $region18: #{dronet_forward.12} parent=0 // pred_check
    _
  $region19: #{dronet_forward.12} parent=0 // pred_check_branch
    %21 = sbr.rel (0) target = $region21
  $region20: #{dronet_forward.12} parent=0 // pred_region
    _
  $region21: #{dronet_forward.12} parent=0 // pred_fallthru
    _
  %v23 = vld [vmem:[%s0] sm:$0xff]
  %v24 = vld [vmem:[%s0 + $0x8] sm:$0xff]
  %v25 = vld [vmem:[%s0 + $0x10] sm:$0xf]
  %v26 = vld [vmem:[%s0 + $0x14] sm:$0xff]
  %v27 = vld [vmem:[%s0 + $0x1c] sm:$0xff]
  %v28 = vld [vmem:[%s0 + $0x24] sm:$0xf]
  %v29 = vld [vmem:[%s1] sm:$0xf]
  %v30 = vld [vmem:[%s1 + $0x4] sm:$0xf]
  %v31 = vld [vmem:[%s1 + $0x8] sm:$0xf]
  %v32 = vld [vmem:[%s1 + $0xc] sm:$0xf]
  %v33 = vld [vmem:[%s1 + $0x10] sm:$0xf]
  %v34 = vld [vmem:[%s1 + $0x14] sm:$0xf]
  %v35 = vld [vmem:[%s1 + $0x18] sm:$0xf]
  %v36 = vld [vmem:[%s1 + $0x1c] sm:$0xf]
  %v37 = vld [vmem:[%s1 + $0x20] sm:$0xf]
  %v38 = vld [vmem:[%s1 + $0x24] sm:$0xf]
  %v39 = vld [vmem:[%s1 + $0x28] sm:$0xf]
  %v40 = vld [vmem:[%s1 + $0x2c] sm:$0xf]
  %v41 = vld [vmem:[%s1 + $0x30] sm:$0xf]
  %v42 = vld [vmem:[%s1 + $0x34] sm:$0xf]
  %v43 = vld [vmem:[%s1 + $0x38] sm:$0xf]
  %v44 = vld [vmem:[%s1 + $0x3c] sm:$0xf]
  %v45 = vld [vmem:[%s1 + $0x40] sm:$0xf]
  %v46 = vld [vmem:[%s1 + $0x44] sm:$0xf]
  %v47 = vld [vmem:[%s1 + $0x48] sm:$0xf]
  %v48 = vld [vmem:[%s1 + $0x4c] sm:$0xf]
  %v49 = vld [vmem:[%s1 + $0x50] sm:$0xf]
  %v50 = vld [vmem:[%s1 + $0x54] sm:$0xf]
  %v51 = vld [vmem:[%s1 + $0x58] sm:$0xf]
  %v52 = vld [vmem:[%s1 + $0x5c] sm:$0xf]
  %v53 = vld [vmem:[%s1 + $0x60] sm:$0xf]
  %v54 = vld [vmem:[%s1 + $0x64] sm:$0xf]
  %v55 = vld [vmem:[%s1 + $0x68] sm:$0xf]
  %v56 = vld [vmem:[%s1 + $0x6c] sm:$0xf]
  %v57 = vld [vmem:[%s1 + $0x70] sm:$0xf]
  %v58 = vld [vmem:[%s1 + $0x74] sm:$0xf]
  %v59 = vld [vmem:[%s1 + $0x78] sm:$0xf]
  %v60 = vld [vmem:[%s1 + $0x7c] sm:$0xf]
  %v61 = vld [vmem:[%s1 + $0x80] sm:$0xf]
  %v62 = vld [vmem:[%s1 + $0x84] sm:$0xf]
  %v63 = vld [vmem:[%s1 + $0x88] sm:$0xf]
  %v64 = vld [vmem:[%s1 + $0x8c] sm:$0xf]
  %v65 = vld [vmem:[%s1 + $0x90] sm:$0xf]
  %v66 = vld [vmem:[%s1 + $0x94] sm:$0xf]
  %v67 = vld [vmem:[%s1 + $0x98] sm:$0xf]
  %v68 = vld [vmem:[%s1 + $0x9c] sm:$0xf]
  %v69 = vld [vmem:[%s1 + $0xa0] sm:$0xf]
  %v70 = vld [vmem:[%s1 + $0xa4] sm:$0xf]
  %v71 = vld [vmem:[%s1 + $0xa8] sm:$0xf]
  %v72 = vld [vmem:[%s1 + $0xac] sm:$0xf]
  %v73 = vld [vmem:[%s1 + $0xb0] sm:$0xf]
  %v74 = vld [vmem:[%s1 + $0xb4] sm:$0xf]
  %v75 = vld [vmem:[%s1 + $0xb8] sm:$0xf]
  %v76 = vld [vmem:[%s1 + $0xbc] sm:$0xf]
  %v77 = vld [vmem:[%s1 + $0xc0] sm:$0xf]
  %v78 = vld [vmem:[%s1 + $0xc4] sm:$0xf]
  %v79 = vld [vmem:[%s1 + $0xc8] sm:$0xf]
  %v80 = vld [vmem:[%s1 + $0xcc] sm:$0xf]
  %v81 = vld [vmem:[%s1 + $0xd0] sm:$0xf]
  %v82 = vld [vmem:[%s1 + $0xd4] sm:$0xf]
  %v83 = vld [vmem:[%s1 + $0xd8] sm:$0xf]
  %v84 = vld [vmem:[%s1 + $0xdc] sm:$0xf]
  %v85 = vld [vmem:[%s1 + $0xe0] sm:$0xf]
  %v86 = vld [vmem:[%s1 + $0xe4] sm:$0xf]
  %v87 = vld [vmem:[%s1 + $0xe8] sm:$0xf]
  %v88 = vld [vmem:[%s1 + $0xec] sm:$0xf]
  %v89 = vld [vmem:[%s1 + $0xf0] sm:$0xf]
  %v90 = vld [vmem:[%s1 + $0xf4] sm:$0xf]
  %v91 = vld [vmem:[%s1 + $0xf8] sm:$0xf]
  %v92 = vld [vmem:[%s1 + $0xfc] sm:$0xf]
  %v93 = vld [vmem:[%s1 + $0x100] sm:$0xf]
  %v94 = vld [vmem:[%s1 + $0x104] sm:$0xf]
  %v95 = vld [vmem:[%s1 + $0x108] sm:$0xf]
  %v96 = vld [vmem:[%s1 + $0x10c] sm:$0xf]
  %v97 = vld [vmem:[%s1 + $0x110] sm:$0xf]
  %v98 = vld [vmem:[%s1 + $0x114] sm:$0xf]
  %v99 = vld [vmem:[%s1 + $0x118] sm:$0xf]
  %v100 = vld [vmem:[%s1 + $0x11c] sm:$0xf]
  %v101 = vld [vmem:[%s1 + $0x120] sm:$0xf]
  %v102 = vld [vmem:[%s1 + $0x124] sm:$0xf]
  %v103 = vld [vmem:[%s1 + $0x128] sm:$0xf]
  %v104 = vld [vmem:[%s1 + $0x12c] sm:$0xf]
  %v105 = vld [vmem:[%s1 + $0x130] sm:$0xf]
  %v106 = vld [vmem:[%s1 + $0x134] sm:$0xf]
  %v107 = vld [vmem:[%s1 + $0x138] sm:$0xf]
  %v108 = vld [vmem:[%s1 + $0x13c] sm:$0xf]
  %v115 = vunpack.c.l.b16 %v23
  %v116 = vunpack.c.h.b16 %v23
  %v117 = vunpack.c.l.b16 %v24
  %v118 = vunpack.c.h.b16 %v24
  %v119 = vunpack.c.l.b16 %v25
  %v120 = vunpack.c.l.b16 %v26
  %v121 = vunpack.c.h.b16 %v26
  %v122 = vunpack.c.l.b16 %v27
  %v123 = vunpack.c.h.b16 %v27
  %v124 = vunpack.c.l.b16 %v28
  %v125 = vpack.c.b16 %v120, %v115
  %v126 = vpack.c.b16 %v121, %v116
  %v127 = vpack.c.b16 %v122, %v117
  %v128 = vpack.c.b16 %v123, %v118
  %v129 = vpack.c.b16 %v124, %v119
  %v215 = vunpack.c.l.b16 %v29
  %v216 = vunpack.c.l.b16 %v30
  %v217 = vunpack.c.l.b16 %v31
  %v218 = vunpack.c.l.b16 %v32
  %v219 = vunpack.c.l.b16 %v33
  %v220 = vunpack.c.l.b16 %v34
  %v221 = vunpack.c.l.b16 %v35
  %v222 = vunpack.c.l.b16 %v36
  %v223 = vunpack.c.l.b16 %v37
  %v224 = vunpack.c.l.b16 %v38
  %v225 = vunpack.c.l.b16 %v39
  %v226 = vunpack.c.l.b16 %v40
  %v227 = vunpack.c.l.b16 %v41
  %v228 = vunpack.c.l.b16 %v42
  %v229 = vunpack.c.l.b16 %v43
  %v230 = vunpack.c.l.b16 %v44
  %v231 = vunpack.c.l.b16 %v45
  %v232 = vunpack.c.l.b16 %v46
  %v233 = vunpack.c.l.b16 %v47
  %v234 = vunpack.c.l.b16 %v48
  %v235 = vunpack.c.l.b16 %v49
  %v236 = vunpack.c.l.b16 %v50
  %v237 = vunpack.c.l.b16 %v51
  %v238 = vunpack.c.l.b16 %v52
  %v239 = vunpack.c.l.b16 %v53
  %v240 = vunpack.c.l.b16 %v54
  %v241 = vunpack.c.l.b16 %v55
  %v242 = vunpack.c.l.b16 %v56
  %v243 = vunpack.c.l.b16 %v57
  %v244 = vunpack.c.l.b16 %v58
  %v245 = vunpack.c.l.b16 %v59
  %v246 = vunpack.c.l.b16 %v60
  %v247 = vunpack.c.l.b16 %v61
  %v248 = vunpack.c.l.b16 %v62
  %v249 = vunpack.c.l.b16 %v63
  %v250 = vunpack.c.l.b16 %v64
  %v251 = vunpack.c.l.b16 %v65
  %v252 = vunpack.c.l.b16 %v66
  %v253 = vunpack.c.l.b16 %v67
  %v254 = vunpack.c.l.b16 %v68
  %v255 = vunpack.c.l.b16 %v69
  %v256 = vunpack.c.l.b16 %v70
  %v257 = vunpack.c.l.b16 %v71
  %v258 = vunpack.c.l.b16 %v72
  %v259 = vunpack.c.l.b16 %v73
  %v260 = vunpack.c.l.b16 %v74
  %v261 = vunpack.c.l.b16 %v75
  %v262 = vunpack.c.l.b16 %v76
  %v263 = vunpack.c.l.b16 %v77
  %v264 = vunpack.c.l.b16 %v78
  %v265 = vunpack.c.l.b16 %v79
  %v266 = vunpack.c.l.b16 %v80
  %v267 = vunpack.c.l.b16 %v81
  %v268 = vunpack.c.l.b16 %v82
  %v269 = vunpack.c.l.b16 %v83
  %v270 = vunpack.c.l.b16 %v84
  %v271 = vunpack.c.l.b16 %v85
  %v272 = vunpack.c.l.b16 %v86
  %v273 = vunpack.c.l.b16 %v87
  %v274 = vunpack.c.l.b16 %v88
  %v275 = vunpack.c.l.b16 %v89
  %v276 = vunpack.c.l.b16 %v90
  %v277 = vunpack.c.l.b16 %v91
  %v278 = vunpack.c.l.b16 %v92
  %v279 = vunpack.c.l.b16 %v93
  %v280 = vunpack.c.l.b16 %v94
  %v281 = vunpack.c.l.b16 %v95
  %v282 = vunpack.c.l.b16 %v96
  %v283 = vunpack.c.l.b16 %v97
  %v284 = vunpack.c.l.b16 %v98
  %v285 = vunpack.c.l.b16 %v99
  %v286 = vunpack.c.l.b16 %v100
  %v287 = vunpack.c.l.b16 %v101
  %v288 = vunpack.c.l.b16 %v102
  %v289 = vunpack.c.l.b16 %v103
  %v290 = vunpack.c.l.b16 %v104
  %v291 = vunpack.c.l.b16 %v105
  %v292 = vunpack.c.l.b16 %v106
  %v293 = vunpack.c.l.b16 %v107
  %v294 = vunpack.c.l.b16 %v108
  %v295 = vpack.c.b16 %v216, %v215
  %v296 = vpack.c.b16 %v218, %v217
  %v297 = vpack.c.b16 %v220, %v219
  %v298 = vpack.c.b16 %v222, %v221
  %v299 = vpack.c.b16 %v224, %v223
  %v300 = vpack.c.b16 %v226, %v225
  %v301 = vpack.c.b16 %v228, %v227
  %v302 = vpack.c.b16 %v230, %v229
  %v303 = vpack.c.b16 %v232, %v231
  %v304 = vpack.c.b16 %v234, %v233
  %v305 = vpack.c.b16 %v236, %v235
  %v306 = vpack.c.b16 %v238, %v237
  %v307 = vpack.c.b16 %v240, %v239
  %v308 = vpack.c.b16 %v242, %v241
  %v309 = vpack.c.b16 %v244, %v243
  %v310 = vpack.c.b16 %v246, %v245
  %v311 = vpack.c.b16 %v248, %v247
  %v312 = vpack.c.b16 %v250, %v249
  %v313 = vpack.c.b16 %v252, %v251
  %v314 = vpack.c.b16 %v254, %v253
  %v315 = vpack.c.b16 %v256, %v255
  %v316 = vpack.c.b16 %v258, %v257
  %v317 = vpack.c.b16 %v260, %v259
  %v318 = vpack.c.b16 %v262, %v261
  %v319 = vpack.c.b16 %v264, %v263
  %v320 = vpack.c.b16 %v266, %v265
  %v321 = vpack.c.b16 %v268, %v267
  %v322 = vpack.c.b16 %v270, %v269
  %v323 = vpack.c.b16 %v272, %v271
  %v324 = vpack.c.b16 %v274, %v273
  %v325 = vpack.c.b16 %v276, %v275
  %v326 = vpack.c.b16 %v278, %v277
  %v327 = vpack.c.b16 %v280, %v279
  %v328 = vpack.c.b16 %v282, %v281
  %v329 = vpack.c.b16 %v284, %v283
  %v330 = vpack.c.b16 %v286, %v285
  %v331 = vpack.c.b16 %v288, %v287
  %v332 = vpack.c.b16 %v290, %v289
  %v333 = vpack.c.b16 %v292, %v291
  %v334 = vpack.c.b16 %v294, %v293
  %375 = vmatprep.subr.bf16.mxu0 0
  %376 = vmatpush1.bf16.msra.mxu0 %v295
  %377 = vmatprep.subr.bf16.mxu0 0
  %378 = vmatpush1.bf16.msra.mxu0 %v296
  %379 = vmatprep.subr.bf16.mxu0 0
  %380 = vmatpush1.bf16.msra.mxu0 %v297
  %381 = vmatprep.subr.bf16.mxu0 0
  %382 = vmatpush1.bf16.msra.mxu0 %v298
  %383 = vmatprep.subr.bf16.mxu0 0
  %384 = vmatpush1.bf16.msra.mxu0 %v299
  %385 = vmatprep.subr.bf16.mxu0 0
  %386 = vmatpush1.bf16.msra.mxu0 %v300
  %387 = vmatprep.subr.bf16.mxu0 0
  %388 = vmatpush1.bf16.msra.mxu0 %v301
  %389 = vmatprep.subr.bf16.mxu0 0
  %390 = vmatpush1.bf16.msra.mxu0 %v302
  %391 = vmatprep.subr.bf16.mxu0 0
  %392 = vmatpush1.bf16.msra.mxu0 %v303
  %393 = vmatprep.subr.bf16.mxu0 0
  %394 = vmatpush1.bf16.msra.mxu0 %v304
  %395 = vmatprep.subr.bf16.mxu0 0
  %396 = vmatpush1.bf16.msra.mxu0 %v305
  %397 = vmatprep.subr.bf16.mxu0 0
  %398 = vmatpush1.bf16.msra.mxu0 %v306
  %399 = vmatprep.subr.bf16.mxu0 0
  %400 = vmatpush1.bf16.msra.mxu0 %v307
  %401 = vmatprep.subr.bf16.mxu0 0
  %402 = vmatpush1.bf16.msra.mxu0 %v308
  %403 = vmatprep.subr.bf16.mxu0 0
  %404 = vmatpush1.bf16.msra.mxu0 %v309
  %405 = vmatprep.subr.bf16.mxu0 0
  %406 = vmatpush1.bf16.msra.mxu0 %v310
  %407 = vmatprep.mubr.bf16.mxu0 %v126
  %408 = vmatmul.mubr.bf16.gmra.mrb[0].mxu0 %v125
  %v409 = vpop.f32.mrb[0].mxu0
  %v410 = vadd.f32 0.0, %v409
  %v411 = vpop.f32.mrb[0].mxu0
  %v412 = vpop.f32.mrb[0].mxu0
  %v413 = vadd.f32 0.0, %v412
  %v414 = vpop.f32.mrb[0].mxu0
  %415 = vdwg.mxu0
  %416 = vmatprep.subr.bf16.mxu0 0
  %417 = vmatpush1.bf16.msra.mxu0 %v311
  %418 = vmatprep.subr.bf16.mxu0 0
  %419 = vmatpush1.bf16.msra.mxu0 %v312
  %420 = vmatprep.subr.bf16.mxu0 0
  %421 = vmatpush1.bf16.msra.mxu0 %v313
  %422 = vmatprep.subr.bf16.mxu0 0
  %423 = vmatpush1.bf16.msra.mxu0 %v314
  %424 = vmatprep.subr.bf16.mxu0 0
  %425 = vmatpush1.bf16.msra.mxu0 %v315
  %426 = vmatprep.subr.bf16.mxu0 0
  %427 = vmatpush1.bf16.msra.mxu0 %v316
  %428 = vmatprep.subr.bf16.mxu0 0
  %429 = vmatpush1.bf16.msra.mxu0 %v317
  %430 = vmatprep.subr.bf16.mxu0 0
  %431 = vmatpush1.bf16.msra.mxu0 %v318
  %432 = vmatprep.subr.bf16.mxu0 0
  %433 = vmatpush1.bf16.msra.mxu0 %v319
  %434 = vmatprep.subr.bf16.mxu0 0
  %435 = vmatpush1.bf16.msra.mxu0 %v320
  %436 = vmatprep.subr.bf16.mxu0 0
  %437 = vmatpush1.bf16.msra.mxu0 %v321
  %438 = vmatprep.subr.bf16.mxu0 0
  %439 = vmatpush1.bf16.msra.mxu0 %v322
  %440 = vmatprep.subr.bf16.mxu0 0
  %441 = vmatpush1.bf16.msra.mxu0 %v323
  %442 = vmatprep.subr.bf16.mxu0 0
  %443 = vmatpush1.bf16.msra.mxu0 %v324
  %444 = vmatprep.subr.bf16.mxu0 0
  %445 = vmatpush1.bf16.msra.mxu0 %v325
  %446 = vmatprep.subr.bf16.mxu0 0
  %447 = vmatpush1.bf16.msra.mxu0 %v326
  %448 = vmatprep.mubr.bf16.mxu0 %v128
  %449 = vmatmul.mubr.bf16.gmra.mrb[0].mxu0 %v127
  %v450 = vpop.f32.mrb[0].mxu0
  %v451 = vadd.f32 %v410, %v450
  %v452 = vpop.f32.mrb[0].mxu0
  %v453 = vpop.f32.mrb[0].mxu0
  %v454 = vadd.f32 %v413, %v453
  %v455 = vpop.f32.mrb[0].mxu0
  %456 = vdwg.mxu0
  %457 = vmatprep.subr.bf16.mxu0 0
  %458 = vmatpush1.bf16.msra.mxu0 %v327
  %459 = vmatprep.subr.bf16.mxu0 0
  %460 = vmatpush1.bf16.msra.mxu0 %v328
  %461 = vmatprep.subr.bf16.mxu0 0
  %462 = vmatpush1.bf16.msra.mxu0 %v329
  %463 = vmatprep.subr.bf16.mxu0 0
  %464 = vmatpush1.bf16.msra.mxu0 %v330
  %465 = vmatprep.subr.bf16.mxu0 0
  %466 = vmatpush1.bf16.msra.mxu0 %v331
  %467 = vmatprep.subr.bf16.mxu0 0
  %468 = vmatpush1.bf16.msra.mxu0 %v332
  %469 = vmatprep.subr.bf16.mxu0 0
  %470 = vmatpush1.bf16.msra.mxu0 %v333
  %471 = vmatprep.subr.bf16.mxu0 0
  %472 = vmatpush1.bf16.msra.mxu0 %v334
  %473 = vmatprep.subr.bf16.mxu0 0
  %474 = vmatpush1.bf16.msra.mxu0 0
  %475 = vmatprep.subr.bf16.mxu0 0
  %476 = vmatpush1.bf16.msra.mxu0 0
  %477 = vmatprep.subr.bf16.mxu0 0
  %478 = vmatpush1.bf16.msra.mxu0 0
  %479 = vmatprep.subr.bf16.mxu0 0
  %480 = vmatpush1.bf16.msra.mxu0 0
  %481 = vmatprep.subr.bf16.mxu0 0
  %482 = vmatpush1.bf16.msra.mxu0 0
  %483 = vmatprep.subr.bf16.mxu0 0
  %484 = vmatpush1.bf16.msra.mxu0 0
  %485 = vmatprep.subr.bf16.mxu0 0
  %486 = vmatpush1.bf16.msra.mxu0 0
  %487 = vmatprep.subr.bf16.mxu0 0
  %488 = vmatpush1.bf16.msra.mxu0 0
  %489 = vmatprep.mubr.bf16.mxu0 0
  %490 = vmatmul.mubr.bf16.gmra.mrb[0].mxu0 %v129
  %v491 = vpop.f32.mrb[0].mxu0
  %v492 = vadd.f32 %v451, %v491
  %v493 = vpop.f32.mrb[0].mxu0
  %v494 = vpop.f32.mrb[0].mxu0
  %v495 = vadd.f32 %v454, %v494
  %v496 = vpop.f32.mrb[0].mxu0
  %497 = vdwg.mxu0
  %v498 = vld [vmem:[%s3] sm:$0x1]
  %v500 = vlaneseq
  %v501 = vshrl.u32 %v500, 7
  %v502 = vsub.s32 0, %v501
  %v503 = vrot.slane %v498, %v502
  %v505 = vmul.f32 %v492, %v503
  %v506 = vmul.f32 %v495, %v503
  %v507 = vld [vmem:[%s4] sm:$0x1]
  %v509 = vlaneseq
  %v510 = vshrl.u32 %v509, 7
  %v511 = vsub.s32 0, %v510
  %v512 = vrot.slane %v507, %v511
  %v514 = vadd.f32 %v505, %v512
  %v515 = vadd.f32 %v506, %v512
  %v516 = vmax.f32 %v514, 0.0
  %v517 = vmax.f32 %v515, 0.0
  %518 = vst [vmem:[%s5] sm:$0xff] %v516
  %519 = vst [vmem:[%s5 + $0x8] sm:$0xff] %v517
  %v520 = vld [vmem:[%s2] sm:$0xf]
  %v521 = vld [vmem:[%s2 + $0x4] sm:$0xf]
  %v522 = vld [vmem:[%s2 + $0x8] sm:$0xf]
  %v523 = vld [vmem:[%s2 + $0xc] sm:$0xf]
  %v524 = vld [vmem:[%s2 + $0x10] sm:$0xf]
  %v525 = vld [vmem:[%s2 + $0x14] sm:$0xf]
  %v526 = vld [vmem:[%s2 + $0x18] sm:$0xf]
  %v527 = vld [vmem:[%s2 + $0x1c] sm:$0xf]
  %v528 = vld [vmem:[%s2 + $0x20] sm:$0xf]
  %v529 = vld [vmem:[%s2 + $0x24] sm:$0xf]
  %v530 = vld [vmem:[%s2 + $0x28] sm:$0xf]
  %v531 = vld [vmem:[%s2 + $0x2c] sm:$0xf]
  %v532 = vld [vmem:[%s2 + $0x30] sm:$0xf]
  %v533 = vld [vmem:[%s2 + $0x34] sm:$0xf]
  %v534 = vld [vmem:[%s2 + $0x38] sm:$0xf]
  %v535 = vld [vmem:[%s2 + $0x3c] sm:$0xf]
  %v552 = vunpack.c.l.b16 %v520
  %v553 = vunpack.c.l.b16 %v521
  %v554 = vunpack.c.l.b16 %v522
  %v555 = vunpack.c.l.b16 %v523
  %v556 = vunpack.c.l.b16 %v524
  %v557 = vunpack.c.l.b16 %v525
  %v558 = vunpack.c.l.b16 %v526
  %v559 = vunpack.c.l.b16 %v527
  %v560 = vunpack.c.l.b16 %v528
  %v561 = vunpack.c.l.b16 %v529
  %v562 = vunpack.c.l.b16 %v530
  %v563 = vunpack.c.l.b16 %v531
  %v564 = vunpack.c.l.b16 %v532
  %v565 = vunpack.c.l.b16 %v533
  %v566 = vunpack.c.l.b16 %v534
  %v567 = vunpack.c.l.b16 %v535
  %v568 = vpack.c.b16 %v553, %v552
  %v569 = vpack.c.b16 %v555, %v554
  %v570 = vpack.c.b16 %v557, %v556
  %v571 = vpack.c.b16 %v559, %v558
  %v572 = vpack.c.b16 %v561, %v560
  %v573 = vpack.c.b16 %v563, %v562
  %v574 = vpack.c.b16 %v565, %v564
  %v575 = vpack.c.b16 %v567, %v566
  %584 = vmatprep.subr.bf16.mxu0 0
  %585 = vmatpush1.bf16.msra.mxu0 %v568
  %586 = vmatprep.subr.bf16.mxu0 0
  %587 = vmatpush1.bf16.msra.mxu0 %v569
  %588 = vmatprep.subr.bf16.mxu0 0
  %589 = vmatpush1.bf16.msra.mxu0 %v570
  %590 = vmatprep.subr.bf16.mxu0 0
  %591 = vmatpush1.bf16.msra.mxu0 %v571
  %592 = vmatprep.subr.bf16.mxu0 0
  %593 = vmatpush1.bf16.msra.mxu0 %v572
  %594 = vmatprep.subr.bf16.mxu0 0
  %595 = vmatpush1.bf16.msra.mxu0 %v573
  %596 = vmatprep.subr.bf16.mxu0 0
  %597 = vmatpush1.bf16.msra.mxu0 %v574
  %598 = vmatprep.subr.bf16.mxu0 0
  %599 = vmatpush1.bf16.msra.mxu0 %v575
  %600 = vmatprep.subr.bf16.mxu0 0
  %601 = vmatpush1.bf16.msra.mxu0 0
  %602 = vmatprep.subr.bf16.mxu0 0
  %603 = vmatpush1.bf16.msra.mxu0 0
  %604 = vmatprep.subr.bf16.mxu0 0
  %605 = vmatpush1.bf16.msra.mxu0 0
  %606 = vmatprep.subr.bf16.mxu0 0
  %607 = vmatpush1.bf16.msra.mxu0 0
  %608 = vmatprep.subr.bf16.mxu0 0
  %609 = vmatpush1.bf16.msra.mxu0 0
  %610 = vmatprep.subr.bf16.mxu0 0
  %611 = vmatpush1.bf16.msra.mxu0 0
  %612 = vmatprep.subr.bf16.mxu0 0
  %613 = vmatpush1.bf16.msra.mxu0 0
  %614 = vmatprep.subr.bf16.mxu0 0
  %615 = vmatpush1.bf16.msra.mxu0 0
  %616 = vmatprep.mubr.bf16.mxu0 0
  %617 = vmatmul.mubr.bf16.gmra.mrb[0].mxu0 %v127
  %v618 = vpop.f32.mrb[0].mxu0
  %v619 = vadd.f32 0.0, %v618
  %v620 = vpop.f32.mrb[0].mxu0
  %v621 = vpop.f32.mrb[0].mxu0
  %v622 = vadd.f32 0.0, %v621
  %v623 = vpop.f32.mrb[0].mxu0
  %624 = vdwg.mxu0
  %625 = vst [vmem:[%s6] sm:$0xff] %v619
  %626 = vst [vmem:[%s6 + $0x8] sm:$0xff] %v622
  // Predicated region
  $region22: #{dronet_forward.12} parent=0 // pred_check
    _
  $region23: #{dronet_forward.12} parent=0 // pred_check_branch
    %628 = sbr.rel (0) target = $region25
  $region24: #{dronet_forward.12} parent=0 // pred_region
    _
  $region25: #{dronet_forward.12} parent=0 // pred_fallthru
    _
  // Predicated region
  $region26: #{dronet_forward.12} parent=0 // pred_check
    _
  $region27: #{dronet_forward.12} parent=0 // pred_check_branch
    %630 = sbr.rel (0) target = $region29
  $region28: #{dronet_forward.12} parent=0 // pred_region
    _
  $region29: #{dronet_forward.12} parent=0 // pred_fallthru
    _
  // Predicated region
  $region30: #{dronet_forward.12} parent=0 // pred_check
    _
  $region31: #{dronet_forward.12} parent=0 // pred_check_branch
    %632 = sbr.rel (0) target = $region33
  $region32: #{dronet_forward.12} parent=0 // pred_region
    _
  $region33: #{dronet_forward.12} parent=0 // pred_fallthru
    _
  // Predicated region
  $region34: #{dronet_forward.12} parent=0 // pred_check
    _
  $region35: #{dronet_forward.12} parent=0 // pred_check_branch
    %634 = sbr.rel (0) target = $region37
  $region36: #{dronet_forward.12} parent=0 // pred_region
    _
  $region37: #{dronet_forward.12} parent=0 // pred_fallthru
    _

// kernel: dronet_forward.13
$region0: #{dronet_forward.13}
  #allocation0 [shape = 'u32[]', space=smem, size = 0x4, offset = 0x4, fixed_abs, tag = 'smem constant byte address 0x4 - core index']
  #allocation1 [shape = 'u32[144,128]{1,0:T(1,128)}', space=vmem, size = 0x12000, scoped, tag = 'internal scratch']
  %s0 = inlined_call_operand.vmem [shape: bf16[16,1152], index: 0, kind: input, shape index: {}]
  %s1 = inlined_call_operand.vmem [shape: bf16[1152,128], index: 1, kind: input, shape index: {}]
  %s2 = inlined_call_operand.vmem [shape: f32[16,128], index: 2, kind: input, shape index: {}]
  %s3 = inlined_call_operand.vmem [shape: f32[1,128], index: 3, kind: input, shape index: {}]
  %s4 = inlined_call_operand.vmem [shape: f32[1,128], index: 4, kind: input, shape index: {}]
  %s5 = inlined_call_operand.vmem [shape: f32[16,128], index: 5, kind: output, shape index: {}]
  %s6 = sld [smem:[#allocation0]]
  $region30: #{dronet_forward.13} parent=0
    _
  %s8 = ssub.s32 1, %s6
  %s9 = scalar_select 0, %s8, %s6
  // Predicated region
  $region2: #{dronet_forward.13} parent=0 // pred_check
    _
  $region3: #{dronet_forward.13} parent=0 // pred_check_branch
    %11 = sbr.rel (0) target = $region5
  $region4: #{dronet_forward.13} parent=0 // pred_region
    _
  $region5: #{dronet_forward.13} parent=0 // pred_fallthru
    _
  // Predicated region
  $region6: #{dronet_forward.13} parent=0 // pred_check
    _
  $region7: #{dronet_forward.13} parent=0 // pred_check_branch
    %13 = sbr.rel (0) target = $region9
  $region8: #{dronet_forward.13} parent=0 // pred_region
    _
  $region9: #{dronet_forward.13} parent=0 // pred_fallthru
    _
  // Predicated region
  $region10: #{dronet_forward.13} parent=0 // pred_check
    _
  $region11: #{dronet_forward.13} parent=0 // pred_check_branch
    %15 = sbr.rel (0) target = $region13
  $region12: #{dronet_forward.13} parent=0 // pred_region
    _
  $region13: #{dronet_forward.13} parent=0 // pred_fallthru
    _
  // Predicated region
  $region14: #{dronet_forward.13} parent=0 // pred_check
    _
  $region15: #{dronet_forward.13} parent=0 // pred_check_branch
    %17 = sbr.rel (0) target = $region17
  $region16: #{dronet_forward.13} parent=0 // pred_region
    _
  $region17: #{dronet_forward.13} parent=0 // pred_fallthru
    _
  // Predicated region
  $region18: #{dronet_forward.13} parent=0 // pred_check
    _
  $region19: #{dronet_forward.13} parent=0 // pred_check_branch
    %19 = sbr.rel (0) target = $region21
  $region20: #{dronet_forward.13} parent=0 // pred_region
    _
  $region21: #{dronet_forward.13} parent=0 // pred_fallthru
    _
  %v21 = vld [vmem:[%s0] sm:$0xff]
  %v22 = vld [vmem:[%s0 + $0x8] sm:$0xff]
  %v23 = vld [vmem:[%s0 + $0x10] sm:$0xff]
  %v24 = vld [vmem:[%s0 + $0x18] sm:$0xff]
  %v25 = vld [vmem:[%s0 + $0x20] sm:$0xf]
  %v26 = vld [vmem:[%s0 + $0x24] sm:$0xff]
  %v27 = vld [vmem:[%s0 + $0x2c] sm:$0xff]
  %v28 = vld [vmem:[%s0 + $0x34] sm:$0xff]
  %v29 = vld [vmem:[%s0 + $0x3c] sm:$0xff]
  %v30 = vld [vmem:[%s0 + $0x44] sm:$0xf]
  %v31 = vld [vmem:[%s1] sm:$0xf]
  %v32 = vld [vmem:[%s1 + $0x4] sm:$0xf]
  %v33 = vld [vmem:[%s1 + $0x8] sm:$0xf]
  %v34 = vld [vmem:[%s1 + $0xc] sm:$0xf]
  %v35 = vld [vmem:[%s1 + $0x10] sm:$0xf]
  %v36 = vld [vmem:[%s1 + $0x14] sm:$0xf]
  %v37 = vld [vmem:[%s1 + $0x18] sm:$0xf]
  %v38 = vld [vmem:[%s1 + $0x1c] sm:$0xf]
  %v39 = vld [vmem:[%s1 + $0x20] sm:$0xf]
  %v40 = vld [vmem:[%s1 + $0x24] sm:$0xf]
  %v41 = vld [vmem:[%s1 + $0x28] sm:$0xf]
  %v42 = vld [vmem:[%s1 + $0x2c] sm:$0xf]
  %v43 = vld [vmem:[%s1 + $0x30] sm:$0xf]
  %v44 = vld [vmem:[%s1 + $0x34] sm:$0xf]
  %v45 = vld [vmem:[%s1 + $0x38] sm:$0xf]
  %v46 = vld [vmem:[%s1 + $0x3c] sm:$0xf]
  %v47 = vld [vmem:[%s1 + $0x40] sm:$0xf]
  %v48 = vld [vmem:[%s1 + $0x44] sm:$0xf]
  %v49 = vld [vmem:[%s1 + $0x48] sm:$0xf]
  %v50 = vld [vmem:[%s1 + $0x4c] sm:$0xf]
  %v51 = vld [vmem:[%s1 + $0x50] sm:$0xf]
  %v52 = vld [vmem:[%s1 + $0x54] sm:$0xf]
  %v53 = vld [vmem:[%s1 + $0x58] sm:$0xf]
  %v54 = vld [vmem:[%s1 + $0x5c] sm:$0xf]
  %v55 = vld [vmem:[%s1 + $0x60] sm:$0xf]
  %v56 = vld [vmem:[%s1 + $0x64] sm:$0xf]
  %v57 = vld [vmem:[%s1 + $0x68] sm:$0xf]
  %v58 = vld [vmem:[%s1 + $0x6c] sm:$0xf]
  %v59 = vld [vmem:[%s1 + $0x70] sm:$0xf]
  %v60 = vld [vmem:[%s1 + $0x74] sm:$0xf]
  %v61 = vld [vmem:[%s1 + $0x78] sm:$0xf]
  %v62 = vld [vmem:[%s1 + $0x7c] sm:$0xf]
  %v63 = vld [vmem:[%s1 + $0x80] sm:$0xf]
  %v64 = vld [vmem:[%s1 + $0x84] sm:$0xf]
  %v65 = vld [vmem:[%s1 + $0x88] sm:$0xf]
  %v66 = vld [vmem:[%s1 + $0x8c] sm:$0xf]
  %v67 = vld [vmem:[%s1 + $0x90] sm:$0xf]
  %v68 = vld [vmem:[%s1 + $0x94] sm:$0xf]
  %v69 = vld [vmem:[%s1 + $0x98] sm:$0xf]
  %v70 = vld [vmem:[%s1 + $0x9c] sm:$0xf]
  %v71 = vld [vmem:[%s1 + $0xa0] sm:$0xf]
  %v72 = vld [vmem:[%s1 + $0xa4] sm:$0xf]
  %v73 = vld [vmem:[%s1 + $0xa8] sm:$0xf]
  %v74 = vld [vmem:[%s1 + $0xac] sm:$0xf]
  %v75 = vld [vmem:[%s1 + $0xb0] sm:$0xf]
  %v76 = vld [vmem:[%s1 + $0xb4] sm:$0xf]
  %v77 = vld [vmem:[%s1 + $0xb8] sm:$0xf]
  %v78 = vld [vmem:[%s1 + $0xbc] sm:$0xf]
  %v79 = vld [vmem:[%s1 + $0xc0] sm:$0xf]
  %v80 = vld [vmem:[%s1 + $0xc4] sm:$0xf]
  %v81 = vld [vmem:[%s1 + $0xc8] sm:$0xf]
  %v82 = vld [vmem:[%s1 + $0xcc] sm:$0xf]
  %v83 = vld [vmem:[%s1 + $0xd0] sm:$0xf]
  %v84 = vld [vmem:[%s1 + $0xd4] sm:$0xf]
  %v85 = vld [vmem:[%s1 + $0xd8] sm:$0xf]
  %v86 = vld [vmem:[%s1 + $0xdc] sm:$0xf]
  %v87 = vld [vmem:[%s1 + $0xe0] sm:$0xf]
  %v88 = vld [vmem:[%s1 + $0xe4] sm:$0xf]
  %v89 = vld [vmem:[%s1 + $0xe8] sm:$0xf]
  %v90 = vld [vmem:[%s1 + $0xec] sm:$0xf]
  %v91 = vld [vmem:[%s1 + $0xf0] sm:$0xf]
  %v92 = vld [vmem:[%s1 + $0xf4] sm:$0xf]
  %v93 = vld [vmem:[%s1 + $0xf8] sm:$0xf]
  %v94 = vld [vmem:[%s1 + $0xfc] sm:$0xf]
  %v95 = vld [vmem:[%s1 + $0x100] sm:$0xf]
  %v96 = vld [vmem:[%s1 + $0x104] sm:$0xf]
  %v97 = vld [vmem:[%s1 + $0x108] sm:$0xf]
  %v98 = vld [vmem:[%s1 + $0x10c] sm:$0xf]
  %v99 = vld [vmem:[%s1 + $0x110] sm:$0xf]
  %v100 = vld [vmem:[%s1 + $0x114] sm:$0xf]
  %v101 = vld [vmem:[%s1 + $0x118] sm:$0xf]
  %v102 = vld [vmem:[%s1 + $0x11c] sm:$0xf]
  %v103 = vld [vmem:[%s1 + $0x120] sm:$0xf]
  %v104 = vld [vmem:[%s1 + $0x124] sm:$0xf]
  %v105 = vld [vmem:[%s1 + $0x128] sm:$0xf]
  %v106 = vld [vmem:[%s1 + $0x12c] sm:$0xf]
  %v107 = vld [vmem:[%s1 + $0x130] sm:$0xf]
  %v108 = vld [vmem:[%s1 + $0x134] sm:$0xf]
  %v109 = vld [vmem:[%s1 + $0x138] sm:$0xf]
  %v110 = vld [vmem:[%s1 + $0x13c] sm:$0xf]
  %v111 = vld [vmem:[%s1 + $0x140] sm:$0xf]
  %v112 = vld [vmem:[%s1 + $0x144] sm:$0xf]
  %v113 = vld [vmem:[%s1 + $0x148] sm:$0xf]
  %v114 = vld [vmem:[%s1 + $0x14c] sm:$0xf]
  %v115 = vld [vmem:[%s1 + $0x150] sm:$0xf]
  %v116 = vld [vmem:[%s1 + $0x154] sm:$0xf]
  %v117 = vld [vmem:[%s1 + $0x158] sm:$0xf]
  %v118 = vld [vmem:[%s1 + $0x15c] sm:$0xf]
  %v119 = vld [vmem:[%s1 + $0x160] sm:$0xf]
  %v120 = vld [vmem:[%s1 + $0x164] sm:$0xf]
  %v121 = vld [vmem:[%s1 + $0x168] sm:$0xf]
  %v122 = vld [vmem:[%s1 + $0x16c] sm:$0xf]
  %v123 = vld [vmem:[%s1 + $0x170] sm:$0xf]
  %v124 = vld [vmem:[%s1 + $0x174] sm:$0xf]
  %v125 = vld [vmem:[%s1 + $0x178] sm:$0xf]
  %v126 = vld [vmem:[%s1 + $0x17c] sm:$0xf]
  %v127 = vld [vmem:[%s1 + $0x180] sm:$0xf]
  %v128 = vld [vmem:[%s1 + $0x184] sm:$0xf]
  %v129 = vld [vmem:[%s1 + $0x188] sm:$0xf]
  %v130 = vld [vmem:[%s1 + $0x18c] sm:$0xf]
  %v131 = vld [vmem:[%s1 + $0x190] sm:$0xf]
  %v132 = vld [vmem:[%s1 + $0x194] sm:$0xf]
  %v133 = vld [vmem:[%s1 + $0x198] sm:$0xf]
  %v134 = vld [vmem:[%s1 + $0x19c] sm:$0xf]
  %v135 = vld [vmem:[%s1 + $0x1a0] sm:$0xf]
  %v136 = vld [vmem:[%s1 + $0x1a4] sm:$0xf]
  %v137 = vld [vmem:[%s1 + $0x1a8] sm:$0xf]
  %v138 = vld [vmem:[%s1 + $0x1ac] sm:$0xf]
  %v139 = vld [vmem:[%s1 + $0x1b0] sm:$0xf]
  %v140 = vld [vmem:[%s1 + $0x1b4] sm:$0xf]
  %v141 = vld [vmem:[%s1 + $0x1b8] sm:$0xf]
  %v142 = vld [vmem:[%s1 + $0x1bc] sm:$0xf]
  %v143 = vld [vmem:[%s1 + $0x1c0] sm:$0xf]
  %v144 = vld [vmem:[%s1 + $0x1c4] sm:$0xf]
  %v145 = vld [vmem:[%s1 + $0x1c8] sm:$0xf]
  %v146 = vld [vmem:[%s1 + $0x1cc] sm:$0xf]
  %v147 = vld [vmem:[%s1 + $0x1d0] sm:$0xf]
  %v148 = vld [vmem:[%s1 + $0x1d4] sm:$0xf]
  %v149 = vld [vmem:[%s1 + $0x1d8] sm:$0xf]
  %v150 = vld [vmem:[%s1 + $0x1dc] sm:$0xf]
  %v151 = vld [vmem:[%s1 + $0x1e0] sm:$0xf]
  %v152 = vld [vmem:[%s1 + $0x1e4] sm:$0xf]
  %v153 = vld [vmem:[%s1 + $0x1e8] sm:$0xf]
  %v154 = vld [vmem:[%s1 + $0x1ec] sm:$0xf]
  %v155 = vld [vmem:[%s1 + $0x1f0] sm:$0xf]
  %v156 = vld [vmem:[%s1 + $0x1f4] sm:$0xf]
  %v157 = vld [vmem:[%s1 + $0x1f8] sm:$0xf]
  %v158 = vld [vmem:[%s1 + $0x1fc] sm:$0xf]
  %v159 = vld [vmem:[%s1 + $0x200] sm:$0xf]
  %v160 = vld [vmem:[%s1 + $0x204] sm:$0xf]
  %v161 = vld [vmem:[%s1 + $0x208] sm:$0xf]
  %v162 = vld [vmem:[%s1 + $0x20c] sm:$0xf]
  %v163 = vld [vmem:[%s1 + $0x210] sm:$0xf]
  %v164 = vld [vmem:[%s1 + $0x214] sm:$0xf]
  %v165 = vld [vmem:[%s1 + $0x218] sm:$0xf]
  %v166 = vld [vmem:[%s1 + $0x21c] sm:$0xf]
  %v167 = vld [vmem:[%s1 + $0x220] sm:$0xf]
  %v168 = vld [vmem:[%s1 + $0x224] sm:$0xf]
  %v169 = vld [vmem:[%s1 + $0x228] sm:$0xf]
  %v170 = vld [vmem:[%s1 + $0x22c] sm:$0xf]
  %v171 = vld [vmem:[%s1 + $0x230] sm:$0xf]
  %v172 = vld [vmem:[%s1 + $0x234] sm:$0xf]
  %v173 = vld [vmem:[%s1 + $0x238] sm:$0xf]
  %v174 = vld [vmem:[%s1 + $0x23c] sm:$0xf]
  %v175 = vld [vmem:[%s2] sm:$0xff]
  %v176 = vld [vmem:[%s2 + $0x8] sm:$0xff]
  %v187 = vunpack.c.l.b16 %v21
  %v188 = vunpack.c.h.b16 %v21
  %v189 = vunpack.c.l.b16 %v22
  %v190 = vunpack.c.h.b16 %v22
  %v191 = vunpack.c.l.b16 %v23
  %v192 = vunpack.c.h.b16 %v23
  %v193 = vunpack.c.l.b16 %v24
  %v194 = vunpack.c.h.b16 %v24
  %v195 = vunpack.c.l.b16 %v25
  %v196 = vunpack.c.l.b16 %v26
  %v197 = vunpack.c.h.b16 %v26
  %v198 = vunpack.c.l.b16 %v27
  %v199 = vunpack.c.h.b16 %v27
  %v200 = vunpack.c.l.b16 %v28
  %v201 = vunpack.c.h.b16 %v28
  %v202 = vunpack.c.l.b16 %v29
  %v203 = vunpack.c.h.b16 %v29
  %v204 = vunpack.c.l.b16 %v30
  %v205 = vpack.c.b16 %v196, %v187
  %v206 = vpack.c.b16 %v197, %v188
  %v207 = vpack.c.b16 %v198, %v189
  %v208 = vpack.c.b16 %v199, %v190
  %v209 = vpack.c.b16 %v200, %v191
  %v210 = vpack.c.b16 %v201, %v192
  %v211 = vpack.c.b16 %v202, %v193
  %v212 = vpack.c.b16 %v203, %v194
  %v213 = vpack.c.b16 %v204, %v195
  %v367 = vunpack.c.l.b16 %v31
  %v368 = vunpack.c.l.b16 %v32
  %v369 = vunpack.c.l.b16 %v33
  %v370 = vunpack.c.l.b16 %v34
  %v371 = vunpack.c.l.b16 %v35
  %v372 = vunpack.c.l.b16 %v36
  %v373 = vunpack.c.l.b16 %v37
  %v374 = vunpack.c.l.b16 %v38
  %v375 = vunpack.c.l.b16 %v39
  %v376 = vunpack.c.l.b16 %v40
  %v377 = vunpack.c.l.b16 %v41
  %v378 = vunpack.c.l.b16 %v42
  %v379 = vunpack.c.l.b16 %v43
  %v380 = vunpack.c.l.b16 %v44
  %v381 = vunpack.c.l.b16 %v45
  %v382 = vunpack.c.l.b16 %v46
  %v383 = vunpack.c.l.b16 %v47
  %v384 = vunpack.c.l.b16 %v48
  %v385 = vunpack.c.l.b16 %v49
  %v386 = vunpack.c.l.b16 %v50
  %v387 = vunpack.c.l.b16 %v51
  %v388 = vunpack.c.l.b16 %v52
  %v389 = vunpack.c.l.b16 %v53
  %v390 = vunpack.c.l.b16 %v54
  %v391 = vunpack.c.l.b16 %v55
  %v392 = vunpack.c.l.b16 %v56
  %v393 = vunpack.c.l.b16 %v57
  %v394 = vunpack.c.l.b16 %v58
  %v395 = vunpack.c.l.b16 %v59
  %v396 = vunpack.c.l.b16 %v60
  %v397 = vunpack.c.l.b16 %v61
  %v398 = vunpack.c.l.b16 %v62
  %v399 = vunpack.c.l.b16 %v63
  %v400 = vunpack.c.l.b16 %v64
  %v401 = vunpack.c.l.b16 %v65
  %v402 = vunpack.c.l.b16 %v66
  %v403 = vunpack.c.l.b16 %v67
  %v404 = vunpack.c.l.b16 %v68
  %v405 = vunpack.c.l.b16 %v69
  %v406 = vunpack.c.l.b16 %v70
  %v407 = vunpack.c.l.b16 %v71
  %v408 = vunpack.c.l.b16 %v72
  %v409 = vunpack.c.l.b16 %v73
  %v410 = vunpack.c.l.b16 %v74
  %v411 = vunpack.c.l.b16 %v75
  %v412 = vunpack.c.l.b16 %v76
  %v413 = vunpack.c.l.b16 %v77
  %v414 = vunpack.c.l.b16 %v78
  %v415 = vunpack.c.l.b16 %v79
  %v416 = vunpack.c.l.b16 %v80
  %v417 = vunpack.c.l.b16 %v81
  %v418 = vunpack.c.l.b16 %v82
  %v419 = vunpack.c.l.b16 %v83
  %v420 = vunpack.c.l.b16 %v84
  %v421 = vunpack.c.l.b16 %v85
  %v422 = vunpack.c.l.b16 %v86
  %v423 = vunpack.c.l.b16 %v87
  %v424 = vunpack.c.l.b16 %v88
  %v425 = vunpack.c.l.b16 %v89
  %v426 = vunpack.c.l.b16 %v90
  %v427 = vunpack.c.l.b16 %v91
  %v428 = vunpack.c.l.b16 %v92
  %v429 = vunpack.c.l.b16 %v93
  %v430 = vunpack.c.l.b16 %v94
  %v431 = vunpack.c.l.b16 %v95
  %v432 = vunpack.c.l.b16 %v96
  %v433 = vunpack.c.l.b16 %v97
  %v434 = vunpack.c.l.b16 %v98
  %v435 = vunpack.c.l.b16 %v99
  %v436 = vunpack.c.l.b16 %v100
  %v437 = vunpack.c.l.b16 %v101
  %v438 = vunpack.c.l.b16 %v102
  %v439 = vunpack.c.l.b16 %v103
  %v440 = vunpack.c.l.b16 %v104
  %v441 = vunpack.c.l.b16 %v105
  %v442 = vunpack.c.l.b16 %v106
  %v443 = vunpack.c.l.b16 %v107
  %v444 = vunpack.c.l.b16 %v108
  %v445 = vunpack.c.l.b16 %v109
  %v446 = vunpack.c.l.b16 %v110
  %v447 = vunpack.c.l.b16 %v111
  %v448 = vunpack.c.l.b16 %v112
  %v449 = vunpack.c.l.b16 %v113
  %v450 = vunpack.c.l.b16 %v114
  %v451 = vunpack.c.l.b16 %v115
  %v452 = vunpack.c.l.b16 %v116
  %v453 = vunpack.c.l.b16 %v117
  %v454 = vunpack.c.l.b16 %v118
  %v455 = vunpack.c.l.b16 %v119
  %v456 = vunpack.c.l.b16 %v120
  %v457 = vunpack.c.l.b16 %v121
  %v458 = vunpack.c.l.b16 %v122
  %v459 = vunpack.c.l.b16 %v123
  %v460 = vunpack.c.l.b16 %v124
  %v461 = vunpack.c.l.b16 %v125
  %v462 = vunpack.c.l.b16 %v126
  %v463 = vunpack.c.l.b16 %v127
  %v464 = vunpack.c.l.b16 %v128
  %v465 = vunpack.c.l.b16 %v129
  %v466 = vunpack.c.l.b16 %v130
  %v467 = vunpack.c.l.b16 %v131
  %v468 = vunpack.c.l.b16 %v132
  %v469 = vunpack.c.l.b16 %v133
  %v470 = vunpack.c.l.b16 %v134
  %v471 = vunpack.c.l.b16 %v135
  %v472 = vunpack.c.l.b16 %v136
  %v473 = vunpack.c.l.b16 %v137
  %v474 = vunpack.c.l.b16 %v138
  %v475 = vunpack.c.l.b16 %v139
  %v476 = vunpack.c.l.b16 %v140
  %v477 = vunpack.c.l.b16 %v141
  %v478 = vunpack.c.l.b16 %v142
  %v479 = vunpack.c.l.b16 %v143
  %v480 = vunpack.c.l.b16 %v144
  %v481 = vunpack.c.l.b16 %v145
  %v482 = vunpack.c.l.b16 %v146
  %v483 = vunpack.c.l.b16 %v147
  %v484 = vunpack.c.l.b16 %v148
  %v485 = vunpack.c.l.b16 %v149
  %v486 = vunpack.c.l.b16 %v150
  %v487 = vunpack.c.l.b16 %v151
  %v488 = vunpack.c.l.b16 %v152
  %v489 = vunpack.c.l.b16 %v153
  %v490 = vunpack.c.l.b16 %v154
  %v491 = vunpack.c.l.b16 %v155
  %v492 = vunpack.c.l.b16 %v156
  %v493 = vunpack.c.l.b16 %v157
  %v494 = vunpack.c.l.b16 %v158
  %v495 = vunpack.c.l.b16 %v159
  %v496 = vunpack.c.l.b16 %v160
  %v497 = vunpack.c.l.b16 %v161
  %v498 = vunpack.c.l.b16 %v162
  %v499 = vunpack.c.l.b16 %v163
  %v500 = vunpack.c.l.b16 %v164
  %v501 = vunpack.c.l.b16 %v165
  %v502 = vunpack.c.l.b16 %v166
  %v503 = vunpack.c.l.b16 %v167
  %v504 = vunpack.c.l.b16 %v168
  %v505 = vunpack.c.l.b16 %v169
  %v506 = vunpack.c.l.b16 %v170
  %v507 = vunpack.c.l.b16 %v171
  %v508 = vunpack.c.l.b16 %v172
  %v509 = vunpack.c.l.b16 %v173
  %v510 = vunpack.c.l.b16 %v174
  %v511 = vpack.c.b16 %v368, %v367
  %v512 = vpack.c.b16 %v370, %v369
  %v513 = vpack.c.b16 %v372, %v371
  %v514 = vpack.c.b16 %v374, %v373
  %v515 = vpack.c.b16 %v376, %v375
  %v516 = vpack.c.b16 %v378, %v377
  %v517 = vpack.c.b16 %v380, %v379
  %v518 = vpack.c.b16 %v382, %v381
  %v519 = vpack.c.b16 %v384, %v383
  %v520 = vpack.c.b16 %v386, %v385
  %v521 = vpack.c.b16 %v388, %v387
  %v522 = vpack.c.b16 %v390, %v389
  %v523 = vpack.c.b16 %v392, %v391
  %v524 = vpack.c.b16 %v394, %v393
  %v525 = vpack.c.b16 %v396, %v395
  %v526 = vpack.c.b16 %v398, %v397
  %v527 = vpack.c.b16 %v400, %v399
  %v528 = vpack.c.b16 %v402, %v401
  %v529 = vpack.c.b16 %v404, %v403
  %v530 = vpack.c.b16 %v406, %v405
  %v531 = vpack.c.b16 %v408, %v407
  %v532 = vpack.c.b16 %v410, %v409
  %v533 = vpack.c.b16 %v412, %v411
  %v534 = vpack.c.b16 %v414, %v413
  %v535 = vpack.c.b16 %v416, %v415
  %v536 = vpack.c.b16 %v418, %v417
  %v537 = vpack.c.b16 %v420, %v419
  %v538 = vpack.c.b16 %v422, %v421
  %v539 = vpack.c.b16 %v424, %v423
  %v540 = vpack.c.b16 %v426, %v425
  %v541 = vpack.c.b16 %v428, %v427
  %v542 = vpack.c.b16 %v430, %v429
  %v543 = vpack.c.b16 %v432, %v431
  %v544 = vpack.c.b16 %v434, %v433
  %v545 = vpack.c.b16 %v436, %v435
  %v546 = vpack.c.b16 %v438, %v437
  %v547 = vpack.c.b16 %v440, %v439
  %v548 = vpack.c.b16 %v442, %v441
  %v549 = vpack.c.b16 %v444, %v443
  %v550 = vpack.c.b16 %v446, %v445
  %v551 = vpack.c.b16 %v448, %v447
  %v552 = vpack.c.b16 %v450, %v449
  %v553 = vpack.c.b16 %v452, %v451
  %v554 = vpack.c.b16 %v454, %v453
  %v555 = vpack.c.b16 %v456, %v455
  %v556 = vpack.c.b16 %v458, %v457
  %v557 = vpack.c.b16 %v460, %v459
  %v558 = vpack.c.b16 %v462, %v461
  %v559 = vpack.c.b16 %v464, %v463
  %v560 = vpack.c.b16 %v466, %v465
  %v561 = vpack.c.b16 %v468, %v467
  %v562 = vpack.c.b16 %v470, %v469
  %v563 = vpack.c.b16 %v472, %v471
  %v564 = vpack.c.b16 %v474, %v473
  %v565 = vpack.c.b16 %v476, %v475
  %v566 = vpack.c.b16 %v478, %v477
  %v567 = vpack.c.b16 %v480, %v479
  %v568 = vpack.c.b16 %v482, %v481
  %v569 = vpack.c.b16 %v484, %v483
  %v570 = vpack.c.b16 %v486, %v485
  %v571 = vpack.c.b16 %v488, %v487
  %v572 = vpack.c.b16 %v490, %v489
  %v573 = vpack.c.b16 %v492, %v491
  %v574 = vpack.c.b16 %v494, %v493
  %v575 = vpack.c.b16 %v496, %v495
  %v576 = vpack.c.b16 %v498, %v497
  %v577 = vpack.c.b16 %v500, %v499
  %v578 = vpack.c.b16 %v502, %v501
  %v579 = vpack.c.b16 %v504, %v503
  %v580 = vpack.c.b16 %v506, %v505
  %v581 = vpack.c.b16 %v508, %v507
  %v582 = vpack.c.b16 %v510, %v509
  %655 = vmatprep.subr.bf16.mxu0 0
  %656 = vmatpush1.bf16.msra.mxu0 %v511
  %657 = vmatprep.subr.bf16.mxu0 0
  %658 = vmatpush1.bf16.msra.mxu0 %v512
  %659 = vmatprep.subr.bf16.mxu0 0
  %660 = vmatpush1.bf16.msra.mxu0 %v513
  %661 = vmatprep.subr.bf16.mxu0 0
  %662 = vmatpush1.bf16.msra.mxu0 %v514
  %663 = vmatprep.subr.bf16.mxu0 0
  %664 = vmatpush1.bf16.msra.mxu0 %v515
  %665 = vmatprep.subr.bf16.mxu0 0
  %666 = vmatpush1.bf16.msra.mxu0 %v516
  %667 = vmatprep.subr.bf16.mxu0 0
  %668 = vmatpush1.bf16.msra.mxu0 %v517
  %669 = vmatprep.subr.bf16.mxu0 0
  %670 = vmatpush1.bf16.msra.mxu0 %v518
  %671 = vmatprep.subr.bf16.mxu0 0
  %672 = vmatpush1.bf16.msra.mxu0 %v519
  %673 = vmatprep.subr.bf16.mxu0 0
  %674 = vmatpush1.bf16.msra.mxu0 %v520
  %675 = vmatprep.subr.bf16.mxu0 0
  %676 = vmatpush1.bf16.msra.mxu0 %v521
  %677 = vmatprep.subr.bf16.mxu0 0
  %678 = vmatpush1.bf16.msra.mxu0 %v522
  %679 = vmatprep.subr.bf16.mxu0 0
  %680 = vmatpush1.bf16.msra.mxu0 %v523
  %681 = vmatprep.subr.bf16.mxu0 0
  %682 = vmatpush1.bf16.msra.mxu0 %v524
  %683 = vmatprep.subr.bf16.mxu0 0
  %684 = vmatpush1.bf16.msra.mxu0 %v525
  %685 = vmatprep.subr.bf16.mxu0 0
  %686 = vmatpush1.bf16.msra.mxu0 %v526
  %687 = vmatprep.mubr.bf16.mxu0 %v206
  %688 = vmatmul.mubr.bf16.gmra.mrb[0].mxu0 %v205
  %v689 = vpop.f32.mrb[0].mxu0
  %v690 = vadd.f32 %v175, %v689
  %v691 = vpop.f32.mrb[0].mxu0
  %v692 = vpop.f32.mrb[0].mxu0
  %v693 = vadd.f32 %v176, %v692
  %v694 = vpop.f32.mrb[0].mxu0
  %695 = vdwg.mxu0
  %696 = vmatprep.subr.bf16.mxu0 0
  %697 = vmatpush1.bf16.msra.mxu0 %v527
  %698 = vmatprep.subr.bf16.mxu0 0
  %699 = vmatpush1.bf16.msra.mxu0 %v528
  %700 = vmatprep.subr.bf16.mxu0 0
  %701 = vmatpush1.bf16.msra.mxu0 %v529
  %702 = vmatprep.subr.bf16.mxu0 0
  %703 = vmatpush1.bf16.msra.mxu0 %v530
  %704 = vmatprep.subr.bf16.mxu0 0
  %705 = vmatpush1.bf16.msra.mxu0 %v531
  %706 = vmatprep.subr.bf16.mxu0 0
  %707 = vmatpush1.bf16.msra.mxu0 %v532
  %708 = vmatprep.subr.bf16.mxu0 0
  %709 = vmatpush1.bf16.msra.mxu0 %v533
  %710 = vmatprep.subr.bf16.mxu0 0
  %711 = vmatpush1.bf16.msra.mxu0 %v534
  %712 = vmatprep.subr.bf16.mxu0 0
  %713 = vmatpush1.bf16.msra.mxu0 %v535
  %714 = vmatprep.subr.bf16.mxu0 0
  %715 = vmatpush1.bf16.msra.mxu0 %v536
  %716 = vmatprep.subr.bf16.mxu0 0
  %717 = vmatpush1.bf16.msra.mxu0 %v537
  %718 = vmatprep.subr.bf16.mxu0 0
  %719 = vmatpush1.bf16.msra.mxu0 %v538
  %720 = vmatprep.subr.bf16.mxu0 0
  %721 = vmatpush1.bf16.msra.mxu0 %v539
  %722 = vmatprep.subr.bf16.mxu0 0
  %723 = vmatpush1.bf16.msra.mxu0 %v540
  %724 = vmatprep.subr.bf16.mxu0 0
  %725 = vmatpush1.bf16.msra.mxu0 %v541
  %726 = vmatprep.subr.bf16.mxu0 0
  %727 = vmatpush1.bf16.msra.mxu0 %v542
  %728 = vmatprep.mubr.bf16.mxu0 %v208
  %729 = vmatmul.mubr.bf16.gmra.mrb[0].mxu0 %v207
  %v730 = vpop.f32.mrb[0].mxu0
  %v731 = vadd.f32 %v690, %v730
  %v732 = vpop.f32.mrb[0].mxu0
  %v733 = vpop.f32.mrb[0].mxu0
  %v734 = vadd.f32 %v693, %v733
  %v735 = vpop.f32.mrb[0].mxu0
  %736 = vdwg.mxu0
  %737 = vmatprep.subr.bf16.mxu0 0
  %738 = vmatpush1.bf16.msra.mxu0 %v543
  %739 = vmatprep.subr.bf16.mxu0 0
  %740 = vmatpush1.bf16.msra.mxu0 %v544
  %741 = vmatprep.subr.bf16.mxu0 0
  %742 = vmatpush1.bf16.msra.mxu0 %v545
  %743 = vmatprep.subr.bf16.mxu0 0
  %744 = vmatpush1.bf16.msra.mxu0 %v546
  %745 = vmatprep.subr.bf16.mxu0 0
  %746 = vmatpush1.bf16.msra.mxu0 %v547
  %747 = vmatprep.subr.bf16.mxu0 0
  %748 = vmatpush1.bf16.msra.mxu0 %v548
  %749 = vmatprep.subr.bf16.mxu0 0
  %750 = vmatpush1.bf16.msra.mxu0 %v549
  %751 = vmatprep.subr.bf16.mxu0 0
  %752 = vmatpush1.bf16.msra.mxu0 %v550
  %753 = vmatprep.subr.bf16.mxu0 0
  %754 = vmatpush1.bf16.msra.mxu0 %v551
  %755 = vmatprep.subr.bf16.mxu0 0
  %756 = vmatpush1.bf16.msra.mxu0 %v552
  %757 = vmatprep.subr.bf16.mxu0 0
  %758 = vmatpush1.bf16.msra.mxu0 %v553
  %759 = vmatprep.subr.bf16.mxu0 0
  %760 = vmatpush1.bf16.msra.mxu0 %v554
  %761 = vmatprep.subr.bf16.mxu0 0
  %762 = vmatpush1.bf16.msra.mxu0 %v555
  %763 = vmatprep.subr.bf16.mxu0 0
  %764 = vmatpush1.bf16.msra.mxu0 %v556
  %765 = vmatprep.subr.bf16.mxu0 0
  %766 = vmatpush1.bf16.msra.mxu0 %v557
  %767 = vmatprep.subr.bf16.mxu0 0
  %768 = vmatpush1.bf16.msra.mxu0 %v558
  %769 = vmatprep.mubr.bf16.mxu0 %v210
  %770 = vmatmul.mubr.bf16.gmra.mrb[0].mxu0 %v209
  %v771 = vpop.f32.mrb[0].mxu0
  %v772 = vadd.f32 %v731, %v771
  %v773 = vpop.f32.mrb[0].mxu0
  %v774 = vpop.f32.mrb[0].mxu0
  %v775 = vadd.f32 %v734, %v774
  %v776 = vpop.f32.mrb[0].mxu0
  %777 = vdwg.mxu0
  %778 = vmatprep.subr.bf16.mxu0 0
  %779 = vmatpush1.bf16.msra.mxu0 %v559
  %780 = vmatprep.subr.bf16.mxu0 0
  %781 = vmatpush1.bf16.msra.mxu0 %v560
  %782 = vmatprep.subr.bf16.mxu0 0
  %783 = vmatpush1.bf16.msra.mxu0 %v561
  %784 = vmatprep.subr.bf16.mxu0 0
  %785 = vmatpush1.bf16.msra.mxu0 %v562
  %786 = vmatprep.subr.bf16.mxu0 0
  %787 = vmatpush1.bf16.msra.mxu0 %v563
  %788 = vmatprep.subr.bf16.mxu0 0
  %789 = vmatpush1.bf16.msra.mxu0 %v564
  %790 = vmatprep.subr.bf16.mxu0 0
  %791 = vmatpush1.bf16.msra.mxu0 %v565
  %792 = vmatprep.subr.bf16.mxu0 0
  %793 = vmatpush1.bf16.msra.mxu0 %v566
  %794 = vmatprep.subr.bf16.mxu0 0
  %795 = vmatpush1.bf16.msra.mxu0 %v567
  %796 = vmatprep.subr.bf16.mxu0 0
  %797 = vmatpush1.bf16.msra.mxu0 %v568
  %798 = vmatprep.subr.bf16.mxu0 0
  %799 = vmatpush1.bf16.msra.mxu0 %v569
  %800 = vmatprep.subr.bf16.mxu0 0
  %801 = vmatpush1.bf16.msra.mxu0 %v570
  %802 = vmatprep.subr.bf16.mxu0 0
  %803 = vmatpush1.bf16.msra.mxu0 %v571
  %804 = vmatprep.subr.bf16.mxu0 0
  %805 = vmatpush1.bf16.msra.mxu0 %v572
  %806 = vmatprep.subr.bf16.mxu0 0
  %807 = vmatpush1.bf16.msra.mxu0 %v573
  %808 = vmatprep.subr.bf16.mxu0 0
  %809 = vmatpush1.bf16.msra.mxu0 %v574
  %810 = vmatprep.mubr.bf16.mxu0 %v212
  %811 = vmatmul.mubr.bf16.gmra.mrb[0].mxu0 %v211
  %v812 = vpop.f32.mrb[0].mxu0
  %v813 = vadd.f32 %v772, %v812
  %v814 = vpop.f32.mrb[0].mxu0
  %v815 = vpop.f32.mrb[0].mxu0
  %v816 = vadd.f32 %v775, %v815
  %v817 = vpop.f32.mrb[0].mxu0
  %818 = vdwg.mxu0
  %819 = vmatprep.subr.bf16.mxu0 0
  %820 = vmatpush1.bf16.msra.mxu0 %v575
  %821 = vmatprep.subr.bf16.mxu0 0
  %822 = vmatpush1.bf16.msra.mxu0 %v576
  %823 = vmatprep.subr.bf16.mxu0 0
  %824 = vmatpush1.bf16.msra.mxu0 %v577
  %825 = vmatprep.subr.bf16.mxu0 0
  %826 = vmatpush1.bf16.msra.mxu0 %v578
  %827 = vmatprep.subr.bf16.mxu0 0
  %828 = vmatpush1.bf16.msra.mxu0 %v579
  %829 = vmatprep.subr.bf16.mxu0 0
  %830 = vmatpush1.bf16.msra.mxu0 %v580
  %831 = vmatprep.subr.bf16.mxu0 0
  %832 = vmatpush1.bf16.msra.mxu0 %v581
  %833 = vmatprep.subr.bf16.mxu0 0
  %834 = vmatpush1.bf16.msra.mxu0 %v582
  %835 = vmatprep.subr.bf16.mxu0 0
  %836 = vmatpush1.bf16.msra.mxu0 0
  %837 = vmatprep.subr.bf16.mxu0 0
  %838 = vmatpush1.bf16.msra.mxu0 0
  %839 = vmatprep.subr.bf16.mxu0 0
  %840 = vmatpush1.bf16.msra.mxu0 0
  %841 = vmatprep.subr.bf16.mxu0 0
  %842 = vmatpush1.bf16.msra.mxu0 0
  %843 = vmatprep.subr.bf16.mxu0 0
  %844 = vmatpush1.bf16.msra.mxu0 0
  %845 = vmatprep.subr.bf16.mxu0 0
  %846 = vmatpush1.bf16.msra.mxu0 0
  %847 = vmatprep.subr.bf16.mxu0 0
  %848 = vmatpush1.bf16.msra.mxu0 0
  %849 = vmatprep.subr.bf16.mxu0 0
  %850 = vmatpush1.bf16.msra.mxu0 0
  %851 = vmatprep.mubr.bf16.mxu0 0
  %852 = vmatmul.mubr.bf16.gmra.mrb[0].mxu0 %v213
  %v853 = vpop.f32.mrb[0].mxu0
  %v854 = vadd.f32 %v813, %v853
  %v855 = vpop.f32.mrb[0].mxu0
  %v856 = vpop.f32.mrb[0].mxu0
  %v857 = vadd.f32 %v816, %v856
  %v858 = vpop.f32.mrb[0].mxu0
  %859 = vdwg.mxu0
  %v860 = vld [vmem:[%s3] sm:$0x1]
  %v862 = vlaneseq
  %v863 = vshrl.u32 %v862, 7
  %v864 = vsub.s32 0, %v863
  %v865 = vrot.slane %v860, %v864
  %v867 = vmul.f32 %v854, %v865
  %v868 = vmul.f32 %v857, %v865
  %v869 = vld [vmem:[%s4] sm:$0x1]
  %v871 = vlaneseq
  %v872 = vshrl.u32 %v871, 7
  %v873 = vsub.s32 0, %v872
  %v874 = vrot.slane %v869, %v873
  %v876 = vadd.f32 %v867, %v874
  %v877 = vadd.f32 %v868, %v874
  %v878 = vmax.f32 %v876, 0.0
  %v879 = vmax.f32 %v877, 0.0
  %880 = vst [vmem:[%s5] sm:$0xff] %v878
  %881 = vst [vmem:[%s5 + $0x8] sm:$0xff] %v879
  // Predicated region
  $region22: #{dronet_forward.13} parent=0 // pred_check
    _
  $region23: #{dronet_forward.13} parent=0 // pred_check_branch
    %883 = sbr.rel (0) target = $region25
  $region24: #{dronet_forward.13} parent=0 // pred_region
    _
  $region25: #{dronet_forward.13} parent=0 // pred_fallthru
    _
  // Predicated region
  $region26: #{dronet_forward.13} parent=0 // pred_check
    _
  $region27: #{dronet_forward.13} parent=0 // pred_check_branch
    %885 = sbr.rel (0) target = $region29
  $region28: #{dronet_forward.13} parent=0 // pred_region
    _
  $region29: #{dronet_forward.13} parent=0 // pred_fallthru
    _

</llo_original>
